<compile_context>
chip_gen: v6e
topology: v6e:2x2x1
jax: 0.10.0
libtpu: 0.0.40
codegen_flags: <defaults>
</compile_context>

<pallas_src>
import jax
import jax.numpy as jnp
from jax.experimental import pallas as pl
from jax.experimental.pallas import tpu as pltpu


def _decoder_rollout_kernel(
    h0_ref, ly_ref, enc_ref,
    watt_h_ref, w_ih_ref, w_hh_ref, b_i_ref, b_hn_ref,
    hid_ref,
    h_scr,
):
    tc = pl.program_id(1)
    n_steps = ly_ref.shape[0]          # Tc (static)
    H = w_hh_ref.shape[0]

    # (Re)initialize the VMEM-carried hidden state at the start of each batch
    # block's rollout (time-chunk 0).
    @pl.when(tc == 0)
    def _():
        h_scr[...] = h0_ref[...].astype(jnp.float32)

    enc = enc_ref[...]                 # (Bb, S, H)   (f32 or bf16)
    watt_h = watt_h_ref[...]           # (H, S)
    w_ih = w_ih_ref[...]               # (H, 3H)  columns r|z|n
    w_hh = w_hh_ref[...]               # (H, 3H)
    b_i = b_i_ref[...]                 # (1, 3H)  f32
    b_hn = b_hn_ref[...]               # (1, H)   f32
    mm_dtype = watt_h.dtype

    def step(i, h):
        # ---- attention logits: h-dependent part in-kernel; y part hoisted ----
        logits = (
            jnp.dot(h.astype(mm_dtype), watt_h, preferred_element_type=jnp.float32)
            + ly_ref[i]
        )                                                        # (Bb, S)
        m = jnp.max(logits, axis=-1, keepdims=True)
        e = jnp.exp(logits - m)
        aw = e / jnp.sum(e, axis=-1, keepdims=True)              # exact softmax

        # ---- attention combine: (Bb,1,S) @ (Bb,S,H) on the MXU ----
        # TODO(synk): for tiny B this is an M=1 batched matmul; a VPU
        # broadcast-multiply-accumulate may win — verify via bundle dump.
        comb3 = jax.lax.dot_general(
            aw.astype(mm_dtype)[:, None, :], enc,
            dimension_numbers=(((2,), (1,)), ((0,), (0,))),
            preferred_element_type=jnp.float32,
        )                                                        # (Bb, 1, H)
        comb = comb3[:, 0, :]                                    # (Bb, H)

        # ---- GRU cell: two packed GEMMs, gates r|z|n sliced from (Bb, 3H) ----
        gi = jnp.dot(comb.astype(mm_dtype), w_ih,
                     preferred_element_type=jnp.float32) + b_i
        gh = jnp.dot(h.astype(mm_dtype), w_hh,
                     preferred_element_type=jnp.float32)
        r = jax.nn.sigmoid(gi[:, 0:H] + gh[:, 0:H])
        z = jax.nn.sigmoid(gi[:, H:2 * H] + gh[:, H:2 * H])
        n = jnp.tanh(gi[:, 2 * H:3 * H] + r * (gh[:, 2 * H:3 * H] + b_hn))
        h_new = (1.0 - z) * n + z * h                            # (Bb, H) f32

        hid_ref[i] = h_new        # dropout = identity (eval mode)
        return h_new

    h_final = jax.lax.fori_loop(0, n_steps, step, h_scr[...], unroll=True)
    h_scr[...] = h_final


def attention_decoder_rollout(encoder_output, prev_hidden, y_seq, kp, *,
                              time_chunk=8, use_bf16=False):
    """Fused T-step decode: one pallas_call, hidden state carried in VMEM."""
    B, S, H = encoder_output.shape
    T, _, Fd = y_seq.shape

    # Hoisted out of the serial recurrence: y-dependent attention term.
    logits_y = (y_seq.reshape(T * B, Fd) @ kp["watt_y"]
                + kp["batt"]).reshape(T, B, S).astype(jnp.float32)

    # Time chunking: Tc steps per grid iteration.
    Tc = max(1, min(time_chunk, T))
    n_tc = pl.cdiv(T, Tc)
    Tp = n_tc * Tc
    if Tp != T:   # pad tail chunk; padded steps only write rows sliced off below
        logits_y = jnp.pad(logits_y, ((0, Tp - T), (0, 0), (0, 0)))

    # Batch blocking: leading "parallel" grid axis (v7x has 2 TensorCores).
    if B % 16 == 0:
        Bb = B // 2
    elif B > 8 and B % 8 == 0:
        Bb = 8
    else:
        Bb = B
    nb = B // Bb

    # bf16 MXU inputs (v6e/v7x); accumulation + element-wise math stay f32.
    mm_dtype = jnp.bfloat16 if use_bf16 else encoder_output.dtype
    enc = encoder_output.astype(mm_dtype)
    watt_h = kp["watt_h"].astype(mm_dtype)
    w_ih = kp["w_ih"].astype(mm_dtype)
    w_hh = kp["w_hh"].astype(mm_dtype)

    flops_per_step = (
        2 * B * H * S            # h @ watt_h
        + 2 * B * S * H          # attention combine
        + 2 * 2 * B * H * 3 * H  # two packed GRU GEMMs
    )
    cost = pl.CostEstimate(
        flops=Tp * flops_per_step,
        transcendentals=Tp * (B * S + 3 * B * H),
        bytes_accessed=int(
            enc.size * enc.dtype.itemsize
            + (watt_h.size + w_ih.size + w_hh.size) * watt_h.dtype.itemsize
            + 4 * (prev_hidden.size + logits_y.size
                   + kp["b_i"].size + kp["b_hn"].size + Tp * B * H)
        ),
    )

    def build_call(single_buffer):
        def spec(shape, index_map, const=False):
            if const and single_buffer:
                # Grid-(near-)invariant block: hold one VMEM copy, not two.
                return pl.BlockSpec(shape, index_map, pipeline_mode=pl.Buffered(1))
            return pl.BlockSpec(shape, index_map)

        grid_spec = pltpu.PrefetchScalarGridSpec(
            num_scalar_prefetch=0,
            grid=(nb, n_tc),
            in_specs=[
                spec((Bb, H), lambda b, t: (b, 0), const=True),        # h0
                spec((Tc, Bb, S), lambda b, t: (t, b, 0)),             # logits_y
                spec((Bb, S, H), lambda b, t: (b, 0, 0), const=True),  # encoder
                spec((H, S), lambda b, t: (0, 0), const=True),         # watt_h
                spec((H, 3 * H), lambda b, t: (0, 0), const=True),     # packed W_ih
                spec((H, 3 * H), lambda b, t: (0, 0), const=True),     # packed W_hh
                spec((1, 3 * H), lambda b, t: (0, 0), const=True),     # packed bias
                spec((1, H), lambda b, t: (0, 0), const=True),         # b_hn
            ],
            out_specs=spec((Tc, Bb, H), lambda b, t: (t, b, 0)),       # hid stream
            scratch_shapes=[pltpu.VMEM((Bb, H), jnp.float32)],         # h carry
        )
        return pl.pallas_call(
            _decoder_rollout_kernel,
            out_shape=jax.ShapeDtypeStruct((Tp, B, H), jnp.float32),
            grid_spec=grid_spec,
            compiler_params=pltpu.CompilerParams(
                dimension_semantics=("parallel", "arbitrary"),
                vmem_limit_bytes=32 * 1024 * 1024,
            ),
            cost_estimate=cost,
        )

    args = (prev_hidden, logits_y, enc, watt_h, w_ih, w_hh, kp["b_i"], kp["b_hn"])
    try:
        hid_pad = build_call(single_buffer=True)(*args)
    except Exception:
        # pipeline_mode=pl.Buffered(1) unsupported on this jax build: fall back
        # to the default double-buffered (known-good) configuration.
        hid_pad = build_call(single_buffer=False)(*args)

    hid_seq = hid_pad[:T]                                          # (T, B, H)

    # Output head hoisted out of the kernel: one XLA GEMM over all T*B rows.
    out_seq = (hid_seq.reshape(T * B, H) @ kp["out_w"].T
               + kp["out_b"]).reshape(T, B, 1)
    return out_seq, hid_seq


def attention_decoder_cell(encoder_output, prev_hidden, y, kp, **kw):
    """Single step == PyTorch AttentionDecoderCell.forward (eval mode)."""
    out_seq, hid_seq = attention_decoder_rollout(
        encoder_output, prev_hidden, y[None], kp, **kw)
    return out_seq[0], hid_seq[0]


# ---------------------------------------------------------------------------
# Parameter helpers (PyTorch-shaped params -> packed kernel params) + reference
# ---------------------------------------------------------------------------
def init_torch_params(key, input_feature_len, hidden_size, sequence_len):
    H, Fd, S = hidden_size, input_feature_len, sequence_len
    ks = jax.random.split(key, 8)
    u = lambda k, shape, s: jax.random.uniform(k, shape, jnp.float32, minval=-s, maxval=s)
    s_att = 1.0 / jnp.sqrt(H + Fd)
    s_gru = 1.0 / jnp.sqrt(H)
    return {
        "att_w": u(ks[0], (S, H + Fd), s_att),   # attention_linear.weight
        "att_b": u(ks[1], (S,), s_att),          # attention_linear.bias
        "w_ih": u(ks[2], (3 * H, H), s_gru),     # GRUCell.weight_ih (r,z,n)
        "w_hh": u(ks[3], (3 * H, H), s_gru),     # GRUCell.weight_hh
        "b_ih": u(ks[4], (3 * H,), s_gru),
        "b_hh": u(ks[5], (3 * H,), s_gru),
        "out_w": u(ks[6], (1, H), s_gru),        # out.weight
        "out_b": u(ks[7], (1,), s_gru),          # out.bias
    }


def pack_params(tp):
    H = tp["w_hh"].shape[1]
    att_w_t = tp["att_w"].T                              # (H+F, S)
    b_i = tp["b_ih"] + jnp.concatenate(
        [tp["b_hh"][: 2 * H], jnp.zeros((H,), jnp.float32)])
    return {
        "watt_h": att_w_t[:H, :],                        # (H, S)
        "watt_y": att_w_t[H:, :],                        # (F, S) — used in wrapper
        "batt": tp["att_b"][None, :],                    # (1, S) — used in wrapper
        "w_ih": tp["w_ih"].T,                            # (H, 3H), columns r|z|n
        "w_hh": tp["w_hh"].T,
        "b_i": b_i[None, :],                             # (1, 3H), r/z pre-summed
        "b_hn": tp["b_hh"][2 * H:][None, :],             # (1, H)
        "out_w": tp["out_w"],                            # (1, H)  — wrapper GEMM
        "out_b": tp["out_b"],                            # (1,)
    }


def _reference_step(enc, h, y, tp):
    """Plain-JAX mirror of the PyTorch forward (eval mode)."""
    H = h.shape[1]
    att_in = jnp.concatenate([h, y], axis=1)
    aw = jax.nn.softmax(att_in @ tp["att_w"].T + tp["att_b"], axis=-1)
    comb = jnp.einsum("bs,bsh->bh", aw, enc)
    gi = comb @ tp["w_ih"].T + tp["b_ih"]
    gh = h @ tp["w_hh"].T + tp["b_hh"]
    r = jax.nn.sigmoid(gi[:, :H] + gh[:, :H])
    z = jax.nn.sigmoid(gi[:, H:2 * H] + gh[:, H:2 * H])
    n = jnp.tanh(gi[:, 2 * H:] + r * gh[:, 2 * H:])
    h_new = (1.0 - z) * n + z * h
    out = h_new @ tp["out_w"].T + tp["out_b"]
    return out, h_new


if __name__ == "__main__":
    # Keep the plain-JAX reference at full f32 matmul precision so the kernel
    # (f32 MXU accumulation) and reference agree to ~1e-5 level.
    jax.config.update("jax_default_matmul_precision", "highest")

    B, S, H, Fd, T = 8, 8, 32, 4, 6   # batch, seq_len, hidden, feature_len, steps

    key = jax.random.PRNGKey(0)
    k_enc, k_h, k_y, k_p = jax.random.split(key, 4)
    encoder_output = jax.random.normal(k_enc, (B, S, H), jnp.float32)
    prev_hidden = jax.random.normal(k_h, (B, H), jnp.float32)
    y_seq = jax.random.normal(k_y, (T, B, Fd), jnp.float32)

    torch_params = init_torch_params(k_p, Fd, H, S)
    kernel_params = pack_params(torch_params)

    # --- sequential plain-JAX reference rollout ---
    h = prev_hidden
    ref_outs, ref_hids = [], []
    for t in range(T):
        o, h = _reference_step(encoder_output, h, y_seq[t], torch_params)
        ref_outs.append(o)
        ref_hids.append(h)
    ref_outs = jnp.stack(ref_outs)
    ref_hids = jnp.stack(ref_hids)

    # --- single step: must match the PyTorch forward semantics ---
    out1, hid1 = attention_decoder_cell(encoder_output, prev_hidden, y_seq[0], kernel_params)
    out1, hid1 = jax.block_until_ready((out1, hid1))
    assert out1.shape == (B, 1) and hid1.shape == (B, H)
    assert jnp.allclose(out1, ref_outs[0], atol=2e-4, rtol=2e-4)
    assert jnp.allclose(hid1, ref_hids[0], atol=2e-4, rtol=2e-4)

    # --- fused T-step rollout (T=6, time_chunk=4 exercises chunking + padding) ---
    outs, hids = attention_decoder_rollout(
        encoder_output, prev_hidden, y_seq, kernel_params, time_chunk=4)
    outs, hids = jax.block_until_ready((outs, hids))
    assert outs.shape == (T, B, 1) and hids.shape == (T, B, H)
    assert jnp.allclose(outs, ref_outs, atol=2e-4, rtol=2e-4)
    assert jnp.allclose(hids, ref_hids, atol=2e-4, rtol=2e-4)

    # --- bf16 MXU-input variant (v6e/v7x recommendation); f32 accumulation ---
    outs_bf, hids_bf = attention_decoder_rollout(
        encoder_output, prev_hidden, y_seq, kernel_params, time_chunk=4, use_bf16=True)
    outs_bf, hids_bf = jax.block_until_ready((outs_bf, hids_bf))
    assert jnp.allclose(hids_bf, ref_hids, atol=1e-1, rtol=1e-1)
    assert jnp.allclose(outs_bf, ref_outs, atol=1e-1, rtol=1e-1)

    print("KERNEL_OK")
</pallas_src>

<mosaic_0001>
module attributes {stable_mosaic.version = 11 : i64} {
  func.func @_decoder_rollout_kernel(%arg0: i32, %arg1: i32, %arg2: memref<8x32xf32, #tpu.memory_space<vmem>>, %arg3: memref<1x8x8xf32, #tpu.memory_space<vmem>>, %arg4: memref<8x8x32xf32, #tpu.memory_space<vmem>>, %arg5: memref<32x8xf32, #tpu.memory_space<vmem>>, %arg6: memref<32x96xf32, #tpu.memory_space<vmem>>, %arg7: memref<32x96xf32, #tpu.memory_space<vmem>>, %arg8: memref<1x96xf32, #tpu.memory_space<vmem>>, %arg9: memref<1x32xf32, #tpu.memory_space<vmem>>, %arg10: memref<1x8x32xf32, #tpu.memory_space<vmem>>, %arg11: memref<8x32xf32, #tpu.memory_space<vmem>>) attributes {dimension_semantics = [#tpu.dimension_semantics<parallel>, #tpu.dimension_semantics<arbitrary>], iteration_bounds = array<i64: 1, 1>, scalar_prefetch = 0 : i64, scratch_operands = 1 : i64, tpu.core_type = #tpu.core_type<tc>, window_params = [{pipeline_mode = #tpu.pipeline_mode<synchronous>, transform_indices = @transform_0, window_bounds = array<i64: 8, 32>}, {transform_indices = @transform_1, window_bounds = array<i64: 1, 8, 8>}, {pipeline_mode = #tpu.pipeline_mode<synchronous>, transform_indices = @transform_2, window_bounds = array<i64: 8, 8, 32>}, {pipeline_mode = #tpu.pipeline_mode<synchronous>, transform_indices = @transform_3, window_bounds = array<i64: 32, 8>}, {pipeline_mode = #tpu.pipeline_mode<synchronous>, transform_indices = @transform_4, window_bounds = array<i64: 32, 96>}, {pipeline_mode = #tpu.pipeline_mode<synchronous>, transform_indices = @transform_5, window_bounds = array<i64: 32, 96>}, {pipeline_mode = #tpu.pipeline_mode<synchronous>, transform_indices = @transform_6, window_bounds = array<i64: 1, 96>}, {pipeline_mode = #tpu.pipeline_mode<synchronous>, transform_indices = @transform_7, window_bounds = array<i64: 1, 32>}, {transform_indices = @transform_8, window_bounds = array<i64: 1, 8, 32>}]} {
    %c0_i32 = arith.constant 0 : i32
    %0 = arith.cmpi eq, %arg1, %c0_i32 : i32
    %1 = arith.extui %0 : i1 to i32
    %c0_i32_0 = arith.constant 0 : i32
    %2 = arith.cmpi ne, %1, %c0_i32_0 : i32
    scf.if %2 {
      %c0_30 = arith.constant 0 : index
      %c0_31 = arith.constant 0 : index
      %64 = vector.load %arg2[%c0_30, %c0_31] : memref<8x32xf32, #tpu.memory_space<vmem>>, vector<8x32xf32>
      %c0_32 = arith.constant 0 : index
      %c0_33 = arith.constant 0 : index
      %65 = vector.load %arg11[%c0_32, %c0_33] : memref<8x32xf32, #tpu.memory_space<vmem>>, vector<8x32xf32>
      tpu.vector_store %arg11[%c0_32, %c0_33], %64 {strides = array<i32>} : memref<8x32xf32, #tpu.memory_space<vmem>>, vector<8x32xf32>,
    } else {
    }
    %c0 = arith.constant 0 : index
    %c0_1 = arith.constant 0 : index
    %c0_2 = arith.constant 0 : index
    %3 = vector.load %arg4[%c0, %c0_1, %c0_2] : memref<8x8x32xf32, #tpu.memory_space<vmem>>, vector<8x8x32xf32>
    %c0_3 = arith.constant 0 : index
    %c0_4 = arith.constant 0 : index
    %4 = vector.load %arg5[%c0_3, %c0_4] : memref<32x8xf32, #tpu.memory_space<vmem>>, vector<32x8xf32>
    %c0_5 = arith.constant 0 : index
    %c0_6 = arith.constant 0 : index
    %5 = vector.load %arg6[%c0_5, %c0_6] : memref<32x96xf32, #tpu.memory_space<vmem>>, vector<32x96xf32>
    %c0_7 = arith.constant 0 : index
    %c0_8 = arith.constant 0 : index
    %6 = vector.load %arg7[%c0_7, %c0_8] : memref<32x96xf32, #tpu.memory_space<vmem>>, vector<32x96xf32>
    %c0_9 = arith.constant 0 : index
    %c0_10 = arith.constant 0 : index
    %7 = vector.load %arg8[%c0_9, %c0_10] : memref<1x96xf32, #tpu.memory_space<vmem>>, vector<1x96xf32>
    %c0_11 = arith.constant 0 : index
    %c0_12 = arith.constant 0 : index
    %8 = vector.load %arg9[%c0_11, %c0_12] : memref<1x32xf32, #tpu.memory_space<vmem>>, vector<1x32xf32>
    %c0_13 = arith.constant 0 : index
    %c0_14 = arith.constant 0 : index
    %9 = vector.load %arg11[%c0_13, %c0_14] : memref<8x32xf32, #tpu.memory_space<vmem>>, vector<8x32xf32>
    %c0_i32_15 = arith.constant 0 : i32
    %cst = arith.constant dense<0.000000e+00> : vector<8x8xf32>
    %10 = tpu.matmul %9, %4, %cst {dimension_numbers = #tpu.dot_dimension_numbers<[1], [0], [0], [1], [0, 0, 1, 1], [], []>, precision = #tpu.contract_precision<fp32>} : vector<8x32xf32>, vector<32x8xf32>, vector<8x8xf32> -> vector<8x8xf32>
    %11 = arith.index_cast %c0_i32_15 : i32 to index
    %c0_16 = arith.constant 0 : index
    %c0_17 = arith.constant 0 : index
    %12 = vector.load %arg3[%11, %c0_16, %c0_17] : memref<1x8x8xf32, #tpu.memory_space<vmem>>, vector<1x8x8xf32>
    %13 = vector.shape_cast %12 : vector<1x8x8xf32> to vector<8x8xf32>
    %14 = arith.addf %10, %13 : vector<8x8xf32>
    %cst_18 = arith.constant dense<0xFF800000> : vector<8xf32>
    %15 = vector.multi_reduction <maximumf>, %14, %cst_18 [1] : vector<8x8xf32> to vector<8xf32>
    %16 = vector.shape_cast %15 : vector<8xf32> to vector<8x1xf32>
    %17 = vector.broadcast %16 : vector<8x1xf32> to vector<8x8xf32>
    %18 = arith.subf %14, %17 : vector<8x8xf32>
    %19 = math.exp %18 : vector<8x8xf32>
    %cst_19 = arith.constant dense<0.000000e+00> : vector<8xf32>
    %20 = vector.multi_reduction <add>, %19, %cst_19 [1] : vector<8x8xf32> to vector<8xf32>
    %21 = vector.shape_cast %20 : vector<8xf32> to vector<8x1xf32>
    %22 = vector.broadcast %21 : vector<8x1xf32> to vector<8x8xf32>
    %23 = arith.divf %19, %22 : vector<8x8xf32>
    %24 = vector.shape_cast %23 : vector<8x8xf32> to vector<8x1x8xf32>
    %cst_20 = arith.constant dense<0.000000e+00> : vector<8x1x32xf32>
    %25 = tpu.matmul %24, %3, %cst_20 {dimension_numbers = #tpu.dot_dimension_numbers<[2], [1], [1], [2], [0, 0, 0, 1, 1, 2], [0], [0]>, precision = #tpu.contract_precision<fp32>} : vector<8x1x8xf32>, vector<8x8x32xf32>, vector<8x1x32xf32> -> vector<8x1x32xf32>
    %26 = vector.shape_cast %25 : vector<8x1x32xf32> to vector<8x32xf32>
    %cst_21 = arith.constant dense<0.000000e+00> : vector<8x96xf32>
    %27 = tpu.matmul %26, %5, %cst_21 {dimension_numbers = #tpu.dot_dimension_numbers<[1], [0], [0], [1], [0, 0, 1, 1], [], []>, precision = #tpu.contract_precision<fp32>} : vector<8x32xf32>, vector<32x96xf32>, vector<8x96xf32> -> vector<8x96xf32>
    %28 = vector.broadcast %7 : vector<1x96xf32> to vector<8x96xf32>
    %29 = arith.addf %27, %28 : vector<8x96xf32>
    %cst_22 = arith.constant dense<0.000000e+00> : vector<8x96xf32>
    %30 = tpu.matmul %9, %6, %cst_22 {dimension_numbers = #tpu.dot_dimension_numbers<[1], [0], [0], [1], [0, 0, 1, 1], [], []>, precision = #tpu.contract_precision<fp32>} : vector<8x32xf32>, vector<32x96xf32>, vector<8x96xf32> -> vector<8x96xf32>
    %31 = vector.extract_strided_slice %29 {offsets = [0, 0], sizes = [8, 32], strides = [1, 1]} : vector<8x96xf32> to vector<8x32xf32>
    %32 = vector.extract_strided_slice %30 {offsets = [0, 0], sizes = [8, 32], strides = [1, 1]} : vector<8x96xf32> to vector<8x32xf32>
    %33 = arith.addf %31, %32 : vector<8x32xf32>
    %34 = arith.negf %33 : vector<8x32xf32>
    %35 = math.exp %34 : vector<8x32xf32>
    %cst_23 = arith.constant 1.000000e+00 : f32
    %36 = vector.broadcast %cst_23 : f32 to vector<8x32xf32>
    %37 = arith.addf %36, %35 : vector<8x32xf32>
    %38 = arith.divf %36, %37 : vector<8x32xf32>
    %39 = vector.extract_strided_slice %29 {offsets = [0, 32], sizes = [8, 32], strides = [1, 1]} : vector<8x96xf32> to vector<8x32xf32>
    %40 = vector.extract_strided_slice %30 {offsets = [0, 32], sizes = [8, 32], strides = [1, 1]} : vector<8x96xf32> to vector<8x32xf32>
    %41 = arith.addf %39, %40 : vector<8x32xf32>
    %42 = arith.negf %41 : vector<8x32xf32>
    %43 = math.exp %42 : vector<8x32xf32>
    %cst_24 = arith.constant 1.000000e+00 : f32
    %44 = vector.broadcast %cst_24 : f32 to vector<8x32xf32>
    %45 = arith.addf %44, %43 : vector<8x32xf32>
    %46 = arith.divf %44, %45 : vector<8x32xf32>
    %47 = vector.extract_strided_slice %29 {offsets = [0, 64], sizes = [8, 32], strides = [1, 1]} : vector<8x96xf32> to vector<8x32xf32>
    %48 = vector.extract_strided_slice %30 {offsets = [0, 64], sizes = [8, 32], strides = [1, 1]} : vector<8x96xf32> to vector<8x32xf32>
    %49 = vector.broadcast %8 : vector<1x32xf32> to vector<8x32xf32>
    %50 = arith.addf %48, %49 : vector<8x32xf32>
    %51 = arith.mulf %38, %50 : vector<8x32xf32>
    %52 = arith.addf %47, %51 : vector<8x32xf32>
    %53 = math.tanh %52 : vector<8x32xf32>
    %cst_25 = arith.constant 1.000000e+00 : f32
    %54 = vector.broadcast %cst_25 : f32 to vector<8x32xf32>
    %55 = arith.subf %54, %46 : vector<8x32xf32>
    %56 = arith.mulf %55, %53 : vector<8x32xf32>
    %57 = arith.mulf %46, %9 : vector<8x32xf32>
    %58 = arith.addf %56, %57 : vector<8x32xf32>
    %59 = arith.index_cast %c0_i32_15 : i32 to index
    %c0_26 = arith.constant 0 : index
    %c0_27 = arith.constant 0 : index
    %60 = vector.load %arg10[%59, %c0_26, %c0_27] : memref<1x8x32xf32, #tpu.memory_space<vmem>>, vector<1x8x32xf32>
    %61 = vector.shape_cast %60 : vector<1x8x32xf32> to vector<8x32xf32>
    %62 = vector.shape_cast %58 : vector<8x32xf32> to vector<1x8x32xf32>
    tpu.vector_store %arg10[%59, %c0_26, %c0_27], %62 {strides = array<i32>} : memref<1x8x32xf32, #tpu.memory_space<vmem>>, vector<1x8x32xf32>,
    %c1_i32 = arith.constant 1 : i32
    %c0_28 = arith.constant 0 : index
    %c0_29 = arith.constant 0 : index
    %63 = vector.load %arg11[%c0_28, %c0_29] : memref<8x32xf32, #tpu.memory_space<vmem>>, vector<8x32xf32>
    tpu.vector_store %arg11[%c0_28, %c0_29], %58 {strides = array<i32>} : memref<8x32xf32, #tpu.memory_space<vmem>>, vector<8x32xf32>,
    return
  }
  func.func @transform_0(%arg0: i32, %arg1: i32) -> (i32, i32) {
    %c0_i32 = arith.constant 0 : i32
    %c0_i32_0 = arith.constant 0 : i32
    return %arg0, %c0_i32 : i32, i32
  }
  func.func @transform_1(%arg0: i32, %arg1: i32) -> (i32, i32, i32) {
    %c0_i32 = arith.constant 0 : i32
    %c0_i32_0 = arith.constant 0 : i32
    return %arg1, %arg0, %c0_i32 : i32, i32, i32
  }
  func.func @transform_2(%arg0: i32, %arg1: i32) -> (i32, i32, i32) {
    %c0_i32 = arith.constant 0 : i32
    %c0_i32_0 = arith.constant 0 : i32
    %c0_i32_1 = arith.constant 0 : i32
    return %arg0, %c0_i32, %c0_i32_0 : i32, i32, i32
  }
  func.func @transform_3(%arg0: i32, %arg1: i32) -> (i32, i32) {
    %c0_i32 = arith.constant 0 : i32
    %c0_i32_0 = arith.constant 0 : i32
    %c0_i32_1 = arith.constant 0 : i32
    return %c0_i32, %c0_i32_0 : i32, i32
  }
  func.func @transform_4(%arg0: i32, %arg1: i32) -> (i32, i32) {
    %c0_i32 = arith.constant 0 : i32
    %c0_i32_0 = arith.constant 0 : i32
    %c0_i32_1 = arith.constant 0 : i32
    return %c0_i32, %c0_i32_0 : i32, i32
  }
  func.func @transform_5(%arg0: i32, %arg1: i32) -> (i32, i32) {
    %c0_i32 = arith.constant 0 : i32
    %c0_i32_0 = arith.constant 0 : i32
    %c0_i32_1 = arith.constant 0 : i32
    return %c0_i32, %c0_i32_0 : i32, i32
  }
  func.func @transform_6(%arg0: i32, %arg1: i32) -> (i32, i32) {
    %c0_i32 = arith.constant 0 : i32
    %c0_i32_0 = arith.constant 0 : i32
    %c0_i32_1 = arith.constant 0 : i32
    return %c0_i32, %c0_i32_0 : i32, i32
  }
  func.func @transform_7(%arg0: i32, %arg1: i32) -> (i32, i32) {
    %c0_i32 = arith.constant 0 : i32
    %c0_i32_0 = arith.constant 0 : i32
    %c0_i32_1 = arith.constant 0 : i32
    return %c0_i32, %c0_i32_0 : i32, i32
  }
  func.func @transform_8(%arg0: i32, %arg1: i32) -> (i32, i32, i32) {
    %c0_i32 = arith.constant 0 : i32
    %c0_i32_0 = arith.constant 0 : i32
    return %arg1, %arg0, %c0_i32 : i32, i32, i32
  }
}

module attributes {stable_mosaic.version = 11 : i64} {
  func.func @_decoder_rollout_kernel(%arg0: i32, %arg1: i32, %arg2: memref<8x32xf32, #tpu.memory_space<vmem>>, %arg3: memref<1x8x8xf32, #tpu.memory_space<vmem>>, %arg4: memref<8x8x32xf32, #tpu.memory_space<vmem>>, %arg5: memref<32x8xf32, #tpu.memory_space<vmem>>, %arg6: memref<32x96xf32, #tpu.memory_space<vmem>>, %arg7: memref<32x96xf32, #tpu.memory_space<vmem>>, %arg8: memref<1x96xf32, #tpu.memory_space<vmem>>, %arg9: memref<1x32xf32, #tpu.memory_space<vmem>>, %arg10: memref<1x8x32xf32, #tpu.memory_space<vmem>>, %arg11: memref<8x32xf32, #tpu.memory_space<vmem>>) attributes {dimension_semantics = [#tpu.dimension_semantics<parallel>, #tpu.dimension_semantics<arbitrary>], iteration_bounds = array<i64: 1, 1>, scalar_prefetch = 0 : i64, scratch_operands = 1 : i64, tpu.core_type = #tpu.core_type<tc>, window_params = [{transform_indices = @transform_0, window_bounds = array<i64: 8, 32>}, {transform_indices = @transform_1, window_bounds = array<i64: 1, 8, 8>}, {transform_indices = @transform_2, window_bounds = array<i64: 8, 8, 32>}, {pipeline_mode = #tpu.pipeline_mode<synchronous>, transform_indices = @transform_3, window_bounds = array<i64: 32, 8>}, {pipeline_mode = #tpu.pipeline_mode<synchronous>, transform_indices = @transform_4, window_bounds = array<i64: 32, 96>}, {pipeline_mode = #tpu.pipeline_mode<synchronous>, transform_indices = @transform_5, window_bounds = array<i64: 32, 96>}, {pipeline_mode = #tpu.pipeline_mode<synchronous>, transform_indices = @transform_6, window_bounds = array<i64: 1, 96>}, {pipeline_mode = #tpu.pipeline_mode<synchronous>, transform_indices = @transform_7, window_bounds = array<i64: 1, 32>}, {transform_indices = @transform_8, window_bounds = array<i64: 1, 8, 32>}]} {
    %c0_i32 = arith.constant 0 : i32
    %0 = arith.cmpi eq, %arg1, %c0_i32 : i32
    %1 = arith.extui %0 : i1 to i32
    %c0_i32_0 = arith.constant 0 : i32
    %2 = arith.cmpi ne, %1, %c0_i32_0 : i32
    scf.if %2 {
      %c0_30 = arith.constant 0 : index
      %c0_31 = arith.constant 0 : index
      %64 = vector.load %arg2[%c0_30, %c0_31] : memref<8x32xf32, #tpu.memory_space<vmem>>, vector<8x32xf32>
      %c0_32 = arith.constant 0 : index
      %c0_33 = arith.constant 0 : index
      %65 = vector.load %arg11[%c0_32, %c0_33] : memref<8x32xf32, #tpu.memory_space<vmem>>, vector<8x32xf32>
      tpu.vector_store %arg11[%c0_32, %c0_33], %64 {strides = array<i32>} : memref<8x32xf32, #tpu.memory_space<vmem>>, vector<8x32xf32>,
    } else {
    }
    %c0 = arith.constant 0 : index
    %c0_1 = arith.constant 0 : index
    %c0_2 = arith.constant 0 : index
    %3 = vector.load %arg4[%c0, %c0_1, %c0_2] : memref<8x8x32xf32, #tpu.memory_space<vmem>>, vector<8x8x32xf32>
    %c0_3 = arith.constant 0 : index
    %c0_4 = arith.constant 0 : index
    %4 = vector.load %arg5[%c0_3, %c0_4] : memref<32x8xf32, #tpu.memory_space<vmem>>, vector<32x8xf32>
    %c0_5 = arith.constant 0 : index
    %c0_6 = arith.constant 0 : index
    %5 = vector.load %arg6[%c0_5, %c0_6] : memref<32x96xf32, #tpu.memory_space<vmem>>, vector<32x96xf32>
    %c0_7 = arith.constant 0 : index
    %c0_8 = arith.constant 0 : index
    %6 = vector.load %arg7[%c0_7, %c0_8] : memref<32x96xf32, #tpu.memory_space<vmem>>, vector<32x96xf32>
    %c0_9 = arith.constant 0 : index
    %c0_10 = arith.constant 0 : index
    %7 = vector.load %arg8[%c0_9, %c0_10] : memref<1x96xf32, #tpu.memory_space<vmem>>, vector<1x96xf32>
    %c0_11 = arith.constant 0 : index
    %c0_12 = arith.constant 0 : index
    %8 = vector.load %arg9[%c0_11, %c0_12] : memref<1x32xf32, #tpu.memory_space<vmem>>, vector<1x32xf32>
    %c0_13 = arith.constant 0 : index
    %c0_14 = arith.constant 0 : index
    %9 = vector.load %arg11[%c0_13, %c0_14] : memref<8x32xf32, #tpu.memory_space<vmem>>, vector<8x32xf32>
    %c0_i32_15 = arith.constant 0 : i32
    %cst = arith.constant dense<0.000000e+00> : vector<8x8xf32>
    %10 = tpu.matmul %9, %4, %cst {dimension_numbers = #tpu.dot_dimension_numbers<[1], [0], [0], [1], [0, 0, 1, 1], [], []>, precision = #tpu.contract_precision<fp32>} : vector<8x32xf32>, vector<32x8xf32>, vector<8x8xf32> -> vector<8x8xf32>
    %11 = arith.index_cast %c0_i32_15 : i32 to index
    %c0_16 = arith.constant 0 : index
    %c0_17 = arith.constant 0 : index
    %12 = vector.load %arg3[%11, %c0_16, %c0_17] : memref<1x8x8xf32, #tpu.memory_space<vmem>>, vector<1x8x8xf32>
    %13 = vector.shape_cast %12 : vector<1x8x8xf32> to vector<8x8xf32>
    %14 = arith.addf %10, %13 : vector<8x8xf32>
    %cst_18 = arith.constant dense<0xFF800000> : vector<8xf32>
    %15 = vector.multi_reduction <maximumf>, %14, %cst_18 [1] : vector<8x8xf32> to vector<8xf32>
    %16 = vector.shape_cast %15 : vector<8xf32> to vector<8x1xf32>
    %17 = vector.broadcast %16 : vector<8x1xf32> to vector<8x8xf32>
    %18 = arith.subf %14, %17 : vector<8x8xf32>
    %19 = math.exp %18 : vector<8x8xf32>
    %cst_19 = arith.constant dense<0.000000e+00> : vector<8xf32>
    %20 = vector.multi_reduction <add>, %19, %cst_19 [1] : vector<8x8xf32> to vector<8xf32>
    %21 = vector.shape_cast %20 : vector<8xf32> to vector<8x1xf32>
    %22 = vector.broadcast %21 : vector<8x1xf32> to vector<8x8xf32>
    %23 = arith.divf %19, %22 : vector<8x8xf32>
    %24 = vector.shape_cast %23 : vector<8x8xf32> to vector<8x1x8xf32>
    %cst_20 = arith.constant dense<0.000000e+00> : vector<8x1x32xf32>
    %25 = tpu.matmul %24, %3, %cst_20 {dimension_numbers = #tpu.dot_dimension_numbers<[2], [1], [1], [2], [0, 0, 0, 1, 1, 2], [0], [0]>, precision = #tpu.contract_precision<fp32>} : vector<8x1x8xf32>, vector<8x8x32xf32>, vector<8x1x32xf32> -> vector<8x1x32xf32>
    %26 = vector.shape_cast %25 : vector<8x1x32xf32> to vector<8x32xf32>
    %cst_21 = arith.constant dense<0.000000e+00> : vector<8x96xf32>
    %27 = tpu.matmul %26, %5, %cst_21 {dimension_numbers = #tpu.dot_dimension_numbers<[1], [0], [0], [1], [0, 0, 1, 1], [], []>, precision = #tpu.contract_precision<fp32>} : vector<8x32xf32>, vector<32x96xf32>, vector<8x96xf32> -> vector<8x96xf32>
    %28 = vector.broadcast %7 : vector<1x96xf32> to vector<8x96xf32>
    %29 = arith.addf %27, %28 : vector<8x96xf32>
    %cst_22 = arith.constant dense<0.000000e+00> : vector<8x96xf32>
    %30 = tpu.matmul %9, %6, %cst_22 {dimension_numbers = #tpu.dot_dimension_numbers<[1], [0], [0], [1], [0, 0, 1, 1], [], []>, precision = #tpu.contract_precision<fp32>} : vector<8x32xf32>, vector<32x96xf32>, vector<8x96xf32> -> vector<8x96xf32>
    %31 = vector.extract_strided_slice %29 {offsets = [0, 0], sizes = [8, 32], strides = [1, 1]} : vector<8x96xf32> to vector<8x32xf32>
    %32 = vector.extract_strided_slice %30 {offsets = [0, 0], sizes = [8, 32], strides = [1, 1]} : vector<8x96xf32> to vector<8x32xf32>
    %33 = arith.addf %31, %32 : vector<8x32xf32>
    %34 = arith.negf %33 : vector<8x32xf32>
    %35 = math.exp %34 : vector<8x32xf32>
    %cst_23 = arith.constant 1.000000e+00 : f32
    %36 = vector.broadcast %cst_23 : f32 to vector<8x32xf32>
    %37 = arith.addf %36, %35 : vector<8x32xf32>
    %38 = arith.divf %36, %37 : vector<8x32xf32>
    %39 = vector.extract_strided_slice %29 {offsets = [0, 32], sizes = [8, 32], strides = [1, 1]} : vector<8x96xf32> to vector<8x32xf32>
    %40 = vector.extract_strided_slice %30 {offsets = [0, 32], sizes = [8, 32], strides = [1, 1]} : vector<8x96xf32> to vector<8x32xf32>
    %41 = arith.addf %39, %40 : vector<8x32xf32>
    %42 = arith.negf %41 : vector<8x32xf32>
    %43 = math.exp %42 : vector<8x32xf32>
    %cst_24 = arith.constant 1.000000e+00 : f32
    %44 = vector.broadcast %cst_24 : f32 to vector<8x32xf32>
    %45 = arith.addf %44, %43 : vector<8x32xf32>
    %46 = arith.divf %44, %45 : vector<8x32xf32>
    %47 = vector.extract_strided_slice %29 {offsets = [0, 64], sizes = [8, 32], strides = [1, 1]} : vector<8x96xf32> to vector<8x32xf32>
    %48 = vector.extract_strided_slice %30 {offsets = [0, 64], sizes = [8, 32], strides = [1, 1]} : vector<8x96xf32> to vector<8x32xf32>
    %49 = vector.broadcast %8 : vector<1x32xf32> to vector<8x32xf32>
    %50 = arith.addf %48, %49 : vector<8x32xf32>
    %51 = arith.mulf %38, %50 : vector<8x32xf32>
    %52 = arith.addf %47, %51 : vector<8x32xf32>
    %53 = math.tanh %52 : vector<8x32xf32>
    %cst_25 = arith.constant 1.000000e+00 : f32
    %54 = vector.broadcast %cst_25 : f32 to vector<8x32xf32>
    %55 = arith.subf %54, %46 : vector<8x32xf32>
    %56 = arith.mulf %55, %53 : vector<8x32xf32>
    %57 = arith.mulf %46, %9 : vector<8x32xf32>
    %58 = arith.addf %56, %57 : vector<8x32xf32>
    %59 = arith.index_cast %c0_i32_15 : i32 to index
    %c0_26 = arith.constant 0 : index
    %c0_27 = arith.constant 0 : index
    %60 = vector.load %arg10[%59, %c0_26, %c0_27] : memref<1x8x32xf32, #tpu.memory_space<vmem>>, vector<1x8x32xf32>
    %61 = vector.shape_cast %60 : vector<1x8x32xf32> to vector<8x32xf32>
    %62 = vector.shape_cast %58 : vector<8x32xf32> to vector<1x8x32xf32>
    tpu.vector_store %arg10[%59, %c0_26, %c0_27], %62 {strides = array<i32>} : memref<1x8x32xf32, #tpu.memory_space<vmem>>, vector<1x8x32xf32>,
    %c1_i32 = arith.constant 1 : i32
    %c0_28 = arith.constant 0 : index
    %c0_29 = arith.constant 0 : index
    %63 = vector.load %arg11[%c0_28, %c0_29] : memref<8x32xf32, #tpu.memory_space<vmem>>, vector<8x32xf32>
    tpu.vector_store %arg11[%c0_28, %c0_29], %58 {strides = array<i32>} : memref<8x32xf32, #tpu.memory_space<vmem>>, vector<8x32xf32>,
    return
  }
  func.func @transform_0(%arg0: i32, %arg1: i32) -> (i32, i32) {
    %c0_i32 = arith.constant 0 : i32
    %c0_i32_0 = arith.constant 0 : i32
    return %arg0, %c0_i32 : i32, i32
  }
  func.func @transform_1(%arg0: i32, %arg1: i32) -> (i32, i32, i32) {
    %c0_i32 = arith.constant 0 : i32
    %c0_i32_0 = arith.constant 0 : i32
    return %arg1, %arg0, %c0_i32 : i32, i32, i32
  }
  func.func @transform_2(%arg0: i32, %arg1: i32) -> (i32, i32, i32) {
    %c0_i32 = arith.constant 0 : i32
    %c0_i32_0 = arith.constant 0 : i32
    %c0_i32_1 = arith.constant 0 : i32
    return %arg0, %c0_i32, %c0_i32_0 : i32, i32, i32
  }
  func.func @transform_3(%arg0: i32, %arg1: i32) -> (i32, i32) {
    %c0_i32 = arith.constant 0 : i32
    %c0_i32_0 = arith.constant 0 : i32
    %c0_i32_1 = arith.constant 0 : i32
    return %c0_i32, %c0_i32_0 : i32, i32
  }
  func.func @transform_4(%arg0: i32, %arg1: i32) -> (i32, i32) {
    %c0_i32 = arith.constant 0 : i32
    %c0_i32_0 = arith.constant 0 : i32
    %c0_i32_1 = arith.constant 0 : i32
    return %c0_i32, %c0_i32_0 : i32, i32
  }
  func.func @transform_5(%arg0: i32, %arg1: i32) -> (i32, i32) {
    %c0_i32 = arith.constant 0 : i32
    %c0_i32_0 = arith.constant 0 : i32
    %c0_i32_1 = arith.constant 0 : i32
    return %c0_i32, %c0_i32_0 : i32, i32
  }
  func.func @transform_6(%arg0: i32, %arg1: i32) -> (i32, i32) {
    %c0_i32 = arith.constant 0 : i32
    %c0_i32_0 = arith.constant 0 : i32
    %c0_i32_1 = arith.constant 0 : i32
    return %c0_i32, %c0_i32_0 : i32, i32
  }
  func.func @transform_7(%arg0: i32, %arg1: i32) -> (i32, i32) {
    %c0_i32 = arith.constant 0 : i32
    %c0_i32_0 = arith.constant 0 : i32
    %c0_i32_1 = arith.constant 0 : i32
    return %c0_i32, %c0_i32_0 : i32, i32
  }
  func.func @transform_8(%arg0: i32, %arg1: i32) -> (i32, i32, i32) {
    %c0_i32 = arith.constant 0 : i32
    %c0_i32_0 = arith.constant 0 : i32
    return %arg1, %arg0, %c0_i32 : i32, i32, i32
  }
}

</mosaic_0001>

<llo_original>
// kernel: tpu_custom_call.1
$region0: #{tpu_custom_call.1}
  #allocation0 [shape = 'u32[]', space=smem, size = 0x4, offset = 0x4, fixed_abs, tag = 'smem constant byte address 0x4 - core index']
  #allocation1 [shape = 'u32[144,128]{1,0:T(1,128)}', space=vmem, size = 0x12000, scoped, tag = 'internal scratch']
  #allocation2 [shape = 'f32[8,32]{1,0:T(8,128)}', space=vmem, size = 0x1000, scoped, tag = 'scratch operand']
  %s0 = inlined_call_operand.vmem [shape: f32[8,32], index: 0, kind: input, shape index: {}]
  %s1 = inlined_call_operand.hbm [shape: f32[1,8,8], index: 1, kind: input, shape index: {}]
  %s2 = inlined_call_operand.hbm [shape: f32[8,8,32], index: 2, kind: input, shape index: {}]
  %s3 = inlined_call_operand.vmem [shape: f32[32,8], index: 3, kind: input, shape index: {}]
  %s4 = inlined_call_operand.vmem [shape: f32[32,96], index: 4, kind: input, shape index: {}]
  %s5 = inlined_call_operand.hbm [shape: f32[32,96], index: 5, kind: input, shape index: {}]
  %s6 = inlined_call_operand.vmem [shape: f32[1,96], index: 6, kind: input, shape index: {}]
  %s7 = inlined_call_operand.vmem [shape: f32[1,32], index: 7, kind: input, shape index: {}]
  %s8 = inlined_call_operand.hbm [shape: f32[1,8,32], index: 8, kind: output, shape index: {}]
  %s9 = sld [smem:[#allocation0]]
  $region58: #{tpu_custom_call.1} parent=0
    _
  %s11 = ssub.s32 1, %s9
  %s12 = scalar_select 0, %s11, %s9
  $region1: #{tpu_custom_call.1} parent=0
    #allocation3 [shape = 'u8[4096]{0}', space=vmem, size = 0x1000, scoped, tag = 'input window, operand 1, single buffered']
    #allocation4 [shape = 's32[1]{0}', space=sflag, size = 0x4, scoped, tag = 'scoped memory for tpu_custom_call.1']
    #allocation5 [shape = 's32[1]{0}', space=sflag, size = 0x4, scoped, tag = 'scoped memory for tpu_custom_call.1']
    #allocation6 [shape = 'u8[32768]{0}', space=vmem, size = 0x8000, scoped, tag = 'input window, operand 2, single buffered']
    #allocation7 [shape = 's32[1]{0}', space=sflag, size = 0x4, scoped, tag = 'scoped memory for tpu_custom_call.1']
    #allocation8 [shape = 'u8[16384]{0}', space=vmem, size = 0x4000, scoped, tag = 'input window, operand 5, single buffered']
    #allocation9 [shape = 'u8[4096]{0}', space=vmem, size = 0x1000, scoped, tag = 'output window, operand 0, single buffered']
    %13 = vsyncpa [#allocation4], 0
    %14 = vsyncpa [#allocation7], 0
    %15 = vsyncpa [#allocation5], 0
    // Predicated region
    $region2: #{tpu_custom_call.1} parent=1 // pred_check
      _
    $region3: #{tpu_custom_call.1} parent=1 // pred_check_branch
      %17 = sbr.rel (0) target = $region5
    $region4: #{tpu_custom_call.1} parent=1 // pred_region
      _
    $region5: #{tpu_custom_call.1} parent=1 // pred_fallthru
      _
    // Predicated region
    $region6: #{tpu_custom_call.1} parent=1 // pred_check
      _
    $region7: #{tpu_custom_call.1} parent=1 // pred_check_branch
      %19 = sbr.rel (0) target = $region9
    $region8: #{tpu_custom_call.1} parent=1 // pred_region
      %s21 = ssub.s32 128, 128
      %22 = vsyncadd [#allocation4], %s21
      %s24 = sshll.u32 [#allocation3], 4
      %s25 = int_to_ptr.vmem [resolvable:$true] %s24
      %27 = dma.hbm_to_vmem [thread:$0]  %s1, 128, %s25, [#allocation4]
    $region9: #{tpu_custom_call.1} parent=1 // pred_fallthru
      _
    // Predicated region
    $region10: #{tpu_custom_call.1} parent=1 // pred_check
      _
    $region11: #{tpu_custom_call.1} parent=1 // pred_check_branch
      %29 = sbr.rel (0) target = $region13
    $region12: #{tpu_custom_call.1} parent=1 // pred_region
      %s31 = ssub.s32 1024, 1024
      %32 = vsyncadd [#allocation7], %s31
      %s33 = sshll.u32 [#allocation6], 4
      %s34 = int_to_ptr.vmem [resolvable:$true] %s33
      %39 = dma.hbm_to_vmem [thread:$0]  %s2, 1024, %s34, [#allocation7], 128, 128, 8
    $region13: #{tpu_custom_call.1} parent=1 // pred_fallthru
      _
    // Predicated region
    $region14: #{tpu_custom_call.1} parent=1 // pred_check
      _
    $region15: #{tpu_custom_call.1} parent=1 // pred_check_branch
      %41 = sbr.rel (0) target = $region17
    $region16: #{tpu_custom_call.1} parent=1 // pred_region
      _
    $region17: #{tpu_custom_call.1} parent=1 // pred_fallthru
      _
    // Predicated region
    $region18: #{tpu_custom_call.1} parent=1 // pred_check
      _
    $region19: #{tpu_custom_call.1} parent=1 // pred_check_branch
      %43 = sbr.rel (0) target = $region21
    $region20: #{tpu_custom_call.1} parent=1 // pred_region
      _
    $region21: #{tpu_custom_call.1} parent=1 // pred_fallthru
      _
    // Predicated region
    $region22: #{tpu_custom_call.1} parent=1 // pred_check
      _
    $region23: #{tpu_custom_call.1} parent=1 // pred_check_branch
      %45 = sbr.rel (0) target = $region25
    $region24: #{tpu_custom_call.1} parent=1 // pred_region
      %s47 = ssub.s32 512, 512
      %48 = vsyncadd [#allocation7], %s47
      %s49 = sshll.u32 [#allocation8], 4
      %s50 = int_to_ptr.vmem [resolvable:$true] %s49
      %55 = dma.hbm_to_vmem [thread:$0]  %s5, 512, %s50, [#allocation7], 128, 128, 8
    $region25: #{tpu_custom_call.1} parent=1 // pred_fallthru
      _
    // Predicated region
    $region26: #{tpu_custom_call.1} parent=1 // pred_check
      _
    $region27: #{tpu_custom_call.1} parent=1 // pred_check_branch
      %57 = sbr.rel (0) target = $region29
    $region28: #{tpu_custom_call.1} parent=1 // pred_region
      _
    $region29: #{tpu_custom_call.1} parent=1 // pred_fallthru
      _
    // Predicated region
    $region30: #{tpu_custom_call.1} parent=1 // pred_check
      _
    $region31: #{tpu_custom_call.1} parent=1 // pred_check_branch
      %59 = sbr.rel (0) target = $region33
    $region32: #{tpu_custom_call.1} parent=1 // pred_region
      _
    $region33: #{tpu_custom_call.1} parent=1 // pred_fallthru
      _
    // Predicated region
    $region34: #{tpu_custom_call.1} parent=1 // pred_check
      _
    $region35: #{tpu_custom_call.1} parent=1 // pred_check_branch
      %61 = sbr.rel (0) target = $region37
    $region36: #{tpu_custom_call.1} parent=1 // pred_region
      %62 = dma.done [#allocation4], 128
    $region37: #{tpu_custom_call.1} parent=1 // pred_fallthru
      _
    // Predicated region
    $region38: #{tpu_custom_call.1} parent=1 // pred_check
      _
    $region39: #{tpu_custom_call.1} parent=1 // pred_check_branch
      %64 = sbr.rel (0) target = $region41
    $region40: #{tpu_custom_call.1} parent=1 // pred_region
      %65 = dma.done [#allocation7], 1024
    $region41: #{tpu_custom_call.1} parent=1 // pred_fallthru
      _
    // Predicated region
    $region42: #{tpu_custom_call.1} parent=1 // pred_check
      _
    $region43: #{tpu_custom_call.1} parent=1 // pred_check_branch
      %67 = sbr.rel (0) target = $region45
    $region44: #{tpu_custom_call.1} parent=1 // pred_region
      %68 = dma.done [#allocation7], 512
    $region45: #{tpu_custom_call.1} parent=1 // pred_fallthru
      _
    %p69 = scmp.eq.s32.totalorder 0, 0
    // Predicated region
    $region46: #{tpu_custom_call.1} parent=1 // pred_check
      %p70 = pneg %p69
    $region47: #{tpu_custom_call.1} parent=1 // pred_check_branch
      %72 = sbr.rel (%p70) target = $region49
    $region48: #{tpu_custom_call.1} parent=1 // pred_region
      %v73 = vld [vmem:[%s0] sm:$0xff]
      %vm74 = vcmask 261120
      %75 = vst.msk [vmem:[#allocation2] sm:$0xff] %vm74, %v73
    $region49: #{tpu_custom_call.1} parent=1 // pred_fallthru
      _
    %v76 = vld [vmem:[#allocation6] sm:$0xff]
    %v77 = vld [vmem:[#allocation6 + $0x8] sm:$0xff]
    %v78 = vld [vmem:[#allocation6 + $0x10] sm:$0xff]
    %v79 = vld [vmem:[#allocation6 + $0x18] sm:$0xff]
    %v80 = vld [vmem:[#allocation6 + $0x20] sm:$0xff]
    %v81 = vld [vmem:[#allocation6 + $0x28] sm:$0xff]
    %v82 = vld [vmem:[#allocation6 + $0x30] sm:$0xff]
    %v83 = vld [vmem:[#allocation6 + $0x38] sm:$0xff]
    %v84 = vld [vmem:[%s3] sm:$0xff]
    %v85 = vld [vmem:[%s3 + $0x8] sm:$0xff]
    %v86 = vld [vmem:[%s3 + $0x10] sm:$0xff]
    %v87 = vld [vmem:[%s3 + $0x18] sm:$0xff]
    %v88 = vld [vmem:[%s4] sm:$0xff]
    %v89 = vld [vmem:[%s4 + $0x8] sm:$0xff]
    %v90 = vld [vmem:[%s4 + $0x10] sm:$0xff]
    %v91 = vld [vmem:[%s4 + $0x18] sm:$0xff]
    %v92 = vld [vmem:[#allocation8] sm:$0xff]
    %v93 = vld [vmem:[#allocation8 + $0x8] sm:$0xff]
    %v94 = vld [vmem:[#allocation8 + $0x10] sm:$0xff]
    %v95 = vld [vmem:[#allocation8 + $0x18] sm:$0xff]
    %v96 = vld [vmem:[%s6] sm:$0x1]
    %v97 = vld [vmem:[%s7] sm:$0x1]
    %v98 = vld [vmem:[#allocation2] sm:$0xff]
    %v99 = vld [vmem:[#allocation3] sm:$0xff]
    %vm100 = vcmask 261120
    %v102 = vsel %vm100, %v98, 0
    %104 = vmatprep.subr.mxu0 0.0
    %105 = vmatpush1.msra.mxu0 0.0
    %106 = vmatprep.subr.mxu0 0.0
    %107 = vmatpush1.msra.mxu0 0.0
    %108 = vmatprep.subr.mxu0 0.0
    %109 = vmatpush1.msra.mxu0 0.0
    %110 = vmatprep.subr.mxu0 0.0
    %111 = vmatpush1.msra.mxu0 0.0
    %112 = vmatprep.subr.mxu0 0.0
    %113 = vmatpush1.msra.mxu0 0.0
    %114 = vmatprep.subr.mxu0 0.0
    %115 = vmatpush1.msra.mxu0 0.0
    %116 = vmatprep.subr.mxu0 0.0
    %117 = vmatpush1.msra.mxu0 0.0
    %118 = vmatprep.subr.mxu0 0.0
    %119 = vmatpush1.msra.mxu0 0.0
    %120 = vmatprep.subr.mxu0 0.0
    %121 = vmatpush1.msra.mxu0 0.0
    %122 = vmatprep.subr.mxu0 0.0
    %123 = vmatpush1.msra.mxu0 0.0
    %124 = vmatprep.subr.mxu0 0.0
    %125 = vmatpush1.msra.mxu0 0.0
    %126 = vmatprep.subr.mxu0 0.0
    %127 = vmatpush1.msra.mxu0 0.0
    %128 = vmatprep.subr.mxu0 0.0
    %v129 = vand.u32 %v87, 4294901760
    %130 = vmatpush1.msra.mxu0 %v129
    %131 = vmatprep.subr.mxu0 0.0
    %v132 = vand.u32 %v86, 4294901760
    %133 = vmatpush1.msra.mxu0 %v132
    %134 = vmatprep.subr.mxu0 0.0
    %v135 = vand.u32 %v85, 4294901760
    %136 = vmatpush1.msra.mxu0 %v135
    %137 = vmatprep.subr.mxu0 0.0
    %v138 = vand.u32 %v84, 4294901760
    %139 = vmatpush1.msra.mxu0 %v138
    %140 = vmatprep.subr.mxu0 0.0
    %141 = vmatpush2.msra.mxu0 0.0
    %142 = vmatprep.subr.mxu0 0.0
    %143 = vmatpush2.msra.mxu0 0.0
    %144 = vmatprep.subr.mxu0 0.0
    %145 = vmatpush2.msra.mxu0 0.0
    %146 = vmatprep.subr.mxu0 0.0
    %147 = vmatpush2.msra.mxu0 0.0
    %148 = vmatprep.subr.mxu0 0.0
    %149 = vmatpush2.msra.mxu0 0.0
    %150 = vmatprep.subr.mxu0 0.0
    %151 = vmatpush2.msra.mxu0 0.0
    %152 = vmatprep.subr.mxu0 0.0
    %153 = vmatpush2.msra.mxu0 0.0
    %154 = vmatprep.subr.mxu0 0.0
    %155 = vmatpush2.msra.mxu0 0.0
    %156 = vmatprep.subr.mxu0 0.0
    %157 = vmatpush2.msra.mxu0 0.0
    %158 = vmatprep.subr.mxu0 0.0
    %159 = vmatpush2.msra.mxu0 0.0
    %160 = vmatprep.subr.mxu0 0.0
    %161 = vmatpush2.msra.mxu0 0.0
    %162 = vmatprep.subr.mxu0 0.0
    %163 = vmatpush2.msra.mxu0 0.0
    %164 = vmatprep.subr.mxu0 0.0
    %165 = vmatpush2.msra.mxu0 0.0
    %166 = vmatprep.subr.mxu0 0.0
    %167 = vmatpush2.msra.mxu0 0.0
    %168 = vmatprep.subr.mxu0 0.0
    %169 = vmatpush2.msra.mxu0 0.0
    %170 = vmatprep.subr.mxu0 0.0
    %171 = vmatpush2.msra.mxu0 0.0
    %172 = vmatprep.mubr.f32.mxu0 0.0
    %v173 = vand.u32 %v102, 4294901760
    %v174 = vsub.f32 %v102, %v173
    %v175 = vand.u32 %v174, 4294901760
    %v176 = vsub.f32 %v174, %v175
    %v177 = vand.u32 %v176, 4294901760
    %178 = vmatmul.mubr.f32.gmra.mxu0 %v177
    %v179 = vpop.f32.mrf.mxu0
    %v180 = vadd.f32 %v99, %v179
    %v181 = vpop.f32.mrf.mxu0
    %182 = vdwg.mxu0
    %183 = vmatprep.subr.mxu0 0.0
    %184 = vmatpush1.msra.mxu0 0.0
    %185 = vmatprep.subr.mxu0 0.0
    %186 = vmatpush1.msra.mxu0 0.0
    %187 = vmatprep.subr.mxu0 0.0
    %188 = vmatpush1.msra.mxu0 0.0
    %189 = vmatprep.subr.mxu0 0.0
    %190 = vmatpush1.msra.mxu0 0.0
    %191 = vmatprep.subr.mxu0 0.0
    %192 = vmatpush1.msra.mxu0 0.0
    %193 = vmatprep.subr.mxu0 0.0
    %194 = vmatpush1.msra.mxu0 0.0
    %195 = vmatprep.subr.mxu0 0.0
    %196 = vmatpush1.msra.mxu0 0.0
    %197 = vmatprep.subr.mxu0 0.0
    %198 = vmatpush1.msra.mxu0 0.0
    %199 = vmatprep.subr.mxu0 0.0
    %200 = vmatpush1.msra.mxu0 0.0
    %201 = vmatprep.subr.mxu0 0.0
    %202 = vmatpush1.msra.mxu0 0.0
    %203 = vmatprep.subr.mxu0 0.0
    %204 = vmatpush1.msra.mxu0 0.0
    %205 = vmatprep.subr.mxu0 0.0
    %206 = vmatpush1.msra.mxu0 0.0
    %207 = vmatprep.subr.mxu0 0.0
    %v208 = vand.u32 %v87, 4294901760
    %v209 = vsub.f32 %v87, %v208
    %v210 = vand.u32 %v209, 4294901760
    %v211 = vsub.f32 %v209, %v210
    %v212 = vand.u32 %v211, 4294901760
    %213 = vmatpush1.msra.mxu0 %v212
    %214 = vmatprep.subr.mxu0 0.0
    %v215 = vand.u32 %v86, 4294901760
    %v216 = vsub.f32 %v86, %v215
    %v217 = vand.u32 %v216, 4294901760
    %v218 = vsub.f32 %v216, %v217
    %v219 = vand.u32 %v218, 4294901760
    %220 = vmatpush1.msra.mxu0 %v219
    %221 = vmatprep.subr.mxu0 0.0
    %v222 = vand.u32 %v85, 4294901760
    %v223 = vsub.f32 %v85, %v222
    %v224 = vand.u32 %v223, 4294901760
    %v225 = vsub.f32 %v223, %v224
    %v226 = vand.u32 %v225, 4294901760
    %227 = vmatpush1.msra.mxu0 %v226
    %228 = vmatprep.subr.mxu0 0.0
    %v229 = vand.u32 %v84, 4294901760
    %v230 = vsub.f32 %v84, %v229
    %v231 = vand.u32 %v230, 4294901760
    %v232 = vsub.f32 %v230, %v231
    %v233 = vand.u32 %v232, 4294901760
    %234 = vmatpush1.msra.mxu0 %v233
    %235 = vmatprep.subr.mxu0 0.0
    %236 = vmatpush2.msra.mxu0 0.0
    %237 = vmatprep.subr.mxu0 0.0
    %238 = vmatpush2.msra.mxu0 0.0
    %239 = vmatprep.subr.mxu0 0.0
    %240 = vmatpush2.msra.mxu0 0.0
    %241 = vmatprep.subr.mxu0 0.0
    %242 = vmatpush2.msra.mxu0 0.0
    %243 = vmatprep.subr.mxu0 0.0
    %244 = vmatpush2.msra.mxu0 0.0
    %245 = vmatprep.subr.mxu0 0.0
    %246 = vmatpush2.msra.mxu0 0.0
    %247 = vmatprep.subr.mxu0 0.0
    %248 = vmatpush2.msra.mxu0 0.0
    %249 = vmatprep.subr.mxu0 0.0
    %250 = vmatpush2.msra.mxu0 0.0
    %251 = vmatprep.subr.mxu0 0.0
    %252 = vmatpush2.msra.mxu0 0.0
    %253 = vmatprep.subr.mxu0 0.0
    %254 = vmatpush2.msra.mxu0 0.0
    %255 = vmatprep.subr.mxu0 0.0
    %256 = vmatpush2.msra.mxu0 0.0
    %257 = vmatprep.subr.mxu0 0.0
    %258 = vmatpush2.msra.mxu0 0.0
    %259 = vmatprep.subr.mxu0 0.0
    %260 = vmatpush2.msra.mxu0 0.0
    %261 = vmatprep.subr.mxu0 0.0
    %262 = vmatpush2.msra.mxu0 0.0
    %263 = vmatprep.subr.mxu0 0.0
    %264 = vmatpush2.msra.mxu0 0.0
    %265 = vmatprep.subr.mxu0 0.0
    %266 = vmatpush2.msra.mxu0 0.0
    %267 = vmatprep.mubr.f32.mxu0 0.0
    %v268 = vand.u32 %v102, 4294901760
    %269 = vmatmul.mubr.f32.gmra.mxu0 %v268
    %v270 = vpop.f32.mrf.mxu0
    %v271 = vadd.f32 %v180, %v270
    %v272 = vpop.f32.mrf.mxu0
    %273 = vdwg.mxu0
    %274 = vmatprep.subr.mxu0 0.0
    %275 = vmatpush1.msra.mxu0 0.0
    %276 = vmatprep.subr.mxu0 0.0
    %277 = vmatpush1.msra.mxu0 0.0
    %278 = vmatprep.subr.mxu0 0.0
    %279 = vmatpush1.msra.mxu0 0.0
    %280 = vmatprep.subr.mxu0 0.0
    %281 = vmatpush1.msra.mxu0 0.0
    %282 = vmatprep.subr.mxu0 0.0
    %283 = vmatpush1.msra.mxu0 0.0
    %284 = vmatprep.subr.mxu0 0.0
    %285 = vmatpush1.msra.mxu0 0.0
    %286 = vmatprep.subr.mxu0 0.0
    %287 = vmatpush1.msra.mxu0 0.0
    %288 = vmatprep.subr.mxu0 0.0
    %289 = vmatpush1.msra.mxu0 0.0
    %290 = vmatprep.subr.mxu0 0.0
    %291 = vmatpush1.msra.mxu0 0.0
    %292 = vmatprep.subr.mxu0 0.0
    %293 = vmatpush1.msra.mxu0 0.0
    %294 = vmatprep.subr.mxu0 0.0
    %295 = vmatpush1.msra.mxu0 0.0
    %296 = vmatprep.subr.mxu0 0.0
    %297 = vmatpush1.msra.mxu0 0.0
    %298 = vmatprep.subr.mxu0 0.0
    %v299 = vand.u32 %v87, 4294901760
    %v300 = vsub.f32 %v87, %v299
    %301 = vmatpush1.msra.mxu0 %v300
    %302 = vmatprep.subr.mxu0 0.0
    %v303 = vand.u32 %v86, 4294901760
    %v304 = vsub.f32 %v86, %v303
    %305 = vmatpush1.msra.mxu0 %v304
    %306 = vmatprep.subr.mxu0 0.0
    %v307 = vand.u32 %v85, 4294901760
    %v308 = vsub.f32 %v85, %v307
    %309 = vmatpush1.msra.mxu0 %v308
    %310 = vmatprep.subr.mxu0 0.0
    %v311 = vand.u32 %v84, 4294901760
    %v312 = vsub.f32 %v84, %v311
    %313 = vmatpush1.msra.mxu0 %v312
    %314 = vmatprep.subr.mxu0 0.0
    %315 = vmatpush2.msra.mxu0 0.0
    %316 = vmatprep.subr.mxu0 0.0
    %317 = vmatpush2.msra.mxu0 0.0
    %318 = vmatprep.subr.mxu0 0.0
    %319 = vmatpush2.msra.mxu0 0.0
    %320 = vmatprep.subr.mxu0 0.0
    %321 = vmatpush2.msra.mxu0 0.0
    %322 = vmatprep.subr.mxu0 0.0
    %323 = vmatpush2.msra.mxu0 0.0
    %324 = vmatprep.subr.mxu0 0.0
    %325 = vmatpush2.msra.mxu0 0.0
    %326 = vmatprep.subr.mxu0 0.0
    %327 = vmatpush2.msra.mxu0 0.0
    %328 = vmatprep.subr.mxu0 0.0
    %329 = vmatpush2.msra.mxu0 0.0
    %330 = vmatprep.subr.mxu0 0.0
    %331 = vmatpush2.msra.mxu0 0.0
    %332 = vmatprep.subr.mxu0 0.0
    %333 = vmatpush2.msra.mxu0 0.0
    %334 = vmatprep.subr.mxu0 0.0
    %335 = vmatpush2.msra.mxu0 0.0
    %336 = vmatprep.subr.mxu0 0.0
    %337 = vmatpush2.msra.mxu0 0.0
    %338 = vmatprep.subr.mxu0 0.0
    %339 = vmatpush2.msra.mxu0 0.0
    %340 = vmatprep.subr.mxu0 0.0
    %341 = vmatpush2.msra.mxu0 0.0
    %342 = vmatprep.subr.mxu0 0.0
    %343 = vmatpush2.msra.mxu0 0.0
    %344 = vmatprep.subr.mxu0 0.0
    %345 = vmatpush2.msra.mxu0 0.0
    %346 = vmatprep.mubr.f32.mxu0 0.0
    %v347 = vand.u32 %v102, 4294901760
    %v348 = vsub.f32 %v102, %v347
    %349 = vmatmul.mubr.f32.gmra.mxu0 %v348
    %v350 = vpop.f32.mrf.mxu0
    %v351 = vadd.f32 %v271, %v350
    %v352 = vpop.f32.mrf.mxu0
    %353 = vdwg.mxu0
    %354 = vmatprep.subr.mxu0 0.0
    %355 = vmatpush1.msra.mxu0 0.0
    %356 = vmatprep.subr.mxu0 0.0
    %357 = vmatpush1.msra.mxu0 0.0
    %358 = vmatprep.subr.mxu0 0.0
    %359 = vmatpush1.msra.mxu0 0.0
    %360 = vmatprep.subr.mxu0 0.0
    %361 = vmatpush1.msra.mxu0 0.0
    %362 = vmatprep.subr.mxu0 0.0
    %363 = vmatpush1.msra.mxu0 0.0
    %364 = vmatprep.subr.mxu0 0.0
    %365 = vmatpush1.msra.mxu0 0.0
    %366 = vmatprep.subr.mxu0 0.0
    %367 = vmatpush1.msra.mxu0 0.0
    %368 = vmatprep.subr.mxu0 0.0
    %369 = vmatpush1.msra.mxu0 0.0
    %370 = vmatprep.subr.mxu0 0.0
    %371 = vmatpush1.msra.mxu0 0.0
    %372 = vmatprep.subr.mxu0 0.0
    %373 = vmatpush1.msra.mxu0 0.0
    %374 = vmatprep.subr.mxu0 0.0
    %375 = vmatpush1.msra.mxu0 0.0
    %376 = vmatprep.subr.mxu0 0.0
    %377 = vmatpush1.msra.mxu0 0.0
    %378 = vmatprep.subr.mxu0 0.0
    %v379 = vand.u32 %v87, 4294901760
    %380 = vmatpush1.msra.mxu0 %v379
    %381 = vmatprep.subr.mxu0 0.0
    %v382 = vand.u32 %v86, 4294901760
    %383 = vmatpush1.msra.mxu0 %v382
    %384 = vmatprep.subr.mxu0 0.0
    %v385 = vand.u32 %v85, 4294901760
    %386 = vmatpush1.msra.mxu0 %v385
    %387 = vmatprep.subr.mxu0 0.0
    %v388 = vand.u32 %v84, 4294901760
    %389 = vmatpush1.msra.mxu0 %v388
    %390 = vmatprep.subr.mxu0 0.0
    %391 = vmatpush2.msra.mxu0 0.0
    %392 = vmatprep.subr.mxu0 0.0
    %393 = vmatpush2.msra.mxu0 0.0
    %394 = vmatprep.subr.mxu0 0.0
    %395 = vmatpush2.msra.mxu0 0.0
    %396 = vmatprep.subr.mxu0 0.0
    %397 = vmatpush2.msra.mxu0 0.0
    %398 = vmatprep.subr.mxu0 0.0
    %399 = vmatpush2.msra.mxu0 0.0
    %400 = vmatprep.subr.mxu0 0.0
    %401 = vmatpush2.msra.mxu0 0.0
    %402 = vmatprep.subr.mxu0 0.0
    %403 = vmatpush2.msra.mxu0 0.0
    %404 = vmatprep.subr.mxu0 0.0
    %405 = vmatpush2.msra.mxu0 0.0
    %406 = vmatprep.subr.mxu0 0.0
    %407 = vmatpush2.msra.mxu0 0.0
    %408 = vmatprep.subr.mxu0 0.0
    %409 = vmatpush2.msra.mxu0 0.0
    %410 = vmatprep.subr.mxu0 0.0
    %411 = vmatpush2.msra.mxu0 0.0
    %412 = vmatprep.subr.mxu0 0.0
    %413 = vmatpush2.msra.mxu0 0.0
    %414 = vmatprep.subr.mxu0 0.0
    %415 = vmatpush2.msra.mxu0 0.0
    %416 = vmatprep.subr.mxu0 0.0
    %417 = vmatpush2.msra.mxu0 0.0
    %418 = vmatprep.subr.mxu0 0.0
    %419 = vmatpush2.msra.mxu0 0.0
    %420 = vmatprep.subr.mxu0 0.0
    %421 = vmatpush2.msra.mxu0 0.0
    %422 = vmatprep.mubr.f32.mxu0 0.0
    %v423 = vand.u32 %v102, 4294901760
    %v424 = vsub.f32 %v102, %v423
    %v425 = vand.u32 %v424, 4294901760
    %426 = vmatmul.mubr.f32.gmra.mxu0 %v425
    %v427 = vpop.f32.mrf.mxu0
    %v428 = vadd.f32 %v351, %v427
    %v429 = vpop.f32.mrf.mxu0
    %430 = vdwg.mxu0
    %431 = vmatprep.subr.mxu0 0.0
    %432 = vmatpush1.msra.mxu0 0.0
    %433 = vmatprep.subr.mxu0 0.0
    %434 = vmatpush1.msra.mxu0 0.0
    %435 = vmatprep.subr.mxu0 0.0
    %436 = vmatpush1.msra.mxu0 0.0
    %437 = vmatprep.subr.mxu0 0.0
    %438 = vmatpush1.msra.mxu0 0.0
    %439 = vmatprep.subr.mxu0 0.0
    %440 = vmatpush1.msra.mxu0 0.0
    %441 = vmatprep.subr.mxu0 0.0
    %442 = vmatpush1.msra.mxu0 0.0
    %443 = vmatprep.subr.mxu0 0.0
    %444 = vmatpush1.msra.mxu0 0.0
    %445 = vmatprep.subr.mxu0 0.0
    %446 = vmatpush1.msra.mxu0 0.0
    %447 = vmatprep.subr.mxu0 0.0
    %448 = vmatpush1.msra.mxu0 0.0
    %449 = vmatprep.subr.mxu0 0.0
    %450 = vmatpush1.msra.mxu0 0.0
    %451 = vmatprep.subr.mxu0 0.0
    %452 = vmatpush1.msra.mxu0 0.0
    %453 = vmatprep.subr.mxu0 0.0
    %454 = vmatpush1.msra.mxu0 0.0
    %455 = vmatprep.subr.mxu0 0.0
    %v456 = vand.u32 %v87, 4294901760
    %v457 = vsub.f32 %v87, %v456
    %v458 = vand.u32 %v457, 4294901760
    %459 = vmatpush1.msra.mxu0 %v458
    %460 = vmatprep.subr.mxu0 0.0
    %v461 = vand.u32 %v86, 4294901760
    %v462 = vsub.f32 %v86, %v461
    %v463 = vand.u32 %v462, 4294901760
    %464 = vmatpush1.msra.mxu0 %v463
    %465 = vmatprep.subr.mxu0 0.0
    %v466 = vand.u32 %v85, 4294901760
    %v467 = vsub.f32 %v85, %v466
    %v468 = vand.u32 %v467, 4294901760
    %469 = vmatpush1.msra.mxu0 %v468
    %470 = vmatprep.subr.mxu0 0.0
    %v471 = vand.u32 %v84, 4294901760
    %v472 = vsub.f32 %v84, %v471
    %v473 = vand.u32 %v472, 4294901760
    %474 = vmatpush1.msra.mxu0 %v473
    %475 = vmatprep.subr.mxu0 0.0
    %476 = vmatpush2.msra.mxu0 0.0
    %477 = vmatprep.subr.mxu0 0.0
    %478 = vmatpush2.msra.mxu0 0.0
    %479 = vmatprep.subr.mxu0 0.0
    %480 = vmatpush2.msra.mxu0 0.0
    %481 = vmatprep.subr.mxu0 0.0
    %482 = vmatpush2.msra.mxu0 0.0
    %483 = vmatprep.subr.mxu0 0.0
    %484 = vmatpush2.msra.mxu0 0.0
    %485 = vmatprep.subr.mxu0 0.0
    %486 = vmatpush2.msra.mxu0 0.0
    %487 = vmatprep.subr.mxu0 0.0
    %488 = vmatpush2.msra.mxu0 0.0
    %489 = vmatprep.subr.mxu0 0.0
    %490 = vmatpush2.msra.mxu0 0.0
    %491 = vmatprep.subr.mxu0 0.0
    %492 = vmatpush2.msra.mxu0 0.0
    %493 = vmatprep.subr.mxu0 0.0
    %494 = vmatpush2.msra.mxu0 0.0
    %495 = vmatprep.subr.mxu0 0.0
    %496 = vmatpush2.msra.mxu0 0.0
    %497 = vmatprep.subr.mxu0 0.0
    %498 = vmatpush2.msra.mxu0 0.0
    %499 = vmatprep.subr.mxu0 0.0
    %500 = vmatpush2.msra.mxu0 0.0
    %501 = vmatprep.subr.mxu0 0.0
    %502 = vmatpush2.msra.mxu0 0.0
    %503 = vmatprep.subr.mxu0 0.0
    %504 = vmatpush2.msra.mxu0 0.0
    %505 = vmatprep.subr.mxu0 0.0
    %506 = vmatpush2.msra.mxu0 0.0
    %507 = vmatprep.mubr.f32.mxu0 0.0
    %v508 = vand.u32 %v102, 4294901760
    %509 = vmatmul.mubr.f32.gmra.mxu0 %v508
    %v510 = vpop.f32.mrf.mxu0
    %v511 = vadd.f32 %v428, %v510
    %v512 = vpop.f32.mrf.mxu0
    %513 = vdwg.mxu0
    %514 = vmatprep.subr.mxu0 0.0
    %515 = vmatpush1.msra.mxu0 0.0
    %516 = vmatprep.subr.mxu0 0.0
    %517 = vmatpush1.msra.mxu0 0.0
    %518 = vmatprep.subr.mxu0 0.0
    %519 = vmatpush1.msra.mxu0 0.0
    %520 = vmatprep.subr.mxu0 0.0
    %521 = vmatpush1.msra.mxu0 0.0
    %522 = vmatprep.subr.mxu0 0.0
    %523 = vmatpush1.msra.mxu0 0.0
    %524 = vmatprep.subr.mxu0 0.0
    %525 = vmatpush1.msra.mxu0 0.0
    %526 = vmatprep.subr.mxu0 0.0
    %527 = vmatpush1.msra.mxu0 0.0
    %528 = vmatprep.subr.mxu0 0.0
    %529 = vmatpush1.msra.mxu0 0.0
    %530 = vmatprep.subr.mxu0 0.0
    %531 = vmatpush1.msra.mxu0 0.0
    %532 = vmatprep.subr.mxu0 0.0
    %533 = vmatpush1.msra.mxu0 0.0
    %534 = vmatprep.subr.mxu0 0.0
    %535 = vmatpush1.msra.mxu0 0.0
    %536 = vmatprep.subr.mxu0 0.0
    %537 = vmatpush1.msra.mxu0 0.0
    %538 = vmatprep.subr.mxu0 0.0
    %v539 = vand.u32 %v87, 4294901760
    %540 = vmatpush1.msra.mxu0 %v539
    %541 = vmatprep.subr.mxu0 0.0
    %v542 = vand.u32 %v86, 4294901760
    %543 = vmatpush1.msra.mxu0 %v542
    %544 = vmatprep.subr.mxu0 0.0
    %v545 = vand.u32 %v85, 4294901760
    %546 = vmatpush1.msra.mxu0 %v545
    %547 = vmatprep.subr.mxu0 0.0
    %v548 = vand.u32 %v84, 4294901760
    %549 = vmatpush1.msra.mxu0 %v548
    %550 = vmatprep.subr.mxu0 0.0
    %551 = vmatpush2.msra.mxu0 0.0
    %552 = vmatprep.subr.mxu0 0.0
    %553 = vmatpush2.msra.mxu0 0.0
    %554 = vmatprep.subr.mxu0 0.0
    %555 = vmatpush2.msra.mxu0 0.0
    %556 = vmatprep.subr.mxu0 0.0
    %557 = vmatpush2.msra.mxu0 0.0
    %558 = vmatprep.subr.mxu0 0.0
    %559 = vmatpush2.msra.mxu0 0.0
    %560 = vmatprep.subr.mxu0 0.0
    %561 = vmatpush2.msra.mxu0 0.0
    %562 = vmatprep.subr.mxu0 0.0
    %563 = vmatpush2.msra.mxu0 0.0
    %564 = vmatprep.subr.mxu0 0.0
    %565 = vmatpush2.msra.mxu0 0.0
    %566 = vmatprep.subr.mxu0 0.0
    %567 = vmatpush2.msra.mxu0 0.0
    %568 = vmatprep.subr.mxu0 0.0
    %569 = vmatpush2.msra.mxu0 0.0
    %570 = vmatprep.subr.mxu0 0.0
    %571 = vmatpush2.msra.mxu0 0.0
    %572 = vmatprep.subr.mxu0 0.0
    %573 = vmatpush2.msra.mxu0 0.0
    %574 = vmatprep.subr.mxu0 0.0
    %575 = vmatpush2.msra.mxu0 0.0
    %576 = vmatprep.subr.mxu0 0.0
    %577 = vmatpush2.msra.mxu0 0.0
    %578 = vmatprep.subr.mxu0 0.0
    %579 = vmatpush2.msra.mxu0 0.0
    %580 = vmatprep.subr.mxu0 0.0
    %581 = vmatpush2.msra.mxu0 0.0
    %582 = vmatprep.mubr.f32.mxu0 0.0
    %v583 = vand.u32 %v102, 4294901760
    %584 = vmatmul.mubr.f32.gmra.mxu0 %v583
    %v585 = vpop.f32.mrf.mxu0
    %v586 = vadd.f32 %v511, %v585
    %v587 = vpop.f32.mrf.mxu0
    %588 = vdwg.mxu0
    %vm589 = vcmask 64512
    %v590 = vsel %vm589, %v586, -inf
    %591 = vmax.xlane.f32.xlu0 %v590
    %v592 = vpop.xlane.xlu0 %591
    %v593 = vsub.f32 %v586, %v592
    %v594 = vmul.f32 %v593, 1.442695
    %v595 = vpow.pop %v594
    %v596 = vsel %vm589, %v595, 0.0
    %597 = vadd.xlane.f32.xlu0 %v596
    %v598 = vpop.xlane.xlu0 %597
    %v599 = vrcp.pop %v598
    %v600 = vmul.f32 %v595, %v599
    %v602 = vcombine.high %v600, %v600
    %v604 = vunpack.c.l.s4 1966171168
    %v605 = vunpack.c.0.s8 %v604
    %v606 = vlaneseq
    %v607 = vshrl.u32 %v606, 7
    %v608 = vsub.s32 %v605, %v607
    %v609 = vrot.slane %v600, %v608
    %v611 = vunpack.c.l.s4 1966171168
    %v612 = vunpack.c.0.s8 %v611
    %v613 = vlaneseq
    %v614 = vshrl.u32 %v613, 7
    %v615 = vsub.s32 %v612, %v614
    %v616 = vrot.slane %v602, %v615
    %v617 = vcombine.high %v609, %v609
    %v618 = vcombine.high %v616, %v616
    %v620 = vunpack.c.l.s4 1966171168
    %v621 = vunpack.c.0.s8 %v620
    %v622 = vlaneseq
    %v623 = vshrl.u32 %v622, 7
    %v624 = vsub.s32 %v621, %v623
    %v625 = vrot.slane %v609, %v624
    %v627 = vunpack.c.l.s4 1966171168
    %v628 = vunpack.c.0.s8 %v627
    %v629 = vlaneseq
    %v630 = vshrl.u32 %v629, 7
    %v631 = vsub.s32 %v628, %v630
    %v632 = vrot.slane %v616, %v631
    %v634 = vunpack.c.l.s4 1966171168
    %v635 = vunpack.c.0.s8 %v634
    %v636 = vlaneseq
    %v637 = vshrl.u32 %v636, 7
    %v638 = vsub.s32 %v635, %v637
    %v639 = vrot.slane %v617, %v638
    %v641 = vunpack.c.l.s4 1966171168
    %v642 = vunpack.c.0.s8 %v641
    %v643 = vlaneseq
    %v644 = vshrl.u32 %v643, 7
    %v645 = vsub.s32 %v642, %v644
    %v646 = vrot.slane %v618, %v645
    %v647 = vcombine.high %v625, %v625
    %v648 = vcombine.high %v632, %v632
    %v649 = vcombine.high %v639, %v639
    %v650 = vcombine.high %v646, %v646
    %v651 = vsel %vm589, %v625, 0
    %653 = vmatprep.subr.mxu0 0.0
    %654 = vmatpush1.msra.mxu0 0.0
    %655 = vmatprep.subr.mxu0 0.0
    %656 = vmatpush1.msra.mxu0 0.0
    %657 = vmatprep.subr.mxu0 0.0
    %658 = vmatpush1.msra.mxu0 0.0
    %659 = vmatprep.subr.mxu0 0.0
    %660 = vmatpush1.msra.mxu0 0.0
    %661 = vmatprep.subr.mxu0 0.0
    %662 = vmatpush1.msra.mxu0 0.0
    %663 = vmatprep.subr.mxu0 0.0
    %664 = vmatpush1.msra.mxu0 0.0
    %665 = vmatprep.subr.mxu0 0.0
    %666 = vmatpush1.msra.mxu0 0.0
    %667 = vmatprep.subr.mxu0 0.0
    %668 = vmatpush1.msra.mxu0 0.0
    %669 = vmatprep.subr.mxu0 0.0
    %670 = vmatpush1.msra.mxu0 0.0
    %671 = vmatprep.subr.mxu0 0.0
    %672 = vmatpush1.msra.mxu0 0.0
    %673 = vmatprep.subr.mxu0 0.0
    %674 = vmatpush1.msra.mxu0 0.0
    %675 = vmatprep.subr.mxu0 0.0
    %676 = vmatpush1.msra.mxu0 0.0
    %677 = vmatprep.subr.mxu0 0.0
    %678 = vmatpush1.msra.mxu0 0.0
    %679 = vmatprep.subr.mxu0 0.0
    %680 = vmatpush1.msra.mxu0 0.0
    %681 = vmatprep.subr.mxu0 0.0
    %682 = vmatpush1.msra.mxu0 0.0
    %683 = vmatprep.subr.mxu0 0.0
    %v684 = vand.u32 %v76, 4294901760
    %685 = vmatpush1.msra.mxu0 %v684
    %686 = vmatprep.subr.mxu0 0.0
    %687 = vmatpush2.msra.mxu0 0.0
    %688 = vmatprep.subr.mxu0 0.0
    %689 = vmatpush2.msra.mxu0 0.0
    %690 = vmatprep.subr.mxu0 0.0
    %691 = vmatpush2.msra.mxu0 0.0
    %692 = vmatprep.subr.mxu0 0.0
    %693 = vmatpush2.msra.mxu0 0.0
    %694 = vmatprep.subr.mxu0 0.0
    %695 = vmatpush2.msra.mxu0 0.0
    %696 = vmatprep.subr.mxu0 0.0
    %697 = vmatpush2.msra.mxu0 0.0
    %698 = vmatprep.subr.mxu0 0.0
    %699 = vmatpush2.msra.mxu0 0.0
    %700 = vmatprep.subr.mxu0 0.0
    %701 = vmatpush2.msra.mxu0 0.0
    %702 = vmatprep.subr.mxu0 0.0
    %703 = vmatpush2.msra.mxu0 0.0
    %704 = vmatprep.subr.mxu0 0.0
    %705 = vmatpush2.msra.mxu0 0.0
    %706 = vmatprep.subr.mxu0 0.0
    %707 = vmatpush2.msra.mxu0 0.0
    %708 = vmatprep.subr.mxu0 0.0
    %709 = vmatpush2.msra.mxu0 0.0
    %710 = vmatprep.subr.mxu0 0.0
    %711 = vmatpush2.msra.mxu0 0.0
    %712 = vmatprep.subr.mxu0 0.0
    %713 = vmatpush2.msra.mxu0 0.0
    %714 = vmatprep.subr.mxu0 0.0
    %715 = vmatpush2.msra.mxu0 0.0
    %716 = vmatprep.subr.mxu0 0.0
    %717 = vmatpush2.msra.mxu0 0.0
    %718 = vmatprep.mubr.f32.mxu0 0.0
    %v719 = vand.u32 %v651, 4294901760
    %v720 = vsub.f32 %v651, %v719
    %v721 = vand.u32 %v720, 4294901760
    %v722 = vsub.f32 %v720, %v721
    %v723 = vand.u32 %v722, 4294901760
    %724 = vmatmul.mubr.f32.gmra.mxu0 %v723
    %v725 = vpop.f32.mrf.mxu0
    %v726 = vadd.f32 0.0, %v725
    %v727 = vpop.f32.mrf.mxu0
    %728 = vdwg.mxu0
    %729 = vmatprep.subr.mxu0 0.0
    %730 = vmatpush1.msra.mxu0 0.0
    %731 = vmatprep.subr.mxu0 0.0
    %732 = vmatpush1.msra.mxu0 0.0
    %733 = vmatprep.subr.mxu0 0.0
    %734 = vmatpush1.msra.mxu0 0.0
    %735 = vmatprep.subr.mxu0 0.0
    %736 = vmatpush1.msra.mxu0 0.0
    %737 = vmatprep.subr.mxu0 0.0
    %738 = vmatpush1.msra.mxu0 0.0
    %739 = vmatprep.subr.mxu0 0.0
    %740 = vmatpush1.msra.mxu0 0.0
    %741 = vmatprep.subr.mxu0 0.0
    %742 = vmatpush1.msra.mxu0 0.0
    %743 = vmatprep.subr.mxu0 0.0
    %744 = vmatpush1.msra.mxu0 0.0
    %745 = vmatprep.subr.mxu0 0.0
    %746 = vmatpush1.msra.mxu0 0.0
    %747 = vmatprep.subr.mxu0 0.0
    %748 = vmatpush1.msra.mxu0 0.0
    %749 = vmatprep.subr.mxu0 0.0
    %750 = vmatpush1.msra.mxu0 0.0
    %751 = vmatprep.subr.mxu0 0.0
    %752 = vmatpush1.msra.mxu0 0.0
    %753 = vmatprep.subr.mxu0 0.0
    %754 = vmatpush1.msra.mxu0 0.0
    %755 = vmatprep.subr.mxu0 0.0
    %756 = vmatpush1.msra.mxu0 0.0
    %757 = vmatprep.subr.mxu0 0.0
    %758 = vmatpush1.msra.mxu0 0.0
    %759 = vmatprep.subr.mxu0 0.0
    %v760 = vand.u32 %v76, 4294901760
    %v761 = vsub.f32 %v76, %v760
    %v762 = vand.u32 %v761, 4294901760
    %v763 = vsub.f32 %v761, %v762
    %v764 = vand.u32 %v763, 4294901760
    %765 = vmatpush1.msra.mxu0 %v764
    %766 = vmatprep.subr.mxu0 0.0
    %767 = vmatpush2.msra.mxu0 0.0
    %768 = vmatprep.subr.mxu0 0.0
    %769 = vmatpush2.msra.mxu0 0.0
    %770 = vmatprep.subr.mxu0 0.0
    %771 = vmatpush2.msra.mxu0 0.0
    %772 = vmatprep.subr.mxu0 0.0
    %773 = vmatpush2.msra.mxu0 0.0
    %774 = vmatprep.subr.mxu0 0.0
    %775 = vmatpush2.msra.mxu0 0.0
    %776 = vmatprep.subr.mxu0 0.0
    %777 = vmatpush2.msra.mxu0 0.0
    %778 = vmatprep.subr.mxu0 0.0
    %779 = vmatpush2.msra.mxu0 0.0
    %780 = vmatprep.subr.mxu0 0.0
    %781 = vmatpush2.msra.mxu0 0.0
    %782 = vmatprep.subr.mxu0 0.0
    %783 = vmatpush2.msra.mxu0 0.0
    %784 = vmatprep.subr.mxu0 0.0
    %785 = vmatpush2.msra.mxu0 0.0
    %786 = vmatprep.subr.mxu0 0.0
    %787 = vmatpush2.msra.mxu0 0.0
    %788 = vmatprep.subr.mxu0 0.0
    %789 = vmatpush2.msra.mxu0 0.0
    %790 = vmatprep.subr.mxu0 0.0
    %791 = vmatpush2.msra.mxu0 0.0
    %792 = vmatprep.subr.mxu0 0.0
    %793 = vmatpush2.msra.mxu0 0.0
    %794 = vmatprep.subr.mxu0 0.0
    %795 = vmatpush2.msra.mxu0 0.0
    %796 = vmatprep.subr.mxu0 0.0
    %797 = vmatpush2.msra.mxu0 0.0
    %798 = vmatprep.mubr.f32.mxu0 0.0
    %v799 = vand.u32 %v651, 4294901760
    %800 = vmatmul.mubr.f32.gmra.mxu0 %v799
    %v801 = vpop.f32.mrf.mxu0
    %v802 = vadd.f32 %v726, %v801
    %v803 = vpop.f32.mrf.mxu0
    %804 = vdwg.mxu0
    %805 = vmatprep.subr.mxu0 0.0
    %806 = vmatpush1.msra.mxu0 0.0
    %807 = vmatprep.subr.mxu0 0.0
    %808 = vmatpush1.msra.mxu0 0.0
    %809 = vmatprep.subr.mxu0 0.0
    %810 = vmatpush1.msra.mxu0 0.0
    %811 = vmatprep.subr.mxu0 0.0
    %812 = vmatpush1.msra.mxu0 0.0
    %813 = vmatprep.subr.mxu0 0.0
    %814 = vmatpush1.msra.mxu0 0.0
    %815 = vmatprep.subr.mxu0 0.0
    %816 = vmatpush1.msra.mxu0 0.0
    %817 = vmatprep.subr.mxu0 0.0
    %818 = vmatpush1.msra.mxu0 0.0
    %819 = vmatprep.subr.mxu0 0.0
    %820 = vmatpush1.msra.mxu0 0.0
    %821 = vmatprep.subr.mxu0 0.0
    %822 = vmatpush1.msra.mxu0 0.0
    %823 = vmatprep.subr.mxu0 0.0
    %824 = vmatpush1.msra.mxu0 0.0
    %825 = vmatprep.subr.mxu0 0.0
    %826 = vmatpush1.msra.mxu0 0.0
    %827 = vmatprep.subr.mxu0 0.0
    %828 = vmatpush1.msra.mxu0 0.0
    %829 = vmatprep.subr.mxu0 0.0
    %830 = vmatpush1.msra.mxu0 0.0
    %831 = vmatprep.subr.mxu0 0.0
    %832 = vmatpush1.msra.mxu0 0.0
    %833 = vmatprep.subr.mxu0 0.0
    %834 = vmatpush1.msra.mxu0 0.0
    %835 = vmatprep.subr.mxu0 0.0
    %v836 = vand.u32 %v76, 4294901760
    %v837 = vsub.f32 %v76, %v836
    %838 = vmatpush1.msra.mxu0 %v837
    %839 = vmatprep.subr.mxu0 0.0
    %840 = vmatpush2.msra.mxu0 0.0
    %841 = vmatprep.subr.mxu0 0.0
    %842 = vmatpush2.msra.mxu0 0.0
    %843 = vmatprep.subr.mxu0 0.0
    %844 = vmatpush2.msra.mxu0 0.0
    %845 = vmatprep.subr.mxu0 0.0
    %846 = vmatpush2.msra.mxu0 0.0
    %847 = vmatprep.subr.mxu0 0.0
    %848 = vmatpush2.msra.mxu0 0.0
    %849 = vmatprep.subr.mxu0 0.0
    %850 = vmatpush2.msra.mxu0 0.0
    %851 = vmatprep.subr.mxu0 0.0
    %852 = vmatpush2.msra.mxu0 0.0
    %853 = vmatprep.subr.mxu0 0.0
    %854 = vmatpush2.msra.mxu0 0.0
    %855 = vmatprep.subr.mxu0 0.0
    %856 = vmatpush2.msra.mxu0 0.0
    %857 = vmatprep.subr.mxu0 0.0
    %858 = vmatpush2.msra.mxu0 0.0
    %859 = vmatprep.subr.mxu0 0.0
    %860 = vmatpush2.msra.mxu0 0.0
    %861 = vmatprep.subr.mxu0 0.0
    %862 = vmatpush2.msra.mxu0 0.0
    %863 = vmatprep.subr.mxu0 0.0
    %864 = vmatpush2.msra.mxu0 0.0
    %865 = vmatprep.subr.mxu0 0.0
    %866 = vmatpush2.msra.mxu0 0.0
    %867 = vmatprep.subr.mxu0 0.0
    %868 = vmatpush2.msra.mxu0 0.0
    %869 = vmatprep.subr.mxu0 0.0
    %870 = vmatpush2.msra.mxu0 0.0
    %871 = vmatprep.mubr.f32.mxu0 0.0
    %v872 = vand.u32 %v651, 4294901760
    %v873 = vsub.f32 %v651, %v872
    %874 = vmatmul.mubr.f32.gmra.mxu0 %v873
    %v875 = vpop.f32.mrf.mxu0
    %v876 = vadd.f32 %v802, %v875
    %v877 = vpop.f32.mrf.mxu0
    %878 = vdwg.mxu0
    %879 = vmatprep.subr.mxu0 0.0
    %880 = vmatpush1.msra.mxu0 0.0
    %881 = vmatprep.subr.mxu0 0.0
    %882 = vmatpush1.msra.mxu0 0.0
    %883 = vmatprep.subr.mxu0 0.0
    %884 = vmatpush1.msra.mxu0 0.0
    %885 = vmatprep.subr.mxu0 0.0
    %886 = vmatpush1.msra.mxu0 0.0
    %887 = vmatprep.subr.mxu0 0.0
    %888 = vmatpush1.msra.mxu0 0.0
    %889 = vmatprep.subr.mxu0 0.0
    %890 = vmatpush1.msra.mxu0 0.0
    %891 = vmatprep.subr.mxu0 0.0
    %892 = vmatpush1.msra.mxu0 0.0
    %893 = vmatprep.subr.mxu0 0.0
    %894 = vmatpush1.msra.mxu0 0.0
    %895 = vmatprep.subr.mxu0 0.0
    %896 = vmatpush1.msra.mxu0 0.0
    %897 = vmatprep.subr.mxu0 0.0
    %898 = vmatpush1.msra.mxu0 0.0
    %899 = vmatprep.subr.mxu0 0.0
    %900 = vmatpush1.msra.mxu0 0.0
    %901 = vmatprep.subr.mxu0 0.0
    %902 = vmatpush1.msra.mxu0 0.0
    %903 = vmatprep.subr.mxu0 0.0
    %904 = vmatpush1.msra.mxu0 0.0
    %905 = vmatprep.subr.mxu0 0.0
    %906 = vmatpush1.msra.mxu0 0.0
    %907 = vmatprep.subr.mxu0 0.0
    %908 = vmatpush1.msra.mxu0 0.0
    %909 = vmatprep.subr.mxu0 0.0
    %v910 = vand.u32 %v76, 4294901760
    %911 = vmatpush1.msra.mxu0 %v910
    %912 = vmatprep.subr.mxu0 0.0
    %913 = vmatpush2.msra.mxu0 0.0
    %914 = vmatprep.subr.mxu0 0.0
    %915 = vmatpush2.msra.mxu0 0.0
    %916 = vmatprep.subr.mxu0 0.0
    %917 = vmatpush2.msra.mxu0 0.0
    %918 = vmatprep.subr.mxu0 0.0
    %919 = vmatpush2.msra.mxu0 0.0
    %920 = vmatprep.subr.mxu0 0.0
    %921 = vmatpush2.msra.mxu0 0.0
    %922 = vmatprep.subr.mxu0 0.0
    %923 = vmatpush2.msra.mxu0 0.0
    %924 = vmatprep.subr.mxu0 0.0
    %925 = vmatpush2.msra.mxu0 0.0
    %926 = vmatprep.subr.mxu0 0.0
    %927 = vmatpush2.msra.mxu0 0.0
    %928 = vmatprep.subr.mxu0 0.0
    %929 = vmatpush2.msra.mxu0 0.0
    %930 = vmatprep.subr.mxu0 0.0
    %931 = vmatpush2.msra.mxu0 0.0
    %932 = vmatprep.subr.mxu0 0.0
    %933 = vmatpush2.msra.mxu0 0.0
    %934 = vmatprep.subr.mxu0 0.0
    %935 = vmatpush2.msra.mxu0 0.0
    %936 = vmatprep.subr.mxu0 0.0
    %937 = vmatpush2.msra.mxu0 0.0
    %938 = vmatprep.subr.mxu0 0.0
    %939 = vmatpush2.msra.mxu0 0.0
    %940 = vmatprep.subr.mxu0 0.0
    %941 = vmatpush2.msra.mxu0 0.0
    %942 = vmatprep.subr.mxu0 0.0
    %943 = vmatpush2.msra.mxu0 0.0
    %944 = vmatprep.mubr.f32.mxu0 0.0
    %v945 = vand.u32 %v651, 4294901760
    %v946 = vsub.f32 %v651, %v945
    %v947 = vand.u32 %v946, 4294901760
    %948 = vmatmul.mubr.f32.gmra.mxu0 %v947
    %v949 = vpop.f32.mrf.mxu0
    %v950 = vadd.f32 %v876, %v949
    %v951 = vpop.f32.mrf.mxu0
    %952 = vdwg.mxu0
    %953 = vmatprep.subr.mxu0 0.0
    %954 = vmatpush1.msra.mxu0 0.0
    %955 = vmatprep.subr.mxu0 0.0
    %956 = vmatpush1.msra.mxu0 0.0
    %957 = vmatprep.subr.mxu0 0.0
    %958 = vmatpush1.msra.mxu0 0.0
    %959 = vmatprep.subr.mxu0 0.0
    %960 = vmatpush1.msra.mxu0 0.0
    %961 = vmatprep.subr.mxu0 0.0
    %962 = vmatpush1.msra.mxu0 0.0
    %963 = vmatprep.subr.mxu0 0.0
    %964 = vmatpush1.msra.mxu0 0.0
    %965 = vmatprep.subr.mxu0 0.0
    %966 = vmatpush1.msra.mxu0 0.0
    %967 = vmatprep.subr.mxu0 0.0
    %968 = vmatpush1.msra.mxu0 0.0
    %969 = vmatprep.subr.mxu0 0.0
    %970 = vmatpush1.msra.mxu0 0.0
    %971 = vmatprep.subr.mxu0 0.0
    %972 = vmatpush1.msra.mxu0 0.0
    %973 = vmatprep.subr.mxu0 0.0
    %974 = vmatpush1.msra.mxu0 0.0
    %975 = vmatprep.subr.mxu0 0.0
    %976 = vmatpush1.msra.mxu0 0.0
    %977 = vmatprep.subr.mxu0 0.0
    %978 = vmatpush1.msra.mxu0 0.0
    %979 = vmatprep.subr.mxu0 0.0
    %980 = vmatpush1.msra.mxu0 0.0
    %981 = vmatprep.subr.mxu0 0.0
    %982 = vmatpush1.msra.mxu0 0.0
    %983 = vmatprep.subr.mxu0 0.0
    %v984 = vand.u32 %v76, 4294901760
    %v985 = vsub.f32 %v76, %v984
    %v986 = vand.u32 %v985, 4294901760
    %987 = vmatpush1.msra.mxu0 %v986
    %988 = vmatprep.subr.mxu0 0.0
    %989 = vmatpush2.msra.mxu0 0.0
    %990 = vmatprep.subr.mxu0 0.0
    %991 = vmatpush2.msra.mxu0 0.0
    %992 = vmatprep.subr.mxu0 0.0
    %993 = vmatpush2.msra.mxu0 0.0
    %994 = vmatprep.subr.mxu0 0.0
    %995 = vmatpush2.msra.mxu0 0.0
    %996 = vmatprep.subr.mxu0 0.0
    %997 = vmatpush2.msra.mxu0 0.0
    %998 = vmatprep.subr.mxu0 0.0
    %999 = vmatpush2.msra.mxu0 0.0
    %1000 = vmatprep.subr.mxu0 0.0
    %1001 = vmatpush2.msra.mxu0 0.0
    %1002 = vmatprep.subr.mxu0 0.0
    %1003 = vmatpush2.msra.mxu0 0.0
    %1004 = vmatprep.subr.mxu0 0.0
    %1005 = vmatpush2.msra.mxu0 0.0
    %1006 = vmatprep.subr.mxu0 0.0
    %1007 = vmatpush2.msra.mxu0 0.0
    %1008 = vmatprep.subr.mxu0 0.0
    %1009 = vmatpush2.msra.mxu0 0.0
    %1010 = vmatprep.subr.mxu0 0.0
    %1011 = vmatpush2.msra.mxu0 0.0
    %1012 = vmatprep.subr.mxu0 0.0
    %1013 = vmatpush2.msra.mxu0 0.0
    %1014 = vmatprep.subr.mxu0 0.0
    %1015 = vmatpush2.msra.mxu0 0.0
    %1016 = vmatprep.subr.mxu0 0.0
    %1017 = vmatpush2.msra.mxu0 0.0
    %1018 = vmatprep.subr.mxu0 0.0
    %1019 = vmatpush2.msra.mxu0 0.0
    %1020 = vmatprep.mubr.f32.mxu0 0.0
    %v1021 = vand.u32 %v651, 4294901760
    %1022 = vmatmul.mubr.f32.gmra.mxu0 %v1021
    %v1023 = vpop.f32.mrf.mxu0
    %v1024 = vadd.f32 %v950, %v1023
    %v1025 = vpop.f32.mrf.mxu0
    %1026 = vdwg.mxu0
    %1027 = vmatprep.subr.mxu0 0.0
    %1028 = vmatpush1.msra.mxu0 0.0
    %1029 = vmatprep.subr.mxu0 0.0
    %1030 = vmatpush1.msra.mxu0 0.0
    %1031 = vmatprep.subr.mxu0 0.0
    %1032 = vmatpush1.msra.mxu0 0.0
    %1033 = vmatprep.subr.mxu0 0.0
    %1034 = vmatpush1.msra.mxu0 0.0
    %1035 = vmatprep.subr.mxu0 0.0
    %1036 = vmatpush1.msra.mxu0 0.0
    %1037 = vmatprep.subr.mxu0 0.0
    %1038 = vmatpush1.msra.mxu0 0.0
    %1039 = vmatprep.subr.mxu0 0.0
    %1040 = vmatpush1.msra.mxu0 0.0
    %1041 = vmatprep.subr.mxu0 0.0
    %1042 = vmatpush1.msra.mxu0 0.0
    %1043 = vmatprep.subr.mxu0 0.0
    %1044 = vmatpush1.msra.mxu0 0.0
    %1045 = vmatprep.subr.mxu0 0.0
    %1046 = vmatpush1.msra.mxu0 0.0
    %1047 = vmatprep.subr.mxu0 0.0
    %1048 = vmatpush1.msra.mxu0 0.0
    %1049 = vmatprep.subr.mxu0 0.0
    %1050 = vmatpush1.msra.mxu0 0.0
    %1051 = vmatprep.subr.mxu0 0.0
    %1052 = vmatpush1.msra.mxu0 0.0
    %1053 = vmatprep.subr.mxu0 0.0
    %1054 = vmatpush1.msra.mxu0 0.0
    %1055 = vmatprep.subr.mxu0 0.0
    %1056 = vmatpush1.msra.mxu0 0.0
    %1057 = vmatprep.subr.mxu0 0.0
    %v1058 = vand.u32 %v76, 4294901760
    %1059 = vmatpush1.msra.mxu0 %v1058
    %1060 = vmatprep.subr.mxu0 0.0
    %1061 = vmatpush2.msra.mxu0 0.0
    %1062 = vmatprep.subr.mxu0 0.0
    %1063 = vmatpush2.msra.mxu0 0.0
    %1064 = vmatprep.subr.mxu0 0.0
    %1065 = vmatpush2.msra.mxu0 0.0
    %1066 = vmatprep.subr.mxu0 0.0
    %1067 = vmatpush2.msra.mxu0 0.0
    %1068 = vmatprep.subr.mxu0 0.0
    %1069 = vmatpush2.msra.mxu0 0.0
    %1070 = vmatprep.subr.mxu0 0.0
    %1071 = vmatpush2.msra.mxu0 0.0
    %1072 = vmatprep.subr.mxu0 0.0
    %1073 = vmatpush2.msra.mxu0 0.0
    %1074 = vmatprep.subr.mxu0 0.0
    %1075 = vmatpush2.msra.mxu0 0.0
    %1076 = vmatprep.subr.mxu0 0.0
    %1077 = vmatpush2.msra.mxu0 0.0
    %1078 = vmatprep.subr.mxu0 0.0
    %1079 = vmatpush2.msra.mxu0 0.0
    %1080 = vmatprep.subr.mxu0 0.0
    %1081 = vmatpush2.msra.mxu0 0.0
    %1082 = vmatprep.subr.mxu0 0.0
    %1083 = vmatpush2.msra.mxu0 0.0
    %1084 = vmatprep.subr.mxu0 0.0
    %1085 = vmatpush2.msra.mxu0 0.0
    %1086 = vmatprep.subr.mxu0 0.0
    %1087 = vmatpush2.msra.mxu0 0.0
    %1088 = vmatprep.subr.mxu0 0.0
    %1089 = vmatpush2.msra.mxu0 0.0
    %1090 = vmatprep.subr.mxu0 0.0
    %1091 = vmatpush2.msra.mxu0 0.0
    %1092 = vmatprep.mubr.f32.mxu0 0.0
    %v1093 = vand.u32 %v651, 4294901760
    %1094 = vmatmul.mubr.f32.gmra.mxu0 %v1093
    %v1095 = vpop.f32.mrf.mxu0
    %v1096 = vadd.f32 %v1024, %v1095
    %v1097 = vpop.f32.mrf.mxu0
    %1098 = vdwg.mxu0
    %v1099 = vsel %vm589, %v639, 0
    %1101 = vmatprep.subr.mxu0 0.0
    %1102 = vmatpush1.msra.mxu0 0.0
    %1103 = vmatprep.subr.mxu0 0.0
    %1104 = vmatpush1.msra.mxu0 0.0
    %1105 = vmatprep.subr.mxu0 0.0
    %1106 = vmatpush1.msra.mxu0 0.0
    %1107 = vmatprep.subr.mxu0 0.0
    %1108 = vmatpush1.msra.mxu0 0.0
    %1109 = vmatprep.subr.mxu0 0.0
    %1110 = vmatpush1.msra.mxu0 0.0
    %1111 = vmatprep.subr.mxu0 0.0
    %1112 = vmatpush1.msra.mxu0 0.0
    %1113 = vmatprep.subr.mxu0 0.0
    %1114 = vmatpush1.msra.mxu0 0.0
    %1115 = vmatprep.subr.mxu0 0.0
    %1116 = vmatpush1.msra.mxu0 0.0
    %1117 = vmatprep.subr.mxu0 0.0
    %1118 = vmatpush1.msra.mxu0 0.0
    %1119 = vmatprep.subr.mxu0 0.0
    %1120 = vmatpush1.msra.mxu0 0.0
    %1121 = vmatprep.subr.mxu0 0.0
    %1122 = vmatpush1.msra.mxu0 0.0
    %1123 = vmatprep.subr.mxu0 0.0
    %1124 = vmatpush1.msra.mxu0 0.0
    %1125 = vmatprep.subr.mxu0 0.0
    %1126 = vmatpush1.msra.mxu0 0.0
    %1127 = vmatprep.subr.mxu0 0.0
    %1128 = vmatpush1.msra.mxu0 0.0
    %1129 = vmatprep.subr.mxu0 0.0
    %1130 = vmatpush1.msra.mxu0 0.0
    %1131 = vmatprep.subr.mxu0 0.0
    %v1132 = vand.u32 %v77, 4294901760
    %1133 = vmatpush1.msra.mxu0 %v1132
    %1134 = vmatprep.subr.mxu0 0.0
    %1135 = vmatpush2.msra.mxu0 0.0
    %1136 = vmatprep.subr.mxu0 0.0
    %1137 = vmatpush2.msra.mxu0 0.0
    %1138 = vmatprep.subr.mxu0 0.0
    %1139 = vmatpush2.msra.mxu0 0.0
    %1140 = vmatprep.subr.mxu0 0.0
    %1141 = vmatpush2.msra.mxu0 0.0
    %1142 = vmatprep.subr.mxu0 0.0
    %1143 = vmatpush2.msra.mxu0 0.0
    %1144 = vmatprep.subr.mxu0 0.0
    %1145 = vmatpush2.msra.mxu0 0.0
    %1146 = vmatprep.subr.mxu0 0.0
    %1147 = vmatpush2.msra.mxu0 0.0
    %1148 = vmatprep.subr.mxu0 0.0
    %1149 = vmatpush2.msra.mxu0 0.0
    %1150 = vmatprep.subr.mxu0 0.0
    %1151 = vmatpush2.msra.mxu0 0.0
    %1152 = vmatprep.subr.mxu0 0.0
    %1153 = vmatpush2.msra.mxu0 0.0
    %1154 = vmatprep.subr.mxu0 0.0
    %1155 = vmatpush2.msra.mxu0 0.0
    %1156 = vmatprep.subr.mxu0 0.0
    %1157 = vmatpush2.msra.mxu0 0.0
    %1158 = vmatprep.subr.mxu0 0.0
    %1159 = vmatpush2.msra.mxu0 0.0
    %1160 = vmatprep.subr.mxu0 0.0
    %1161 = vmatpush2.msra.mxu0 0.0
    %1162 = vmatprep.subr.mxu0 0.0
    %1163 = vmatpush2.msra.mxu0 0.0
    %1164 = vmatprep.subr.mxu0 0.0
    %1165 = vmatpush2.msra.mxu0 0.0
    %1166 = vmatprep.mubr.f32.mxu0 0.0
    %v1167 = vand.u32 %v1099, 4294901760
    %v1168 = vsub.f32 %v1099, %v1167
    %v1169 = vand.u32 %v1168, 4294901760
    %v1170 = vsub.f32 %v1168, %v1169
    %v1171 = vand.u32 %v1170, 4294901760
    %1172 = vmatmul.mubr.f32.gmra.mxu0 %v1171
    %v1173 = vpop.f32.mrf.mxu0
    %v1174 = vadd.f32 0.0, %v1173
    %v1175 = vpop.f32.mrf.mxu0
    %1176 = vdwg.mxu0
    %1177 = vmatprep.subr.mxu0 0.0
    %1178 = vmatpush1.msra.mxu0 0.0
    %1179 = vmatprep.subr.mxu0 0.0
    %1180 = vmatpush1.msra.mxu0 0.0
    %1181 = vmatprep.subr.mxu0 0.0
    %1182 = vmatpush1.msra.mxu0 0.0
    %1183 = vmatprep.subr.mxu0 0.0
    %1184 = vmatpush1.msra.mxu0 0.0
    %1185 = vmatprep.subr.mxu0 0.0
    %1186 = vmatpush1.msra.mxu0 0.0
    %1187 = vmatprep.subr.mxu0 0.0
    %1188 = vmatpush1.msra.mxu0 0.0
    %1189 = vmatprep.subr.mxu0 0.0
    %1190 = vmatpush1.msra.mxu0 0.0
    %1191 = vmatprep.subr.mxu0 0.0
    %1192 = vmatpush1.msra.mxu0 0.0
    %1193 = vmatprep.subr.mxu0 0.0
    %1194 = vmatpush1.msra.mxu0 0.0
    %1195 = vmatprep.subr.mxu0 0.0
    %1196 = vmatpush1.msra.mxu0 0.0
    %1197 = vmatprep.subr.mxu0 0.0
    %1198 = vmatpush1.msra.mxu0 0.0
    %1199 = vmatprep.subr.mxu0 0.0
    %1200 = vmatpush1.msra.mxu0 0.0
    %1201 = vmatprep.subr.mxu0 0.0
    %1202 = vmatpush1.msra.mxu0 0.0
    %1203 = vmatprep.subr.mxu0 0.0
    %1204 = vmatpush1.msra.mxu0 0.0
    %1205 = vmatprep.subr.mxu0 0.0
    %1206 = vmatpush1.msra.mxu0 0.0
    %1207 = vmatprep.subr.mxu0 0.0
    %v1208 = vand.u32 %v77, 4294901760
    %v1209 = vsub.f32 %v77, %v1208
    %v1210 = vand.u32 %v1209, 4294901760
    %v1211 = vsub.f32 %v1209, %v1210
    %v1212 = vand.u32 %v1211, 4294901760
    %1213 = vmatpush1.msra.mxu0 %v1212
    %1214 = vmatprep.subr.mxu0 0.0
    %1215 = vmatpush2.msra.mxu0 0.0
    %1216 = vmatprep.subr.mxu0 0.0
    %1217 = vmatpush2.msra.mxu0 0.0
    %1218 = vmatprep.subr.mxu0 0.0
    %1219 = vmatpush2.msra.mxu0 0.0
    %1220 = vmatprep.subr.mxu0 0.0
    %1221 = vmatpush2.msra.mxu0 0.0
    %1222 = vmatprep.subr.mxu0 0.0
    %1223 = vmatpush2.msra.mxu0 0.0
    %1224 = vmatprep.subr.mxu0 0.0
    %1225 = vmatpush2.msra.mxu0 0.0
    %1226 = vmatprep.subr.mxu0 0.0
    %1227 = vmatpush2.msra.mxu0 0.0
    %1228 = vmatprep.subr.mxu0 0.0
    %1229 = vmatpush2.msra.mxu0 0.0
    %1230 = vmatprep.subr.mxu0 0.0
    %1231 = vmatpush2.msra.mxu0 0.0
    %1232 = vmatprep.subr.mxu0 0.0
    %1233 = vmatpush2.msra.mxu0 0.0
    %1234 = vmatprep.subr.mxu0 0.0
    %1235 = vmatpush2.msra.mxu0 0.0
    %1236 = vmatprep.subr.mxu0 0.0
    %1237 = vmatpush2.msra.mxu0 0.0
    %1238 = vmatprep.subr.mxu0 0.0
    %1239 = vmatpush2.msra.mxu0 0.0
    %1240 = vmatprep.subr.mxu0 0.0
    %1241 = vmatpush2.msra.mxu0 0.0
    %1242 = vmatprep.subr.mxu0 0.0
    %1243 = vmatpush2.msra.mxu0 0.0
    %1244 = vmatprep.subr.mxu0 0.0
    %1245 = vmatpush2.msra.mxu0 0.0
    %1246 = vmatprep.mubr.f32.mxu0 0.0
    %v1247 = vand.u32 %v1099, 4294901760
    %1248 = vmatmul.mubr.f32.gmra.mxu0 %v1247
    %v1249 = vpop.f32.mrf.mxu0
    %v1250 = vadd.f32 %v1174, %v1249
    %v1251 = vpop.f32.mrf.mxu0
    %1252 = vdwg.mxu0
    %1253 = vmatprep.subr.mxu0 0.0
    %1254 = vmatpush1.msra.mxu0 0.0
    %1255 = vmatprep.subr.mxu0 0.0
    %1256 = vmatpush1.msra.mxu0 0.0
    %1257 = vmatprep.subr.mxu0 0.0
    %1258 = vmatpush1.msra.mxu0 0.0
    %1259 = vmatprep.subr.mxu0 0.0
    %1260 = vmatpush1.msra.mxu0 0.0
    %1261 = vmatprep.subr.mxu0 0.0
    %1262 = vmatpush1.msra.mxu0 0.0
    %1263 = vmatprep.subr.mxu0 0.0
    %1264 = vmatpush1.msra.mxu0 0.0
    %1265 = vmatprep.subr.mxu0 0.0
    %1266 = vmatpush1.msra.mxu0 0.0
    %1267 = vmatprep.subr.mxu0 0.0
    %1268 = vmatpush1.msra.mxu0 0.0
    %1269 = vmatprep.subr.mxu0 0.0
    %1270 = vmatpush1.msra.mxu0 0.0
    %1271 = vmatprep.subr.mxu0 0.0
    %1272 = vmatpush1.msra.mxu0 0.0
    %1273 = vmatprep.subr.mxu0 0.0
    %1274 = vmatpush1.msra.mxu0 0.0
    %1275 = vmatprep.subr.mxu0 0.0
    %1276 = vmatpush1.msra.mxu0 0.0
    %1277 = vmatprep.subr.mxu0 0.0
    %1278 = vmatpush1.msra.mxu0 0.0
    %1279 = vmatprep.subr.mxu0 0.0
    %1280 = vmatpush1.msra.mxu0 0.0
    %1281 = vmatprep.subr.mxu0 0.0
    %1282 = vmatpush1.msra.mxu0 0.0
    %1283 = vmatprep.subr.mxu0 0.0
    %v1284 = vand.u32 %v77, 4294901760
    %v1285 = vsub.f32 %v77, %v1284
    %1286 = vmatpush1.msra.mxu0 %v1285
    %1287 = vmatprep.subr.mxu0 0.0
    %1288 = vmatpush2.msra.mxu0 0.0
    %1289 = vmatprep.subr.mxu0 0.0
    %1290 = vmatpush2.msra.mxu0 0.0
    %1291 = vmatprep.subr.mxu0 0.0
    %1292 = vmatpush2.msra.mxu0 0.0
    %1293 = vmatprep.subr.mxu0 0.0
    %1294 = vmatpush2.msra.mxu0 0.0
    %1295 = vmatprep.subr.mxu0 0.0
    %1296 = vmatpush2.msra.mxu0 0.0
    %1297 = vmatprep.subr.mxu0 0.0
    %1298 = vmatpush2.msra.mxu0 0.0
    %1299 = vmatprep.subr.mxu0 0.0
    %1300 = vmatpush2.msra.mxu0 0.0
    %1301 = vmatprep.subr.mxu0 0.0
    %1302 = vmatpush2.msra.mxu0 0.0
    %1303 = vmatprep.subr.mxu0 0.0
    %1304 = vmatpush2.msra.mxu0 0.0
    %1305 = vmatprep.subr.mxu0 0.0
    %1306 = vmatpush2.msra.mxu0 0.0
    %1307 = vmatprep.subr.mxu0 0.0
    %1308 = vmatpush2.msra.mxu0 0.0
    %1309 = vmatprep.subr.mxu0 0.0
    %1310 = vmatpush2.msra.mxu0 0.0
    %1311 = vmatprep.subr.mxu0 0.0
    %1312 = vmatpush2.msra.mxu0 0.0
    %1313 = vmatprep.subr.mxu0 0.0
    %1314 = vmatpush2.msra.mxu0 0.0
    %1315 = vmatprep.subr.mxu0 0.0
    %1316 = vmatpush2.msra.mxu0 0.0
    %1317 = vmatprep.subr.mxu0 0.0
    %1318 = vmatpush2.msra.mxu0 0.0
    %1319 = vmatprep.mubr.f32.mxu0 0.0
    %v1320 = vand.u32 %v1099, 4294901760
    %v1321 = vsub.f32 %v1099, %v1320
    %1322 = vmatmul.mubr.f32.gmra.mxu0 %v1321
    %v1323 = vpop.f32.mrf.mxu0
    %v1324 = vadd.f32 %v1250, %v1323
    %v1325 = vpop.f32.mrf.mxu0
    %1326 = vdwg.mxu0
    %1327 = vmatprep.subr.mxu0 0.0
    %1328 = vmatpush1.msra.mxu0 0.0
    %1329 = vmatprep.subr.mxu0 0.0
    %1330 = vmatpush1.msra.mxu0 0.0
    %1331 = vmatprep.subr.mxu0 0.0
    %1332 = vmatpush1.msra.mxu0 0.0
    %1333 = vmatprep.subr.mxu0 0.0
    %1334 = vmatpush1.msra.mxu0 0.0
    %1335 = vmatprep.subr.mxu0 0.0
    %1336 = vmatpush1.msra.mxu0 0.0
    %1337 = vmatprep.subr.mxu0 0.0
    %1338 = vmatpush1.msra.mxu0 0.0
    %1339 = vmatprep.subr.mxu0 0.0
    %1340 = vmatpush1.msra.mxu0 0.0
    %1341 = vmatprep.subr.mxu0 0.0
    %1342 = vmatpush1.msra.mxu0 0.0
    %1343 = vmatprep.subr.mxu0 0.0
    %1344 = vmatpush1.msra.mxu0 0.0
    %1345 = vmatprep.subr.mxu0 0.0
    %1346 = vmatpush1.msra.mxu0 0.0
    %1347 = vmatprep.subr.mxu0 0.0
    %1348 = vmatpush1.msra.mxu0 0.0
    %1349 = vmatprep.subr.mxu0 0.0
    %1350 = vmatpush1.msra.mxu0 0.0
    %1351 = vmatprep.subr.mxu0 0.0
    %1352 = vmatpush1.msra.mxu0 0.0
    %1353 = vmatprep.subr.mxu0 0.0
    %1354 = vmatpush1.msra.mxu0 0.0
    %1355 = vmatprep.subr.mxu0 0.0
    %1356 = vmatpush1.msra.mxu0 0.0
    %1357 = vmatprep.subr.mxu0 0.0
    %v1358 = vand.u32 %v77, 4294901760
    %1359 = vmatpush1.msra.mxu0 %v1358
    %1360 = vmatprep.subr.mxu0 0.0
    %1361 = vmatpush2.msra.mxu0 0.0
    %1362 = vmatprep.subr.mxu0 0.0
    %1363 = vmatpush2.msra.mxu0 0.0
    %1364 = vmatprep.subr.mxu0 0.0
    %1365 = vmatpush2.msra.mxu0 0.0
    %1366 = vmatprep.subr.mxu0 0.0
    %1367 = vmatpush2.msra.mxu0 0.0
    %1368 = vmatprep.subr.mxu0 0.0
    %1369 = vmatpush2.msra.mxu0 0.0
    %1370 = vmatprep.subr.mxu0 0.0
    %1371 = vmatpush2.msra.mxu0 0.0
    %1372 = vmatprep.subr.mxu0 0.0
    %1373 = vmatpush2.msra.mxu0 0.0
    %1374 = vmatprep.subr.mxu0 0.0
    %1375 = vmatpush2.msra.mxu0 0.0
    %1376 = vmatprep.subr.mxu0 0.0
    %1377 = vmatpush2.msra.mxu0 0.0
    %1378 = vmatprep.subr.mxu0 0.0
    %1379 = vmatpush2.msra.mxu0 0.0
    %1380 = vmatprep.subr.mxu0 0.0
    %1381 = vmatpush2.msra.mxu0 0.0
    %1382 = vmatprep.subr.mxu0 0.0
    %1383 = vmatpush2.msra.mxu0 0.0
    %1384 = vmatprep.subr.mxu0 0.0
    %1385 = vmatpush2.msra.mxu0 0.0
    %1386 = vmatprep.subr.mxu0 0.0
    %1387 = vmatpush2.msra.mxu0 0.0
    %1388 = vmatprep.subr.mxu0 0.0
    %1389 = vmatpush2.msra.mxu0 0.0
    %1390 = vmatprep.subr.mxu0 0.0
    %1391 = vmatpush2.msra.mxu0 0.0
    %1392 = vmatprep.mubr.f32.mxu0 0.0
    %v1393 = vand.u32 %v1099, 4294901760
    %v1394 = vsub.f32 %v1099, %v1393
    %v1395 = vand.u32 %v1394, 4294901760
    %1396 = vmatmul.mubr.f32.gmra.mxu0 %v1395
    %v1397 = vpop.f32.mrf.mxu0
    %v1398 = vadd.f32 %v1324, %v1397
    %v1399 = vpop.f32.mrf.mxu0
    %1400 = vdwg.mxu0
    %1401 = vmatprep.subr.mxu0 0.0
    %1402 = vmatpush1.msra.mxu0 0.0
    %1403 = vmatprep.subr.mxu0 0.0
    %1404 = vmatpush1.msra.mxu0 0.0
    %1405 = vmatprep.subr.mxu0 0.0
    %1406 = vmatpush1.msra.mxu0 0.0
    %1407 = vmatprep.subr.mxu0 0.0
    %1408 = vmatpush1.msra.mxu0 0.0
    %1409 = vmatprep.subr.mxu0 0.0
    %1410 = vmatpush1.msra.mxu0 0.0
    %1411 = vmatprep.subr.mxu0 0.0
    %1412 = vmatpush1.msra.mxu0 0.0
    %1413 = vmatprep.subr.mxu0 0.0
    %1414 = vmatpush1.msra.mxu0 0.0
    %1415 = vmatprep.subr.mxu0 0.0
    %1416 = vmatpush1.msra.mxu0 0.0
    %1417 = vmatprep.subr.mxu0 0.0
    %1418 = vmatpush1.msra.mxu0 0.0
    %1419 = vmatprep.subr.mxu0 0.0
    %1420 = vmatpush1.msra.mxu0 0.0
    %1421 = vmatprep.subr.mxu0 0.0
    %1422 = vmatpush1.msra.mxu0 0.0
    %1423 = vmatprep.subr.mxu0 0.0
    %1424 = vmatpush1.msra.mxu0 0.0
    %1425 = vmatprep.subr.mxu0 0.0
    %1426 = vmatpush1.msra.mxu0 0.0
    %1427 = vmatprep.subr.mxu0 0.0
    %1428 = vmatpush1.msra.mxu0 0.0
    %1429 = vmatprep.subr.mxu0 0.0
    %1430 = vmatpush1.msra.mxu0 0.0
    %1431 = vmatprep.subr.mxu0 0.0
    %v1432 = vand.u32 %v77, 4294901760
    %v1433 = vsub.f32 %v77, %v1432
    %v1434 = vand.u32 %v1433, 4294901760
    %1435 = vmatpush1.msra.mxu0 %v1434
    %1436 = vmatprep.subr.mxu0 0.0
    %1437 = vmatpush2.msra.mxu0 0.0
    %1438 = vmatprep.subr.mxu0 0.0
    %1439 = vmatpush2.msra.mxu0 0.0
    %1440 = vmatprep.subr.mxu0 0.0
    %1441 = vmatpush2.msra.mxu0 0.0
    %1442 = vmatprep.subr.mxu0 0.0
    %1443 = vmatpush2.msra.mxu0 0.0
    %1444 = vmatprep.subr.mxu0 0.0
    %1445 = vmatpush2.msra.mxu0 0.0
    %1446 = vmatprep.subr.mxu0 0.0
    %1447 = vmatpush2.msra.mxu0 0.0
    %1448 = vmatprep.subr.mxu0 0.0
    %1449 = vmatpush2.msra.mxu0 0.0
    %1450 = vmatprep.subr.mxu0 0.0
    %1451 = vmatpush2.msra.mxu0 0.0
    %1452 = vmatprep.subr.mxu0 0.0
    %1453 = vmatpush2.msra.mxu0 0.0
    %1454 = vmatprep.subr.mxu0 0.0
    %1455 = vmatpush2.msra.mxu0 0.0
    %1456 = vmatprep.subr.mxu0 0.0
    %1457 = vmatpush2.msra.mxu0 0.0
    %1458 = vmatprep.subr.mxu0 0.0
    %1459 = vmatpush2.msra.mxu0 0.0
    %1460 = vmatprep.subr.mxu0 0.0
    %1461 = vmatpush2.msra.mxu0 0.0
    %1462 = vmatprep.subr.mxu0 0.0
    %1463 = vmatpush2.msra.mxu0 0.0
    %1464 = vmatprep.subr.mxu0 0.0
    %1465 = vmatpush2.msra.mxu0 0.0
    %1466 = vmatprep.subr.mxu0 0.0
    %1467 = vmatpush2.msra.mxu0 0.0
    %1468 = vmatprep.mubr.f32.mxu0 0.0
    %v1469 = vand.u32 %v1099, 4294901760
    %1470 = vmatmul.mubr.f32.gmra.mxu0 %v1469
    %v1471 = vpop.f32.mrf.mxu0
    %v1472 = vadd.f32 %v1398, %v1471
    %v1473 = vpop.f32.mrf.mxu0
    %1474 = vdwg.mxu0
    %1475 = vmatprep.subr.mxu0 0.0
    %1476 = vmatpush1.msra.mxu0 0.0
    %1477 = vmatprep.subr.mxu0 0.0
    %1478 = vmatpush1.msra.mxu0 0.0
    %1479 = vmatprep.subr.mxu0 0.0
    %1480 = vmatpush1.msra.mxu0 0.0
    %1481 = vmatprep.subr.mxu0 0.0
    %1482 = vmatpush1.msra.mxu0 0.0
    %1483 = vmatprep.subr.mxu0 0.0
    %1484 = vmatpush1.msra.mxu0 0.0
    %1485 = vmatprep.subr.mxu0 0.0
    %1486 = vmatpush1.msra.mxu0 0.0
    %1487 = vmatprep.subr.mxu0 0.0
    %1488 = vmatpush1.msra.mxu0 0.0
    %1489 = vmatprep.subr.mxu0 0.0
    %1490 = vmatpush1.msra.mxu0 0.0
    %1491 = vmatprep.subr.mxu0 0.0
    %1492 = vmatpush1.msra.mxu0 0.0
    %1493 = vmatprep.subr.mxu0 0.0
    %1494 = vmatpush1.msra.mxu0 0.0
    %1495 = vmatprep.subr.mxu0 0.0
    %1496 = vmatpush1.msra.mxu0 0.0
    %1497 = vmatprep.subr.mxu0 0.0
    %1498 = vmatpush1.msra.mxu0 0.0
    %1499 = vmatprep.subr.mxu0 0.0
    %1500 = vmatpush1.msra.mxu0 0.0
    %1501 = vmatprep.subr.mxu0 0.0
    %1502 = vmatpush1.msra.mxu0 0.0
    %1503 = vmatprep.subr.mxu0 0.0
    %1504 = vmatpush1.msra.mxu0 0.0
    %1505 = vmatprep.subr.mxu0 0.0
    %v1506 = vand.u32 %v77, 4294901760
    %1507 = vmatpush1.msra.mxu0 %v1506
    %1508 = vmatprep.subr.mxu0 0.0
    %1509 = vmatpush2.msra.mxu0 0.0
    %1510 = vmatprep.subr.mxu0 0.0
    %1511 = vmatpush2.msra.mxu0 0.0
    %1512 = vmatprep.subr.mxu0 0.0
    %1513 = vmatpush2.msra.mxu0 0.0
    %1514 = vmatprep.subr.mxu0 0.0
    %1515 = vmatpush2.msra.mxu0 0.0
    %1516 = vmatprep.subr.mxu0 0.0
    %1517 = vmatpush2.msra.mxu0 0.0
    %1518 = vmatprep.subr.mxu0 0.0
    %1519 = vmatpush2.msra.mxu0 0.0
    %1520 = vmatprep.subr.mxu0 0.0
    %1521 = vmatpush2.msra.mxu0 0.0
    %1522 = vmatprep.subr.mxu0 0.0
    %1523 = vmatpush2.msra.mxu0 0.0
    %1524 = vmatprep.subr.mxu0 0.0
    %1525 = vmatpush2.msra.mxu0 0.0
    %1526 = vmatprep.subr.mxu0 0.0
    %1527 = vmatpush2.msra.mxu0 0.0
    %1528 = vmatprep.subr.mxu0 0.0
    %1529 = vmatpush2.msra.mxu0 0.0
    %1530 = vmatprep.subr.mxu0 0.0
    %1531 = vmatpush2.msra.mxu0 0.0
    %1532 = vmatprep.subr.mxu0 0.0
    %1533 = vmatpush2.msra.mxu0 0.0
    %1534 = vmatprep.subr.mxu0 0.0
    %1535 = vmatpush2.msra.mxu0 0.0
    %1536 = vmatprep.subr.mxu0 0.0
    %1537 = vmatpush2.msra.mxu0 0.0
    %1538 = vmatprep.subr.mxu0 0.0
    %1539 = vmatpush2.msra.mxu0 0.0
    %1540 = vmatprep.mubr.f32.mxu0 0.0
    %v1541 = vand.u32 %v1099, 4294901760
    %1542 = vmatmul.mubr.f32.gmra.mxu0 %v1541
    %v1543 = vpop.f32.mrf.mxu0
    %v1544 = vadd.f32 %v1472, %v1543
    %v1545 = vpop.f32.mrf.mxu0
    %1546 = vdwg.mxu0
    %v1547 = vsel %vm589, %v647, 0
    %1549 = vmatprep.subr.mxu0 0.0
    %1550 = vmatpush1.msra.mxu0 0.0
    %1551 = vmatprep.subr.mxu0 0.0
    %1552 = vmatpush1.msra.mxu0 0.0
    %1553 = vmatprep.subr.mxu0 0.0
    %1554 = vmatpush1.msra.mxu0 0.0
    %1555 = vmatprep.subr.mxu0 0.0
    %1556 = vmatpush1.msra.mxu0 0.0
    %1557 = vmatprep.subr.mxu0 0.0
    %1558 = vmatpush1.msra.mxu0 0.0
    %1559 = vmatprep.subr.mxu0 0.0
    %1560 = vmatpush1.msra.mxu0 0.0
    %1561 = vmatprep.subr.mxu0 0.0
    %1562 = vmatpush1.msra.mxu0 0.0
    %1563 = vmatprep.subr.mxu0 0.0
    %1564 = vmatpush1.msra.mxu0 0.0
    %1565 = vmatprep.subr.mxu0 0.0
    %1566 = vmatpush1.msra.mxu0 0.0
    %1567 = vmatprep.subr.mxu0 0.0
    %1568 = vmatpush1.msra.mxu0 0.0
    %1569 = vmatprep.subr.mxu0 0.0
    %1570 = vmatpush1.msra.mxu0 0.0
    %1571 = vmatprep.subr.mxu0 0.0
    %1572 = vmatpush1.msra.mxu0 0.0
    %1573 = vmatprep.subr.mxu0 0.0
    %1574 = vmatpush1.msra.mxu0 0.0
    %1575 = vmatprep.subr.mxu0 0.0
    %1576 = vmatpush1.msra.mxu0 0.0
    %1577 = vmatprep.subr.mxu0 0.0
    %1578 = vmatpush1.msra.mxu0 0.0
    %1579 = vmatprep.subr.mxu0 0.0
    %v1580 = vand.u32 %v78, 4294901760
    %1581 = vmatpush1.msra.mxu0 %v1580
    %1582 = vmatprep.subr.mxu0 0.0
    %1583 = vmatpush2.msra.mxu0 0.0
    %1584 = vmatprep.subr.mxu0 0.0
    %1585 = vmatpush2.msra.mxu0 0.0
    %1586 = vmatprep.subr.mxu0 0.0
    %1587 = vmatpush2.msra.mxu0 0.0
    %1588 = vmatprep.subr.mxu0 0.0
    %1589 = vmatpush2.msra.mxu0 0.0
    %1590 = vmatprep.subr.mxu0 0.0
    %1591 = vmatpush2.msra.mxu0 0.0
    %1592 = vmatprep.subr.mxu0 0.0
    %1593 = vmatpush2.msra.mxu0 0.0
    %1594 = vmatprep.subr.mxu0 0.0
    %1595 = vmatpush2.msra.mxu0 0.0
    %1596 = vmatprep.subr.mxu0 0.0
    %1597 = vmatpush2.msra.mxu0 0.0
    %1598 = vmatprep.subr.mxu0 0.0
    %1599 = vmatpush2.msra.mxu0 0.0
    %1600 = vmatprep.subr.mxu0 0.0
    %1601 = vmatpush2.msra.mxu0 0.0
    %1602 = vmatprep.subr.mxu0 0.0
    %1603 = vmatpush2.msra.mxu0 0.0
    %1604 = vmatprep.subr.mxu0 0.0
    %1605 = vmatpush2.msra.mxu0 0.0
    %1606 = vmatprep.subr.mxu0 0.0
    %1607 = vmatpush2.msra.mxu0 0.0
    %1608 = vmatprep.subr.mxu0 0.0
    %1609 = vmatpush2.msra.mxu0 0.0
    %1610 = vmatprep.subr.mxu0 0.0
    %1611 = vmatpush2.msra.mxu0 0.0
    %1612 = vmatprep.subr.mxu0 0.0
    %1613 = vmatpush2.msra.mxu0 0.0
    %1614 = vmatprep.mubr.f32.mxu0 0.0
    %v1615 = vand.u32 %v1547, 4294901760
    %v1616 = vsub.f32 %v1547, %v1615
    %v1617 = vand.u32 %v1616, 4294901760
    %v1618 = vsub.f32 %v1616, %v1617
    %v1619 = vand.u32 %v1618, 4294901760
    %1620 = vmatmul.mubr.f32.gmra.mxu0 %v1619
    %v1621 = vpop.f32.mrf.mxu0
    %v1622 = vadd.f32 0.0, %v1621
    %v1623 = vpop.f32.mrf.mxu0
    %1624 = vdwg.mxu0
    %1625 = vmatprep.subr.mxu0 0.0
    %1626 = vmatpush1.msra.mxu0 0.0
    %1627 = vmatprep.subr.mxu0 0.0
    %1628 = vmatpush1.msra.mxu0 0.0
    %1629 = vmatprep.subr.mxu0 0.0
    %1630 = vmatpush1.msra.mxu0 0.0
    %1631 = vmatprep.subr.mxu0 0.0
    %1632 = vmatpush1.msra.mxu0 0.0
    %1633 = vmatprep.subr.mxu0 0.0
    %1634 = vmatpush1.msra.mxu0 0.0
    %1635 = vmatprep.subr.mxu0 0.0
    %1636 = vmatpush1.msra.mxu0 0.0
    %1637 = vmatprep.subr.mxu0 0.0
    %1638 = vmatpush1.msra.mxu0 0.0
    %1639 = vmatprep.subr.mxu0 0.0
    %1640 = vmatpush1.msra.mxu0 0.0
    %1641 = vmatprep.subr.mxu0 0.0
    %1642 = vmatpush1.msra.mxu0 0.0
    %1643 = vmatprep.subr.mxu0 0.0
    %1644 = vmatpush1.msra.mxu0 0.0
    %1645 = vmatprep.subr.mxu0 0.0
    %1646 = vmatpush1.msra.mxu0 0.0
    %1647 = vmatprep.subr.mxu0 0.0
    %1648 = vmatpush1.msra.mxu0 0.0
    %1649 = vmatprep.subr.mxu0 0.0
    %1650 = vmatpush1.msra.mxu0 0.0
    %1651 = vmatprep.subr.mxu0 0.0
    %1652 = vmatpush1.msra.mxu0 0.0
    %1653 = vmatprep.subr.mxu0 0.0
    %1654 = vmatpush1.msra.mxu0 0.0
    %1655 = vmatprep.subr.mxu0 0.0
    %v1656 = vand.u32 %v78, 4294901760
    %v1657 = vsub.f32 %v78, %v1656
    %v1658 = vand.u32 %v1657, 4294901760
    %v1659 = vsub.f32 %v1657, %v1658
    %v1660 = vand.u32 %v1659, 4294901760
    %1661 = vmatpush1.msra.mxu0 %v1660
    %1662 = vmatprep.subr.mxu0 0.0
    %1663 = vmatpush2.msra.mxu0 0.0
    %1664 = vmatprep.subr.mxu0 0.0
    %1665 = vmatpush2.msra.mxu0 0.0
    %1666 = vmatprep.subr.mxu0 0.0
    %1667 = vmatpush2.msra.mxu0 0.0
    %1668 = vmatprep.subr.mxu0 0.0
    %1669 = vmatpush2.msra.mxu0 0.0
    %1670 = vmatprep.subr.mxu0 0.0
    %1671 = vmatpush2.msra.mxu0 0.0
    %1672 = vmatprep.subr.mxu0 0.0
    %1673 = vmatpush2.msra.mxu0 0.0
    %1674 = vmatprep.subr.mxu0 0.0
    %1675 = vmatpush2.msra.mxu0 0.0
    %1676 = vmatprep.subr.mxu0 0.0
    %1677 = vmatpush2.msra.mxu0 0.0
    %1678 = vmatprep.subr.mxu0 0.0
    %1679 = vmatpush2.msra.mxu0 0.0
    %1680 = vmatprep.subr.mxu0 0.0
    %1681 = vmatpush2.msra.mxu0 0.0
    %1682 = vmatprep.subr.mxu0 0.0
    %1683 = vmatpush2.msra.mxu0 0.0
    %1684 = vmatprep.subr.mxu0 0.0
    %1685 = vmatpush2.msra.mxu0 0.0
    %1686 = vmatprep.subr.mxu0 0.0
    %1687 = vmatpush2.msra.mxu0 0.0
    %1688 = vmatprep.subr.mxu0 0.0
    %1689 = vmatpush2.msra.mxu0 0.0
    %1690 = vmatprep.subr.mxu0 0.0
    %1691 = vmatpush2.msra.mxu0 0.0
    %1692 = vmatprep.subr.mxu0 0.0
    %1693 = vmatpush2.msra.mxu0 0.0
    %1694 = vmatprep.mubr.f32.mxu0 0.0
    %v1695 = vand.u32 %v1547, 4294901760
    %1696 = vmatmul.mubr.f32.gmra.mxu0 %v1695
    %v1697 = vpop.f32.mrf.mxu0
    %v1698 = vadd.f32 %v1622, %v1697
    %v1699 = vpop.f32.mrf.mxu0
    %1700 = vdwg.mxu0
    %1701 = vmatprep.subr.mxu0 0.0
    %1702 = vmatpush1.msra.mxu0 0.0
    %1703 = vmatprep.subr.mxu0 0.0
    %1704 = vmatpush1.msra.mxu0 0.0
    %1705 = vmatprep.subr.mxu0 0.0
    %1706 = vmatpush1.msra.mxu0 0.0
    %1707 = vmatprep.subr.mxu0 0.0
    %1708 = vmatpush1.msra.mxu0 0.0
    %1709 = vmatprep.subr.mxu0 0.0
    %1710 = vmatpush1.msra.mxu0 0.0
    %1711 = vmatprep.subr.mxu0 0.0
    %1712 = vmatpush1.msra.mxu0 0.0
    %1713 = vmatprep.subr.mxu0 0.0
    %1714 = vmatpush1.msra.mxu0 0.0
    %1715 = vmatprep.subr.mxu0 0.0
    %1716 = vmatpush1.msra.mxu0 0.0
    %1717 = vmatprep.subr.mxu0 0.0
    %1718 = vmatpush1.msra.mxu0 0.0
    %1719 = vmatprep.subr.mxu0 0.0
    %1720 = vmatpush1.msra.mxu0 0.0
    %1721 = vmatprep.subr.mxu0 0.0
    %1722 = vmatpush1.msra.mxu0 0.0
    %1723 = vmatprep.subr.mxu0 0.0
    %1724 = vmatpush1.msra.mxu0 0.0
    %1725 = vmatprep.subr.mxu0 0.0
    %1726 = vmatpush1.msra.mxu0 0.0
    %1727 = vmatprep.subr.mxu0 0.0
    %1728 = vmatpush1.msra.mxu0 0.0
    %1729 = vmatprep.subr.mxu0 0.0
    %1730 = vmatpush1.msra.mxu0 0.0
    %1731 = vmatprep.subr.mxu0 0.0
    %v1732 = vand.u32 %v78, 4294901760
    %v1733 = vsub.f32 %v78, %v1732
    %1734 = vmatpush1.msra.mxu0 %v1733
    %1735 = vmatprep.subr.mxu0 0.0
    %1736 = vmatpush2.msra.mxu0 0.0
    %1737 = vmatprep.subr.mxu0 0.0
    %1738 = vmatpush2.msra.mxu0 0.0
    %1739 = vmatprep.subr.mxu0 0.0
    %1740 = vmatpush2.msra.mxu0 0.0
    %1741 = vmatprep.subr.mxu0 0.0
    %1742 = vmatpush2.msra.mxu0 0.0
    %1743 = vmatprep.subr.mxu0 0.0
    %1744 = vmatpush2.msra.mxu0 0.0
    %1745 = vmatprep.subr.mxu0 0.0
    %1746 = vmatpush2.msra.mxu0 0.0
    %1747 = vmatprep.subr.mxu0 0.0
    %1748 = vmatpush2.msra.mxu0 0.0
    %1749 = vmatprep.subr.mxu0 0.0
    %1750 = vmatpush2.msra.mxu0 0.0
    %1751 = vmatprep.subr.mxu0 0.0
    %1752 = vmatpush2.msra.mxu0 0.0
    %1753 = vmatprep.subr.mxu0 0.0
    %1754 = vmatpush2.msra.mxu0 0.0
    %1755 = vmatprep.subr.mxu0 0.0
    %1756 = vmatpush2.msra.mxu0 0.0
    %1757 = vmatprep.subr.mxu0 0.0
    %1758 = vmatpush2.msra.mxu0 0.0
    %1759 = vmatprep.subr.mxu0 0.0
    %1760 = vmatpush2.msra.mxu0 0.0
    %1761 = vmatprep.subr.mxu0 0.0
    %1762 = vmatpush2.msra.mxu0 0.0
    %1763 = vmatprep.subr.mxu0 0.0
    %1764 = vmatpush2.msra.mxu0 0.0
    %1765 = vmatprep.subr.mxu0 0.0
    %1766 = vmatpush2.msra.mxu0 0.0
    %1767 = vmatprep.mubr.f32.mxu0 0.0
    %v1768 = vand.u32 %v1547, 4294901760
    %v1769 = vsub.f32 %v1547, %v1768
    %1770 = vmatmul.mubr.f32.gmra.mxu0 %v1769
    %v1771 = vpop.f32.mrf.mxu0
    %v1772 = vadd.f32 %v1698, %v1771
    %v1773 = vpop.f32.mrf.mxu0
    %1774 = vdwg.mxu0
    %1775 = vmatprep.subr.mxu0 0.0
    %1776 = vmatpush1.msra.mxu0 0.0
    %1777 = vmatprep.subr.mxu0 0.0
    %1778 = vmatpush1.msra.mxu0 0.0
    %1779 = vmatprep.subr.mxu0 0.0
    %1780 = vmatpush1.msra.mxu0 0.0
    %1781 = vmatprep.subr.mxu0 0.0
    %1782 = vmatpush1.msra.mxu0 0.0
    %1783 = vmatprep.subr.mxu0 0.0
    %1784 = vmatpush1.msra.mxu0 0.0
    %1785 = vmatprep.subr.mxu0 0.0
    %1786 = vmatpush1.msra.mxu0 0.0
    %1787 = vmatprep.subr.mxu0 0.0
    %1788 = vmatpush1.msra.mxu0 0.0
    %1789 = vmatprep.subr.mxu0 0.0
    %1790 = vmatpush1.msra.mxu0 0.0
    %1791 = vmatprep.subr.mxu0 0.0
    %1792 = vmatpush1.msra.mxu0 0.0
    %1793 = vmatprep.subr.mxu0 0.0
    %1794 = vmatpush1.msra.mxu0 0.0
    %1795 = vmatprep.subr.mxu0 0.0
    %1796 = vmatpush1.msra.mxu0 0.0
    %1797 = vmatprep.subr.mxu0 0.0
    %1798 = vmatpush1.msra.mxu0 0.0
    %1799 = vmatprep.subr.mxu0 0.0
    %1800 = vmatpush1.msra.mxu0 0.0
    %1801 = vmatprep.subr.mxu0 0.0
    %1802 = vmatpush1.msra.mxu0 0.0
    %1803 = vmatprep.subr.mxu0 0.0
    %1804 = vmatpush1.msra.mxu0 0.0
    %1805 = vmatprep.subr.mxu0 0.0
    %v1806 = vand.u32 %v78, 4294901760
    %1807 = vmatpush1.msra.mxu0 %v1806
    %1808 = vmatprep.subr.mxu0 0.0
    %1809 = vmatpush2.msra.mxu0 0.0
    %1810 = vmatprep.subr.mxu0 0.0
    %1811 = vmatpush2.msra.mxu0 0.0
    %1812 = vmatprep.subr.mxu0 0.0
    %1813 = vmatpush2.msra.mxu0 0.0
    %1814 = vmatprep.subr.mxu0 0.0
    %1815 = vmatpush2.msra.mxu0 0.0
    %1816 = vmatprep.subr.mxu0 0.0
    %1817 = vmatpush2.msra.mxu0 0.0
    %1818 = vmatprep.subr.mxu0 0.0
    %1819 = vmatpush2.msra.mxu0 0.0
    %1820 = vmatprep.subr.mxu0 0.0
    %1821 = vmatpush2.msra.mxu0 0.0
    %1822 = vmatprep.subr.mxu0 0.0
    %1823 = vmatpush2.msra.mxu0 0.0
    %1824 = vmatprep.subr.mxu0 0.0
    %1825 = vmatpush2.msra.mxu0 0.0
    %1826 = vmatprep.subr.mxu0 0.0
    %1827 = vmatpush2.msra.mxu0 0.0
    %1828 = vmatprep.subr.mxu0 0.0
    %1829 = vmatpush2.msra.mxu0 0.0
    %1830 = vmatprep.subr.mxu0 0.0
    %1831 = vmatpush2.msra.mxu0 0.0
    %1832 = vmatprep.subr.mxu0 0.0
    %1833 = vmatpush2.msra.mxu0 0.0
    %1834 = vmatprep.subr.mxu0 0.0
    %1835 = vmatpush2.msra.mxu0 0.0
    %1836 = vmatprep.subr.mxu0 0.0
    %1837 = vmatpush2.msra.mxu0 0.0
    %1838 = vmatprep.subr.mxu0 0.0
    %1839 = vmatpush2.msra.mxu0 0.0
    %1840 = vmatprep.mubr.f32.mxu0 0.0
    %v1841 = vand.u32 %v1547, 4294901760
    %v1842 = vsub.f32 %v1547, %v1841
    %v1843 = vand.u32 %v1842, 4294901760
    %1844 = vmatmul.mubr.f32.gmra.mxu0 %v1843
    %v1845 = vpop.f32.mrf.mxu0
    %v1846 = vadd.f32 %v1772, %v1845
    %v1847 = vpop.f32.mrf.mxu0
    %1848 = vdwg.mxu0
    %1849 = vmatprep.subr.mxu0 0.0
    %1850 = vmatpush1.msra.mxu0 0.0
    %1851 = vmatprep.subr.mxu0 0.0
    %1852 = vmatpush1.msra.mxu0 0.0
    %1853 = vmatprep.subr.mxu0 0.0
    %1854 = vmatpush1.msra.mxu0 0.0
    %1855 = vmatprep.subr.mxu0 0.0
    %1856 = vmatpush1.msra.mxu0 0.0
    %1857 = vmatprep.subr.mxu0 0.0
    %1858 = vmatpush1.msra.mxu0 0.0
    %1859 = vmatprep.subr.mxu0 0.0
    %1860 = vmatpush1.msra.mxu0 0.0
    %1861 = vmatprep.subr.mxu0 0.0
    %1862 = vmatpush1.msra.mxu0 0.0
    %1863 = vmatprep.subr.mxu0 0.0
    %1864 = vmatpush1.msra.mxu0 0.0
    %1865 = vmatprep.subr.mxu0 0.0
    %1866 = vmatpush1.msra.mxu0 0.0
    %1867 = vmatprep.subr.mxu0 0.0
    %1868 = vmatpush1.msra.mxu0 0.0
    %1869 = vmatprep.subr.mxu0 0.0
    %1870 = vmatpush1.msra.mxu0 0.0
    %1871 = vmatprep.subr.mxu0 0.0
    %1872 = vmatpush1.msra.mxu0 0.0
    %1873 = vmatprep.subr.mxu0 0.0
    %1874 = vmatpush1.msra.mxu0 0.0
    %1875 = vmatprep.subr.mxu0 0.0
    %1876 = vmatpush1.msra.mxu0 0.0
    %1877 = vmatprep.subr.mxu0 0.0
    %1878 = vmatpush1.msra.mxu0 0.0
    %1879 = vmatprep.subr.mxu0 0.0
    %v1880 = vand.u32 %v78, 4294901760
    %v1881 = vsub.f32 %v78, %v1880
    %v1882 = vand.u32 %v1881, 4294901760
    %1883 = vmatpush1.msra.mxu0 %v1882
    %1884 = vmatprep.subr.mxu0 0.0
    %1885 = vmatpush2.msra.mxu0 0.0
    %1886 = vmatprep.subr.mxu0 0.0
    %1887 = vmatpush2.msra.mxu0 0.0
    %1888 = vmatprep.subr.mxu0 0.0
    %1889 = vmatpush2.msra.mxu0 0.0
    %1890 = vmatprep.subr.mxu0 0.0
    %1891 = vmatpush2.msra.mxu0 0.0
    %1892 = vmatprep.subr.mxu0 0.0
    %1893 = vmatpush2.msra.mxu0 0.0
    %1894 = vmatprep.subr.mxu0 0.0
    %1895 = vmatpush2.msra.mxu0 0.0
    %1896 = vmatprep.subr.mxu0 0.0
    %1897 = vmatpush2.msra.mxu0 0.0
    %1898 = vmatprep.subr.mxu0 0.0
    %1899 = vmatpush2.msra.mxu0 0.0
    %1900 = vmatprep.subr.mxu0 0.0
    %1901 = vmatpush2.msra.mxu0 0.0
    %1902 = vmatprep.subr.mxu0 0.0
    %1903 = vmatpush2.msra.mxu0 0.0
    %1904 = vmatprep.subr.mxu0 0.0
    %1905 = vmatpush2.msra.mxu0 0.0
    %1906 = vmatprep.subr.mxu0 0.0
    %1907 = vmatpush2.msra.mxu0 0.0
    %1908 = vmatprep.subr.mxu0 0.0
    %1909 = vmatpush2.msra.mxu0 0.0
    %1910 = vmatprep.subr.mxu0 0.0
    %1911 = vmatpush2.msra.mxu0 0.0
    %1912 = vmatprep.subr.mxu0 0.0
    %1913 = vmatpush2.msra.mxu0 0.0
    %1914 = vmatprep.subr.mxu0 0.0
    %1915 = vmatpush2.msra.mxu0 0.0
    %1916 = vmatprep.mubr.f32.mxu0 0.0
    %v1917 = vand.u32 %v1547, 4294901760
    %1918 = vmatmul.mubr.f32.gmra.mxu0 %v1917
    %v1919 = vpop.f32.mrf.mxu0
    %v1920 = vadd.f32 %v1846, %v1919
    %v1921 = vpop.f32.mrf.mxu0
    %1922 = vdwg.mxu0
    %1923 = vmatprep.subr.mxu0 0.0
    %1924 = vmatpush1.msra.mxu0 0.0
    %1925 = vmatprep.subr.mxu0 0.0
    %1926 = vmatpush1.msra.mxu0 0.0
    %1927 = vmatprep.subr.mxu0 0.0
    %1928 = vmatpush1.msra.mxu0 0.0
    %1929 = vmatprep.subr.mxu0 0.0
    %1930 = vmatpush1.msra.mxu0 0.0
    %1931 = vmatprep.subr.mxu0 0.0
    %1932 = vmatpush1.msra.mxu0 0.0
    %1933 = vmatprep.subr.mxu0 0.0
    %1934 = vmatpush1.msra.mxu0 0.0
    %1935 = vmatprep.subr.mxu0 0.0
    %1936 = vmatpush1.msra.mxu0 0.0
    %1937 = vmatprep.subr.mxu0 0.0
    %1938 = vmatpush1.msra.mxu0 0.0
    %1939 = vmatprep.subr.mxu0 0.0
    %1940 = vmatpush1.msra.mxu0 0.0
    %1941 = vmatprep.subr.mxu0 0.0
    %1942 = vmatpush1.msra.mxu0 0.0
    %1943 = vmatprep.subr.mxu0 0.0
    %1944 = vmatpush1.msra.mxu0 0.0
    %1945 = vmatprep.subr.mxu0 0.0
    %1946 = vmatpush1.msra.mxu0 0.0
    %1947 = vmatprep.subr.mxu0 0.0
    %1948 = vmatpush1.msra.mxu0 0.0
    %1949 = vmatprep.subr.mxu0 0.0
    %1950 = vmatpush1.msra.mxu0 0.0
    %1951 = vmatprep.subr.mxu0 0.0
    %1952 = vmatpush1.msra.mxu0 0.0
    %1953 = vmatprep.subr.mxu0 0.0
    %v1954 = vand.u32 %v78, 4294901760
    %1955 = vmatpush1.msra.mxu0 %v1954
    %1956 = vmatprep.subr.mxu0 0.0
    %1957 = vmatpush2.msra.mxu0 0.0
    %1958 = vmatprep.subr.mxu0 0.0
    %1959 = vmatpush2.msra.mxu0 0.0
    %1960 = vmatprep.subr.mxu0 0.0
    %1961 = vmatpush2.msra.mxu0 0.0
    %1962 = vmatprep.subr.mxu0 0.0
    %1963 = vmatpush2.msra.mxu0 0.0
    %1964 = vmatprep.subr.mxu0 0.0
    %1965 = vmatpush2.msra.mxu0 0.0
    %1966 = vmatprep.subr.mxu0 0.0
    %1967 = vmatpush2.msra.mxu0 0.0
    %1968 = vmatprep.subr.mxu0 0.0
    %1969 = vmatpush2.msra.mxu0 0.0
    %1970 = vmatprep.subr.mxu0 0.0
    %1971 = vmatpush2.msra.mxu0 0.0
    %1972 = vmatprep.subr.mxu0 0.0
    %1973 = vmatpush2.msra.mxu0 0.0
    %1974 = vmatprep.subr.mxu0 0.0
    %1975 = vmatpush2.msra.mxu0 0.0
    %1976 = vmatprep.subr.mxu0 0.0
    %1977 = vmatpush2.msra.mxu0 0.0
    %1978 = vmatprep.subr.mxu0 0.0
    %1979 = vmatpush2.msra.mxu0 0.0
    %1980 = vmatprep.subr.mxu0 0.0
    %1981 = vmatpush2.msra.mxu0 0.0
    %1982 = vmatprep.subr.mxu0 0.0
    %1983 = vmatpush2.msra.mxu0 0.0
    %1984 = vmatprep.subr.mxu0 0.0
    %1985 = vmatpush2.msra.mxu0 0.0
    %1986 = vmatprep.subr.mxu0 0.0
    %1987 = vmatpush2.msra.mxu0 0.0
    %1988 = vmatprep.mubr.f32.mxu0 0.0
    %v1989 = vand.u32 %v1547, 4294901760
    %1990 = vmatmul.mubr.f32.gmra.mxu0 %v1989
    %v1991 = vpop.f32.mrf.mxu0
    %v1992 = vadd.f32 %v1920, %v1991
    %v1993 = vpop.f32.mrf.mxu0
    %1994 = vdwg.mxu0
    %v1995 = vsel %vm589, %v649, 0
    %1997 = vmatprep.subr.mxu0 0.0
    %1998 = vmatpush1.msra.mxu0 0.0
    %1999 = vmatprep.subr.mxu0 0.0
    %2000 = vmatpush1.msra.mxu0 0.0
    %2001 = vmatprep.subr.mxu0 0.0
    %2002 = vmatpush1.msra.mxu0 0.0
    %2003 = vmatprep.subr.mxu0 0.0
    %2004 = vmatpush1.msra.mxu0 0.0
    %2005 = vmatprep.subr.mxu0 0.0
    %2006 = vmatpush1.msra.mxu0 0.0
    %2007 = vmatprep.subr.mxu0 0.0
    %2008 = vmatpush1.msra.mxu0 0.0
    %2009 = vmatprep.subr.mxu0 0.0
    %2010 = vmatpush1.msra.mxu0 0.0
    %2011 = vmatprep.subr.mxu0 0.0
    %2012 = vmatpush1.msra.mxu0 0.0
    %2013 = vmatprep.subr.mxu0 0.0
    %2014 = vmatpush1.msra.mxu0 0.0
    %2015 = vmatprep.subr.mxu0 0.0
    %2016 = vmatpush1.msra.mxu0 0.0
    %2017 = vmatprep.subr.mxu0 0.0
    %2018 = vmatpush1.msra.mxu0 0.0
    %2019 = vmatprep.subr.mxu0 0.0
    %2020 = vmatpush1.msra.mxu0 0.0
    %2021 = vmatprep.subr.mxu0 0.0
    %2022 = vmatpush1.msra.mxu0 0.0
    %2023 = vmatprep.subr.mxu0 0.0
    %2024 = vmatpush1.msra.mxu0 0.0
    %2025 = vmatprep.subr.mxu0 0.0
    %2026 = vmatpush1.msra.mxu0 0.0
    %2027 = vmatprep.subr.mxu0 0.0
    %v2028 = vand.u32 %v79, 4294901760
    %2029 = vmatpush1.msra.mxu0 %v2028
    %2030 = vmatprep.subr.mxu0 0.0
    %2031 = vmatpush2.msra.mxu0 0.0
    %2032 = vmatprep.subr.mxu0 0.0
    %2033 = vmatpush2.msra.mxu0 0.0
    %2034 = vmatprep.subr.mxu0 0.0
    %2035 = vmatpush2.msra.mxu0 0.0
    %2036 = vmatprep.subr.mxu0 0.0
    %2037 = vmatpush2.msra.mxu0 0.0
    %2038 = vmatprep.subr.mxu0 0.0
    %2039 = vmatpush2.msra.mxu0 0.0
    %2040 = vmatprep.subr.mxu0 0.0
    %2041 = vmatpush2.msra.mxu0 0.0
    %2042 = vmatprep.subr.mxu0 0.0
    %2043 = vmatpush2.msra.mxu0 0.0
    %2044 = vmatprep.subr.mxu0 0.0
    %2045 = vmatpush2.msra.mxu0 0.0
    %2046 = vmatprep.subr.mxu0 0.0
    %2047 = vmatpush2.msra.mxu0 0.0
    %2048 = vmatprep.subr.mxu0 0.0
    %2049 = vmatpush2.msra.mxu0 0.0
    %2050 = vmatprep.subr.mxu0 0.0
    %2051 = vmatpush2.msra.mxu0 0.0
    %2052 = vmatprep.subr.mxu0 0.0
    %2053 = vmatpush2.msra.mxu0 0.0
    %2054 = vmatprep.subr.mxu0 0.0
    %2055 = vmatpush2.msra.mxu0 0.0
    %2056 = vmatprep.subr.mxu0 0.0
    %2057 = vmatpush2.msra.mxu0 0.0
    %2058 = vmatprep.subr.mxu0 0.0
    %2059 = vmatpush2.msra.mxu0 0.0
    %2060 = vmatprep.subr.mxu0 0.0
    %2061 = vmatpush2.msra.mxu0 0.0
    %2062 = vmatprep.mubr.f32.mxu0 0.0
    %v2063 = vand.u32 %v1995, 4294901760
    %v2064 = vsub.f32 %v1995, %v2063
    %v2065 = vand.u32 %v2064, 4294901760
    %v2066 = vsub.f32 %v2064, %v2065
    %v2067 = vand.u32 %v2066, 4294901760
    %2068 = vmatmul.mubr.f32.gmra.mxu0 %v2067
    %v2069 = vpop.f32.mrf.mxu0
    %v2070 = vadd.f32 0.0, %v2069
    %v2071 = vpop.f32.mrf.mxu0
    %2072 = vdwg.mxu0
    %2073 = vmatprep.subr.mxu0 0.0
    %2074 = vmatpush1.msra.mxu0 0.0
    %2075 = vmatprep.subr.mxu0 0.0
    %2076 = vmatpush1.msra.mxu0 0.0
    %2077 = vmatprep.subr.mxu0 0.0
    %2078 = vmatpush1.msra.mxu0 0.0
    %2079 = vmatprep.subr.mxu0 0.0
    %2080 = vmatpush1.msra.mxu0 0.0
    %2081 = vmatprep.subr.mxu0 0.0
    %2082 = vmatpush1.msra.mxu0 0.0
    %2083 = vmatprep.subr.mxu0 0.0
    %2084 = vmatpush1.msra.mxu0 0.0
    %2085 = vmatprep.subr.mxu0 0.0
    %2086 = vmatpush1.msra.mxu0 0.0
    %2087 = vmatprep.subr.mxu0 0.0
    %2088 = vmatpush1.msra.mxu0 0.0
    %2089 = vmatprep.subr.mxu0 0.0
    %2090 = vmatpush1.msra.mxu0 0.0
    %2091 = vmatprep.subr.mxu0 0.0
    %2092 = vmatpush1.msra.mxu0 0.0
    %2093 = vmatprep.subr.mxu0 0.0
    %2094 = vmatpush1.msra.mxu0 0.0
    %2095 = vmatprep.subr.mxu0 0.0
    %2096 = vmatpush1.msra.mxu0 0.0
    %2097 = vmatprep.subr.mxu0 0.0
    %2098 = vmatpush1.msra.mxu0 0.0
    %2099 = vmatprep.subr.mxu0 0.0
    %2100 = vmatpush1.msra.mxu0 0.0
    %2101 = vmatprep.subr.mxu0 0.0
    %2102 = vmatpush1.msra.mxu0 0.0
    %2103 = vmatprep.subr.mxu0 0.0
    %v2104 = vand.u32 %v79, 4294901760
    %v2105 = vsub.f32 %v79, %v2104
    %v2106 = vand.u32 %v2105, 4294901760
    %v2107 = vsub.f32 %v2105, %v2106
    %v2108 = vand.u32 %v2107, 4294901760
    %2109 = vmatpush1.msra.mxu0 %v2108
    %2110 = vmatprep.subr.mxu0 0.0
    %2111 = vmatpush2.msra.mxu0 0.0
    %2112 = vmatprep.subr.mxu0 0.0
    %2113 = vmatpush2.msra.mxu0 0.0
    %2114 = vmatprep.subr.mxu0 0.0
    %2115 = vmatpush2.msra.mxu0 0.0
    %2116 = vmatprep.subr.mxu0 0.0
    %2117 = vmatpush2.msra.mxu0 0.0
    %2118 = vmatprep.subr.mxu0 0.0
    %2119 = vmatpush2.msra.mxu0 0.0
    %2120 = vmatprep.subr.mxu0 0.0
    %2121 = vmatpush2.msra.mxu0 0.0
    %2122 = vmatprep.subr.mxu0 0.0
    %2123 = vmatpush2.msra.mxu0 0.0
    %2124 = vmatprep.subr.mxu0 0.0
    %2125 = vmatpush2.msra.mxu0 0.0
    %2126 = vmatprep.subr.mxu0 0.0
    %2127 = vmatpush2.msra.mxu0 0.0
    %2128 = vmatprep.subr.mxu0 0.0
    %2129 = vmatpush2.msra.mxu0 0.0
    %2130 = vmatprep.subr.mxu0 0.0
    %2131 = vmatpush2.msra.mxu0 0.0
    %2132 = vmatprep.subr.mxu0 0.0
    %2133 = vmatpush2.msra.mxu0 0.0
    %2134 = vmatprep.subr.mxu0 0.0
    %2135 = vmatpush2.msra.mxu0 0.0
    %2136 = vmatprep.subr.mxu0 0.0
    %2137 = vmatpush2.msra.mxu0 0.0
    %2138 = vmatprep.subr.mxu0 0.0
    %2139 = vmatpush2.msra.mxu0 0.0
    %2140 = vmatprep.subr.mxu0 0.0
    %2141 = vmatpush2.msra.mxu0 0.0
    %2142 = vmatprep.mubr.f32.mxu0 0.0
    %v2143 = vand.u32 %v1995, 4294901760
    %2144 = vmatmul.mubr.f32.gmra.mxu0 %v2143
    %v2145 = vpop.f32.mrf.mxu0
    %v2146 = vadd.f32 %v2070, %v2145
    %v2147 = vpop.f32.mrf.mxu0
    %2148 = vdwg.mxu0
    %2149 = vmatprep.subr.mxu0 0.0
    %2150 = vmatpush1.msra.mxu0 0.0
    %2151 = vmatprep.subr.mxu0 0.0
    %2152 = vmatpush1.msra.mxu0 0.0
    %2153 = vmatprep.subr.mxu0 0.0
    %2154 = vmatpush1.msra.mxu0 0.0
    %2155 = vmatprep.subr.mxu0 0.0
    %2156 = vmatpush1.msra.mxu0 0.0
    %2157 = vmatprep.subr.mxu0 0.0
    %2158 = vmatpush1.msra.mxu0 0.0
    %2159 = vmatprep.subr.mxu0 0.0
    %2160 = vmatpush1.msra.mxu0 0.0
    %2161 = vmatprep.subr.mxu0 0.0
    %2162 = vmatpush1.msra.mxu0 0.0
    %2163 = vmatprep.subr.mxu0 0.0
    %2164 = vmatpush1.msra.mxu0 0.0
    %2165 = vmatprep.subr.mxu0 0.0
    %2166 = vmatpush1.msra.mxu0 0.0
    %2167 = vmatprep.subr.mxu0 0.0
    %2168 = vmatpush1.msra.mxu0 0.0
    %2169 = vmatprep.subr.mxu0 0.0
    %2170 = vmatpush1.msra.mxu0 0.0
    %2171 = vmatprep.subr.mxu0 0.0
    %2172 = vmatpush1.msra.mxu0 0.0
    %2173 = vmatprep.subr.mxu0 0.0
    %2174 = vmatpush1.msra.mxu0 0.0
    %2175 = vmatprep.subr.mxu0 0.0
    %2176 = vmatpush1.msra.mxu0 0.0
    %2177 = vmatprep.subr.mxu0 0.0
    %2178 = vmatpush1.msra.mxu0 0.0
    %2179 = vmatprep.subr.mxu0 0.0
    %v2180 = vand.u32 %v79, 4294901760
    %v2181 = vsub.f32 %v79, %v2180
    %2182 = vmatpush1.msra.mxu0 %v2181
    %2183 = vmatprep.subr.mxu0 0.0
    %2184 = vmatpush2.msra.mxu0 0.0
    %2185 = vmatprep.subr.mxu0 0.0
    %2186 = vmatpush2.msra.mxu0 0.0
    %2187 = vmatprep.subr.mxu0 0.0
    %2188 = vmatpush2.msra.mxu0 0.0
    %2189 = vmatprep.subr.mxu0 0.0
    %2190 = vmatpush2.msra.mxu0 0.0
    %2191 = vmatprep.subr.mxu0 0.0
    %2192 = vmatpush2.msra.mxu0 0.0
    %2193 = vmatprep.subr.mxu0 0.0
    %2194 = vmatpush2.msra.mxu0 0.0
    %2195 = vmatprep.subr.mxu0 0.0
    %2196 = vmatpush2.msra.mxu0 0.0
    %2197 = vmatprep.subr.mxu0 0.0
    %2198 = vmatpush2.msra.mxu0 0.0
    %2199 = vmatprep.subr.mxu0 0.0
    %2200 = vmatpush2.msra.mxu0 0.0
    %2201 = vmatprep.subr.mxu0 0.0
    %2202 = vmatpush2.msra.mxu0 0.0
    %2203 = vmatprep.subr.mxu0 0.0
    %2204 = vmatpush2.msra.mxu0 0.0
    %2205 = vmatprep.subr.mxu0 0.0
    %2206 = vmatpush2.msra.mxu0 0.0
    %2207 = vmatprep.subr.mxu0 0.0
    %2208 = vmatpush2.msra.mxu0 0.0
    %2209 = vmatprep.subr.mxu0 0.0
    %2210 = vmatpush2.msra.mxu0 0.0
    %2211 = vmatprep.subr.mxu0 0.0
    %2212 = vmatpush2.msra.mxu0 0.0
    %2213 = vmatprep.subr.mxu0 0.0
    %2214 = vmatpush2.msra.mxu0 0.0
    %2215 = vmatprep.mubr.f32.mxu0 0.0
    %v2216 = vand.u32 %v1995, 4294901760
    %v2217 = vsub.f32 %v1995, %v2216
    %2218 = vmatmul.mubr.f32.gmra.mxu0 %v2217
    %v2219 = vpop.f32.mrf.mxu0
    %v2220 = vadd.f32 %v2146, %v2219
    %v2221 = vpop.f32.mrf.mxu0
    %2222 = vdwg.mxu0
    %2223 = vmatprep.subr.mxu0 0.0
    %2224 = vmatpush1.msra.mxu0 0.0
    %2225 = vmatprep.subr.mxu0 0.0
    %2226 = vmatpush1.msra.mxu0 0.0
    %2227 = vmatprep.subr.mxu0 0.0
    %2228 = vmatpush1.msra.mxu0 0.0
    %2229 = vmatprep.subr.mxu0 0.0
    %2230 = vmatpush1.msra.mxu0 0.0
    %2231 = vmatprep.subr.mxu0 0.0
    %2232 = vmatpush1.msra.mxu0 0.0
    %2233 = vmatprep.subr.mxu0 0.0
    %2234 = vmatpush1.msra.mxu0 0.0
    %2235 = vmatprep.subr.mxu0 0.0
    %2236 = vmatpush1.msra.mxu0 0.0
    %2237 = vmatprep.subr.mxu0 0.0
    %2238 = vmatpush1.msra.mxu0 0.0
    %2239 = vmatprep.subr.mxu0 0.0
    %2240 = vmatpush1.msra.mxu0 0.0
    %2241 = vmatprep.subr.mxu0 0.0
    %2242 = vmatpush1.msra.mxu0 0.0
    %2243 = vmatprep.subr.mxu0 0.0
    %2244 = vmatpush1.msra.mxu0 0.0
    %2245 = vmatprep.subr.mxu0 0.0
    %2246 = vmatpush1.msra.mxu0 0.0
    %2247 = vmatprep.subr.mxu0 0.0
    %2248 = vmatpush1.msra.mxu0 0.0
    %2249 = vmatprep.subr.mxu0 0.0
    %2250 = vmatpush1.msra.mxu0 0.0
    %2251 = vmatprep.subr.mxu0 0.0
    %2252 = vmatpush1.msra.mxu0 0.0
    %2253 = vmatprep.subr.mxu0 0.0
    %v2254 = vand.u32 %v79, 4294901760
    %2255 = vmatpush1.msra.mxu0 %v2254
    %2256 = vmatprep.subr.mxu0 0.0
    %2257 = vmatpush2.msra.mxu0 0.0
    %2258 = vmatprep.subr.mxu0 0.0
    %2259 = vmatpush2.msra.mxu0 0.0
    %2260 = vmatprep.subr.mxu0 0.0
    %2261 = vmatpush2.msra.mxu0 0.0
    %2262 = vmatprep.subr.mxu0 0.0
    %2263 = vmatpush2.msra.mxu0 0.0
    %2264 = vmatprep.subr.mxu0 0.0
    %2265 = vmatpush2.msra.mxu0 0.0
    %2266 = vmatprep.subr.mxu0 0.0
    %2267 = vmatpush2.msra.mxu0 0.0
    %2268 = vmatprep.subr.mxu0 0.0
    %2269 = vmatpush2.msra.mxu0 0.0
    %2270 = vmatprep.subr.mxu0 0.0
    %2271 = vmatpush2.msra.mxu0 0.0
    %2272 = vmatprep.subr.mxu0 0.0
    %2273 = vmatpush2.msra.mxu0 0.0
    %2274 = vmatprep.subr.mxu0 0.0
    %2275 = vmatpush2.msra.mxu0 0.0
    %2276 = vmatprep.subr.mxu0 0.0
    %2277 = vmatpush2.msra.mxu0 0.0
    %2278 = vmatprep.subr.mxu0 0.0
    %2279 = vmatpush2.msra.mxu0 0.0
    %2280 = vmatprep.subr.mxu0 0.0
    %2281 = vmatpush2.msra.mxu0 0.0
    %2282 = vmatprep.subr.mxu0 0.0
    %2283 = vmatpush2.msra.mxu0 0.0
    %2284 = vmatprep.subr.mxu0 0.0
    %2285 = vmatpush2.msra.mxu0 0.0
    %2286 = vmatprep.subr.mxu0 0.0
    %2287 = vmatpush2.msra.mxu0 0.0
    %2288 = vmatprep.mubr.f32.mxu0 0.0
    %v2289 = vand.u32 %v1995, 4294901760
    %v2290 = vsub.f32 %v1995, %v2289
    %v2291 = vand.u32 %v2290, 4294901760
    %2292 = vmatmul.mubr.f32.gmra.mxu0 %v2291
    %v2293 = vpop.f32.mrf.mxu0
    %v2294 = vadd.f32 %v2220, %v2293
    %v2295 = vpop.f32.mrf.mxu0
    %2296 = vdwg.mxu0
    %2297 = vmatprep.subr.mxu0 0.0
    %2298 = vmatpush1.msra.mxu0 0.0
    %2299 = vmatprep.subr.mxu0 0.0
    %2300 = vmatpush1.msra.mxu0 0.0
    %2301 = vmatprep.subr.mxu0 0.0
    %2302 = vmatpush1.msra.mxu0 0.0
    %2303 = vmatprep.subr.mxu0 0.0
    %2304 = vmatpush1.msra.mxu0 0.0
    %2305 = vmatprep.subr.mxu0 0.0
    %2306 = vmatpush1.msra.mxu0 0.0
    %2307 = vmatprep.subr.mxu0 0.0
    %2308 = vmatpush1.msra.mxu0 0.0
    %2309 = vmatprep.subr.mxu0 0.0
    %2310 = vmatpush1.msra.mxu0 0.0
    %2311 = vmatprep.subr.mxu0 0.0
    %2312 = vmatpush1.msra.mxu0 0.0
    %2313 = vmatprep.subr.mxu0 0.0
    %2314 = vmatpush1.msra.mxu0 0.0
    %2315 = vmatprep.subr.mxu0 0.0
    %2316 = vmatpush1.msra.mxu0 0.0
    %2317 = vmatprep.subr.mxu0 0.0
    %2318 = vmatpush1.msra.mxu0 0.0
    %2319 = vmatprep.subr.mxu0 0.0
    %2320 = vmatpush1.msra.mxu0 0.0
    %2321 = vmatprep.subr.mxu0 0.0
    %2322 = vmatpush1.msra.mxu0 0.0
    %2323 = vmatprep.subr.mxu0 0.0
    %2324 = vmatpush1.msra.mxu0 0.0
    %2325 = vmatprep.subr.mxu0 0.0
    %2326 = vmatpush1.msra.mxu0 0.0
    %2327 = vmatprep.subr.mxu0 0.0
    %v2328 = vand.u32 %v79, 4294901760
    %v2329 = vsub.f32 %v79, %v2328
    %v2330 = vand.u32 %v2329, 4294901760
    %2331 = vmatpush1.msra.mxu0 %v2330
    %2332 = vmatprep.subr.mxu0 0.0
    %2333 = vmatpush2.msra.mxu0 0.0
    %2334 = vmatprep.subr.mxu0 0.0
    %2335 = vmatpush2.msra.mxu0 0.0
    %2336 = vmatprep.subr.mxu0 0.0
    %2337 = vmatpush2.msra.mxu0 0.0
    %2338 = vmatprep.subr.mxu0 0.0
    %2339 = vmatpush2.msra.mxu0 0.0
    %2340 = vmatprep.subr.mxu0 0.0
    %2341 = vmatpush2.msra.mxu0 0.0
    %2342 = vmatprep.subr.mxu0 0.0
    %2343 = vmatpush2.msra.mxu0 0.0
    %2344 = vmatprep.subr.mxu0 0.0
    %2345 = vmatpush2.msra.mxu0 0.0
    %2346 = vmatprep.subr.mxu0 0.0
    %2347 = vmatpush2.msra.mxu0 0.0
    %2348 = vmatprep.subr.mxu0 0.0
    %2349 = vmatpush2.msra.mxu0 0.0
    %2350 = vmatprep.subr.mxu0 0.0
    %2351 = vmatpush2.msra.mxu0 0.0
    %2352 = vmatprep.subr.mxu0 0.0
    %2353 = vmatpush2.msra.mxu0 0.0
    %2354 = vmatprep.subr.mxu0 0.0
    %2355 = vmatpush2.msra.mxu0 0.0
    %2356 = vmatprep.subr.mxu0 0.0
    %2357 = vmatpush2.msra.mxu0 0.0
    %2358 = vmatprep.subr.mxu0 0.0
    %2359 = vmatpush2.msra.mxu0 0.0
    %2360 = vmatprep.subr.mxu0 0.0
    %2361 = vmatpush2.msra.mxu0 0.0
    %2362 = vmatprep.subr.mxu0 0.0
    %2363 = vmatpush2.msra.mxu0 0.0
    %2364 = vmatprep.mubr.f32.mxu0 0.0
    %v2365 = vand.u32 %v1995, 4294901760
    %2366 = vmatmul.mubr.f32.gmra.mxu0 %v2365
    %v2367 = vpop.f32.mrf.mxu0
    %v2368 = vadd.f32 %v2294, %v2367
    %v2369 = vpop.f32.mrf.mxu0
    %2370 = vdwg.mxu0
    %2371 = vmatprep.subr.mxu0 0.0
    %2372 = vmatpush1.msra.mxu0 0.0
    %2373 = vmatprep.subr.mxu0 0.0
    %2374 = vmatpush1.msra.mxu0 0.0
    %2375 = vmatprep.subr.mxu0 0.0
    %2376 = vmatpush1.msra.mxu0 0.0
    %2377 = vmatprep.subr.mxu0 0.0
    %2378 = vmatpush1.msra.mxu0 0.0
    %2379 = vmatprep.subr.mxu0 0.0
    %2380 = vmatpush1.msra.mxu0 0.0
    %2381 = vmatprep.subr.mxu0 0.0
    %2382 = vmatpush1.msra.mxu0 0.0
    %2383 = vmatprep.subr.mxu0 0.0
    %2384 = vmatpush1.msra.mxu0 0.0
    %2385 = vmatprep.subr.mxu0 0.0
    %2386 = vmatpush1.msra.mxu0 0.0
    %2387 = vmatprep.subr.mxu0 0.0
    %2388 = vmatpush1.msra.mxu0 0.0
    %2389 = vmatprep.subr.mxu0 0.0
    %2390 = vmatpush1.msra.mxu0 0.0
    %2391 = vmatprep.subr.mxu0 0.0
    %2392 = vmatpush1.msra.mxu0 0.0
    %2393 = vmatprep.subr.mxu0 0.0
    %2394 = vmatpush1.msra.mxu0 0.0
    %2395 = vmatprep.subr.mxu0 0.0
    %2396 = vmatpush1.msra.mxu0 0.0
    %2397 = vmatprep.subr.mxu0 0.0
    %2398 = vmatpush1.msra.mxu0 0.0
    %2399 = vmatprep.subr.mxu0 0.0
    %2400 = vmatpush1.msra.mxu0 0.0
    %2401 = vmatprep.subr.mxu0 0.0
    %v2402 = vand.u32 %v79, 4294901760
    %2403 = vmatpush1.msra.mxu0 %v2402
    %2404 = vmatprep.subr.mxu0 0.0
    %2405 = vmatpush2.msra.mxu0 0.0
    %2406 = vmatprep.subr.mxu0 0.0
    %2407 = vmatpush2.msra.mxu0 0.0
    %2408 = vmatprep.subr.mxu0 0.0
    %2409 = vmatpush2.msra.mxu0 0.0
    %2410 = vmatprep.subr.mxu0 0.0
    %2411 = vmatpush2.msra.mxu0 0.0
    %2412 = vmatprep.subr.mxu0 0.0
    %2413 = vmatpush2.msra.mxu0 0.0
    %2414 = vmatprep.subr.mxu0 0.0
    %2415 = vmatpush2.msra.mxu0 0.0
    %2416 = vmatprep.subr.mxu0 0.0
    %2417 = vmatpush2.msra.mxu0 0.0
    %2418 = vmatprep.subr.mxu0 0.0
    %2419 = vmatpush2.msra.mxu0 0.0
    %2420 = vmatprep.subr.mxu0 0.0
    %2421 = vmatpush2.msra.mxu0 0.0
    %2422 = vmatprep.subr.mxu0 0.0
    %2423 = vmatpush2.msra.mxu0 0.0
    %2424 = vmatprep.subr.mxu0 0.0
    %2425 = vmatpush2.msra.mxu0 0.0
    %2426 = vmatprep.subr.mxu0 0.0
    %2427 = vmatpush2.msra.mxu0 0.0
    %2428 = vmatprep.subr.mxu0 0.0
    %2429 = vmatpush2.msra.mxu0 0.0
    %2430 = vmatprep.subr.mxu0 0.0
    %2431 = vmatpush2.msra.mxu0 0.0
    %2432 = vmatprep.subr.mxu0 0.0
    %2433 = vmatpush2.msra.mxu0 0.0
    %2434 = vmatprep.subr.mxu0 0.0
    %2435 = vmatpush2.msra.mxu0 0.0
    %2436 = vmatprep.mubr.f32.mxu0 0.0
    %v2437 = vand.u32 %v1995, 4294901760
    %2438 = vmatmul.mubr.f32.gmra.mxu0 %v2437
    %v2439 = vpop.f32.mrf.mxu0
    %v2440 = vadd.f32 %v2368, %v2439
    %v2441 = vpop.f32.mrf.mxu0
    %2442 = vdwg.mxu0
    %v2443 = vsel %vm589, %v632, 0
    %2445 = vmatprep.subr.mxu0 0.0
    %2446 = vmatpush1.msra.mxu0 0.0
    %2447 = vmatprep.subr.mxu0 0.0
    %2448 = vmatpush1.msra.mxu0 0.0
    %2449 = vmatprep.subr.mxu0 0.0
    %2450 = vmatpush1.msra.mxu0 0.0
    %2451 = vmatprep.subr.mxu0 0.0
    %2452 = vmatpush1.msra.mxu0 0.0
    %2453 = vmatprep.subr.mxu0 0.0
    %2454 = vmatpush1.msra.mxu0 0.0
    %2455 = vmatprep.subr.mxu0 0.0
    %2456 = vmatpush1.msra.mxu0 0.0
    %2457 = vmatprep.subr.mxu0 0.0
    %2458 = vmatpush1.msra.mxu0 0.0
    %2459 = vmatprep.subr.mxu0 0.0
    %2460 = vmatpush1.msra.mxu0 0.0
    %2461 = vmatprep.subr.mxu0 0.0
    %2462 = vmatpush1.msra.mxu0 0.0
    %2463 = vmatprep.subr.mxu0 0.0
    %2464 = vmatpush1.msra.mxu0 0.0
    %2465 = vmatprep.subr.mxu0 0.0
    %2466 = vmatpush1.msra.mxu0 0.0
    %2467 = vmatprep.subr.mxu0 0.0
    %2468 = vmatpush1.msra.mxu0 0.0
    %2469 = vmatprep.subr.mxu0 0.0
    %2470 = vmatpush1.msra.mxu0 0.0
    %2471 = vmatprep.subr.mxu0 0.0
    %2472 = vmatpush1.msra.mxu0 0.0
    %2473 = vmatprep.subr.mxu0 0.0
    %2474 = vmatpush1.msra.mxu0 0.0
    %2475 = vmatprep.subr.mxu0 0.0
    %v2476 = vand.u32 %v80, 4294901760
    %2477 = vmatpush1.msra.mxu0 %v2476
    %2478 = vmatprep.subr.mxu0 0.0
    %2479 = vmatpush2.msra.mxu0 0.0
    %2480 = vmatprep.subr.mxu0 0.0
    %2481 = vmatpush2.msra.mxu0 0.0
    %2482 = vmatprep.subr.mxu0 0.0
    %2483 = vmatpush2.msra.mxu0 0.0
    %2484 = vmatprep.subr.mxu0 0.0
    %2485 = vmatpush2.msra.mxu0 0.0
    %2486 = vmatprep.subr.mxu0 0.0
    %2487 = vmatpush2.msra.mxu0 0.0
    %2488 = vmatprep.subr.mxu0 0.0
    %2489 = vmatpush2.msra.mxu0 0.0
    %2490 = vmatprep.subr.mxu0 0.0
    %2491 = vmatpush2.msra.mxu0 0.0
    %2492 = vmatprep.subr.mxu0 0.0
    %2493 = vmatpush2.msra.mxu0 0.0
    %2494 = vmatprep.subr.mxu0 0.0
    %2495 = vmatpush2.msra.mxu0 0.0
    %2496 = vmatprep.subr.mxu0 0.0
    %2497 = vmatpush2.msra.mxu0 0.0
    %2498 = vmatprep.subr.mxu0 0.0
    %2499 = vmatpush2.msra.mxu0 0.0
    %2500 = vmatprep.subr.mxu0 0.0
    %2501 = vmatpush2.msra.mxu0 0.0
    %2502 = vmatprep.subr.mxu0 0.0
    %2503 = vmatpush2.msra.mxu0 0.0
    %2504 = vmatprep.subr.mxu0 0.0
    %2505 = vmatpush2.msra.mxu0 0.0
    %2506 = vmatprep.subr.mxu0 0.0
    %2507 = vmatpush2.msra.mxu0 0.0
    %2508 = vmatprep.subr.mxu0 0.0
    %2509 = vmatpush2.msra.mxu0 0.0
    %2510 = vmatprep.mubr.f32.mxu0 0.0
    %v2511 = vand.u32 %v2443, 4294901760
    %v2512 = vsub.f32 %v2443, %v2511
    %v2513 = vand.u32 %v2512, 4294901760
    %v2514 = vsub.f32 %v2512, %v2513
    %v2515 = vand.u32 %v2514, 4294901760
    %2516 = vmatmul.mubr.f32.gmra.mxu0 %v2515
    %v2517 = vpop.f32.mrf.mxu0
    %v2518 = vadd.f32 0.0, %v2517
    %v2519 = vpop.f32.mrf.mxu0
    %2520 = vdwg.mxu0
    %2521 = vmatprep.subr.mxu0 0.0
    %2522 = vmatpush1.msra.mxu0 0.0
    %2523 = vmatprep.subr.mxu0 0.0
    %2524 = vmatpush1.msra.mxu0 0.0
    %2525 = vmatprep.subr.mxu0 0.0
    %2526 = vmatpush1.msra.mxu0 0.0
    %2527 = vmatprep.subr.mxu0 0.0
    %2528 = vmatpush1.msra.mxu0 0.0
    %2529 = vmatprep.subr.mxu0 0.0
    %2530 = vmatpush1.msra.mxu0 0.0
    %2531 = vmatprep.subr.mxu0 0.0
    %2532 = vmatpush1.msra.mxu0 0.0
    %2533 = vmatprep.subr.mxu0 0.0
    %2534 = vmatpush1.msra.mxu0 0.0
    %2535 = vmatprep.subr.mxu0 0.0
    %2536 = vmatpush1.msra.mxu0 0.0
    %2537 = vmatprep.subr.mxu0 0.0
    %2538 = vmatpush1.msra.mxu0 0.0
    %2539 = vmatprep.subr.mxu0 0.0
    %2540 = vmatpush1.msra.mxu0 0.0
    %2541 = vmatprep.subr.mxu0 0.0
    %2542 = vmatpush1.msra.mxu0 0.0
    %2543 = vmatprep.subr.mxu0 0.0
    %2544 = vmatpush1.msra.mxu0 0.0
    %2545 = vmatprep.subr.mxu0 0.0
    %2546 = vmatpush1.msra.mxu0 0.0
    %2547 = vmatprep.subr.mxu0 0.0
    %2548 = vmatpush1.msra.mxu0 0.0
    %2549 = vmatprep.subr.mxu0 0.0
    %2550 = vmatpush1.msra.mxu0 0.0
    %2551 = vmatprep.subr.mxu0 0.0
    %v2552 = vand.u32 %v80, 4294901760
    %v2553 = vsub.f32 %v80, %v2552
    %v2554 = vand.u32 %v2553, 4294901760
    %v2555 = vsub.f32 %v2553, %v2554
    %v2556 = vand.u32 %v2555, 4294901760
    %2557 = vmatpush1.msra.mxu0 %v2556
    %2558 = vmatprep.subr.mxu0 0.0
    %2559 = vmatpush2.msra.mxu0 0.0
    %2560 = vmatprep.subr.mxu0 0.0
    %2561 = vmatpush2.msra.mxu0 0.0
    %2562 = vmatprep.subr.mxu0 0.0
    %2563 = vmatpush2.msra.mxu0 0.0
    %2564 = vmatprep.subr.mxu0 0.0
    %2565 = vmatpush2.msra.mxu0 0.0
    %2566 = vmatprep.subr.mxu0 0.0
    %2567 = vmatpush2.msra.mxu0 0.0
    %2568 = vmatprep.subr.mxu0 0.0
    %2569 = vmatpush2.msra.mxu0 0.0
    %2570 = vmatprep.subr.mxu0 0.0
    %2571 = vmatpush2.msra.mxu0 0.0
    %2572 = vmatprep.subr.mxu0 0.0
    %2573 = vmatpush2.msra.mxu0 0.0
    %2574 = vmatprep.subr.mxu0 0.0
    %2575 = vmatpush2.msra.mxu0 0.0
    %2576 = vmatprep.subr.mxu0 0.0
    %2577 = vmatpush2.msra.mxu0 0.0
    %2578 = vmatprep.subr.mxu0 0.0
    %2579 = vmatpush2.msra.mxu0 0.0
    %2580 = vmatprep.subr.mxu0 0.0
    %2581 = vmatpush2.msra.mxu0 0.0
    %2582 = vmatprep.subr.mxu0 0.0
    %2583 = vmatpush2.msra.mxu0 0.0
    %2584 = vmatprep.subr.mxu0 0.0
    %2585 = vmatpush2.msra.mxu0 0.0
    %2586 = vmatprep.subr.mxu0 0.0
    %2587 = vmatpush2.msra.mxu0 0.0
    %2588 = vmatprep.subr.mxu0 0.0
    %2589 = vmatpush2.msra.mxu0 0.0
    %2590 = vmatprep.mubr.f32.mxu0 0.0
    %v2591 = vand.u32 %v2443, 4294901760
    %2592 = vmatmul.mubr.f32.gmra.mxu0 %v2591
    %v2593 = vpop.f32.mrf.mxu0
    %v2594 = vadd.f32 %v2518, %v2593
    %v2595 = vpop.f32.mrf.mxu0
    %2596 = vdwg.mxu0
    %2597 = vmatprep.subr.mxu0 0.0
    %2598 = vmatpush1.msra.mxu0 0.0
    %2599 = vmatprep.subr.mxu0 0.0
    %2600 = vmatpush1.msra.mxu0 0.0
    %2601 = vmatprep.subr.mxu0 0.0
    %2602 = vmatpush1.msra.mxu0 0.0
    %2603 = vmatprep.subr.mxu0 0.0
    %2604 = vmatpush1.msra.mxu0 0.0
    %2605 = vmatprep.subr.mxu0 0.0
    %2606 = vmatpush1.msra.mxu0 0.0
    %2607 = vmatprep.subr.mxu0 0.0
    %2608 = vmatpush1.msra.mxu0 0.0
    %2609 = vmatprep.subr.mxu0 0.0
    %2610 = vmatpush1.msra.mxu0 0.0
    %2611 = vmatprep.subr.mxu0 0.0
    %2612 = vmatpush1.msra.mxu0 0.0
    %2613 = vmatprep.subr.mxu0 0.0
    %2614 = vmatpush1.msra.mxu0 0.0
    %2615 = vmatprep.subr.mxu0 0.0
    %2616 = vmatpush1.msra.mxu0 0.0
    %2617 = vmatprep.subr.mxu0 0.0
    %2618 = vmatpush1.msra.mxu0 0.0
    %2619 = vmatprep.subr.mxu0 0.0
    %2620 = vmatpush1.msra.mxu0 0.0
    %2621 = vmatprep.subr.mxu0 0.0
    %2622 = vmatpush1.msra.mxu0 0.0
    %2623 = vmatprep.subr.mxu0 0.0
    %2624 = vmatpush1.msra.mxu0 0.0
    %2625 = vmatprep.subr.mxu0 0.0
    %2626 = vmatpush1.msra.mxu0 0.0
    %2627 = vmatprep.subr.mxu0 0.0
    %v2628 = vand.u32 %v80, 4294901760
    %v2629 = vsub.f32 %v80, %v2628
    %2630 = vmatpush1.msra.mxu0 %v2629
    %2631 = vmatprep.subr.mxu0 0.0
    %2632 = vmatpush2.msra.mxu0 0.0
    %2633 = vmatprep.subr.mxu0 0.0
    %2634 = vmatpush2.msra.mxu0 0.0
    %2635 = vmatprep.subr.mxu0 0.0
    %2636 = vmatpush2.msra.mxu0 0.0
    %2637 = vmatprep.subr.mxu0 0.0
    %2638 = vmatpush2.msra.mxu0 0.0
    %2639 = vmatprep.subr.mxu0 0.0
    %2640 = vmatpush2.msra.mxu0 0.0
    %2641 = vmatprep.subr.mxu0 0.0
    %2642 = vmatpush2.msra.mxu0 0.0
    %2643 = vmatprep.subr.mxu0 0.0
    %2644 = vmatpush2.msra.mxu0 0.0
    %2645 = vmatprep.subr.mxu0 0.0
    %2646 = vmatpush2.msra.mxu0 0.0
    %2647 = vmatprep.subr.mxu0 0.0
    %2648 = vmatpush2.msra.mxu0 0.0
    %2649 = vmatprep.subr.mxu0 0.0
    %2650 = vmatpush2.msra.mxu0 0.0
    %2651 = vmatprep.subr.mxu0 0.0
    %2652 = vmatpush2.msra.mxu0 0.0
    %2653 = vmatprep.subr.mxu0 0.0
    %2654 = vmatpush2.msra.mxu0 0.0
    %2655 = vmatprep.subr.mxu0 0.0
    %2656 = vmatpush2.msra.mxu0 0.0
    %2657 = vmatprep.subr.mxu0 0.0
    %2658 = vmatpush2.msra.mxu0 0.0
    %2659 = vmatprep.subr.mxu0 0.0
    %2660 = vmatpush2.msra.mxu0 0.0
    %2661 = vmatprep.subr.mxu0 0.0
    %2662 = vmatpush2.msra.mxu0 0.0
    %2663 = vmatprep.mubr.f32.mxu0 0.0
    %v2664 = vand.u32 %v2443, 4294901760
    %v2665 = vsub.f32 %v2443, %v2664
    %2666 = vmatmul.mubr.f32.gmra.mxu0 %v2665
    %v2667 = vpop.f32.mrf.mxu0
    %v2668 = vadd.f32 %v2594, %v2667
    %v2669 = vpop.f32.mrf.mxu0
    %2670 = vdwg.mxu0
    %2671 = vmatprep.subr.mxu0 0.0
    %2672 = vmatpush1.msra.mxu0 0.0
    %2673 = vmatprep.subr.mxu0 0.0
    %2674 = vmatpush1.msra.mxu0 0.0
    %2675 = vmatprep.subr.mxu0 0.0
    %2676 = vmatpush1.msra.mxu0 0.0
    %2677 = vmatprep.subr.mxu0 0.0
    %2678 = vmatpush1.msra.mxu0 0.0
    %2679 = vmatprep.subr.mxu0 0.0
    %2680 = vmatpush1.msra.mxu0 0.0
    %2681 = vmatprep.subr.mxu0 0.0
    %2682 = vmatpush1.msra.mxu0 0.0
    %2683 = vmatprep.subr.mxu0 0.0
    %2684 = vmatpush1.msra.mxu0 0.0
    %2685 = vmatprep.subr.mxu0 0.0
    %2686 = vmatpush1.msra.mxu0 0.0
    %2687 = vmatprep.subr.mxu0 0.0
    %2688 = vmatpush1.msra.mxu0 0.0
    %2689 = vmatprep.subr.mxu0 0.0
    %2690 = vmatpush1.msra.mxu0 0.0
    %2691 = vmatprep.subr.mxu0 0.0
    %2692 = vmatpush1.msra.mxu0 0.0
    %2693 = vmatprep.subr.mxu0 0.0
    %2694 = vmatpush1.msra.mxu0 0.0
    %2695 = vmatprep.subr.mxu0 0.0
    %2696 = vmatpush1.msra.mxu0 0.0
    %2697 = vmatprep.subr.mxu0 0.0
    %2698 = vmatpush1.msra.mxu0 0.0
    %2699 = vmatprep.subr.mxu0 0.0
    %2700 = vmatpush1.msra.mxu0 0.0
    %2701 = vmatprep.subr.mxu0 0.0
    %v2702 = vand.u32 %v80, 4294901760
    %2703 = vmatpush1.msra.mxu0 %v2702
    %2704 = vmatprep.subr.mxu0 0.0
    %2705 = vmatpush2.msra.mxu0 0.0
    %2706 = vmatprep.subr.mxu0 0.0
    %2707 = vmatpush2.msra.mxu0 0.0
    %2708 = vmatprep.subr.mxu0 0.0
    %2709 = vmatpush2.msra.mxu0 0.0
    %2710 = vmatprep.subr.mxu0 0.0
    %2711 = vmatpush2.msra.mxu0 0.0
    %2712 = vmatprep.subr.mxu0 0.0
    %2713 = vmatpush2.msra.mxu0 0.0
    %2714 = vmatprep.subr.mxu0 0.0
    %2715 = vmatpush2.msra.mxu0 0.0
    %2716 = vmatprep.subr.mxu0 0.0
    %2717 = vmatpush2.msra.mxu0 0.0
    %2718 = vmatprep.subr.mxu0 0.0
    %2719 = vmatpush2.msra.mxu0 0.0
    %2720 = vmatprep.subr.mxu0 0.0
    %2721 = vmatpush2.msra.mxu0 0.0
    %2722 = vmatprep.subr.mxu0 0.0
    %2723 = vmatpush2.msra.mxu0 0.0
    %2724 = vmatprep.subr.mxu0 0.0
    %2725 = vmatpush2.msra.mxu0 0.0
    %2726 = vmatprep.subr.mxu0 0.0
    %2727 = vmatpush2.msra.mxu0 0.0
    %2728 = vmatprep.subr.mxu0 0.0
    %2729 = vmatpush2.msra.mxu0 0.0
    %2730 = vmatprep.subr.mxu0 0.0
    %2731 = vmatpush2.msra.mxu0 0.0
    %2732 = vmatprep.subr.mxu0 0.0
    %2733 = vmatpush2.msra.mxu0 0.0
    %2734 = vmatprep.subr.mxu0 0.0
    %2735 = vmatpush2.msra.mxu0 0.0
    %2736 = vmatprep.mubr.f32.mxu0 0.0
    %v2737 = vand.u32 %v2443, 4294901760
    %v2738 = vsub.f32 %v2443, %v2737
    %v2739 = vand.u32 %v2738, 4294901760
    %2740 = vmatmul.mubr.f32.gmra.mxu0 %v2739
    %v2741 = vpop.f32.mrf.mxu0
    %v2742 = vadd.f32 %v2668, %v2741
    %v2743 = vpop.f32.mrf.mxu0
    %2744 = vdwg.mxu0
    %2745 = vmatprep.subr.mxu0 0.0
    %2746 = vmatpush1.msra.mxu0 0.0
    %2747 = vmatprep.subr.mxu0 0.0
    %2748 = vmatpush1.msra.mxu0 0.0
    %2749 = vmatprep.subr.mxu0 0.0
    %2750 = vmatpush1.msra.mxu0 0.0
    %2751 = vmatprep.subr.mxu0 0.0
    %2752 = vmatpush1.msra.mxu0 0.0
    %2753 = vmatprep.subr.mxu0 0.0
    %2754 = vmatpush1.msra.mxu0 0.0
    %2755 = vmatprep.subr.mxu0 0.0
    %2756 = vmatpush1.msra.mxu0 0.0
    %2757 = vmatprep.subr.mxu0 0.0
    %2758 = vmatpush1.msra.mxu0 0.0
    %2759 = vmatprep.subr.mxu0 0.0
    %2760 = vmatpush1.msra.mxu0 0.0
    %2761 = vmatprep.subr.mxu0 0.0
    %2762 = vmatpush1.msra.mxu0 0.0
    %2763 = vmatprep.subr.mxu0 0.0
    %2764 = vmatpush1.msra.mxu0 0.0
    %2765 = vmatprep.subr.mxu0 0.0
    %2766 = vmatpush1.msra.mxu0 0.0
    %2767 = vmatprep.subr.mxu0 0.0
    %2768 = vmatpush1.msra.mxu0 0.0
    %2769 = vmatprep.subr.mxu0 0.0
    %2770 = vmatpush1.msra.mxu0 0.0
    %2771 = vmatprep.subr.mxu0 0.0
    %2772 = vmatpush1.msra.mxu0 0.0
    %2773 = vmatprep.subr.mxu0 0.0
    %2774 = vmatpush1.msra.mxu0 0.0
    %2775 = vmatprep.subr.mxu0 0.0
    %v2776 = vand.u32 %v80, 4294901760
    %v2777 = vsub.f32 %v80, %v2776
    %v2778 = vand.u32 %v2777, 4294901760
    %2779 = vmatpush1.msra.mxu0 %v2778
    %2780 = vmatprep.subr.mxu0 0.0
    %2781 = vmatpush2.msra.mxu0 0.0
    %2782 = vmatprep.subr.mxu0 0.0
    %2783 = vmatpush2.msra.mxu0 0.0
    %2784 = vmatprep.subr.mxu0 0.0
    %2785 = vmatpush2.msra.mxu0 0.0
    %2786 = vmatprep.subr.mxu0 0.0
    %2787 = vmatpush2.msra.mxu0 0.0
    %2788 = vmatprep.subr.mxu0 0.0
    %2789 = vmatpush2.msra.mxu0 0.0
    %2790 = vmatprep.subr.mxu0 0.0
    %2791 = vmatpush2.msra.mxu0 0.0
    %2792 = vmatprep.subr.mxu0 0.0
    %2793 = vmatpush2.msra.mxu0 0.0
    %2794 = vmatprep.subr.mxu0 0.0
    %2795 = vmatpush2.msra.mxu0 0.0
    %2796 = vmatprep.subr.mxu0 0.0
    %2797 = vmatpush2.msra.mxu0 0.0
    %2798 = vmatprep.subr.mxu0 0.0
    %2799 = vmatpush2.msra.mxu0 0.0
    %2800 = vmatprep.subr.mxu0 0.0
    %2801 = vmatpush2.msra.mxu0 0.0
    %2802 = vmatprep.subr.mxu0 0.0
    %2803 = vmatpush2.msra.mxu0 0.0
    %2804 = vmatprep.subr.mxu0 0.0
    %2805 = vmatpush2.msra.mxu0 0.0
    %2806 = vmatprep.subr.mxu0 0.0
    %2807 = vmatpush2.msra.mxu0 0.0
    %2808 = vmatprep.subr.mxu0 0.0
    %2809 = vmatpush2.msra.mxu0 0.0
    %2810 = vmatprep.subr.mxu0 0.0
    %2811 = vmatpush2.msra.mxu0 0.0
    %2812 = vmatprep.mubr.f32.mxu0 0.0
    %v2813 = vand.u32 %v2443, 4294901760
    %2814 = vmatmul.mubr.f32.gmra.mxu0 %v2813
    %v2815 = vpop.f32.mrf.mxu0
    %v2816 = vadd.f32 %v2742, %v2815
    %v2817 = vpop.f32.mrf.mxu0
    %2818 = vdwg.mxu0
    %2819 = vmatprep.subr.mxu0 0.0
    %2820 = vmatpush1.msra.mxu0 0.0
    %2821 = vmatprep.subr.mxu0 0.0
    %2822 = vmatpush1.msra.mxu0 0.0
    %2823 = vmatprep.subr.mxu0 0.0
    %2824 = vmatpush1.msra.mxu0 0.0
    %2825 = vmatprep.subr.mxu0 0.0
    %2826 = vmatpush1.msra.mxu0 0.0
    %2827 = vmatprep.subr.mxu0 0.0
    %2828 = vmatpush1.msra.mxu0 0.0
    %2829 = vmatprep.subr.mxu0 0.0
    %2830 = vmatpush1.msra.mxu0 0.0
    %2831 = vmatprep.subr.mxu0 0.0
    %2832 = vmatpush1.msra.mxu0 0.0
    %2833 = vmatprep.subr.mxu0 0.0
    %2834 = vmatpush1.msra.mxu0 0.0
    %2835 = vmatprep.subr.mxu0 0.0
    %2836 = vmatpush1.msra.mxu0 0.0
    %2837 = vmatprep.subr.mxu0 0.0
    %2838 = vmatpush1.msra.mxu0 0.0
    %2839 = vmatprep.subr.mxu0 0.0
    %2840 = vmatpush1.msra.mxu0 0.0
    %2841 = vmatprep.subr.mxu0 0.0
    %2842 = vmatpush1.msra.mxu0 0.0
    %2843 = vmatprep.subr.mxu0 0.0
    %2844 = vmatpush1.msra.mxu0 0.0
    %2845 = vmatprep.subr.mxu0 0.0
    %2846 = vmatpush1.msra.mxu0 0.0
    %2847 = vmatprep.subr.mxu0 0.0
    %2848 = vmatpush1.msra.mxu0 0.0
    %2849 = vmatprep.subr.mxu0 0.0
    %v2850 = vand.u32 %v80, 4294901760
    %2851 = vmatpush1.msra.mxu0 %v2850
    %2852 = vmatprep.subr.mxu0 0.0
    %2853 = vmatpush2.msra.mxu0 0.0
    %2854 = vmatprep.subr.mxu0 0.0
    %2855 = vmatpush2.msra.mxu0 0.0
    %2856 = vmatprep.subr.mxu0 0.0
    %2857 = vmatpush2.msra.mxu0 0.0
    %2858 = vmatprep.subr.mxu0 0.0
    %2859 = vmatpush2.msra.mxu0 0.0
    %2860 = vmatprep.subr.mxu0 0.0
    %2861 = vmatpush2.msra.mxu0 0.0
    %2862 = vmatprep.subr.mxu0 0.0
    %2863 = vmatpush2.msra.mxu0 0.0
    %2864 = vmatprep.subr.mxu0 0.0
    %2865 = vmatpush2.msra.mxu0 0.0
    %2866 = vmatprep.subr.mxu0 0.0
    %2867 = vmatpush2.msra.mxu0 0.0
    %2868 = vmatprep.subr.mxu0 0.0
    %2869 = vmatpush2.msra.mxu0 0.0
    %2870 = vmatprep.subr.mxu0 0.0
    %2871 = vmatpush2.msra.mxu0 0.0
    %2872 = vmatprep.subr.mxu0 0.0
    %2873 = vmatpush2.msra.mxu0 0.0
    %2874 = vmatprep.subr.mxu0 0.0
    %2875 = vmatpush2.msra.mxu0 0.0
    %2876 = vmatprep.subr.mxu0 0.0
    %2877 = vmatpush2.msra.mxu0 0.0
    %2878 = vmatprep.subr.mxu0 0.0
    %2879 = vmatpush2.msra.mxu0 0.0
    %2880 = vmatprep.subr.mxu0 0.0
    %2881 = vmatpush2.msra.mxu0 0.0
    %2882 = vmatprep.subr.mxu0 0.0
    %2883 = vmatpush2.msra.mxu0 0.0
    %2884 = vmatprep.mubr.f32.mxu0 0.0
    %v2885 = vand.u32 %v2443, 4294901760
    %2886 = vmatmul.mubr.f32.gmra.mxu0 %v2885
    %v2887 = vpop.f32.mrf.mxu0
    %v2888 = vadd.f32 %v2816, %v2887
    %v2889 = vpop.f32.mrf.mxu0
    %2890 = vdwg.mxu0
    %v2891 = vsel %vm589, %v646, 0
    %2893 = vmatprep.subr.mxu0 0.0
    %2894 = vmatpush1.msra.mxu0 0.0
    %2895 = vmatprep.subr.mxu0 0.0
    %2896 = vmatpush1.msra.mxu0 0.0
    %2897 = vmatprep.subr.mxu0 0.0
    %2898 = vmatpush1.msra.mxu0 0.0
    %2899 = vmatprep.subr.mxu0 0.0
    %2900 = vmatpush1.msra.mxu0 0.0
    %2901 = vmatprep.subr.mxu0 0.0
    %2902 = vmatpush1.msra.mxu0 0.0
    %2903 = vmatprep.subr.mxu0 0.0
    %2904 = vmatpush1.msra.mxu0 0.0
    %2905 = vmatprep.subr.mxu0 0.0
    %2906 = vmatpush1.msra.mxu0 0.0
    %2907 = vmatprep.subr.mxu0 0.0
    %2908 = vmatpush1.msra.mxu0 0.0
    %2909 = vmatprep.subr.mxu0 0.0
    %2910 = vmatpush1.msra.mxu0 0.0
    %2911 = vmatprep.subr.mxu0 0.0
    %2912 = vmatpush1.msra.mxu0 0.0
    %2913 = vmatprep.subr.mxu0 0.0
    %2914 = vmatpush1.msra.mxu0 0.0
    %2915 = vmatprep.subr.mxu0 0.0
    %2916 = vmatpush1.msra.mxu0 0.0
    %2917 = vmatprep.subr.mxu0 0.0
    %2918 = vmatpush1.msra.mxu0 0.0
    %2919 = vmatprep.subr.mxu0 0.0
    %2920 = vmatpush1.msra.mxu0 0.0
    %2921 = vmatprep.subr.mxu0 0.0
    %2922 = vmatpush1.msra.mxu0 0.0
    %2923 = vmatprep.subr.mxu0 0.0
    %v2924 = vand.u32 %v81, 4294901760
    %2925 = vmatpush1.msra.mxu0 %v2924
    %2926 = vmatprep.subr.mxu0 0.0
    %2927 = vmatpush2.msra.mxu0 0.0
    %2928 = vmatprep.subr.mxu0 0.0
    %2929 = vmatpush2.msra.mxu0 0.0
    %2930 = vmatprep.subr.mxu0 0.0
    %2931 = vmatpush2.msra.mxu0 0.0
    %2932 = vmatprep.subr.mxu0 0.0
    %2933 = vmatpush2.msra.mxu0 0.0
    %2934 = vmatprep.subr.mxu0 0.0
    %2935 = vmatpush2.msra.mxu0 0.0
    %2936 = vmatprep.subr.mxu0 0.0
    %2937 = vmatpush2.msra.mxu0 0.0
    %2938 = vmatprep.subr.mxu0 0.0
    %2939 = vmatpush2.msra.mxu0 0.0
    %2940 = vmatprep.subr.mxu0 0.0
    %2941 = vmatpush2.msra.mxu0 0.0
    %2942 = vmatprep.subr.mxu0 0.0
    %2943 = vmatpush2.msra.mxu0 0.0
    %2944 = vmatprep.subr.mxu0 0.0
    %2945 = vmatpush2.msra.mxu0 0.0
    %2946 = vmatprep.subr.mxu0 0.0
    %2947 = vmatpush2.msra.mxu0 0.0
    %2948 = vmatprep.subr.mxu0 0.0
    %2949 = vmatpush2.msra.mxu0 0.0
    %2950 = vmatprep.subr.mxu0 0.0
    %2951 = vmatpush2.msra.mxu0 0.0
    %2952 = vmatprep.subr.mxu0 0.0
    %2953 = vmatpush2.msra.mxu0 0.0
    %2954 = vmatprep.subr.mxu0 0.0
    %2955 = vmatpush2.msra.mxu0 0.0
    %2956 = vmatprep.subr.mxu0 0.0
    %2957 = vmatpush2.msra.mxu0 0.0
    %2958 = vmatprep.mubr.f32.mxu0 0.0
    %v2959 = vand.u32 %v2891, 4294901760
    %v2960 = vsub.f32 %v2891, %v2959
    %v2961 = vand.u32 %v2960, 4294901760
    %v2962 = vsub.f32 %v2960, %v2961
    %v2963 = vand.u32 %v2962, 4294901760
    %2964 = vmatmul.mubr.f32.gmra.mxu0 %v2963
    %v2965 = vpop.f32.mrf.mxu0
    %v2966 = vadd.f32 0.0, %v2965
    %v2967 = vpop.f32.mrf.mxu0
    %2968 = vdwg.mxu0
    %2969 = vmatprep.subr.mxu0 0.0
    %2970 = vmatpush1.msra.mxu0 0.0
    %2971 = vmatprep.subr.mxu0 0.0
    %2972 = vmatpush1.msra.mxu0 0.0
    %2973 = vmatprep.subr.mxu0 0.0
    %2974 = vmatpush1.msra.mxu0 0.0
    %2975 = vmatprep.subr.mxu0 0.0
    %2976 = vmatpush1.msra.mxu0 0.0
    %2977 = vmatprep.subr.mxu0 0.0
    %2978 = vmatpush1.msra.mxu0 0.0
    %2979 = vmatprep.subr.mxu0 0.0
    %2980 = vmatpush1.msra.mxu0 0.0
    %2981 = vmatprep.subr.mxu0 0.0
    %2982 = vmatpush1.msra.mxu0 0.0
    %2983 = vmatprep.subr.mxu0 0.0
    %2984 = vmatpush1.msra.mxu0 0.0
    %2985 = vmatprep.subr.mxu0 0.0
    %2986 = vmatpush1.msra.mxu0 0.0
    %2987 = vmatprep.subr.mxu0 0.0
    %2988 = vmatpush1.msra.mxu0 0.0
    %2989 = vmatprep.subr.mxu0 0.0
    %2990 = vmatpush1.msra.mxu0 0.0
    %2991 = vmatprep.subr.mxu0 0.0
    %2992 = vmatpush1.msra.mxu0 0.0
    %2993 = vmatprep.subr.mxu0 0.0
    %2994 = vmatpush1.msra.mxu0 0.0
    %2995 = vmatprep.subr.mxu0 0.0
    %2996 = vmatpush1.msra.mxu0 0.0
    %2997 = vmatprep.subr.mxu0 0.0
    %2998 = vmatpush1.msra.mxu0 0.0
    %2999 = vmatprep.subr.mxu0 0.0
    %v3000 = vand.u32 %v81, 4294901760
    %v3001 = vsub.f32 %v81, %v3000
    %v3002 = vand.u32 %v3001, 4294901760
    %v3003 = vsub.f32 %v3001, %v3002
    %v3004 = vand.u32 %v3003, 4294901760
    %3005 = vmatpush1.msra.mxu0 %v3004
    %3006 = vmatprep.subr.mxu0 0.0
    %3007 = vmatpush2.msra.mxu0 0.0
    %3008 = vmatprep.subr.mxu0 0.0
    %3009 = vmatpush2.msra.mxu0 0.0
    %3010 = vmatprep.subr.mxu0 0.0
    %3011 = vmatpush2.msra.mxu0 0.0
    %3012 = vmatprep.subr.mxu0 0.0
    %3013 = vmatpush2.msra.mxu0 0.0
    %3014 = vmatprep.subr.mxu0 0.0
    %3015 = vmatpush2.msra.mxu0 0.0
    %3016 = vmatprep.subr.mxu0 0.0
    %3017 = vmatpush2.msra.mxu0 0.0
    %3018 = vmatprep.subr.mxu0 0.0
    %3019 = vmatpush2.msra.mxu0 0.0
    %3020 = vmatprep.subr.mxu0 0.0
    %3021 = vmatpush2.msra.mxu0 0.0
    %3022 = vmatprep.subr.mxu0 0.0
    %3023 = vmatpush2.msra.mxu0 0.0
    %3024 = vmatprep.subr.mxu0 0.0
    %3025 = vmatpush2.msra.mxu0 0.0
    %3026 = vmatprep.subr.mxu0 0.0
    %3027 = vmatpush2.msra.mxu0 0.0
    %3028 = vmatprep.subr.mxu0 0.0
    %3029 = vmatpush2.msra.mxu0 0.0
    %3030 = vmatprep.subr.mxu0 0.0
    %3031 = vmatpush2.msra.mxu0 0.0
    %3032 = vmatprep.subr.mxu0 0.0
    %3033 = vmatpush2.msra.mxu0 0.0
    %3034 = vmatprep.subr.mxu0 0.0
    %3035 = vmatpush2.msra.mxu0 0.0
    %3036 = vmatprep.subr.mxu0 0.0
    %3037 = vmatpush2.msra.mxu0 0.0
    %3038 = vmatprep.mubr.f32.mxu0 0.0
    %v3039 = vand.u32 %v2891, 4294901760
    %3040 = vmatmul.mubr.f32.gmra.mxu0 %v3039
    %v3041 = vpop.f32.mrf.mxu0
    %v3042 = vadd.f32 %v2966, %v3041
    %v3043 = vpop.f32.mrf.mxu0
    %3044 = vdwg.mxu0
    %3045 = vmatprep.subr.mxu0 0.0
    %3046 = vmatpush1.msra.mxu0 0.0
    %3047 = vmatprep.subr.mxu0 0.0
    %3048 = vmatpush1.msra.mxu0 0.0
    %3049 = vmatprep.subr.mxu0 0.0
    %3050 = vmatpush1.msra.mxu0 0.0
    %3051 = vmatprep.subr.mxu0 0.0
    %3052 = vmatpush1.msra.mxu0 0.0
    %3053 = vmatprep.subr.mxu0 0.0
    %3054 = vmatpush1.msra.mxu0 0.0
    %3055 = vmatprep.subr.mxu0 0.0
    %3056 = vmatpush1.msra.mxu0 0.0
    %3057 = vmatprep.subr.mxu0 0.0
    %3058 = vmatpush1.msra.mxu0 0.0
    %3059 = vmatprep.subr.mxu0 0.0
    %3060 = vmatpush1.msra.mxu0 0.0
    %3061 = vmatprep.subr.mxu0 0.0
    %3062 = vmatpush1.msra.mxu0 0.0
    %3063 = vmatprep.subr.mxu0 0.0
    %3064 = vmatpush1.msra.mxu0 0.0
    %3065 = vmatprep.subr.mxu0 0.0
    %3066 = vmatpush1.msra.mxu0 0.0
    %3067 = vmatprep.subr.mxu0 0.0
    %3068 = vmatpush1.msra.mxu0 0.0
    %3069 = vmatprep.subr.mxu0 0.0
    %3070 = vmatpush1.msra.mxu0 0.0
    %3071 = vmatprep.subr.mxu0 0.0
    %3072 = vmatpush1.msra.mxu0 0.0
    %3073 = vmatprep.subr.mxu0 0.0
    %3074 = vmatpush1.msra.mxu0 0.0
    %3075 = vmatprep.subr.mxu0 0.0
    %v3076 = vand.u32 %v81, 4294901760
    %v3077 = vsub.f32 %v81, %v3076
    %3078 = vmatpush1.msra.mxu0 %v3077
    %3079 = vmatprep.subr.mxu0 0.0
    %3080 = vmatpush2.msra.mxu0 0.0
    %3081 = vmatprep.subr.mxu0 0.0
    %3082 = vmatpush2.msra.mxu0 0.0
    %3083 = vmatprep.subr.mxu0 0.0
    %3084 = vmatpush2.msra.mxu0 0.0
    %3085 = vmatprep.subr.mxu0 0.0
    %3086 = vmatpush2.msra.mxu0 0.0
    %3087 = vmatprep.subr.mxu0 0.0
    %3088 = vmatpush2.msra.mxu0 0.0
    %3089 = vmatprep.subr.mxu0 0.0
    %3090 = vmatpush2.msra.mxu0 0.0
    %3091 = vmatprep.subr.mxu0 0.0
    %3092 = vmatpush2.msra.mxu0 0.0
    %3093 = vmatprep.subr.mxu0 0.0
    %3094 = vmatpush2.msra.mxu0 0.0
    %3095 = vmatprep.subr.mxu0 0.0
    %3096 = vmatpush2.msra.mxu0 0.0
    %3097 = vmatprep.subr.mxu0 0.0
    %3098 = vmatpush2.msra.mxu0 0.0
    %3099 = vmatprep.subr.mxu0 0.0
    %3100 = vmatpush2.msra.mxu0 0.0
    %3101 = vmatprep.subr.mxu0 0.0
    %3102 = vmatpush2.msra.mxu0 0.0
    %3103 = vmatprep.subr.mxu0 0.0
    %3104 = vmatpush2.msra.mxu0 0.0
    %3105 = vmatprep.subr.mxu0 0.0
    %3106 = vmatpush2.msra.mxu0 0.0
    %3107 = vmatprep.subr.mxu0 0.0
    %3108 = vmatpush2.msra.mxu0 0.0
    %3109 = vmatprep.subr.mxu0 0.0
    %3110 = vmatpush2.msra.mxu0 0.0
    %3111 = vmatprep.mubr.f32.mxu0 0.0
    %v3112 = vand.u32 %v2891, 4294901760
    %v3113 = vsub.f32 %v2891, %v3112
    %3114 = vmatmul.mubr.f32.gmra.mxu0 %v3113
    %v3115 = vpop.f32.mrf.mxu0
    %v3116 = vadd.f32 %v3042, %v3115
    %v3117 = vpop.f32.mrf.mxu0
    %3118 = vdwg.mxu0
    %3119 = vmatprep.subr.mxu0 0.0
    %3120 = vmatpush1.msra.mxu0 0.0
    %3121 = vmatprep.subr.mxu0 0.0
    %3122 = vmatpush1.msra.mxu0 0.0
    %3123 = vmatprep.subr.mxu0 0.0
    %3124 = vmatpush1.msra.mxu0 0.0
    %3125 = vmatprep.subr.mxu0 0.0
    %3126 = vmatpush1.msra.mxu0 0.0
    %3127 = vmatprep.subr.mxu0 0.0
    %3128 = vmatpush1.msra.mxu0 0.0
    %3129 = vmatprep.subr.mxu0 0.0
    %3130 = vmatpush1.msra.mxu0 0.0
    %3131 = vmatprep.subr.mxu0 0.0
    %3132 = vmatpush1.msra.mxu0 0.0
    %3133 = vmatprep.subr.mxu0 0.0
    %3134 = vmatpush1.msra.mxu0 0.0
    %3135 = vmatprep.subr.mxu0 0.0
    %3136 = vmatpush1.msra.mxu0 0.0
    %3137 = vmatprep.subr.mxu0 0.0
    %3138 = vmatpush1.msra.mxu0 0.0
    %3139 = vmatprep.subr.mxu0 0.0
    %3140 = vmatpush1.msra.mxu0 0.0
    %3141 = vmatprep.subr.mxu0 0.0
    %3142 = vmatpush1.msra.mxu0 0.0
    %3143 = vmatprep.subr.mxu0 0.0
    %3144 = vmatpush1.msra.mxu0 0.0
    %3145 = vmatprep.subr.mxu0 0.0
    %3146 = vmatpush1.msra.mxu0 0.0
    %3147 = vmatprep.subr.mxu0 0.0
    %3148 = vmatpush1.msra.mxu0 0.0
    %3149 = vmatprep.subr.mxu0 0.0
    %v3150 = vand.u32 %v81, 4294901760
    %3151 = vmatpush1.msra.mxu0 %v3150
    %3152 = vmatprep.subr.mxu0 0.0
    %3153 = vmatpush2.msra.mxu0 0.0
    %3154 = vmatprep.subr.mxu0 0.0
    %3155 = vmatpush2.msra.mxu0 0.0
    %3156 = vmatprep.subr.mxu0 0.0
    %3157 = vmatpush2.msra.mxu0 0.0
    %3158 = vmatprep.subr.mxu0 0.0
    %3159 = vmatpush2.msra.mxu0 0.0
    %3160 = vmatprep.subr.mxu0 0.0
    %3161 = vmatpush2.msra.mxu0 0.0
    %3162 = vmatprep.subr.mxu0 0.0
    %3163 = vmatpush2.msra.mxu0 0.0
    %3164 = vmatprep.subr.mxu0 0.0
    %3165 = vmatpush2.msra.mxu0 0.0
    %3166 = vmatprep.subr.mxu0 0.0
    %3167 = vmatpush2.msra.mxu0 0.0
    %3168 = vmatprep.subr.mxu0 0.0
    %3169 = vmatpush2.msra.mxu0 0.0
    %3170 = vmatprep.subr.mxu0 0.0
    %3171 = vmatpush2.msra.mxu0 0.0
    %3172 = vmatprep.subr.mxu0 0.0
    %3173 = vmatpush2.msra.mxu0 0.0
    %3174 = vmatprep.subr.mxu0 0.0
    %3175 = vmatpush2.msra.mxu0 0.0
    %3176 = vmatprep.subr.mxu0 0.0
    %3177 = vmatpush2.msra.mxu0 0.0
    %3178 = vmatprep.subr.mxu0 0.0
    %3179 = vmatpush2.msra.mxu0 0.0
    %3180 = vmatprep.subr.mxu0 0.0
    %3181 = vmatpush2.msra.mxu0 0.0
    %3182 = vmatprep.subr.mxu0 0.0
    %3183 = vmatpush2.msra.mxu0 0.0
    %3184 = vmatprep.mubr.f32.mxu0 0.0
    %v3185 = vand.u32 %v2891, 4294901760
    %v3186 = vsub.f32 %v2891, %v3185
    %v3187 = vand.u32 %v3186, 4294901760
    %3188 = vmatmul.mubr.f32.gmra.mxu0 %v3187
    %v3189 = vpop.f32.mrf.mxu0
    %v3190 = vadd.f32 %v3116, %v3189
    %v3191 = vpop.f32.mrf.mxu0
    %3192 = vdwg.mxu0
    %3193 = vmatprep.subr.mxu0 0.0
    %3194 = vmatpush1.msra.mxu0 0.0
    %3195 = vmatprep.subr.mxu0 0.0
    %3196 = vmatpush1.msra.mxu0 0.0
    %3197 = vmatprep.subr.mxu0 0.0
    %3198 = vmatpush1.msra.mxu0 0.0
    %3199 = vmatprep.subr.mxu0 0.0
    %3200 = vmatpush1.msra.mxu0 0.0
    %3201 = vmatprep.subr.mxu0 0.0
    %3202 = vmatpush1.msra.mxu0 0.0
    %3203 = vmatprep.subr.mxu0 0.0
    %3204 = vmatpush1.msra.mxu0 0.0
    %3205 = vmatprep.subr.mxu0 0.0
    %3206 = vmatpush1.msra.mxu0 0.0
    %3207 = vmatprep.subr.mxu0 0.0
    %3208 = vmatpush1.msra.mxu0 0.0
    %3209 = vmatprep.subr.mxu0 0.0
    %3210 = vmatpush1.msra.mxu0 0.0
    %3211 = vmatprep.subr.mxu0 0.0
    %3212 = vmatpush1.msra.mxu0 0.0
    %3213 = vmatprep.subr.mxu0 0.0
    %3214 = vmatpush1.msra.mxu0 0.0
    %3215 = vmatprep.subr.mxu0 0.0
    %3216 = vmatpush1.msra.mxu0 0.0
    %3217 = vmatprep.subr.mxu0 0.0
    %3218 = vmatpush1.msra.mxu0 0.0
    %3219 = vmatprep.subr.mxu0 0.0
    %3220 = vmatpush1.msra.mxu0 0.0
    %3221 = vmatprep.subr.mxu0 0.0
    %3222 = vmatpush1.msra.mxu0 0.0
    %3223 = vmatprep.subr.mxu0 0.0
    %v3224 = vand.u32 %v81, 4294901760
    %v3225 = vsub.f32 %v81, %v3224
    %v3226 = vand.u32 %v3225, 4294901760
    %3227 = vmatpush1.msra.mxu0 %v3226
    %3228 = vmatprep.subr.mxu0 0.0
    %3229 = vmatpush2.msra.mxu0 0.0
    %3230 = vmatprep.subr.mxu0 0.0
    %3231 = vmatpush2.msra.mxu0 0.0
    %3232 = vmatprep.subr.mxu0 0.0
    %3233 = vmatpush2.msra.mxu0 0.0
    %3234 = vmatprep.subr.mxu0 0.0
    %3235 = vmatpush2.msra.mxu0 0.0
    %3236 = vmatprep.subr.mxu0 0.0
    %3237 = vmatpush2.msra.mxu0 0.0
    %3238 = vmatprep.subr.mxu0 0.0
    %3239 = vmatpush2.msra.mxu0 0.0
    %3240 = vmatprep.subr.mxu0 0.0
    %3241 = vmatpush2.msra.mxu0 0.0
    %3242 = vmatprep.subr.mxu0 0.0
    %3243 = vmatpush2.msra.mxu0 0.0
    %3244 = vmatprep.subr.mxu0 0.0
    %3245 = vmatpush2.msra.mxu0 0.0
    %3246 = vmatprep.subr.mxu0 0.0
    %3247 = vmatpush2.msra.mxu0 0.0
    %3248 = vmatprep.subr.mxu0 0.0
    %3249 = vmatpush2.msra.mxu0 0.0
    %3250 = vmatprep.subr.mxu0 0.0
    %3251 = vmatpush2.msra.mxu0 0.0
    %3252 = vmatprep.subr.mxu0 0.0
    %3253 = vmatpush2.msra.mxu0 0.0
    %3254 = vmatprep.subr.mxu0 0.0
    %3255 = vmatpush2.msra.mxu0 0.0
    %3256 = vmatprep.subr.mxu0 0.0
    %3257 = vmatpush2.msra.mxu0 0.0
    %3258 = vmatprep.subr.mxu0 0.0
    %3259 = vmatpush2.msra.mxu0 0.0
    %3260 = vmatprep.mubr.f32.mxu0 0.0
    %v3261 = vand.u32 %v2891, 4294901760
    %3262 = vmatmul.mubr.f32.gmra.mxu0 %v3261
    %v3263 = vpop.f32.mrf.mxu0
    %v3264 = vadd.f32 %v3190, %v3263
    %v3265 = vpop.f32.mrf.mxu0
    %3266 = vdwg.mxu0
    %3267 = vmatprep.subr.mxu0 0.0
    %3268 = vmatpush1.msra.mxu0 0.0
    %3269 = vmatprep.subr.mxu0 0.0
    %3270 = vmatpush1.msra.mxu0 0.0
    %3271 = vmatprep.subr.mxu0 0.0
    %3272 = vmatpush1.msra.mxu0 0.0
    %3273 = vmatprep.subr.mxu0 0.0
    %3274 = vmatpush1.msra.mxu0 0.0
    %3275 = vmatprep.subr.mxu0 0.0
    %3276 = vmatpush1.msra.mxu0 0.0
    %3277 = vmatprep.subr.mxu0 0.0
    %3278 = vmatpush1.msra.mxu0 0.0
    %3279 = vmatprep.subr.mxu0 0.0
    %3280 = vmatpush1.msra.mxu0 0.0
    %3281 = vmatprep.subr.mxu0 0.0
    %3282 = vmatpush1.msra.mxu0 0.0
    %3283 = vmatprep.subr.mxu0 0.0
    %3284 = vmatpush1.msra.mxu0 0.0
    %3285 = vmatprep.subr.mxu0 0.0
    %3286 = vmatpush1.msra.mxu0 0.0
    %3287 = vmatprep.subr.mxu0 0.0
    %3288 = vmatpush1.msra.mxu0 0.0
    %3289 = vmatprep.subr.mxu0 0.0
    %3290 = vmatpush1.msra.mxu0 0.0
    %3291 = vmatprep.subr.mxu0 0.0
    %3292 = vmatpush1.msra.mxu0 0.0
    %3293 = vmatprep.subr.mxu0 0.0
    %3294 = vmatpush1.msra.mxu0 0.0
    %3295 = vmatprep.subr.mxu0 0.0
    %3296 = vmatpush1.msra.mxu0 0.0
    %3297 = vmatprep.subr.mxu0 0.0
    %v3298 = vand.u32 %v81, 4294901760
    %3299 = vmatpush1.msra.mxu0 %v3298
    %3300 = vmatprep.subr.mxu0 0.0
    %3301 = vmatpush2.msra.mxu0 0.0
    %3302 = vmatprep.subr.mxu0 0.0
    %3303 = vmatpush2.msra.mxu0 0.0
    %3304 = vmatprep.subr.mxu0 0.0
    %3305 = vmatpush2.msra.mxu0 0.0
    %3306 = vmatprep.subr.mxu0 0.0
    %3307 = vmatpush2.msra.mxu0 0.0
    %3308 = vmatprep.subr.mxu0 0.0
    %3309 = vmatpush2.msra.mxu0 0.0
    %3310 = vmatprep.subr.mxu0 0.0
    %3311 = vmatpush2.msra.mxu0 0.0
    %3312 = vmatprep.subr.mxu0 0.0
    %3313 = vmatpush2.msra.mxu0 0.0
    %3314 = vmatprep.subr.mxu0 0.0
    %3315 = vmatpush2.msra.mxu0 0.0
    %3316 = vmatprep.subr.mxu0 0.0
    %3317 = vmatpush2.msra.mxu0 0.0
    %3318 = vmatprep.subr.mxu0 0.0
    %3319 = vmatpush2.msra.mxu0 0.0
    %3320 = vmatprep.subr.mxu0 0.0
    %3321 = vmatpush2.msra.mxu0 0.0
    %3322 = vmatprep.subr.mxu0 0.0
    %3323 = vmatpush2.msra.mxu0 0.0
    %3324 = vmatprep.subr.mxu0 0.0
    %3325 = vmatpush2.msra.mxu0 0.0
    %3326 = vmatprep.subr.mxu0 0.0
    %3327 = vmatpush2.msra.mxu0 0.0
    %3328 = vmatprep.subr.mxu0 0.0
    %3329 = vmatpush2.msra.mxu0 0.0
    %3330 = vmatprep.subr.mxu0 0.0
    %3331 = vmatpush2.msra.mxu0 0.0
    %3332 = vmatprep.mubr.f32.mxu0 0.0
    %v3333 = vand.u32 %v2891, 4294901760
    %3334 = vmatmul.mubr.f32.gmra.mxu0 %v3333
    %v3335 = vpop.f32.mrf.mxu0
    %v3336 = vadd.f32 %v3264, %v3335
    %v3337 = vpop.f32.mrf.mxu0
    %3338 = vdwg.mxu0
    %v3339 = vsel %vm589, %v648, 0
    %3341 = vmatprep.subr.mxu0 0.0
    %3342 = vmatpush1.msra.mxu0 0.0
    %3343 = vmatprep.subr.mxu0 0.0
    %3344 = vmatpush1.msra.mxu0 0.0
    %3345 = vmatprep.subr.mxu0 0.0
    %3346 = vmatpush1.msra.mxu0 0.0
    %3347 = vmatprep.subr.mxu0 0.0
    %3348 = vmatpush1.msra.mxu0 0.0
    %3349 = vmatprep.subr.mxu0 0.0
    %3350 = vmatpush1.msra.mxu0 0.0
    %3351 = vmatprep.subr.mxu0 0.0
    %3352 = vmatpush1.msra.mxu0 0.0
    %3353 = vmatprep.subr.mxu0 0.0
    %3354 = vmatpush1.msra.mxu0 0.0
    %3355 = vmatprep.subr.mxu0 0.0
    %3356 = vmatpush1.msra.mxu0 0.0
    %3357 = vmatprep.subr.mxu0 0.0
    %3358 = vmatpush1.msra.mxu0 0.0
    %3359 = vmatprep.subr.mxu0 0.0
    %3360 = vmatpush1.msra.mxu0 0.0
    %3361 = vmatprep.subr.mxu0 0.0
    %3362 = vmatpush1.msra.mxu0 0.0
    %3363 = vmatprep.subr.mxu0 0.0
    %3364 = vmatpush1.msra.mxu0 0.0
    %3365 = vmatprep.subr.mxu0 0.0
    %3366 = vmatpush1.msra.mxu0 0.0
    %3367 = vmatprep.subr.mxu0 0.0
    %3368 = vmatpush1.msra.mxu0 0.0
    %3369 = vmatprep.subr.mxu0 0.0
    %3370 = vmatpush1.msra.mxu0 0.0
    %3371 = vmatprep.subr.mxu0 0.0
    %v3372 = vand.u32 %v82, 4294901760
    %3373 = vmatpush1.msra.mxu0 %v3372
    %3374 = vmatprep.subr.mxu0 0.0
    %3375 = vmatpush2.msra.mxu0 0.0
    %3376 = vmatprep.subr.mxu0 0.0
    %3377 = vmatpush2.msra.mxu0 0.0
    %3378 = vmatprep.subr.mxu0 0.0
    %3379 = vmatpush2.msra.mxu0 0.0
    %3380 = vmatprep.subr.mxu0 0.0
    %3381 = vmatpush2.msra.mxu0 0.0
    %3382 = vmatprep.subr.mxu0 0.0
    %3383 = vmatpush2.msra.mxu0 0.0
    %3384 = vmatprep.subr.mxu0 0.0
    %3385 = vmatpush2.msra.mxu0 0.0
    %3386 = vmatprep.subr.mxu0 0.0
    %3387 = vmatpush2.msra.mxu0 0.0
    %3388 = vmatprep.subr.mxu0 0.0
    %3389 = vmatpush2.msra.mxu0 0.0
    %3390 = vmatprep.subr.mxu0 0.0
    %3391 = vmatpush2.msra.mxu0 0.0
    %3392 = vmatprep.subr.mxu0 0.0
    %3393 = vmatpush2.msra.mxu0 0.0
    %3394 = vmatprep.subr.mxu0 0.0
    %3395 = vmatpush2.msra.mxu0 0.0
    %3396 = vmatprep.subr.mxu0 0.0
    %3397 = vmatpush2.msra.mxu0 0.0
    %3398 = vmatprep.subr.mxu0 0.0
    %3399 = vmatpush2.msra.mxu0 0.0
    %3400 = vmatprep.subr.mxu0 0.0
    %3401 = vmatpush2.msra.mxu0 0.0
    %3402 = vmatprep.subr.mxu0 0.0
    %3403 = vmatpush2.msra.mxu0 0.0
    %3404 = vmatprep.subr.mxu0 0.0
    %3405 = vmatpush2.msra.mxu0 0.0
    %3406 = vmatprep.mubr.f32.mxu0 0.0
    %v3407 = vand.u32 %v3339, 4294901760
    %v3408 = vsub.f32 %v3339, %v3407
    %v3409 = vand.u32 %v3408, 4294901760
    %v3410 = vsub.f32 %v3408, %v3409
    %v3411 = vand.u32 %v3410, 4294901760
    %3412 = vmatmul.mubr.f32.gmra.mxu0 %v3411
    %v3413 = vpop.f32.mrf.mxu0
    %v3414 = vadd.f32 0.0, %v3413
    %v3415 = vpop.f32.mrf.mxu0
    %3416 = vdwg.mxu0
    %3417 = vmatprep.subr.mxu0 0.0
    %3418 = vmatpush1.msra.mxu0 0.0
    %3419 = vmatprep.subr.mxu0 0.0
    %3420 = vmatpush1.msra.mxu0 0.0
    %3421 = vmatprep.subr.mxu0 0.0
    %3422 = vmatpush1.msra.mxu0 0.0
    %3423 = vmatprep.subr.mxu0 0.0
    %3424 = vmatpush1.msra.mxu0 0.0
    %3425 = vmatprep.subr.mxu0 0.0
    %3426 = vmatpush1.msra.mxu0 0.0
    %3427 = vmatprep.subr.mxu0 0.0
    %3428 = vmatpush1.msra.mxu0 0.0
    %3429 = vmatprep.subr.mxu0 0.0
    %3430 = vmatpush1.msra.mxu0 0.0
    %3431 = vmatprep.subr.mxu0 0.0
    %3432 = vmatpush1.msra.mxu0 0.0
    %3433 = vmatprep.subr.mxu0 0.0
    %3434 = vmatpush1.msra.mxu0 0.0
    %3435 = vmatprep.subr.mxu0 0.0
    %3436 = vmatpush1.msra.mxu0 0.0
    %3437 = vmatprep.subr.mxu0 0.0
    %3438 = vmatpush1.msra.mxu0 0.0
    %3439 = vmatprep.subr.mxu0 0.0
    %3440 = vmatpush1.msra.mxu0 0.0
    %3441 = vmatprep.subr.mxu0 0.0
    %3442 = vmatpush1.msra.mxu0 0.0
    %3443 = vmatprep.subr.mxu0 0.0
    %3444 = vmatpush1.msra.mxu0 0.0
    %3445 = vmatprep.subr.mxu0 0.0
    %3446 = vmatpush1.msra.mxu0 0.0
    %3447 = vmatprep.subr.mxu0 0.0
    %v3448 = vand.u32 %v82, 4294901760
    %v3449 = vsub.f32 %v82, %v3448
    %v3450 = vand.u32 %v3449, 4294901760
    %v3451 = vsub.f32 %v3449, %v3450
    %v3452 = vand.u32 %v3451, 4294901760
    %3453 = vmatpush1.msra.mxu0 %v3452
    %3454 = vmatprep.subr.mxu0 0.0
    %3455 = vmatpush2.msra.mxu0 0.0
    %3456 = vmatprep.subr.mxu0 0.0
    %3457 = vmatpush2.msra.mxu0 0.0
    %3458 = vmatprep.subr.mxu0 0.0
    %3459 = vmatpush2.msra.mxu0 0.0
    %3460 = vmatprep.subr.mxu0 0.0
    %3461 = vmatpush2.msra.mxu0 0.0
    %3462 = vmatprep.subr.mxu0 0.0
    %3463 = vmatpush2.msra.mxu0 0.0
    %3464 = vmatprep.subr.mxu0 0.0
    %3465 = vmatpush2.msra.mxu0 0.0
    %3466 = vmatprep.subr.mxu0 0.0
    %3467 = vmatpush2.msra.mxu0 0.0
    %3468 = vmatprep.subr.mxu0 0.0
    %3469 = vmatpush2.msra.mxu0 0.0
    %3470 = vmatprep.subr.mxu0 0.0
    %3471 = vmatpush2.msra.mxu0 0.0
    %3472 = vmatprep.subr.mxu0 0.0
    %3473 = vmatpush2.msra.mxu0 0.0
    %3474 = vmatprep.subr.mxu0 0.0
    %3475 = vmatpush2.msra.mxu0 0.0
    %3476 = vmatprep.subr.mxu0 0.0
    %3477 = vmatpush2.msra.mxu0 0.0
    %3478 = vmatprep.subr.mxu0 0.0
    %3479 = vmatpush2.msra.mxu0 0.0
    %3480 = vmatprep.subr.mxu0 0.0
    %3481 = vmatpush2.msra.mxu0 0.0
    %3482 = vmatprep.subr.mxu0 0.0
    %3483 = vmatpush2.msra.mxu0 0.0
    %3484 = vmatprep.subr.mxu0 0.0
    %3485 = vmatpush2.msra.mxu0 0.0
    %3486 = vmatprep.mubr.f32.mxu0 0.0
    %v3487 = vand.u32 %v3339, 4294901760
    %3488 = vmatmul.mubr.f32.gmra.mxu0 %v3487
    %v3489 = vpop.f32.mrf.mxu0
    %v3490 = vadd.f32 %v3414, %v3489
    %v3491 = vpop.f32.mrf.mxu0
    %3492 = vdwg.mxu0
    %3493 = vmatprep.subr.mxu0 0.0
    %3494 = vmatpush1.msra.mxu0 0.0
    %3495 = vmatprep.subr.mxu0 0.0
    %3496 = vmatpush1.msra.mxu0 0.0
    %3497 = vmatprep.subr.mxu0 0.0
    %3498 = vmatpush1.msra.mxu0 0.0
    %3499 = vmatprep.subr.mxu0 0.0
    %3500 = vmatpush1.msra.mxu0 0.0
    %3501 = vmatprep.subr.mxu0 0.0
    %3502 = vmatpush1.msra.mxu0 0.0
    %3503 = vmatprep.subr.mxu0 0.0
    %3504 = vmatpush1.msra.mxu0 0.0
    %3505 = vmatprep.subr.mxu0 0.0
    %3506 = vmatpush1.msra.mxu0 0.0
    %3507 = vmatprep.subr.mxu0 0.0
    %3508 = vmatpush1.msra.mxu0 0.0
    %3509 = vmatprep.subr.mxu0 0.0
    %3510 = vmatpush1.msra.mxu0 0.0
    %3511 = vmatprep.subr.mxu0 0.0
    %3512 = vmatpush1.msra.mxu0 0.0
    %3513 = vmatprep.subr.mxu0 0.0
    %3514 = vmatpush1.msra.mxu0 0.0
    %3515 = vmatprep.subr.mxu0 0.0
    %3516 = vmatpush1.msra.mxu0 0.0
    %3517 = vmatprep.subr.mxu0 0.0
    %3518 = vmatpush1.msra.mxu0 0.0
    %3519 = vmatprep.subr.mxu0 0.0
    %3520 = vmatpush1.msra.mxu0 0.0
    %3521 = vmatprep.subr.mxu0 0.0
    %3522 = vmatpush1.msra.mxu0 0.0
    %3523 = vmatprep.subr.mxu0 0.0
    %v3524 = vand.u32 %v82, 4294901760
    %v3525 = vsub.f32 %v82, %v3524
    %3526 = vmatpush1.msra.mxu0 %v3525
    %3527 = vmatprep.subr.mxu0 0.0
    %3528 = vmatpush2.msra.mxu0 0.0
    %3529 = vmatprep.subr.mxu0 0.0
    %3530 = vmatpush2.msra.mxu0 0.0
    %3531 = vmatprep.subr.mxu0 0.0
    %3532 = vmatpush2.msra.mxu0 0.0
    %3533 = vmatprep.subr.mxu0 0.0
    %3534 = vmatpush2.msra.mxu0 0.0
    %3535 = vmatprep.subr.mxu0 0.0
    %3536 = vmatpush2.msra.mxu0 0.0
    %3537 = vmatprep.subr.mxu0 0.0
    %3538 = vmatpush2.msra.mxu0 0.0
    %3539 = vmatprep.subr.mxu0 0.0
    %3540 = vmatpush2.msra.mxu0 0.0
    %3541 = vmatprep.subr.mxu0 0.0
    %3542 = vmatpush2.msra.mxu0 0.0
    %3543 = vmatprep.subr.mxu0 0.0
    %3544 = vmatpush2.msra.mxu0 0.0
    %3545 = vmatprep.subr.mxu0 0.0
    %3546 = vmatpush2.msra.mxu0 0.0
    %3547 = vmatprep.subr.mxu0 0.0
    %3548 = vmatpush2.msra.mxu0 0.0
    %3549 = vmatprep.subr.mxu0 0.0
    %3550 = vmatpush2.msra.mxu0 0.0
    %3551 = vmatprep.subr.mxu0 0.0
    %3552 = vmatpush2.msra.mxu0 0.0
    %3553 = vmatprep.subr.mxu0 0.0
    %3554 = vmatpush2.msra.mxu0 0.0
    %3555 = vmatprep.subr.mxu0 0.0
    %3556 = vmatpush2.msra.mxu0 0.0
    %3557 = vmatprep.subr.mxu0 0.0
    %3558 = vmatpush2.msra.mxu0 0.0
    %3559 = vmatprep.mubr.f32.mxu0 0.0
    %v3560 = vand.u32 %v3339, 4294901760
    %v3561 = vsub.f32 %v3339, %v3560
    %3562 = vmatmul.mubr.f32.gmra.mxu0 %v3561
    %v3563 = vpop.f32.mrf.mxu0
    %v3564 = vadd.f32 %v3490, %v3563
    %v3565 = vpop.f32.mrf.mxu0
    %3566 = vdwg.mxu0
    %3567 = vmatprep.subr.mxu0 0.0
    %3568 = vmatpush1.msra.mxu0 0.0
    %3569 = vmatprep.subr.mxu0 0.0
    %3570 = vmatpush1.msra.mxu0 0.0
    %3571 = vmatprep.subr.mxu0 0.0
    %3572 = vmatpush1.msra.mxu0 0.0
    %3573 = vmatprep.subr.mxu0 0.0
    %3574 = vmatpush1.msra.mxu0 0.0
    %3575 = vmatprep.subr.mxu0 0.0
    %3576 = vmatpush1.msra.mxu0 0.0
    %3577 = vmatprep.subr.mxu0 0.0
    %3578 = vmatpush1.msra.mxu0 0.0
    %3579 = vmatprep.subr.mxu0 0.0
    %3580 = vmatpush1.msra.mxu0 0.0
    %3581 = vmatprep.subr.mxu0 0.0
    %3582 = vmatpush1.msra.mxu0 0.0
    %3583 = vmatprep.subr.mxu0 0.0
    %3584 = vmatpush1.msra.mxu0 0.0
    %3585 = vmatprep.subr.mxu0 0.0
    %3586 = vmatpush1.msra.mxu0 0.0
    %3587 = vmatprep.subr.mxu0 0.0
    %3588 = vmatpush1.msra.mxu0 0.0
    %3589 = vmatprep.subr.mxu0 0.0
    %3590 = vmatpush1.msra.mxu0 0.0
    %3591 = vmatprep.subr.mxu0 0.0
    %3592 = vmatpush1.msra.mxu0 0.0
    %3593 = vmatprep.subr.mxu0 0.0
    %3594 = vmatpush1.msra.mxu0 0.0
    %3595 = vmatprep.subr.mxu0 0.0
    %3596 = vmatpush1.msra.mxu0 0.0
    %3597 = vmatprep.subr.mxu0 0.0
    %v3598 = vand.u32 %v82, 4294901760
    %3599 = vmatpush1.msra.mxu0 %v3598
    %3600 = vmatprep.subr.mxu0 0.0
    %3601 = vmatpush2.msra.mxu0 0.0
    %3602 = vmatprep.subr.mxu0 0.0
    %3603 = vmatpush2.msra.mxu0 0.0
    %3604 = vmatprep.subr.mxu0 0.0
    %3605 = vmatpush2.msra.mxu0 0.0
    %3606 = vmatprep.subr.mxu0 0.0
    %3607 = vmatpush2.msra.mxu0 0.0
    %3608 = vmatprep.subr.mxu0 0.0
    %3609 = vmatpush2.msra.mxu0 0.0
    %3610 = vmatprep.subr.mxu0 0.0
    %3611 = vmatpush2.msra.mxu0 0.0
    %3612 = vmatprep.subr.mxu0 0.0
    %3613 = vmatpush2.msra.mxu0 0.0
    %3614 = vmatprep.subr.mxu0 0.0
    %3615 = vmatpush2.msra.mxu0 0.0
    %3616 = vmatprep.subr.mxu0 0.0
    %3617 = vmatpush2.msra.mxu0 0.0
    %3618 = vmatprep.subr.mxu0 0.0
    %3619 = vmatpush2.msra.mxu0 0.0
    %3620 = vmatprep.subr.mxu0 0.0
    %3621 = vmatpush2.msra.mxu0 0.0
    %3622 = vmatprep.subr.mxu0 0.0
    %3623 = vmatpush2.msra.mxu0 0.0
    %3624 = vmatprep.subr.mxu0 0.0
    %3625 = vmatpush2.msra.mxu0 0.0
    %3626 = vmatprep.subr.mxu0 0.0
    %3627 = vmatpush2.msra.mxu0 0.0
    %3628 = vmatprep.subr.mxu0 0.0
    %3629 = vmatpush2.msra.mxu0 0.0
    %3630 = vmatprep.subr.mxu0 0.0
    %3631 = vmatpush2.msra.mxu0 0.0
    %3632 = vmatprep.mubr.f32.mxu0 0.0
    %v3633 = vand.u32 %v3339, 4294901760
    %v3634 = vsub.f32 %v3339, %v3633
    %v3635 = vand.u32 %v3634, 4294901760
    %3636 = vmatmul.mubr.f32.gmra.mxu0 %v3635
    %v3637 = vpop.f32.mrf.mxu0
    %v3638 = vadd.f32 %v3564, %v3637
    %v3639 = vpop.f32.mrf.mxu0
    %3640 = vdwg.mxu0
    %3641 = vmatprep.subr.mxu0 0.0
    %3642 = vmatpush1.msra.mxu0 0.0
    %3643 = vmatprep.subr.mxu0 0.0
    %3644 = vmatpush1.msra.mxu0 0.0
    %3645 = vmatprep.subr.mxu0 0.0
    %3646 = vmatpush1.msra.mxu0 0.0
    %3647 = vmatprep.subr.mxu0 0.0
    %3648 = vmatpush1.msra.mxu0 0.0
    %3649 = vmatprep.subr.mxu0 0.0
    %3650 = vmatpush1.msra.mxu0 0.0
    %3651 = vmatprep.subr.mxu0 0.0
    %3652 = vmatpush1.msra.mxu0 0.0
    %3653 = vmatprep.subr.mxu0 0.0
    %3654 = vmatpush1.msra.mxu0 0.0
    %3655 = vmatprep.subr.mxu0 0.0
    %3656 = vmatpush1.msra.mxu0 0.0
    %3657 = vmatprep.subr.mxu0 0.0
    %3658 = vmatpush1.msra.mxu0 0.0
    %3659 = vmatprep.subr.mxu0 0.0
    %3660 = vmatpush1.msra.mxu0 0.0
    %3661 = vmatprep.subr.mxu0 0.0
    %3662 = vmatpush1.msra.mxu0 0.0
    %3663 = vmatprep.subr.mxu0 0.0
    %3664 = vmatpush1.msra.mxu0 0.0
    %3665 = vmatprep.subr.mxu0 0.0
    %3666 = vmatpush1.msra.mxu0 0.0
    %3667 = vmatprep.subr.mxu0 0.0
    %3668 = vmatpush1.msra.mxu0 0.0
    %3669 = vmatprep.subr.mxu0 0.0
    %3670 = vmatpush1.msra.mxu0 0.0
    %3671 = vmatprep.subr.mxu0 0.0
    %v3672 = vand.u32 %v82, 4294901760
    %v3673 = vsub.f32 %v82, %v3672
    %v3674 = vand.u32 %v3673, 4294901760
    %3675 = vmatpush1.msra.mxu0 %v3674
    %3676 = vmatprep.subr.mxu0 0.0
    %3677 = vmatpush2.msra.mxu0 0.0
    %3678 = vmatprep.subr.mxu0 0.0
    %3679 = vmatpush2.msra.mxu0 0.0
    %3680 = vmatprep.subr.mxu0 0.0
    %3681 = vmatpush2.msra.mxu0 0.0
    %3682 = vmatprep.subr.mxu0 0.0
    %3683 = vmatpush2.msra.mxu0 0.0
    %3684 = vmatprep.subr.mxu0 0.0
    %3685 = vmatpush2.msra.mxu0 0.0
    %3686 = vmatprep.subr.mxu0 0.0
    %3687 = vmatpush2.msra.mxu0 0.0
    %3688 = vmatprep.subr.mxu0 0.0
    %3689 = vmatpush2.msra.mxu0 0.0
    %3690 = vmatprep.subr.mxu0 0.0
    %3691 = vmatpush2.msra.mxu0 0.0
    %3692 = vmatprep.subr.mxu0 0.0
    %3693 = vmatpush2.msra.mxu0 0.0
    %3694 = vmatprep.subr.mxu0 0.0
    %3695 = vmatpush2.msra.mxu0 0.0
    %3696 = vmatprep.subr.mxu0 0.0
    %3697 = vmatpush2.msra.mxu0 0.0
    %3698 = vmatprep.subr.mxu0 0.0
    %3699 = vmatpush2.msra.mxu0 0.0
    %3700 = vmatprep.subr.mxu0 0.0
    %3701 = vmatpush2.msra.mxu0 0.0
    %3702 = vmatprep.subr.mxu0 0.0
    %3703 = vmatpush2.msra.mxu0 0.0
    %3704 = vmatprep.subr.mxu0 0.0
    %3705 = vmatpush2.msra.mxu0 0.0
    %3706 = vmatprep.subr.mxu0 0.0
    %3707 = vmatpush2.msra.mxu0 0.0
    %3708 = vmatprep.mubr.f32.mxu0 0.0
    %v3709 = vand.u32 %v3339, 4294901760
    %3710 = vmatmul.mubr.f32.gmra.mxu0 %v3709
    %v3711 = vpop.f32.mrf.mxu0
    %v3712 = vadd.f32 %v3638, %v3711
    %v3713 = vpop.f32.mrf.mxu0
    %3714 = vdwg.mxu0
    %3715 = vmatprep.subr.mxu0 0.0
    %3716 = vmatpush1.msra.mxu0 0.0
    %3717 = vmatprep.subr.mxu0 0.0
    %3718 = vmatpush1.msra.mxu0 0.0
    %3719 = vmatprep.subr.mxu0 0.0
    %3720 = vmatpush1.msra.mxu0 0.0
    %3721 = vmatprep.subr.mxu0 0.0
    %3722 = vmatpush1.msra.mxu0 0.0
    %3723 = vmatprep.subr.mxu0 0.0
    %3724 = vmatpush1.msra.mxu0 0.0
    %3725 = vmatprep.subr.mxu0 0.0
    %3726 = vmatpush1.msra.mxu0 0.0
    %3727 = vmatprep.subr.mxu0 0.0
    %3728 = vmatpush1.msra.mxu0 0.0
    %3729 = vmatprep.subr.mxu0 0.0
    %3730 = vmatpush1.msra.mxu0 0.0
    %3731 = vmatprep.subr.mxu0 0.0
    %3732 = vmatpush1.msra.mxu0 0.0
    %3733 = vmatprep.subr.mxu0 0.0
    %3734 = vmatpush1.msra.mxu0 0.0
    %3735 = vmatprep.subr.mxu0 0.0
    %3736 = vmatpush1.msra.mxu0 0.0
    %3737 = vmatprep.subr.mxu0 0.0
    %3738 = vmatpush1.msra.mxu0 0.0
    %3739 = vmatprep.subr.mxu0 0.0
    %3740 = vmatpush1.msra.mxu0 0.0
    %3741 = vmatprep.subr.mxu0 0.0
    %3742 = vmatpush1.msra.mxu0 0.0
    %3743 = vmatprep.subr.mxu0 0.0
    %3744 = vmatpush1.msra.mxu0 0.0
    %3745 = vmatprep.subr.mxu0 0.0
    %v3746 = vand.u32 %v82, 4294901760
    %3747 = vmatpush1.msra.mxu0 %v3746
    %3748 = vmatprep.subr.mxu0 0.0
    %3749 = vmatpush2.msra.mxu0 0.0
    %3750 = vmatprep.subr.mxu0 0.0
    %3751 = vmatpush2.msra.mxu0 0.0
    %3752 = vmatprep.subr.mxu0 0.0
    %3753 = vmatpush2.msra.mxu0 0.0
    %3754 = vmatprep.subr.mxu0 0.0
    %3755 = vmatpush2.msra.mxu0 0.0
    %3756 = vmatprep.subr.mxu0 0.0
    %3757 = vmatpush2.msra.mxu0 0.0
    %3758 = vmatprep.subr.mxu0 0.0
    %3759 = vmatpush2.msra.mxu0 0.0
    %3760 = vmatprep.subr.mxu0 0.0
    %3761 = vmatpush2.msra.mxu0 0.0
    %3762 = vmatprep.subr.mxu0 0.0
    %3763 = vmatpush2.msra.mxu0 0.0
    %3764 = vmatprep.subr.mxu0 0.0
    %3765 = vmatpush2.msra.mxu0 0.0
    %3766 = vmatprep.subr.mxu0 0.0
    %3767 = vmatpush2.msra.mxu0 0.0
    %3768 = vmatprep.subr.mxu0 0.0
    %3769 = vmatpush2.msra.mxu0 0.0
    %3770 = vmatprep.subr.mxu0 0.0
    %3771 = vmatpush2.msra.mxu0 0.0
    %3772 = vmatprep.subr.mxu0 0.0
    %3773 = vmatpush2.msra.mxu0 0.0
    %3774 = vmatprep.subr.mxu0 0.0
    %3775 = vmatpush2.msra.mxu0 0.0
    %3776 = vmatprep.subr.mxu0 0.0
    %3777 = vmatpush2.msra.mxu0 0.0
    %3778 = vmatprep.subr.mxu0 0.0
    %3779 = vmatpush2.msra.mxu0 0.0
    %3780 = vmatprep.mubr.f32.mxu0 0.0
    %v3781 = vand.u32 %v3339, 4294901760
    %3782 = vmatmul.mubr.f32.gmra.mxu0 %v3781
    %v3783 = vpop.f32.mrf.mxu0
    %v3784 = vadd.f32 %v3712, %v3783
    %v3785 = vpop.f32.mrf.mxu0
    %3786 = vdwg.mxu0
    %v3787 = vsel %vm589, %v650, 0
    %3789 = vmatprep.subr.mxu0 0.0
    %3790 = vmatpush1.msra.mxu0 0.0
    %3791 = vmatprep.subr.mxu0 0.0
    %3792 = vmatpush1.msra.mxu0 0.0
    %3793 = vmatprep.subr.mxu0 0.0
    %3794 = vmatpush1.msra.mxu0 0.0
    %3795 = vmatprep.subr.mxu0 0.0
    %3796 = vmatpush1.msra.mxu0 0.0
    %3797 = vmatprep.subr.mxu0 0.0
    %3798 = vmatpush1.msra.mxu0 0.0
    %3799 = vmatprep.subr.mxu0 0.0
    %3800 = vmatpush1.msra.mxu0 0.0
    %3801 = vmatprep.subr.mxu0 0.0
    %3802 = vmatpush1.msra.mxu0 0.0
    %3803 = vmatprep.subr.mxu0 0.0
    %3804 = vmatpush1.msra.mxu0 0.0
    %3805 = vmatprep.subr.mxu0 0.0
    %3806 = vmatpush1.msra.mxu0 0.0
    %3807 = vmatprep.subr.mxu0 0.0
    %3808 = vmatpush1.msra.mxu0 0.0
    %3809 = vmatprep.subr.mxu0 0.0
    %3810 = vmatpush1.msra.mxu0 0.0
    %3811 = vmatprep.subr.mxu0 0.0
    %3812 = vmatpush1.msra.mxu0 0.0
    %3813 = vmatprep.subr.mxu0 0.0
    %3814 = vmatpush1.msra.mxu0 0.0
    %3815 = vmatprep.subr.mxu0 0.0
    %3816 = vmatpush1.msra.mxu0 0.0
    %3817 = vmatprep.subr.mxu0 0.0
    %3818 = vmatpush1.msra.mxu0 0.0
    %3819 = vmatprep.subr.mxu0 0.0
    %v3820 = vand.u32 %v83, 4294901760
    %3821 = vmatpush1.msra.mxu0 %v3820
    %3822 = vmatprep.subr.mxu0 0.0
    %3823 = vmatpush2.msra.mxu0 0.0
    %3824 = vmatprep.subr.mxu0 0.0
    %3825 = vmatpush2.msra.mxu0 0.0
    %3826 = vmatprep.subr.mxu0 0.0
    %3827 = vmatpush2.msra.mxu0 0.0
    %3828 = vmatprep.subr.mxu0 0.0
    %3829 = vmatpush2.msra.mxu0 0.0
    %3830 = vmatprep.subr.mxu0 0.0
    %3831 = vmatpush2.msra.mxu0 0.0
    %3832 = vmatprep.subr.mxu0 0.0
    %3833 = vmatpush2.msra.mxu0 0.0
    %3834 = vmatprep.subr.mxu0 0.0
    %3835 = vmatpush2.msra.mxu0 0.0
    %3836 = vmatprep.subr.mxu0 0.0
    %3837 = vmatpush2.msra.mxu0 0.0
    %3838 = vmatprep.subr.mxu0 0.0
    %3839 = vmatpush2.msra.mxu0 0.0
    %3840 = vmatprep.subr.mxu0 0.0
    %3841 = vmatpush2.msra.mxu0 0.0
    %3842 = vmatprep.subr.mxu0 0.0
    %3843 = vmatpush2.msra.mxu0 0.0
    %3844 = vmatprep.subr.mxu0 0.0
    %3845 = vmatpush2.msra.mxu0 0.0
    %3846 = vmatprep.subr.mxu0 0.0
    %3847 = vmatpush2.msra.mxu0 0.0
    %3848 = vmatprep.subr.mxu0 0.0
    %3849 = vmatpush2.msra.mxu0 0.0
    %3850 = vmatprep.subr.mxu0 0.0
    %3851 = vmatpush2.msra.mxu0 0.0
    %3852 = vmatprep.subr.mxu0 0.0
    %3853 = vmatpush2.msra.mxu0 0.0
    %3854 = vmatprep.mubr.f32.mxu0 0.0
    %v3855 = vand.u32 %v3787, 4294901760
    %v3856 = vsub.f32 %v3787, %v3855
    %v3857 = vand.u32 %v3856, 4294901760
    %v3858 = vsub.f32 %v3856, %v3857
    %v3859 = vand.u32 %v3858, 4294901760
    %3860 = vmatmul.mubr.f32.gmra.mxu0 %v3859
    %v3861 = vpop.f32.mrf.mxu0
    %v3862 = vadd.f32 0.0, %v3861
    %v3863 = vpop.f32.mrf.mxu0
    %3864 = vdwg.mxu0
    %3865 = vmatprep.subr.mxu0 0.0
    %3866 = vmatpush1.msra.mxu0 0.0
    %3867 = vmatprep.subr.mxu0 0.0
    %3868 = vmatpush1.msra.mxu0 0.0
    %3869 = vmatprep.subr.mxu0 0.0
    %3870 = vmatpush1.msra.mxu0 0.0
    %3871 = vmatprep.subr.mxu0 0.0
    %3872 = vmatpush1.msra.mxu0 0.0
    %3873 = vmatprep.subr.mxu0 0.0
    %3874 = vmatpush1.msra.mxu0 0.0
    %3875 = vmatprep.subr.mxu0 0.0
    %3876 = vmatpush1.msra.mxu0 0.0
    %3877 = vmatprep.subr.mxu0 0.0
    %3878 = vmatpush1.msra.mxu0 0.0
    %3879 = vmatprep.subr.mxu0 0.0
    %3880 = vmatpush1.msra.mxu0 0.0
    %3881 = vmatprep.subr.mxu0 0.0
    %3882 = vmatpush1.msra.mxu0 0.0
    %3883 = vmatprep.subr.mxu0 0.0
    %3884 = vmatpush1.msra.mxu0 0.0
    %3885 = vmatprep.subr.mxu0 0.0
    %3886 = vmatpush1.msra.mxu0 0.0
    %3887 = vmatprep.subr.mxu0 0.0
    %3888 = vmatpush1.msra.mxu0 0.0
    %3889 = vmatprep.subr.mxu0 0.0
    %3890 = vmatpush1.msra.mxu0 0.0
    %3891 = vmatprep.subr.mxu0 0.0
    %3892 = vmatpush1.msra.mxu0 0.0
    %3893 = vmatprep.subr.mxu0 0.0
    %3894 = vmatpush1.msra.mxu0 0.0
    %3895 = vmatprep.subr.mxu0 0.0
    %v3896 = vand.u32 %v83, 4294901760
    %v3897 = vsub.f32 %v83, %v3896
    %v3898 = vand.u32 %v3897, 4294901760
    %v3899 = vsub.f32 %v3897, %v3898
    %v3900 = vand.u32 %v3899, 4294901760
    %3901 = vmatpush1.msra.mxu0 %v3900
    %3902 = vmatprep.subr.mxu0 0.0
    %3903 = vmatpush2.msra.mxu0 0.0
    %3904 = vmatprep.subr.mxu0 0.0
    %3905 = vmatpush2.msra.mxu0 0.0
    %3906 = vmatprep.subr.mxu0 0.0
    %3907 = vmatpush2.msra.mxu0 0.0
    %3908 = vmatprep.subr.mxu0 0.0
    %3909 = vmatpush2.msra.mxu0 0.0
    %3910 = vmatprep.subr.mxu0 0.0
    %3911 = vmatpush2.msra.mxu0 0.0
    %3912 = vmatprep.subr.mxu0 0.0
    %3913 = vmatpush2.msra.mxu0 0.0
    %3914 = vmatprep.subr.mxu0 0.0
    %3915 = vmatpush2.msra.mxu0 0.0
    %3916 = vmatprep.subr.mxu0 0.0
    %3917 = vmatpush2.msra.mxu0 0.0
    %3918 = vmatprep.subr.mxu0 0.0
    %3919 = vmatpush2.msra.mxu0 0.0
    %3920 = vmatprep.subr.mxu0 0.0
    %3921 = vmatpush2.msra.mxu0 0.0
    %3922 = vmatprep.subr.mxu0 0.0
    %3923 = vmatpush2.msra.mxu0 0.0
    %3924 = vmatprep.subr.mxu0 0.0
    %3925 = vmatpush2.msra.mxu0 0.0
    %3926 = vmatprep.subr.mxu0 0.0
    %3927 = vmatpush2.msra.mxu0 0.0
    %3928 = vmatprep.subr.mxu0 0.0
    %3929 = vmatpush2.msra.mxu0 0.0
    %3930 = vmatprep.subr.mxu0 0.0
    %3931 = vmatpush2.msra.mxu0 0.0
    %3932 = vmatprep.subr.mxu0 0.0
    %3933 = vmatpush2.msra.mxu0 0.0
    %3934 = vmatprep.mubr.f32.mxu0 0.0
    %v3935 = vand.u32 %v3787, 4294901760
    %3936 = vmatmul.mubr.f32.gmra.mxu0 %v3935
    %v3937 = vpop.f32.mrf.mxu0
    %v3938 = vadd.f32 %v3862, %v3937
    %v3939 = vpop.f32.mrf.mxu0
    %3940 = vdwg.mxu0
    %3941 = vmatprep.subr.mxu0 0.0
    %3942 = vmatpush1.msra.mxu0 0.0
    %3943 = vmatprep.subr.mxu0 0.0
    %3944 = vmatpush1.msra.mxu0 0.0
    %3945 = vmatprep.subr.mxu0 0.0
    %3946 = vmatpush1.msra.mxu0 0.0
    %3947 = vmatprep.subr.mxu0 0.0
    %3948 = vmatpush1.msra.mxu0 0.0
    %3949 = vmatprep.subr.mxu0 0.0
    %3950 = vmatpush1.msra.mxu0 0.0
    %3951 = vmatprep.subr.mxu0 0.0
    %3952 = vmatpush1.msra.mxu0 0.0
    %3953 = vmatprep.subr.mxu0 0.0
    %3954 = vmatpush1.msra.mxu0 0.0
    %3955 = vmatprep.subr.mxu0 0.0
    %3956 = vmatpush1.msra.mxu0 0.0
    %3957 = vmatprep.subr.mxu0 0.0
    %3958 = vmatpush1.msra.mxu0 0.0
    %3959 = vmatprep.subr.mxu0 0.0
    %3960 = vmatpush1.msra.mxu0 0.0
    %3961 = vmatprep.subr.mxu0 0.0
    %3962 = vmatpush1.msra.mxu0 0.0
    %3963 = vmatprep.subr.mxu0 0.0
    %3964 = vmatpush1.msra.mxu0 0.0
    %3965 = vmatprep.subr.mxu0 0.0
    %3966 = vmatpush1.msra.mxu0 0.0
    %3967 = vmatprep.subr.mxu0 0.0
    %3968 = vmatpush1.msra.mxu0 0.0
    %3969 = vmatprep.subr.mxu0 0.0
    %3970 = vmatpush1.msra.mxu0 0.0
    %3971 = vmatprep.subr.mxu0 0.0
    %v3972 = vand.u32 %v83, 4294901760
    %v3973 = vsub.f32 %v83, %v3972
    %3974 = vmatpush1.msra.mxu0 %v3973
    %3975 = vmatprep.subr.mxu0 0.0
    %3976 = vmatpush2.msra.mxu0 0.0
    %3977 = vmatprep.subr.mxu0 0.0
    %3978 = vmatpush2.msra.mxu0 0.0
    %3979 = vmatprep.subr.mxu0 0.0
    %3980 = vmatpush2.msra.mxu0 0.0
    %3981 = vmatprep.subr.mxu0 0.0
    %3982 = vmatpush2.msra.mxu0 0.0
    %3983 = vmatprep.subr.mxu0 0.0
    %3984 = vmatpush2.msra.mxu0 0.0
    %3985 = vmatprep.subr.mxu0 0.0
    %3986 = vmatpush2.msra.mxu0 0.0
    %3987 = vmatprep.subr.mxu0 0.0
    %3988 = vmatpush2.msra.mxu0 0.0
    %3989 = vmatprep.subr.mxu0 0.0
    %3990 = vmatpush2.msra.mxu0 0.0
    %3991 = vmatprep.subr.mxu0 0.0
    %3992 = vmatpush2.msra.mxu0 0.0
    %3993 = vmatprep.subr.mxu0 0.0
    %3994 = vmatpush2.msra.mxu0 0.0
    %3995 = vmatprep.subr.mxu0 0.0
    %3996 = vmatpush2.msra.mxu0 0.0
    %3997 = vmatprep.subr.mxu0 0.0
    %3998 = vmatpush2.msra.mxu0 0.0
    %3999 = vmatprep.subr.mxu0 0.0
    %4000 = vmatpush2.msra.mxu0 0.0
    %4001 = vmatprep.subr.mxu0 0.0
    %4002 = vmatpush2.msra.mxu0 0.0
    %4003 = vmatprep.subr.mxu0 0.0
    %4004 = vmatpush2.msra.mxu0 0.0
    %4005 = vmatprep.subr.mxu0 0.0
    %4006 = vmatpush2.msra.mxu0 0.0
    %4007 = vmatprep.mubr.f32.mxu0 0.0
    %v4008 = vand.u32 %v3787, 4294901760
    %v4009 = vsub.f32 %v3787, %v4008
    %4010 = vmatmul.mubr.f32.gmra.mxu0 %v4009
    %v4011 = vpop.f32.mrf.mxu0
    %v4012 = vadd.f32 %v3938, %v4011
    %v4013 = vpop.f32.mrf.mxu0
    %4014 = vdwg.mxu0
    %4015 = vmatprep.subr.mxu0 0.0
    %4016 = vmatpush1.msra.mxu0 0.0
    %4017 = vmatprep.subr.mxu0 0.0
    %4018 = vmatpush1.msra.mxu0 0.0
    %4019 = vmatprep.subr.mxu0 0.0
    %4020 = vmatpush1.msra.mxu0 0.0
    %4021 = vmatprep.subr.mxu0 0.0
    %4022 = vmatpush1.msra.mxu0 0.0
    %4023 = vmatprep.subr.mxu0 0.0
    %4024 = vmatpush1.msra.mxu0 0.0
    %4025 = vmatprep.subr.mxu0 0.0
    %4026 = vmatpush1.msra.mxu0 0.0
    %4027 = vmatprep.subr.mxu0 0.0
    %4028 = vmatpush1.msra.mxu0 0.0
    %4029 = vmatprep.subr.mxu0 0.0
    %4030 = vmatpush1.msra.mxu0 0.0
    %4031 = vmatprep.subr.mxu0 0.0
    %4032 = vmatpush1.msra.mxu0 0.0
    %4033 = vmatprep.subr.mxu0 0.0
    %4034 = vmatpush1.msra.mxu0 0.0
    %4035 = vmatprep.subr.mxu0 0.0
    %4036 = vmatpush1.msra.mxu0 0.0
    %4037 = vmatprep.subr.mxu0 0.0
    %4038 = vmatpush1.msra.mxu0 0.0
    %4039 = vmatprep.subr.mxu0 0.0
    %4040 = vmatpush1.msra.mxu0 0.0
    %4041 = vmatprep.subr.mxu0 0.0
    %4042 = vmatpush1.msra.mxu0 0.0
    %4043 = vmatprep.subr.mxu0 0.0
    %4044 = vmatpush1.msra.mxu0 0.0
    %4045 = vmatprep.subr.mxu0 0.0
    %v4046 = vand.u32 %v83, 4294901760
    %4047 = vmatpush1.msra.mxu0 %v4046
    %4048 = vmatprep.subr.mxu0 0.0
    %4049 = vmatpush2.msra.mxu0 0.0
    %4050 = vmatprep.subr.mxu0 0.0
    %4051 = vmatpush2.msra.mxu0 0.0
    %4052 = vmatprep.subr.mxu0 0.0
    %4053 = vmatpush2.msra.mxu0 0.0
    %4054 = vmatprep.subr.mxu0 0.0
    %4055 = vmatpush2.msra.mxu0 0.0
    %4056 = vmatprep.subr.mxu0 0.0
    %4057 = vmatpush2.msra.mxu0 0.0
    %4058 = vmatprep.subr.mxu0 0.0
    %4059 = vmatpush2.msra.mxu0 0.0
    %4060 = vmatprep.subr.mxu0 0.0
    %4061 = vmatpush2.msra.mxu0 0.0
    %4062 = vmatprep.subr.mxu0 0.0
    %4063 = vmatpush2.msra.mxu0 0.0
    %4064 = vmatprep.subr.mxu0 0.0
    %4065 = vmatpush2.msra.mxu0 0.0
    %4066 = vmatprep.subr.mxu0 0.0
    %4067 = vmatpush2.msra.mxu0 0.0
    %4068 = vmatprep.subr.mxu0 0.0
    %4069 = vmatpush2.msra.mxu0 0.0
    %4070 = vmatprep.subr.mxu0 0.0
    %4071 = vmatpush2.msra.mxu0 0.0
    %4072 = vmatprep.subr.mxu0 0.0
    %4073 = vmatpush2.msra.mxu0 0.0
    %4074 = vmatprep.subr.mxu0 0.0
    %4075 = vmatpush2.msra.mxu0 0.0
    %4076 = vmatprep.subr.mxu0 0.0
    %4077 = vmatpush2.msra.mxu0 0.0
    %4078 = vmatprep.subr.mxu0 0.0
    %4079 = vmatpush2.msra.mxu0 0.0
    %4080 = vmatprep.mubr.f32.mxu0 0.0
    %v4081 = vand.u32 %v3787, 4294901760
    %v4082 = vsub.f32 %v3787, %v4081
    %v4083 = vand.u32 %v4082, 4294901760
    %4084 = vmatmul.mubr.f32.gmra.mxu0 %v4083
    %v4085 = vpop.f32.mrf.mxu0
    %v4086 = vadd.f32 %v4012, %v4085
    %v4087 = vpop.f32.mrf.mxu0
    %4088 = vdwg.mxu0
    %4089 = vmatprep.subr.mxu0 0.0
    %4090 = vmatpush1.msra.mxu0 0.0
    %4091 = vmatprep.subr.mxu0 0.0
    %4092 = vmatpush1.msra.mxu0 0.0
    %4093 = vmatprep.subr.mxu0 0.0
    %4094 = vmatpush1.msra.mxu0 0.0
    %4095 = vmatprep.subr.mxu0 0.0
    %4096 = vmatpush1.msra.mxu0 0.0
    %4097 = vmatprep.subr.mxu0 0.0
    %4098 = vmatpush1.msra.mxu0 0.0
    %4099 = vmatprep.subr.mxu0 0.0
    %4100 = vmatpush1.msra.mxu0 0.0
    %4101 = vmatprep.subr.mxu0 0.0
    %4102 = vmatpush1.msra.mxu0 0.0
    %4103 = vmatprep.subr.mxu0 0.0
    %4104 = vmatpush1.msra.mxu0 0.0
    %4105 = vmatprep.subr.mxu0 0.0
    %4106 = vmatpush1.msra.mxu0 0.0
    %4107 = vmatprep.subr.mxu0 0.0
    %4108 = vmatpush1.msra.mxu0 0.0
    %4109 = vmatprep.subr.mxu0 0.0
    %4110 = vmatpush1.msra.mxu0 0.0
    %4111 = vmatprep.subr.mxu0 0.0
    %4112 = vmatpush1.msra.mxu0 0.0
    %4113 = vmatprep.subr.mxu0 0.0
    %4114 = vmatpush1.msra.mxu0 0.0
    %4115 = vmatprep.subr.mxu0 0.0
    %4116 = vmatpush1.msra.mxu0 0.0
    %4117 = vmatprep.subr.mxu0 0.0
    %4118 = vmatpush1.msra.mxu0 0.0
    %4119 = vmatprep.subr.mxu0 0.0
    %v4120 = vand.u32 %v83, 4294901760
    %v4121 = vsub.f32 %v83, %v4120
    %v4122 = vand.u32 %v4121, 4294901760
    %4123 = vmatpush1.msra.mxu0 %v4122
    %4124 = vmatprep.subr.mxu0 0.0
    %4125 = vmatpush2.msra.mxu0 0.0
    %4126 = vmatprep.subr.mxu0 0.0
    %4127 = vmatpush2.msra.mxu0 0.0
    %4128 = vmatprep.subr.mxu0 0.0
    %4129 = vmatpush2.msra.mxu0 0.0
    %4130 = vmatprep.subr.mxu0 0.0
    %4131 = vmatpush2.msra.mxu0 0.0
    %4132 = vmatprep.subr.mxu0 0.0
    %4133 = vmatpush2.msra.mxu0 0.0
    %4134 = vmatprep.subr.mxu0 0.0
    %4135 = vmatpush2.msra.mxu0 0.0
    %4136 = vmatprep.subr.mxu0 0.0
    %4137 = vmatpush2.msra.mxu0 0.0
    %4138 = vmatprep.subr.mxu0 0.0
    %4139 = vmatpush2.msra.mxu0 0.0
    %4140 = vmatprep.subr.mxu0 0.0
    %4141 = vmatpush2.msra.mxu0 0.0
    %4142 = vmatprep.subr.mxu0 0.0
    %4143 = vmatpush2.msra.mxu0 0.0
    %4144 = vmatprep.subr.mxu0 0.0
    %4145 = vmatpush2.msra.mxu0 0.0
    %4146 = vmatprep.subr.mxu0 0.0
    %4147 = vmatpush2.msra.mxu0 0.0
    %4148 = vmatprep.subr.mxu0 0.0
    %4149 = vmatpush2.msra.mxu0 0.0
    %4150 = vmatprep.subr.mxu0 0.0
    %4151 = vmatpush2.msra.mxu0 0.0
    %4152 = vmatprep.subr.mxu0 0.0
    %4153 = vmatpush2.msra.mxu0 0.0
    %4154 = vmatprep.subr.mxu0 0.0
    %4155 = vmatpush2.msra.mxu0 0.0
    %4156 = vmatprep.mubr.f32.mxu0 0.0
    %v4157 = vand.u32 %v3787, 4294901760
    %4158 = vmatmul.mubr.f32.gmra.mxu0 %v4157
    %v4159 = vpop.f32.mrf.mxu0
    %v4160 = vadd.f32 %v4086, %v4159
    %v4161 = vpop.f32.mrf.mxu0
    %4162 = vdwg.mxu0
    %4163 = vmatprep.subr.mxu0 0.0
    %4164 = vmatpush1.msra.mxu0 0.0
    %4165 = vmatprep.subr.mxu0 0.0
    %4166 = vmatpush1.msra.mxu0 0.0
    %4167 = vmatprep.subr.mxu0 0.0
    %4168 = vmatpush1.msra.mxu0 0.0
    %4169 = vmatprep.subr.mxu0 0.0
    %4170 = vmatpush1.msra.mxu0 0.0
    %4171 = vmatprep.subr.mxu0 0.0
    %4172 = vmatpush1.msra.mxu0 0.0
    %4173 = vmatprep.subr.mxu0 0.0
    %4174 = vmatpush1.msra.mxu0 0.0
    %4175 = vmatprep.subr.mxu0 0.0
    %4176 = vmatpush1.msra.mxu0 0.0
    %4177 = vmatprep.subr.mxu0 0.0
    %4178 = vmatpush1.msra.mxu0 0.0
    %4179 = vmatprep.subr.mxu0 0.0
    %4180 = vmatpush1.msra.mxu0 0.0
    %4181 = vmatprep.subr.mxu0 0.0
    %4182 = vmatpush1.msra.mxu0 0.0
    %4183 = vmatprep.subr.mxu0 0.0
    %4184 = vmatpush1.msra.mxu0 0.0
    %4185 = vmatprep.subr.mxu0 0.0
    %4186 = vmatpush1.msra.mxu0 0.0
    %4187 = vmatprep.subr.mxu0 0.0
    %4188 = vmatpush1.msra.mxu0 0.0
    %4189 = vmatprep.subr.mxu0 0.0
    %4190 = vmatpush1.msra.mxu0 0.0
    %4191 = vmatprep.subr.mxu0 0.0
    %4192 = vmatpush1.msra.mxu0 0.0
    %4193 = vmatprep.subr.mxu0 0.0
    %v4194 = vand.u32 %v83, 4294901760
    %4195 = vmatpush1.msra.mxu0 %v4194
    %4196 = vmatprep.subr.mxu0 0.0
    %4197 = vmatpush2.msra.mxu0 0.0
    %4198 = vmatprep.subr.mxu0 0.0
    %4199 = vmatpush2.msra.mxu0 0.0
    %4200 = vmatprep.subr.mxu0 0.0
    %4201 = vmatpush2.msra.mxu0 0.0
    %4202 = vmatprep.subr.mxu0 0.0
    %4203 = vmatpush2.msra.mxu0 0.0
    %4204 = vmatprep.subr.mxu0 0.0
    %4205 = vmatpush2.msra.mxu0 0.0
    %4206 = vmatprep.subr.mxu0 0.0
    %4207 = vmatpush2.msra.mxu0 0.0
    %4208 = vmatprep.subr.mxu0 0.0
    %4209 = vmatpush2.msra.mxu0 0.0
    %4210 = vmatprep.subr.mxu0 0.0
    %4211 = vmatpush2.msra.mxu0 0.0
    %4212 = vmatprep.subr.mxu0 0.0
    %4213 = vmatpush2.msra.mxu0 0.0
    %4214 = vmatprep.subr.mxu0 0.0
    %4215 = vmatpush2.msra.mxu0 0.0
    %4216 = vmatprep.subr.mxu0 0.0
    %4217 = vmatpush2.msra.mxu0 0.0
    %4218 = vmatprep.subr.mxu0 0.0
    %4219 = vmatpush2.msra.mxu0 0.0
    %4220 = vmatprep.subr.mxu0 0.0
    %4221 = vmatpush2.msra.mxu0 0.0
    %4222 = vmatprep.subr.mxu0 0.0
    %4223 = vmatpush2.msra.mxu0 0.0
    %4224 = vmatprep.subr.mxu0 0.0
    %4225 = vmatpush2.msra.mxu0 0.0
    %4226 = vmatprep.subr.mxu0 0.0
    %4227 = vmatpush2.msra.mxu0 0.0
    %4228 = vmatprep.mubr.f32.mxu0 0.0
    %v4229 = vand.u32 %v3787, 4294901760
    %4230 = vmatmul.mubr.f32.gmra.mxu0 %v4229
    %v4231 = vpop.f32.mrf.mxu0
    %v4232 = vadd.f32 %v4160, %v4231
    %v4233 = vpop.f32.mrf.mxu0
    %4234 = vdwg.mxu0
    %v4236 = vlaneseq
    %v4237 = vshrl.u32 %v4236, 7
    %v4238 = vsub.s32 0, %v4237
    %v4239 = vrot.slane %v96, %v4238
    %v4249 = vrot.slane %v1544, 7
    %vm4250 = vcmask 1041409
    %v4251 = vsel %vm4250, %v4249, %v1096
    %v4252 = vrot.slane %v1992, 6
    %vm4253 = vcmask 1042434
    %v4254 = vsel %vm4253, %v4252, %v4251
    %v4255 = vrot.slane %v2440, 5
    %vm4256 = vcmask 1043459
    %v4257 = vsel %vm4256, %v4255, %v4254
    %v4258 = vrot.slane %v2888, 4
    %vm4259 = vcmask 1044484
    %v4260 = vsel %vm4259, %v4258, %v4257
    %v4261 = vrot.slane %v3336, 3
    %vm4262 = vcmask 1045509
    %v4263 = vsel %vm4262, %v4261, %v4260
    %v4264 = vrot.slane %v3784, 2
    %vm4265 = vcmask 1046534
    %v4266 = vsel %vm4265, %v4264, %v4263
    %v4267 = vrot.slane %v4232, 1
    %vm4268 = vcmask 1047559
    %v4269 = vsel %vm4268, %v4267, %v4266
    %v4270 = vsel %vm100, %v4269, 0
    %4272 = vmatprep.subr.mxu0 0.0
    %4273 = vmatpush1.msra.mxu0 0.0
    %4274 = vmatprep.subr.mxu0 0.0
    %4275 = vmatpush1.msra.mxu0 0.0
    %4276 = vmatprep.subr.mxu0 0.0
    %4277 = vmatpush1.msra.mxu0 0.0
    %4278 = vmatprep.subr.mxu0 0.0
    %4279 = vmatpush1.msra.mxu0 0.0
    %4280 = vmatprep.subr.mxu0 0.0
    %4281 = vmatpush1.msra.mxu0 0.0
    %4282 = vmatprep.subr.mxu0 0.0
    %4283 = vmatpush1.msra.mxu0 0.0
    %4284 = vmatprep.subr.mxu0 0.0
    %4285 = vmatpush1.msra.mxu0 0.0
    %4286 = vmatprep.subr.mxu0 0.0
    %4287 = vmatpush1.msra.mxu0 0.0
    %4288 = vmatprep.subr.mxu0 0.0
    %4289 = vmatpush1.msra.mxu0 0.0
    %4290 = vmatprep.subr.mxu0 0.0
    %4291 = vmatpush1.msra.mxu0 0.0
    %4292 = vmatprep.subr.mxu0 0.0
    %4293 = vmatpush1.msra.mxu0 0.0
    %4294 = vmatprep.subr.mxu0 0.0
    %4295 = vmatpush1.msra.mxu0 0.0
    %4296 = vmatprep.subr.mxu0 0.0
    %v4297 = vand.u32 %v91, 4294901760
    %4298 = vmatpush1.msra.mxu0 %v4297
    %4299 = vmatprep.subr.mxu0 0.0
    %v4300 = vand.u32 %v90, 4294901760
    %4301 = vmatpush1.msra.mxu0 %v4300
    %4302 = vmatprep.subr.mxu0 0.0
    %v4303 = vand.u32 %v89, 4294901760
    %4304 = vmatpush1.msra.mxu0 %v4303
    %4305 = vmatprep.subr.mxu0 0.0
    %v4306 = vand.u32 %v88, 4294901760
    %4307 = vmatpush1.msra.mxu0 %v4306
    %4308 = vmatprep.subr.mxu0 0.0
    %4309 = vmatpush2.msra.mxu0 0.0
    %4310 = vmatprep.subr.mxu0 0.0
    %4311 = vmatpush2.msra.mxu0 0.0
    %4312 = vmatprep.subr.mxu0 0.0
    %4313 = vmatpush2.msra.mxu0 0.0
    %4314 = vmatprep.subr.mxu0 0.0
    %4315 = vmatpush2.msra.mxu0 0.0
    %4316 = vmatprep.subr.mxu0 0.0
    %4317 = vmatpush2.msra.mxu0 0.0
    %4318 = vmatprep.subr.mxu0 0.0
    %4319 = vmatpush2.msra.mxu0 0.0
    %4320 = vmatprep.subr.mxu0 0.0
    %4321 = vmatpush2.msra.mxu0 0.0
    %4322 = vmatprep.subr.mxu0 0.0
    %4323 = vmatpush2.msra.mxu0 0.0
    %4324 = vmatprep.subr.mxu0 0.0
    %4325 = vmatpush2.msra.mxu0 0.0
    %4326 = vmatprep.subr.mxu0 0.0
    %4327 = vmatpush2.msra.mxu0 0.0
    %4328 = vmatprep.subr.mxu0 0.0
    %4329 = vmatpush2.msra.mxu0 0.0
    %4330 = vmatprep.subr.mxu0 0.0
    %4331 = vmatpush2.msra.mxu0 0.0
    %4332 = vmatprep.subr.mxu0 0.0
    %4333 = vmatpush2.msra.mxu0 0.0
    %4334 = vmatprep.subr.mxu0 0.0
    %4335 = vmatpush2.msra.mxu0 0.0
    %4336 = vmatprep.subr.mxu0 0.0
    %4337 = vmatpush2.msra.mxu0 0.0
    %4338 = vmatprep.subr.mxu0 0.0
    %4339 = vmatpush2.msra.mxu0 0.0
    %4340 = vmatprep.mubr.f32.mxu0 0.0
    %v4341 = vand.u32 %v4270, 4294901760
    %v4342 = vsub.f32 %v4270, %v4341
    %v4343 = vand.u32 %v4342, 4294901760
    %v4344 = vsub.f32 %v4342, %v4343
    %v4345 = vand.u32 %v4344, 4294901760
    %4346 = vmatmul.mubr.f32.gmra.mxu0 %v4345
    %v4347 = vpop.f32.mrf.mxu0
    %v4348 = vadd.f32 %v4239, %v4347
    %v4349 = vpop.f32.mrf.mxu0
    %4350 = vdwg.mxu0
    %4351 = vmatprep.subr.mxu0 0.0
    %4352 = vmatpush1.msra.mxu0 0.0
    %4353 = vmatprep.subr.mxu0 0.0
    %4354 = vmatpush1.msra.mxu0 0.0
    %4355 = vmatprep.subr.mxu0 0.0
    %4356 = vmatpush1.msra.mxu0 0.0
    %4357 = vmatprep.subr.mxu0 0.0
    %4358 = vmatpush1.msra.mxu0 0.0
    %4359 = vmatprep.subr.mxu0 0.0
    %4360 = vmatpush1.msra.mxu0 0.0
    %4361 = vmatprep.subr.mxu0 0.0
    %4362 = vmatpush1.msra.mxu0 0.0
    %4363 = vmatprep.subr.mxu0 0.0
    %4364 = vmatpush1.msra.mxu0 0.0
    %4365 = vmatprep.subr.mxu0 0.0
    %4366 = vmatpush1.msra.mxu0 0.0
    %4367 = vmatprep.subr.mxu0 0.0
    %4368 = vmatpush1.msra.mxu0 0.0
    %4369 = vmatprep.subr.mxu0 0.0
    %4370 = vmatpush1.msra.mxu0 0.0
    %4371 = vmatprep.subr.mxu0 0.0
    %4372 = vmatpush1.msra.mxu0 0.0
    %4373 = vmatprep.subr.mxu0 0.0
    %4374 = vmatpush1.msra.mxu0 0.0
    %4375 = vmatprep.subr.mxu0 0.0
    %v4376 = vand.u32 %v91, 4294901760
    %v4377 = vsub.f32 %v91, %v4376
    %v4378 = vand.u32 %v4377, 4294901760
    %v4379 = vsub.f32 %v4377, %v4378
    %v4380 = vand.u32 %v4379, 4294901760
    %4381 = vmatpush1.msra.mxu0 %v4380
    %4382 = vmatprep.subr.mxu0 0.0
    %v4383 = vand.u32 %v90, 4294901760
    %v4384 = vsub.f32 %v90, %v4383
    %v4385 = vand.u32 %v4384, 4294901760
    %v4386 = vsub.f32 %v4384, %v4385
    %v4387 = vand.u32 %v4386, 4294901760
    %4388 = vmatpush1.msra.mxu0 %v4387
    %4389 = vmatprep.subr.mxu0 0.0
    %v4390 = vand.u32 %v89, 4294901760
    %v4391 = vsub.f32 %v89, %v4390
    %v4392 = vand.u32 %v4391, 4294901760
    %v4393 = vsub.f32 %v4391, %v4392
    %v4394 = vand.u32 %v4393, 4294901760
    %4395 = vmatpush1.msra.mxu0 %v4394
    %4396 = vmatprep.subr.mxu0 0.0
    %v4397 = vand.u32 %v88, 4294901760
    %v4398 = vsub.f32 %v88, %v4397
    %v4399 = vand.u32 %v4398, 4294901760
    %v4400 = vsub.f32 %v4398, %v4399
    %v4401 = vand.u32 %v4400, 4294901760
    %4402 = vmatpush1.msra.mxu0 %v4401
    %4403 = vmatprep.subr.mxu0 0.0
    %4404 = vmatpush2.msra.mxu0 0.0
    %4405 = vmatprep.subr.mxu0 0.0
    %4406 = vmatpush2.msra.mxu0 0.0
    %4407 = vmatprep.subr.mxu0 0.0
    %4408 = vmatpush2.msra.mxu0 0.0
    %4409 = vmatprep.subr.mxu0 0.0
    %4410 = vmatpush2.msra.mxu0 0.0
    %4411 = vmatprep.subr.mxu0 0.0
    %4412 = vmatpush2.msra.mxu0 0.0
    %4413 = vmatprep.subr.mxu0 0.0
    %4414 = vmatpush2.msra.mxu0 0.0
    %4415 = vmatprep.subr.mxu0 0.0
    %4416 = vmatpush2.msra.mxu0 0.0
    %4417 = vmatprep.subr.mxu0 0.0
    %4418 = vmatpush2.msra.mxu0 0.0
    %4419 = vmatprep.subr.mxu0 0.0
    %4420 = vmatpush2.msra.mxu0 0.0
    %4421 = vmatprep.subr.mxu0 0.0
    %4422 = vmatpush2.msra.mxu0 0.0
    %4423 = vmatprep.subr.mxu0 0.0
    %4424 = vmatpush2.msra.mxu0 0.0
    %4425 = vmatprep.subr.mxu0 0.0
    %4426 = vmatpush2.msra.mxu0 0.0
    %4427 = vmatprep.subr.mxu0 0.0
    %4428 = vmatpush2.msra.mxu0 0.0
    %4429 = vmatprep.subr.mxu0 0.0
    %4430 = vmatpush2.msra.mxu0 0.0
    %4431 = vmatprep.subr.mxu0 0.0
    %4432 = vmatpush2.msra.mxu0 0.0
    %4433 = vmatprep.subr.mxu0 0.0
    %4434 = vmatpush2.msra.mxu0 0.0
    %4435 = vmatprep.mubr.f32.mxu0 0.0
    %v4436 = vand.u32 %v4270, 4294901760
    %4437 = vmatmul.mubr.f32.gmra.mxu0 %v4436
    %v4438 = vpop.f32.mrf.mxu0
    %v4439 = vadd.f32 %v4348, %v4438
    %v4440 = vpop.f32.mrf.mxu0
    %4441 = vdwg.mxu0
    %4442 = vmatprep.subr.mxu0 0.0
    %4443 = vmatpush1.msra.mxu0 0.0
    %4444 = vmatprep.subr.mxu0 0.0
    %4445 = vmatpush1.msra.mxu0 0.0
    %4446 = vmatprep.subr.mxu0 0.0
    %4447 = vmatpush1.msra.mxu0 0.0
    %4448 = vmatprep.subr.mxu0 0.0
    %4449 = vmatpush1.msra.mxu0 0.0
    %4450 = vmatprep.subr.mxu0 0.0
    %4451 = vmatpush1.msra.mxu0 0.0
    %4452 = vmatprep.subr.mxu0 0.0
    %4453 = vmatpush1.msra.mxu0 0.0
    %4454 = vmatprep.subr.mxu0 0.0
    %4455 = vmatpush1.msra.mxu0 0.0
    %4456 = vmatprep.subr.mxu0 0.0
    %4457 = vmatpush1.msra.mxu0 0.0
    %4458 = vmatprep.subr.mxu0 0.0
    %4459 = vmatpush1.msra.mxu0 0.0
    %4460 = vmatprep.subr.mxu0 0.0
    %4461 = vmatpush1.msra.mxu0 0.0
    %4462 = vmatprep.subr.mxu0 0.0
    %4463 = vmatpush1.msra.mxu0 0.0
    %4464 = vmatprep.subr.mxu0 0.0
    %4465 = vmatpush1.msra.mxu0 0.0
    %4466 = vmatprep.subr.mxu0 0.0
    %v4467 = vand.u32 %v91, 4294901760
    %v4468 = vsub.f32 %v91, %v4467
    %4469 = vmatpush1.msra.mxu0 %v4468
    %4470 = vmatprep.subr.mxu0 0.0
    %v4471 = vand.u32 %v90, 4294901760
    %v4472 = vsub.f32 %v90, %v4471
    %4473 = vmatpush1.msra.mxu0 %v4472
    %4474 = vmatprep.subr.mxu0 0.0
    %v4475 = vand.u32 %v89, 4294901760
    %v4476 = vsub.f32 %v89, %v4475
    %4477 = vmatpush1.msra.mxu0 %v4476
    %4478 = vmatprep.subr.mxu0 0.0
    %v4479 = vand.u32 %v88, 4294901760
    %v4480 = vsub.f32 %v88, %v4479
    %4481 = vmatpush1.msra.mxu0 %v4480
    %4482 = vmatprep.subr.mxu0 0.0
    %4483 = vmatpush2.msra.mxu0 0.0
    %4484 = vmatprep.subr.mxu0 0.0
    %4485 = vmatpush2.msra.mxu0 0.0
    %4486 = vmatprep.subr.mxu0 0.0
    %4487 = vmatpush2.msra.mxu0 0.0
    %4488 = vmatprep.subr.mxu0 0.0
    %4489 = vmatpush2.msra.mxu0 0.0
    %4490 = vmatprep.subr.mxu0 0.0
    %4491 = vmatpush2.msra.mxu0 0.0
    %4492 = vmatprep.subr.mxu0 0.0
    %4493 = vmatpush2.msra.mxu0 0.0
    %4494 = vmatprep.subr.mxu0 0.0
    %4495 = vmatpush2.msra.mxu0 0.0
    %4496 = vmatprep.subr.mxu0 0.0
    %4497 = vmatpush2.msra.mxu0 0.0
    %4498 = vmatprep.subr.mxu0 0.0
    %4499 = vmatpush2.msra.mxu0 0.0
    %4500 = vmatprep.subr.mxu0 0.0
    %4501 = vmatpush2.msra.mxu0 0.0
    %4502 = vmatprep.subr.mxu0 0.0
    %4503 = vmatpush2.msra.mxu0 0.0
    %4504 = vmatprep.subr.mxu0 0.0
    %4505 = vmatpush2.msra.mxu0 0.0
    %4506 = vmatprep.subr.mxu0 0.0
    %4507 = vmatpush2.msra.mxu0 0.0
    %4508 = vmatprep.subr.mxu0 0.0
    %4509 = vmatpush2.msra.mxu0 0.0
    %4510 = vmatprep.subr.mxu0 0.0
    %4511 = vmatpush2.msra.mxu0 0.0
    %4512 = vmatprep.subr.mxu0 0.0
    %4513 = vmatpush2.msra.mxu0 0.0
    %4514 = vmatprep.mubr.f32.mxu0 0.0
    %v4515 = vand.u32 %v4270, 4294901760
    %v4516 = vsub.f32 %v4270, %v4515
    %4517 = vmatmul.mubr.f32.gmra.mxu0 %v4516
    %v4518 = vpop.f32.mrf.mxu0
    %v4519 = vadd.f32 %v4439, %v4518
    %v4520 = vpop.f32.mrf.mxu0
    %4521 = vdwg.mxu0
    %4522 = vmatprep.subr.mxu0 0.0
    %4523 = vmatpush1.msra.mxu0 0.0
    %4524 = vmatprep.subr.mxu0 0.0
    %4525 = vmatpush1.msra.mxu0 0.0
    %4526 = vmatprep.subr.mxu0 0.0
    %4527 = vmatpush1.msra.mxu0 0.0
    %4528 = vmatprep.subr.mxu0 0.0
    %4529 = vmatpush1.msra.mxu0 0.0
    %4530 = vmatprep.subr.mxu0 0.0
    %4531 = vmatpush1.msra.mxu0 0.0
    %4532 = vmatprep.subr.mxu0 0.0
    %4533 = vmatpush1.msra.mxu0 0.0
    %4534 = vmatprep.subr.mxu0 0.0
    %4535 = vmatpush1.msra.mxu0 0.0
    %4536 = vmatprep.subr.mxu0 0.0
    %4537 = vmatpush1.msra.mxu0 0.0
    %4538 = vmatprep.subr.mxu0 0.0
    %4539 = vmatpush1.msra.mxu0 0.0
    %4540 = vmatprep.subr.mxu0 0.0
    %4541 = vmatpush1.msra.mxu0 0.0
    %4542 = vmatprep.subr.mxu0 0.0
    %4543 = vmatpush1.msra.mxu0 0.0
    %4544 = vmatprep.subr.mxu0 0.0
    %4545 = vmatpush1.msra.mxu0 0.0
    %4546 = vmatprep.subr.mxu0 0.0
    %v4547 = vand.u32 %v91, 4294901760
    %4548 = vmatpush1.msra.mxu0 %v4547
    %4549 = vmatprep.subr.mxu0 0.0
    %v4550 = vand.u32 %v90, 4294901760
    %4551 = vmatpush1.msra.mxu0 %v4550
    %4552 = vmatprep.subr.mxu0 0.0
    %v4553 = vand.u32 %v89, 4294901760
    %4554 = vmatpush1.msra.mxu0 %v4553
    %4555 = vmatprep.subr.mxu0 0.0
    %v4556 = vand.u32 %v88, 4294901760
    %4557 = vmatpush1.msra.mxu0 %v4556
    %4558 = vmatprep.subr.mxu0 0.0
    %4559 = vmatpush2.msra.mxu0 0.0
    %4560 = vmatprep.subr.mxu0 0.0
    %4561 = vmatpush2.msra.mxu0 0.0
    %4562 = vmatprep.subr.mxu0 0.0
    %4563 = vmatpush2.msra.mxu0 0.0
    %4564 = vmatprep.subr.mxu0 0.0
    %4565 = vmatpush2.msra.mxu0 0.0
    %4566 = vmatprep.subr.mxu0 0.0
    %4567 = vmatpush2.msra.mxu0 0.0
    %4568 = vmatprep.subr.mxu0 0.0
    %4569 = vmatpush2.msra.mxu0 0.0
    %4570 = vmatprep.subr.mxu0 0.0
    %4571 = vmatpush2.msra.mxu0 0.0
    %4572 = vmatprep.subr.mxu0 0.0
    %4573 = vmatpush2.msra.mxu0 0.0
    %4574 = vmatprep.subr.mxu0 0.0
    %4575 = vmatpush2.msra.mxu0 0.0
    %4576 = vmatprep.subr.mxu0 0.0
    %4577 = vmatpush2.msra.mxu0 0.0
    %4578 = vmatprep.subr.mxu0 0.0
    %4579 = vmatpush2.msra.mxu0 0.0
    %4580 = vmatprep.subr.mxu0 0.0
    %4581 = vmatpush2.msra.mxu0 0.0
    %4582 = vmatprep.subr.mxu0 0.0
    %4583 = vmatpush2.msra.mxu0 0.0
    %4584 = vmatprep.subr.mxu0 0.0
    %4585 = vmatpush2.msra.mxu0 0.0
    %4586 = vmatprep.subr.mxu0 0.0
    %4587 = vmatpush2.msra.mxu0 0.0
    %4588 = vmatprep.subr.mxu0 0.0
    %4589 = vmatpush2.msra.mxu0 0.0
    %4590 = vmatprep.mubr.f32.mxu0 0.0
    %v4591 = vand.u32 %v4270, 4294901760
    %v4592 = vsub.f32 %v4270, %v4591
    %v4593 = vand.u32 %v4592, 4294901760
    %4594 = vmatmul.mubr.f32.gmra.mxu0 %v4593
    %v4595 = vpop.f32.mrf.mxu0
    %v4596 = vadd.f32 %v4519, %v4595
    %v4597 = vpop.f32.mrf.mxu0
    %4598 = vdwg.mxu0
    %4599 = vmatprep.subr.mxu0 0.0
    %4600 = vmatpush1.msra.mxu0 0.0
    %4601 = vmatprep.subr.mxu0 0.0
    %4602 = vmatpush1.msra.mxu0 0.0
    %4603 = vmatprep.subr.mxu0 0.0
    %4604 = vmatpush1.msra.mxu0 0.0
    %4605 = vmatprep.subr.mxu0 0.0
    %4606 = vmatpush1.msra.mxu0 0.0
    %4607 = vmatprep.subr.mxu0 0.0
    %4608 = vmatpush1.msra.mxu0 0.0
    %4609 = vmatprep.subr.mxu0 0.0
    %4610 = vmatpush1.msra.mxu0 0.0
    %4611 = vmatprep.subr.mxu0 0.0
    %4612 = vmatpush1.msra.mxu0 0.0
    %4613 = vmatprep.subr.mxu0 0.0
    %4614 = vmatpush1.msra.mxu0 0.0
    %4615 = vmatprep.subr.mxu0 0.0
    %4616 = vmatpush1.msra.mxu0 0.0
    %4617 = vmatprep.subr.mxu0 0.0
    %4618 = vmatpush1.msra.mxu0 0.0
    %4619 = vmatprep.subr.mxu0 0.0
    %4620 = vmatpush1.msra.mxu0 0.0
    %4621 = vmatprep.subr.mxu0 0.0
    %4622 = vmatpush1.msra.mxu0 0.0
    %4623 = vmatprep.subr.mxu0 0.0
    %v4624 = vand.u32 %v91, 4294901760
    %v4625 = vsub.f32 %v91, %v4624
    %v4626 = vand.u32 %v4625, 4294901760
    %4627 = vmatpush1.msra.mxu0 %v4626
    %4628 = vmatprep.subr.mxu0 0.0
    %v4629 = vand.u32 %v90, 4294901760
    %v4630 = vsub.f32 %v90, %v4629
    %v4631 = vand.u32 %v4630, 4294901760
    %4632 = vmatpush1.msra.mxu0 %v4631
    %4633 = vmatprep.subr.mxu0 0.0
    %v4634 = vand.u32 %v89, 4294901760
    %v4635 = vsub.f32 %v89, %v4634
    %v4636 = vand.u32 %v4635, 4294901760
    %4637 = vmatpush1.msra.mxu0 %v4636
    %4638 = vmatprep.subr.mxu0 0.0
    %v4639 = vand.u32 %v88, 4294901760
    %v4640 = vsub.f32 %v88, %v4639
    %v4641 = vand.u32 %v4640, 4294901760
    %4642 = vmatpush1.msra.mxu0 %v4641
    %4643 = vmatprep.subr.mxu0 0.0
    %4644 = vmatpush2.msra.mxu0 0.0
    %4645 = vmatprep.subr.mxu0 0.0
    %4646 = vmatpush2.msra.mxu0 0.0
    %4647 = vmatprep.subr.mxu0 0.0
    %4648 = vmatpush2.msra.mxu0 0.0
    %4649 = vmatprep.subr.mxu0 0.0
    %4650 = vmatpush2.msra.mxu0 0.0
    %4651 = vmatprep.subr.mxu0 0.0
    %4652 = vmatpush2.msra.mxu0 0.0
    %4653 = vmatprep.subr.mxu0 0.0
    %4654 = vmatpush2.msra.mxu0 0.0
    %4655 = vmatprep.subr.mxu0 0.0
    %4656 = vmatpush2.msra.mxu0 0.0
    %4657 = vmatprep.subr.mxu0 0.0
    %4658 = vmatpush2.msra.mxu0 0.0
    %4659 = vmatprep.subr.mxu0 0.0
    %4660 = vmatpush2.msra.mxu0 0.0
    %4661 = vmatprep.subr.mxu0 0.0
    %4662 = vmatpush2.msra.mxu0 0.0
    %4663 = vmatprep.subr.mxu0 0.0
    %4664 = vmatpush2.msra.mxu0 0.0
    %4665 = vmatprep.subr.mxu0 0.0
    %4666 = vmatpush2.msra.mxu0 0.0
    %4667 = vmatprep.subr.mxu0 0.0
    %4668 = vmatpush2.msra.mxu0 0.0
    %4669 = vmatprep.subr.mxu0 0.0
    %4670 = vmatpush2.msra.mxu0 0.0
    %4671 = vmatprep.subr.mxu0 0.0
    %4672 = vmatpush2.msra.mxu0 0.0
    %4673 = vmatprep.subr.mxu0 0.0
    %4674 = vmatpush2.msra.mxu0 0.0
    %4675 = vmatprep.mubr.f32.mxu0 0.0
    %v4676 = vand.u32 %v4270, 4294901760
    %4677 = vmatmul.mubr.f32.gmra.mxu0 %v4676
    %v4678 = vpop.f32.mrf.mxu0
    %v4679 = vadd.f32 %v4596, %v4678
    %v4680 = vpop.f32.mrf.mxu0
    %4681 = vdwg.mxu0
    %4682 = vmatprep.subr.mxu0 0.0
    %4683 = vmatpush1.msra.mxu0 0.0
    %4684 = vmatprep.subr.mxu0 0.0
    %4685 = vmatpush1.msra.mxu0 0.0
    %4686 = vmatprep.subr.mxu0 0.0
    %4687 = vmatpush1.msra.mxu0 0.0
    %4688 = vmatprep.subr.mxu0 0.0
    %4689 = vmatpush1.msra.mxu0 0.0
    %4690 = vmatprep.subr.mxu0 0.0
    %4691 = vmatpush1.msra.mxu0 0.0
    %4692 = vmatprep.subr.mxu0 0.0
    %4693 = vmatpush1.msra.mxu0 0.0
    %4694 = vmatprep.subr.mxu0 0.0
    %4695 = vmatpush1.msra.mxu0 0.0
    %4696 = vmatprep.subr.mxu0 0.0
    %4697 = vmatpush1.msra.mxu0 0.0
    %4698 = vmatprep.subr.mxu0 0.0
    %4699 = vmatpush1.msra.mxu0 0.0
    %4700 = vmatprep.subr.mxu0 0.0
    %4701 = vmatpush1.msra.mxu0 0.0
    %4702 = vmatprep.subr.mxu0 0.0
    %4703 = vmatpush1.msra.mxu0 0.0
    %4704 = vmatprep.subr.mxu0 0.0
    %4705 = vmatpush1.msra.mxu0 0.0
    %4706 = vmatprep.subr.mxu0 0.0
    %v4707 = vand.u32 %v91, 4294901760
    %4708 = vmatpush1.msra.mxu0 %v4707
    %4709 = vmatprep.subr.mxu0 0.0
    %v4710 = vand.u32 %v90, 4294901760
    %4711 = vmatpush1.msra.mxu0 %v4710
    %4712 = vmatprep.subr.mxu0 0.0
    %v4713 = vand.u32 %v89, 4294901760
    %4714 = vmatpush1.msra.mxu0 %v4713
    %4715 = vmatprep.subr.mxu0 0.0
    %v4716 = vand.u32 %v88, 4294901760
    %4717 = vmatpush1.msra.mxu0 %v4716
    %4718 = vmatprep.subr.mxu0 0.0
    %4719 = vmatpush2.msra.mxu0 0.0
    %4720 = vmatprep.subr.mxu0 0.0
    %4721 = vmatpush2.msra.mxu0 0.0
    %4722 = vmatprep.subr.mxu0 0.0
    %4723 = vmatpush2.msra.mxu0 0.0
    %4724 = vmatprep.subr.mxu0 0.0
    %4725 = vmatpush2.msra.mxu0 0.0
    %4726 = vmatprep.subr.mxu0 0.0
    %4727 = vmatpush2.msra.mxu0 0.0
    %4728 = vmatprep.subr.mxu0 0.0
    %4729 = vmatpush2.msra.mxu0 0.0
    %4730 = vmatprep.subr.mxu0 0.0
    %4731 = vmatpush2.msra.mxu0 0.0
    %4732 = vmatprep.subr.mxu0 0.0
    %4733 = vmatpush2.msra.mxu0 0.0
    %4734 = vmatprep.subr.mxu0 0.0
    %4735 = vmatpush2.msra.mxu0 0.0
    %4736 = vmatprep.subr.mxu0 0.0
    %4737 = vmatpush2.msra.mxu0 0.0
    %4738 = vmatprep.subr.mxu0 0.0
    %4739 = vmatpush2.msra.mxu0 0.0
    %4740 = vmatprep.subr.mxu0 0.0
    %4741 = vmatpush2.msra.mxu0 0.0
    %4742 = vmatprep.subr.mxu0 0.0
    %4743 = vmatpush2.msra.mxu0 0.0
    %4744 = vmatprep.subr.mxu0 0.0
    %4745 = vmatpush2.msra.mxu0 0.0
    %4746 = vmatprep.subr.mxu0 0.0
    %4747 = vmatpush2.msra.mxu0 0.0
    %4748 = vmatprep.subr.mxu0 0.0
    %4749 = vmatpush2.msra.mxu0 0.0
    %4750 = vmatprep.mubr.f32.mxu0 0.0
    %v4751 = vand.u32 %v4270, 4294901760
    %4752 = vmatmul.mubr.f32.gmra.mxu0 %v4751
    %v4753 = vpop.f32.mrf.mxu0
    %v4754 = vadd.f32 %v4679, %v4753
    %v4755 = vpop.f32.mrf.mxu0
    %4756 = vdwg.mxu0
    %4757 = vmatprep.subr.mxu0 0.0
    %4758 = vmatpush1.msra.mxu0 0.0
    %4759 = vmatprep.subr.mxu0 0.0
    %4760 = vmatpush1.msra.mxu0 0.0
    %4761 = vmatprep.subr.mxu0 0.0
    %4762 = vmatpush1.msra.mxu0 0.0
    %4763 = vmatprep.subr.mxu0 0.0
    %4764 = vmatpush1.msra.mxu0 0.0
    %4765 = vmatprep.subr.mxu0 0.0
    %4766 = vmatpush1.msra.mxu0 0.0
    %4767 = vmatprep.subr.mxu0 0.0
    %4768 = vmatpush1.msra.mxu0 0.0
    %4769 = vmatprep.subr.mxu0 0.0
    %4770 = vmatpush1.msra.mxu0 0.0
    %4771 = vmatprep.subr.mxu0 0.0
    %4772 = vmatpush1.msra.mxu0 0.0
    %4773 = vmatprep.subr.mxu0 0.0
    %4774 = vmatpush1.msra.mxu0 0.0
    %4775 = vmatprep.subr.mxu0 0.0
    %4776 = vmatpush1.msra.mxu0 0.0
    %4777 = vmatprep.subr.mxu0 0.0
    %4778 = vmatpush1.msra.mxu0 0.0
    %4779 = vmatprep.subr.mxu0 0.0
    %4780 = vmatpush1.msra.mxu0 0.0
    %4781 = vmatprep.subr.mxu0 0.0
    %v4782 = vand.u32 %v95, 4294901760
    %4783 = vmatpush1.msra.mxu0 %v4782
    %4784 = vmatprep.subr.mxu0 0.0
    %v4785 = vand.u32 %v94, 4294901760
    %4786 = vmatpush1.msra.mxu0 %v4785
    %4787 = vmatprep.subr.mxu0 0.0
    %v4788 = vand.u32 %v93, 4294901760
    %4789 = vmatpush1.msra.mxu0 %v4788
    %4790 = vmatprep.subr.mxu0 0.0
    %v4791 = vand.u32 %v92, 4294901760
    %4792 = vmatpush1.msra.mxu0 %v4791
    %4793 = vmatprep.subr.mxu0 0.0
    %4794 = vmatpush2.msra.mxu0 0.0
    %4795 = vmatprep.subr.mxu0 0.0
    %4796 = vmatpush2.msra.mxu0 0.0
    %4797 = vmatprep.subr.mxu0 0.0
    %4798 = vmatpush2.msra.mxu0 0.0
    %4799 = vmatprep.subr.mxu0 0.0
    %4800 = vmatpush2.msra.mxu0 0.0
    %4801 = vmatprep.subr.mxu0 0.0
    %4802 = vmatpush2.msra.mxu0 0.0
    %4803 = vmatprep.subr.mxu0 0.0
    %4804 = vmatpush2.msra.mxu0 0.0
    %4805 = vmatprep.subr.mxu0 0.0
    %4806 = vmatpush2.msra.mxu0 0.0
    %4807 = vmatprep.subr.mxu0 0.0
    %4808 = vmatpush2.msra.mxu0 0.0
    %4809 = vmatprep.subr.mxu0 0.0
    %4810 = vmatpush2.msra.mxu0 0.0
    %4811 = vmatprep.subr.mxu0 0.0
    %4812 = vmatpush2.msra.mxu0 0.0
    %4813 = vmatprep.subr.mxu0 0.0
    %4814 = vmatpush2.msra.mxu0 0.0
    %4815 = vmatprep.subr.mxu0 0.0
    %4816 = vmatpush2.msra.mxu0 0.0
    %4817 = vmatprep.subr.mxu0 0.0
    %4818 = vmatpush2.msra.mxu0 0.0
    %4819 = vmatprep.subr.mxu0 0.0
    %4820 = vmatpush2.msra.mxu0 0.0
    %4821 = vmatprep.subr.mxu0 0.0
    %4822 = vmatpush2.msra.mxu0 0.0
    %4823 = vmatprep.subr.mxu0 0.0
    %4824 = vmatpush2.msra.mxu0 0.0
    %4825 = vmatprep.mubr.f32.mxu0 0.0
    %v4826 = vand.u32 %v102, 4294901760
    %v4827 = vsub.f32 %v102, %v4826
    %v4828 = vand.u32 %v4827, 4294901760
    %v4829 = vsub.f32 %v4827, %v4828
    %v4830 = vand.u32 %v4829, 4294901760
    %4831 = vmatmul.mubr.f32.gmra.mxu0 %v4830
    %v4832 = vpop.f32.mrf.mxu0
    %v4833 = vadd.f32 0.0, %v4832
    %v4834 = vpop.f32.mrf.mxu0
    %4835 = vdwg.mxu0
    %4836 = vmatprep.subr.mxu0 0.0
    %4837 = vmatpush1.msra.mxu0 0.0
    %4838 = vmatprep.subr.mxu0 0.0
    %4839 = vmatpush1.msra.mxu0 0.0
    %4840 = vmatprep.subr.mxu0 0.0
    %4841 = vmatpush1.msra.mxu0 0.0
    %4842 = vmatprep.subr.mxu0 0.0
    %4843 = vmatpush1.msra.mxu0 0.0
    %4844 = vmatprep.subr.mxu0 0.0
    %4845 = vmatpush1.msra.mxu0 0.0
    %4846 = vmatprep.subr.mxu0 0.0
    %4847 = vmatpush1.msra.mxu0 0.0
    %4848 = vmatprep.subr.mxu0 0.0
    %4849 = vmatpush1.msra.mxu0 0.0
    %4850 = vmatprep.subr.mxu0 0.0
    %4851 = vmatpush1.msra.mxu0 0.0
    %4852 = vmatprep.subr.mxu0 0.0
    %4853 = vmatpush1.msra.mxu0 0.0
    %4854 = vmatprep.subr.mxu0 0.0
    %4855 = vmatpush1.msra.mxu0 0.0
    %4856 = vmatprep.subr.mxu0 0.0
    %4857 = vmatpush1.msra.mxu0 0.0
    %4858 = vmatprep.subr.mxu0 0.0
    %4859 = vmatpush1.msra.mxu0 0.0
    %4860 = vmatprep.subr.mxu0 0.0
    %v4861 = vand.u32 %v95, 4294901760
    %v4862 = vsub.f32 %v95, %v4861
    %v4863 = vand.u32 %v4862, 4294901760
    %v4864 = vsub.f32 %v4862, %v4863
    %v4865 = vand.u32 %v4864, 4294901760
    %4866 = vmatpush1.msra.mxu0 %v4865
    %4867 = vmatprep.subr.mxu0 0.0
    %v4868 = vand.u32 %v94, 4294901760
    %v4869 = vsub.f32 %v94, %v4868
    %v4870 = vand.u32 %v4869, 4294901760
    %v4871 = vsub.f32 %v4869, %v4870
    %v4872 = vand.u32 %v4871, 4294901760
    %4873 = vmatpush1.msra.mxu0 %v4872
    %4874 = vmatprep.subr.mxu0 0.0
    %v4875 = vand.u32 %v93, 4294901760
    %v4876 = vsub.f32 %v93, %v4875
    %v4877 = vand.u32 %v4876, 4294901760
    %v4878 = vsub.f32 %v4876, %v4877
    %v4879 = vand.u32 %v4878, 4294901760
    %4880 = vmatpush1.msra.mxu0 %v4879
    %4881 = vmatprep.subr.mxu0 0.0
    %v4882 = vand.u32 %v92, 4294901760
    %v4883 = vsub.f32 %v92, %v4882
    %v4884 = vand.u32 %v4883, 4294901760
    %v4885 = vsub.f32 %v4883, %v4884
    %v4886 = vand.u32 %v4885, 4294901760
    %4887 = vmatpush1.msra.mxu0 %v4886
    %4888 = vmatprep.subr.mxu0 0.0
    %4889 = vmatpush2.msra.mxu0 0.0
    %4890 = vmatprep.subr.mxu0 0.0
    %4891 = vmatpush2.msra.mxu0 0.0
    %4892 = vmatprep.subr.mxu0 0.0
    %4893 = vmatpush2.msra.mxu0 0.0
    %4894 = vmatprep.subr.mxu0 0.0
    %4895 = vmatpush2.msra.mxu0 0.0
    %4896 = vmatprep.subr.mxu0 0.0
    %4897 = vmatpush2.msra.mxu0 0.0
    %4898 = vmatprep.subr.mxu0 0.0
    %4899 = vmatpush2.msra.mxu0 0.0
    %4900 = vmatprep.subr.mxu0 0.0
    %4901 = vmatpush2.msra.mxu0 0.0
    %4902 = vmatprep.subr.mxu0 0.0
    %4903 = vmatpush2.msra.mxu0 0.0
    %4904 = vmatprep.subr.mxu0 0.0
    %4905 = vmatpush2.msra.mxu0 0.0
    %4906 = vmatprep.subr.mxu0 0.0
    %4907 = vmatpush2.msra.mxu0 0.0
    %4908 = vmatprep.subr.mxu0 0.0
    %4909 = vmatpush2.msra.mxu0 0.0
    %4910 = vmatprep.subr.mxu0 0.0
    %4911 = vmatpush2.msra.mxu0 0.0
    %4912 = vmatprep.subr.mxu0 0.0
    %4913 = vmatpush2.msra.mxu0 0.0
    %4914 = vmatprep.subr.mxu0 0.0
    %4915 = vmatpush2.msra.mxu0 0.0
    %4916 = vmatprep.subr.mxu0 0.0
    %4917 = vmatpush2.msra.mxu0 0.0
    %4918 = vmatprep.subr.mxu0 0.0
    %4919 = vmatpush2.msra.mxu0 0.0
    %4920 = vmatprep.mubr.f32.mxu0 0.0
    %v4921 = vand.u32 %v102, 4294901760
    %4922 = vmatmul.mubr.f32.gmra.mxu0 %v4921
    %v4923 = vpop.f32.mrf.mxu0
    %v4924 = vadd.f32 %v4833, %v4923
    %v4925 = vpop.f32.mrf.mxu0
    %4926 = vdwg.mxu0
    %4927 = vmatprep.subr.mxu0 0.0
    %4928 = vmatpush1.msra.mxu0 0.0
    %4929 = vmatprep.subr.mxu0 0.0
    %4930 = vmatpush1.msra.mxu0 0.0
    %4931 = vmatprep.subr.mxu0 0.0
    %4932 = vmatpush1.msra.mxu0 0.0
    %4933 = vmatprep.subr.mxu0 0.0
    %4934 = vmatpush1.msra.mxu0 0.0
    %4935 = vmatprep.subr.mxu0 0.0
    %4936 = vmatpush1.msra.mxu0 0.0
    %4937 = vmatprep.subr.mxu0 0.0
    %4938 = vmatpush1.msra.mxu0 0.0
    %4939 = vmatprep.subr.mxu0 0.0
    %4940 = vmatpush1.msra.mxu0 0.0
    %4941 = vmatprep.subr.mxu0 0.0
    %4942 = vmatpush1.msra.mxu0 0.0
    %4943 = vmatprep.subr.mxu0 0.0
    %4944 = vmatpush1.msra.mxu0 0.0
    %4945 = vmatprep.subr.mxu0 0.0
    %4946 = vmatpush1.msra.mxu0 0.0
    %4947 = vmatprep.subr.mxu0 0.0
    %4948 = vmatpush1.msra.mxu0 0.0
    %4949 = vmatprep.subr.mxu0 0.0
    %4950 = vmatpush1.msra.mxu0 0.0
    %4951 = vmatprep.subr.mxu0 0.0
    %v4952 = vand.u32 %v95, 4294901760
    %v4953 = vsub.f32 %v95, %v4952
    %4954 = vmatpush1.msra.mxu0 %v4953
    %4955 = vmatprep.subr.mxu0 0.0
    %v4956 = vand.u32 %v94, 4294901760
    %v4957 = vsub.f32 %v94, %v4956
    %4958 = vmatpush1.msra.mxu0 %v4957
    %4959 = vmatprep.subr.mxu0 0.0
    %v4960 = vand.u32 %v93, 4294901760
    %v4961 = vsub.f32 %v93, %v4960
    %4962 = vmatpush1.msra.mxu0 %v4961
    %4963 = vmatprep.subr.mxu0 0.0
    %v4964 = vand.u32 %v92, 4294901760
    %v4965 = vsub.f32 %v92, %v4964
    %4966 = vmatpush1.msra.mxu0 %v4965
    %4967 = vmatprep.subr.mxu0 0.0
    %4968 = vmatpush2.msra.mxu0 0.0
    %4969 = vmatprep.subr.mxu0 0.0
    %4970 = vmatpush2.msra.mxu0 0.0
    %4971 = vmatprep.subr.mxu0 0.0
    %4972 = vmatpush2.msra.mxu0 0.0
    %4973 = vmatprep.subr.mxu0 0.0
    %4974 = vmatpush2.msra.mxu0 0.0
    %4975 = vmatprep.subr.mxu0 0.0
    %4976 = vmatpush2.msra.mxu0 0.0
    %4977 = vmatprep.subr.mxu0 0.0
    %4978 = vmatpush2.msra.mxu0 0.0
    %4979 = vmatprep.subr.mxu0 0.0
    %4980 = vmatpush2.msra.mxu0 0.0
    %4981 = vmatprep.subr.mxu0 0.0
    %4982 = vmatpush2.msra.mxu0 0.0
    %4983 = vmatprep.subr.mxu0 0.0
    %4984 = vmatpush2.msra.mxu0 0.0
    %4985 = vmatprep.subr.mxu0 0.0
    %4986 = vmatpush2.msra.mxu0 0.0
    %4987 = vmatprep.subr.mxu0 0.0
    %4988 = vmatpush2.msra.mxu0 0.0
    %4989 = vmatprep.subr.mxu0 0.0
    %4990 = vmatpush2.msra.mxu0 0.0
    %4991 = vmatprep.subr.mxu0 0.0
    %4992 = vmatpush2.msra.mxu0 0.0
    %4993 = vmatprep.subr.mxu0 0.0
    %4994 = vmatpush2.msra.mxu0 0.0
    %4995 = vmatprep.subr.mxu0 0.0
    %4996 = vmatpush2.msra.mxu0 0.0
    %4997 = vmatprep.subr.mxu0 0.0
    %4998 = vmatpush2.msra.mxu0 0.0
    %4999 = vmatprep.mubr.f32.mxu0 0.0
    %v5000 = vand.u32 %v102, 4294901760
    %v5001 = vsub.f32 %v102, %v5000
    %5002 = vmatmul.mubr.f32.gmra.mxu0 %v5001
    %v5003 = vpop.f32.mrf.mxu0
    %v5004 = vadd.f32 %v4924, %v5003
    %v5005 = vpop.f32.mrf.mxu0
    %5006 = vdwg.mxu0
    %5007 = vmatprep.subr.mxu0 0.0
    %5008 = vmatpush1.msra.mxu0 0.0
    %5009 = vmatprep.subr.mxu0 0.0
    %5010 = vmatpush1.msra.mxu0 0.0
    %5011 = vmatprep.subr.mxu0 0.0
    %5012 = vmatpush1.msra.mxu0 0.0
    %5013 = vmatprep.subr.mxu0 0.0
    %5014 = vmatpush1.msra.mxu0 0.0
    %5015 = vmatprep.subr.mxu0 0.0
    %5016 = vmatpush1.msra.mxu0 0.0
    %5017 = vmatprep.subr.mxu0 0.0
    %5018 = vmatpush1.msra.mxu0 0.0
    %5019 = vmatprep.subr.mxu0 0.0
    %5020 = vmatpush1.msra.mxu0 0.0
    %5021 = vmatprep.subr.mxu0 0.0
    %5022 = vmatpush1.msra.mxu0 0.0
    %5023 = vmatprep.subr.mxu0 0.0
    %5024 = vmatpush1.msra.mxu0 0.0
    %5025 = vmatprep.subr.mxu0 0.0
    %5026 = vmatpush1.msra.mxu0 0.0
    %5027 = vmatprep.subr.mxu0 0.0
    %5028 = vmatpush1.msra.mxu0 0.0
    %5029 = vmatprep.subr.mxu0 0.0
    %5030 = vmatpush1.msra.mxu0 0.0
    %5031 = vmatprep.subr.mxu0 0.0
    %v5032 = vand.u32 %v95, 4294901760
    %5033 = vmatpush1.msra.mxu0 %v5032
    %5034 = vmatprep.subr.mxu0 0.0
    %v5035 = vand.u32 %v94, 4294901760
    %5036 = vmatpush1.msra.mxu0 %v5035
    %5037 = vmatprep.subr.mxu0 0.0
    %v5038 = vand.u32 %v93, 4294901760
    %5039 = vmatpush1.msra.mxu0 %v5038
    %5040 = vmatprep.subr.mxu0 0.0
    %v5041 = vand.u32 %v92, 4294901760
    %5042 = vmatpush1.msra.mxu0 %v5041
    %5043 = vmatprep.subr.mxu0 0.0
    %5044 = vmatpush2.msra.mxu0 0.0
    %5045 = vmatprep.subr.mxu0 0.0
    %5046 = vmatpush2.msra.mxu0 0.0
    %5047 = vmatprep.subr.mxu0 0.0
    %5048 = vmatpush2.msra.mxu0 0.0
    %5049 = vmatprep.subr.mxu0 0.0
    %5050 = vmatpush2.msra.mxu0 0.0
    %5051 = vmatprep.subr.mxu0 0.0
    %5052 = vmatpush2.msra.mxu0 0.0
    %5053 = vmatprep.subr.mxu0 0.0
    %5054 = vmatpush2.msra.mxu0 0.0
    %5055 = vmatprep.subr.mxu0 0.0
    %5056 = vmatpush2.msra.mxu0 0.0
    %5057 = vmatprep.subr.mxu0 0.0
    %5058 = vmatpush2.msra.mxu0 0.0
    %5059 = vmatprep.subr.mxu0 0.0
    %5060 = vmatpush2.msra.mxu0 0.0
    %5061 = vmatprep.subr.mxu0 0.0
    %5062 = vmatpush2.msra.mxu0 0.0
    %5063 = vmatprep.subr.mxu0 0.0
    %5064 = vmatpush2.msra.mxu0 0.0
    %5065 = vmatprep.subr.mxu0 0.0
    %5066 = vmatpush2.msra.mxu0 0.0
    %5067 = vmatprep.subr.mxu0 0.0
    %5068 = vmatpush2.msra.mxu0 0.0
    %5069 = vmatprep.subr.mxu0 0.0
    %5070 = vmatpush2.msra.mxu0 0.0
    %5071 = vmatprep.subr.mxu0 0.0
    %5072 = vmatpush2.msra.mxu0 0.0
    %5073 = vmatprep.subr.mxu0 0.0
    %5074 = vmatpush2.msra.mxu0 0.0
    %5075 = vmatprep.mubr.f32.mxu0 0.0
    %v5076 = vand.u32 %v102, 4294901760
    %v5077 = vsub.f32 %v102, %v5076
    %v5078 = vand.u32 %v5077, 4294901760
    %5079 = vmatmul.mubr.f32.gmra.mxu0 %v5078
    %v5080 = vpop.f32.mrf.mxu0
    %v5081 = vadd.f32 %v5004, %v5080
    %v5082 = vpop.f32.mrf.mxu0
    %5083 = vdwg.mxu0
    %5084 = vmatprep.subr.mxu0 0.0
    %5085 = vmatpush1.msra.mxu0 0.0
    %5086 = vmatprep.subr.mxu0 0.0
    %5087 = vmatpush1.msra.mxu0 0.0
    %5088 = vmatprep.subr.mxu0 0.0
    %5089 = vmatpush1.msra.mxu0 0.0
    %5090 = vmatprep.subr.mxu0 0.0
    %5091 = vmatpush1.msra.mxu0 0.0
    %5092 = vmatprep.subr.mxu0 0.0
    %5093 = vmatpush1.msra.mxu0 0.0
    %5094 = vmatprep.subr.mxu0 0.0
    %5095 = vmatpush1.msra.mxu0 0.0
    %5096 = vmatprep.subr.mxu0 0.0
    %5097 = vmatpush1.msra.mxu0 0.0
    %5098 = vmatprep.subr.mxu0 0.0
    %5099 = vmatpush1.msra.mxu0 0.0
    %5100 = vmatprep.subr.mxu0 0.0
    %5101 = vmatpush1.msra.mxu0 0.0
    %5102 = vmatprep.subr.mxu0 0.0
    %5103 = vmatpush1.msra.mxu0 0.0
    %5104 = vmatprep.subr.mxu0 0.0
    %5105 = vmatpush1.msra.mxu0 0.0
    %5106 = vmatprep.subr.mxu0 0.0
    %5107 = vmatpush1.msra.mxu0 0.0
    %5108 = vmatprep.subr.mxu0 0.0
    %v5109 = vand.u32 %v95, 4294901760
    %v5110 = vsub.f32 %v95, %v5109
    %v5111 = vand.u32 %v5110, 4294901760
    %5112 = vmatpush1.msra.mxu0 %v5111
    %5113 = vmatprep.subr.mxu0 0.0
    %v5114 = vand.u32 %v94, 4294901760
    %v5115 = vsub.f32 %v94, %v5114
    %v5116 = vand.u32 %v5115, 4294901760
    %5117 = vmatpush1.msra.mxu0 %v5116
    %5118 = vmatprep.subr.mxu0 0.0
    %v5119 = vand.u32 %v93, 4294901760
    %v5120 = vsub.f32 %v93, %v5119
    %v5121 = vand.u32 %v5120, 4294901760
    %5122 = vmatpush1.msra.mxu0 %v5121
    %5123 = vmatprep.subr.mxu0 0.0
    %v5124 = vand.u32 %v92, 4294901760
    %v5125 = vsub.f32 %v92, %v5124
    %v5126 = vand.u32 %v5125, 4294901760
    %5127 = vmatpush1.msra.mxu0 %v5126
    %5128 = vmatprep.subr.mxu0 0.0
    %5129 = vmatpush2.msra.mxu0 0.0
    %5130 = vmatprep.subr.mxu0 0.0
    %5131 = vmatpush2.msra.mxu0 0.0
    %5132 = vmatprep.subr.mxu0 0.0
    %5133 = vmatpush2.msra.mxu0 0.0
    %5134 = vmatprep.subr.mxu0 0.0
    %5135 = vmatpush2.msra.mxu0 0.0
    %5136 = vmatprep.subr.mxu0 0.0
    %5137 = vmatpush2.msra.mxu0 0.0
    %5138 = vmatprep.subr.mxu0 0.0
    %5139 = vmatpush2.msra.mxu0 0.0
    %5140 = vmatprep.subr.mxu0 0.0
    %5141 = vmatpush2.msra.mxu0 0.0
    %5142 = vmatprep.subr.mxu0 0.0
    %5143 = vmatpush2.msra.mxu0 0.0
    %5144 = vmatprep.subr.mxu0 0.0
    %5145 = vmatpush2.msra.mxu0 0.0
    %5146 = vmatprep.subr.mxu0 0.0
    %5147 = vmatpush2.msra.mxu0 0.0
    %5148 = vmatprep.subr.mxu0 0.0
    %5149 = vmatpush2.msra.mxu0 0.0
    %5150 = vmatprep.subr.mxu0 0.0
    %5151 = vmatpush2.msra.mxu0 0.0
    %5152 = vmatprep.subr.mxu0 0.0
    %5153 = vmatpush2.msra.mxu0 0.0
    %5154 = vmatprep.subr.mxu0 0.0
    %5155 = vmatpush2.msra.mxu0 0.0
    %5156 = vmatprep.subr.mxu0 0.0
    %5157 = vmatpush2.msra.mxu0 0.0
    %5158 = vmatprep.subr.mxu0 0.0
    %5159 = vmatpush2.msra.mxu0 0.0
    %5160 = vmatprep.mubr.f32.mxu0 0.0
    %v5161 = vand.u32 %v102, 4294901760
    %5162 = vmatmul.mubr.f32.gmra.mxu0 %v5161
    %v5163 = vpop.f32.mrf.mxu0
    %v5164 = vadd.f32 %v5081, %v5163
    %v5165 = vpop.f32.mrf.mxu0
    %5166 = vdwg.mxu0
    %5167 = vmatprep.subr.mxu0 0.0
    %5168 = vmatpush1.msra.mxu0 0.0
    %5169 = vmatprep.subr.mxu0 0.0
    %5170 = vmatpush1.msra.mxu0 0.0
    %5171 = vmatprep.subr.mxu0 0.0
    %5172 = vmatpush1.msra.mxu0 0.0
    %5173 = vmatprep.subr.mxu0 0.0
    %5174 = vmatpush1.msra.mxu0 0.0
    %5175 = vmatprep.subr.mxu0 0.0
    %5176 = vmatpush1.msra.mxu0 0.0
    %5177 = vmatprep.subr.mxu0 0.0
    %5178 = vmatpush1.msra.mxu0 0.0
    %5179 = vmatprep.subr.mxu0 0.0
    %5180 = vmatpush1.msra.mxu0 0.0
    %5181 = vmatprep.subr.mxu0 0.0
    %5182 = vmatpush1.msra.mxu0 0.0
    %5183 = vmatprep.subr.mxu0 0.0
    %5184 = vmatpush1.msra.mxu0 0.0
    %5185 = vmatprep.subr.mxu0 0.0
    %5186 = vmatpush1.msra.mxu0 0.0
    %5187 = vmatprep.subr.mxu0 0.0
    %5188 = vmatpush1.msra.mxu0 0.0
    %5189 = vmatprep.subr.mxu0 0.0
    %5190 = vmatpush1.msra.mxu0 0.0
    %5191 = vmatprep.subr.mxu0 0.0
    %v5192 = vand.u32 %v95, 4294901760
    %5193 = vmatpush1.msra.mxu0 %v5192
    %5194 = vmatprep.subr.mxu0 0.0
    %v5195 = vand.u32 %v94, 4294901760
    %5196 = vmatpush1.msra.mxu0 %v5195
    %5197 = vmatprep.subr.mxu0 0.0
    %v5198 = vand.u32 %v93, 4294901760
    %5199 = vmatpush1.msra.mxu0 %v5198
    %5200 = vmatprep.subr.mxu0 0.0
    %v5201 = vand.u32 %v92, 4294901760
    %5202 = vmatpush1.msra.mxu0 %v5201
    %5203 = vmatprep.subr.mxu0 0.0
    %5204 = vmatpush2.msra.mxu0 0.0
    %5205 = vmatprep.subr.mxu0 0.0
    %5206 = vmatpush2.msra.mxu0 0.0
    %5207 = vmatprep.subr.mxu0 0.0
    %5208 = vmatpush2.msra.mxu0 0.0
    %5209 = vmatprep.subr.mxu0 0.0
    %5210 = vmatpush2.msra.mxu0 0.0
    %5211 = vmatprep.subr.mxu0 0.0
    %5212 = vmatpush2.msra.mxu0 0.0
    %5213 = vmatprep.subr.mxu0 0.0
    %5214 = vmatpush2.msra.mxu0 0.0
    %5215 = vmatprep.subr.mxu0 0.0
    %5216 = vmatpush2.msra.mxu0 0.0
    %5217 = vmatprep.subr.mxu0 0.0
    %5218 = vmatpush2.msra.mxu0 0.0
    %5219 = vmatprep.subr.mxu0 0.0
    %5220 = vmatpush2.msra.mxu0 0.0
    %5221 = vmatprep.subr.mxu0 0.0
    %5222 = vmatpush2.msra.mxu0 0.0
    %5223 = vmatprep.subr.mxu0 0.0
    %5224 = vmatpush2.msra.mxu0 0.0
    %5225 = vmatprep.subr.mxu0 0.0
    %5226 = vmatpush2.msra.mxu0 0.0
    %5227 = vmatprep.subr.mxu0 0.0
    %5228 = vmatpush2.msra.mxu0 0.0
    %5229 = vmatprep.subr.mxu0 0.0
    %5230 = vmatpush2.msra.mxu0 0.0
    %5231 = vmatprep.subr.mxu0 0.0
    %5232 = vmatpush2.msra.mxu0 0.0
    %5233 = vmatprep.subr.mxu0 0.0
    %5234 = vmatpush2.msra.mxu0 0.0
    %5235 = vmatprep.mubr.f32.mxu0 0.0
    %v5236 = vand.u32 %v102, 4294901760
    %5237 = vmatmul.mubr.f32.gmra.mxu0 %v5236
    %v5238 = vpop.f32.mrf.mxu0
    %v5239 = vadd.f32 %v5164, %v5238
    %v5240 = vpop.f32.mrf.mxu0
    %5241 = vdwg.mxu0
    %v5242 = vadd.f32 %v4754, %v5239
    %v5243 = vxor.u32 %v5242, 2147483648
    %v5244 = vmul.f32 %v5243, 1.442695
    %v5245 = vpow.pop %v5244
    %v5246 = vadd.f32 %v5245, 1.0
    %v5247 = vrcp.pop %v5246
    %v5248 = vmul.f32 1.0, %v5247
    %v5250 = vlaneseq
    %v5251 = vshrl.u32 %v5250, 7
    %v5252 = vsub.s32 0, %v5251
    %v5253 = vrot.slane %v97, %v5252
    %5254 = vrot.lane.b32.xlu0 %v5253, 64
    %v5255 = vpop.permute.xlu0 %5254
    %v5257 = vadd.f32 %v5239, %v5255
    %5259 = vrot.lane.b32.xlu0 %v5257, 64
    %v5260 = vpop.permute.xlu0 %5259
    %v5262 = vmul.f32 %v5248, %v5260
    %5264 = vrot.lane.b32.xlu0 %v5262, 64
    %v5265 = vpop.permute.xlu0 %5264
    %v5267 = vadd.f32 %v4754, %v5265
    %v5268 = vtanh.pop %v5267
    %v5269 = vsub.f32 1.0, %v5248
    %5271 = vrot.lane.b32.xlu0 %v5268, 96
    %v5272 = vpop.permute.xlu0 %5271
    %v5274 = vmul.f32 %v5269, %v5272
    %5275 = vrot.lane.b32.xlu0 %v98, 32
    %v5276 = vpop.permute.xlu0 %5275
    %v5278 = vmul.f32 %v5248, %v5276
    %v5279 = vadd.f32 %v5274, %v5278
    %5281 = vrot.lane.b32.xlu0 %v5279, 96
    %v5282 = vpop.permute.xlu0 %5281
    %5284 = vst.msk [vmem:[#allocation9] sm:$0xff] %vm100, %v5282
    %5285 = vst.msk [vmem:[#allocation2] sm:$0xff] %vm100, %v5282
    // Predicated region
    $region50: #{tpu_custom_call.1} parent=1 // pred_check
      _
    $region51: #{tpu_custom_call.1} parent=1 // pred_check_branch
      %5287 = sbr.rel (0) target = $region53
    $region52: #{tpu_custom_call.1} parent=1 // pred_region
      %s5289 = ssub.s32 128, 128
      %5290 = vsyncadd [#allocation5], %s5289
      %s5292 = sshll.u32 [#allocation9], 4
      %s5293 = int_to_ptr.vmem [resolvable:$true] %s5292
      %5295 = dma.vmem_to_hbm [thread:$0]  %s5293, 128, %s8, [#allocation5]
    $region53: #{tpu_custom_call.1} parent=1 // pred_fallthru
      _
    // Predicated region
    $region54: #{tpu_custom_call.1} parent=1 // pred_check
      _
    $region55: #{tpu_custom_call.1} parent=1 // pred_check_branch
      %5297 = sbr.rel (0) target = $region57
    $region56: #{tpu_custom_call.1} parent=1 // pred_region
      %5298 = dma.done [#allocation5], 128
    $region57: #{tpu_custom_call.1} parent=1 // pred_fallthru
      _
    %5299 = vsyncpa [#allocation4], 1
    %5300 = vsyncpa [#allocation7], 1
    %5301 = vsyncpa [#allocation5], 1

// kernel: tpu_custom_call.1
$region0: #{tpu_custom_call.1}
  #allocation0 [shape = 'u32[]', space=smem, size = 0x4, offset = 0x4, fixed_abs, tag = 'smem constant byte address 0x4 - core index']
  #allocation1 [shape = 'u32[144,128]{1,0:T(1,128)}', space=vmem, size = 0x12000, scoped, tag = 'internal scratch']
  #allocation2 [shape = 'f32[8,32]{1,0:T(8,128)}', space=vmem, size = 0x1000, scoped, tag = 'scratch operand']
  %s0 = inlined_call_operand.vmem [shape: f32[8,32], index: 0, kind: input, shape index: {}]
  %s1 = inlined_call_operand.hbm [shape: f32[1,8,8], index: 1, kind: input, shape index: {}]
  %s2 = inlined_call_operand.hbm [shape: f32[8,8,32], index: 2, kind: input, shape index: {}]
  %s3 = inlined_call_operand.vmem [shape: f32[32,8], index: 3, kind: input, shape index: {}]
  %s4 = inlined_call_operand.vmem [shape: f32[32,96], index: 4, kind: input, shape index: {}]
  %s5 = inlined_call_operand.hbm [shape: f32[32,96], index: 5, kind: input, shape index: {}]
  %s6 = inlined_call_operand.vmem [shape: f32[1,96], index: 6, kind: input, shape index: {}]
  %s7 = inlined_call_operand.vmem [shape: f32[1,32], index: 7, kind: input, shape index: {}]
  %s8 = inlined_call_operand.hbm [shape: f32[1,8,32], index: 8, kind: output, shape index: {}]
  %s9 = sld [smem:[#allocation0]]
  $region58: #{tpu_custom_call.1} parent=0
    _
  %s11 = ssub.s32 1, %s9
  %s12 = scalar_select 0, %s11, %s9
  $region1: #{tpu_custom_call.1} parent=0
    #allocation3 [shape = 'u8[4096]{0}', space=vmem, size = 0x1000, scoped, tag = 'input window, operand 1, single buffered']
    #allocation4 [shape = 's32[1]{0}', space=sflag, size = 0x4, scoped, tag = 'scoped memory for tpu_custom_call.1']
    #allocation5 [shape = 's32[1]{0}', space=sflag, size = 0x4, scoped, tag = 'scoped memory for tpu_custom_call.1']
    #allocation6 [shape = 'u8[32768]{0}', space=vmem, size = 0x8000, scoped, tag = 'input window, operand 2, single buffered']
    #allocation7 [shape = 's32[1]{0}', space=sflag, size = 0x4, scoped, tag = 'scoped memory for tpu_custom_call.1']
    #allocation8 [shape = 'u8[16384]{0}', space=vmem, size = 0x4000, scoped, tag = 'input window, operand 5, single buffered']
    #allocation9 [shape = 'u8[4096]{0}', space=vmem, size = 0x1000, scoped, tag = 'output window, operand 0, single buffered']
    %13 = vsyncpa [#allocation4], 0
    %14 = vsyncpa [#allocation7], 0
    %15 = vsyncpa [#allocation5], 0
    // Predicated region
    $region2: #{tpu_custom_call.1} parent=1 // pred_check
      _
    $region3: #{tpu_custom_call.1} parent=1 // pred_check_branch
      %17 = sbr.rel (0) target = $region5
    $region4: #{tpu_custom_call.1} parent=1 // pred_region
      _
    $region5: #{tpu_custom_call.1} parent=1 // pred_fallthru
      _
    // Predicated region
    $region6: #{tpu_custom_call.1} parent=1 // pred_check
      _
    $region7: #{tpu_custom_call.1} parent=1 // pred_check_branch
      %19 = sbr.rel (0) target = $region9
    $region8: #{tpu_custom_call.1} parent=1 // pred_region
      %s21 = ssub.s32 128, 128
      %22 = vsyncadd [#allocation4], %s21
      %s24 = sshll.u32 [#allocation3], 4
      %s25 = int_to_ptr.vmem [resolvable:$true] %s24
      %27 = dma.hbm_to_vmem [thread:$0]  %s1, 128, %s25, [#allocation4]
    $region9: #{tpu_custom_call.1} parent=1 // pred_fallthru
      _
    // Predicated region
    $region10: #{tpu_custom_call.1} parent=1 // pred_check
      _
    $region11: #{tpu_custom_call.1} parent=1 // pred_check_branch
      %29 = sbr.rel (0) target = $region13
    $region12: #{tpu_custom_call.1} parent=1 // pred_region
      %s31 = ssub.s32 1024, 1024
      %32 = vsyncadd [#allocation7], %s31
      %s33 = sshll.u32 [#allocation6], 4
      %s34 = int_to_ptr.vmem [resolvable:$true] %s33
      %39 = dma.hbm_to_vmem [thread:$0]  %s2, 1024, %s34, [#allocation7], 128, 128, 8
    $region13: #{tpu_custom_call.1} parent=1 // pred_fallthru
      _
    // Predicated region
    $region14: #{tpu_custom_call.1} parent=1 // pred_check
      _
    $region15: #{tpu_custom_call.1} parent=1 // pred_check_branch
      %41 = sbr.rel (0) target = $region17
    $region16: #{tpu_custom_call.1} parent=1 // pred_region
      _
    $region17: #{tpu_custom_call.1} parent=1 // pred_fallthru
      _
    // Predicated region
    $region18: #{tpu_custom_call.1} parent=1 // pred_check
      _
    $region19: #{tpu_custom_call.1} parent=1 // pred_check_branch
      %43 = sbr.rel (0) target = $region21
    $region20: #{tpu_custom_call.1} parent=1 // pred_region
      _
    $region21: #{tpu_custom_call.1} parent=1 // pred_fallthru
      _
    // Predicated region
    $region22: #{tpu_custom_call.1} parent=1 // pred_check
      _
    $region23: #{tpu_custom_call.1} parent=1 // pred_check_branch
      %45 = sbr.rel (0) target = $region25
    $region24: #{tpu_custom_call.1} parent=1 // pred_region
      %s47 = ssub.s32 512, 512
      %48 = vsyncadd [#allocation7], %s47
      %s49 = sshll.u32 [#allocation8], 4
      %s50 = int_to_ptr.vmem [resolvable:$true] %s49
      %55 = dma.hbm_to_vmem [thread:$0]  %s5, 512, %s50, [#allocation7], 128, 128, 8
    $region25: #{tpu_custom_call.1} parent=1 // pred_fallthru
      _
    // Predicated region
    $region26: #{tpu_custom_call.1} parent=1 // pred_check
      _
    $region27: #{tpu_custom_call.1} parent=1 // pred_check_branch
      %57 = sbr.rel (0) target = $region29
    $region28: #{tpu_custom_call.1} parent=1 // pred_region
      _
    $region29: #{tpu_custom_call.1} parent=1 // pred_fallthru
      _
    // Predicated region
    $region30: #{tpu_custom_call.1} parent=1 // pred_check
      _
    $region31: #{tpu_custom_call.1} parent=1 // pred_check_branch
      %59 = sbr.rel (0) target = $region33
    $region32: #{tpu_custom_call.1} parent=1 // pred_region
      _
    $region33: #{tpu_custom_call.1} parent=1 // pred_fallthru
      _
    // Predicated region
    $region34: #{tpu_custom_call.1} parent=1 // pred_check
      _
    $region35: #{tpu_custom_call.1} parent=1 // pred_check_branch
      %61 = sbr.rel (0) target = $region37
    $region36: #{tpu_custom_call.1} parent=1 // pred_region
      %62 = dma.done [#allocation4], 128
    $region37: #{tpu_custom_call.1} parent=1 // pred_fallthru
      _
    // Predicated region
    $region38: #{tpu_custom_call.1} parent=1 // pred_check
      _
    $region39: #{tpu_custom_call.1} parent=1 // pred_check_branch
      %64 = sbr.rel (0) target = $region41
    $region40: #{tpu_custom_call.1} parent=1 // pred_region
      %65 = dma.done [#allocation7], 1024
    $region41: #{tpu_custom_call.1} parent=1 // pred_fallthru
      _
    // Predicated region
    $region42: #{tpu_custom_call.1} parent=1 // pred_check
      _
    $region43: #{tpu_custom_call.1} parent=1 // pred_check_branch
      %67 = sbr.rel (0) target = $region45
    $region44: #{tpu_custom_call.1} parent=1 // pred_region
      %68 = dma.done [#allocation7], 512
    $region45: #{tpu_custom_call.1} parent=1 // pred_fallthru
      _
    %p69 = scmp.eq.s32.totalorder 0, 0
    // Predicated region
    $region46: #{tpu_custom_call.1} parent=1 // pred_check
      %p70 = pneg %p69
    $region47: #{tpu_custom_call.1} parent=1 // pred_check_branch
      %72 = sbr.rel (%p70) target = $region49
    $region48: #{tpu_custom_call.1} parent=1 // pred_region
      %v73 = vld [vmem:[%s0] sm:$0xff]
      %vm74 = vcmask 261120
      %75 = vst.msk [vmem:[#allocation2] sm:$0xff] %vm74, %v73
    $region49: #{tpu_custom_call.1} parent=1 // pred_fallthru
      _
    %v76 = vld [vmem:[#allocation6] sm:$0xff]
    %v77 = vld [vmem:[#allocation6 + $0x8] sm:$0xff]
    %v78 = vld [vmem:[#allocation6 + $0x10] sm:$0xff]
    %v79 = vld [vmem:[#allocation6 + $0x18] sm:$0xff]
    %v80 = vld [vmem:[#allocation6 + $0x20] sm:$0xff]
    %v81 = vld [vmem:[#allocation6 + $0x28] sm:$0xff]
    %v82 = vld [vmem:[#allocation6 + $0x30] sm:$0xff]
    %v83 = vld [vmem:[#allocation6 + $0x38] sm:$0xff]
    %v84 = vld [vmem:[%s3] sm:$0xff]
    %v85 = vld [vmem:[%s3 + $0x8] sm:$0xff]
    %v86 = vld [vmem:[%s3 + $0x10] sm:$0xff]
    %v87 = vld [vmem:[%s3 + $0x18] sm:$0xff]
    %v88 = vld [vmem:[%s4] sm:$0xff]
    %v89 = vld [vmem:[%s4 + $0x8] sm:$0xff]
    %v90 = vld [vmem:[%s4 + $0x10] sm:$0xff]
    %v91 = vld [vmem:[%s4 + $0x18] sm:$0xff]
    %v92 = vld [vmem:[#allocation8] sm:$0xff]
    %v93 = vld [vmem:[#allocation8 + $0x8] sm:$0xff]
    %v94 = vld [vmem:[#allocation8 + $0x10] sm:$0xff]
    %v95 = vld [vmem:[#allocation8 + $0x18] sm:$0xff]
    %v96 = vld [vmem:[%s6] sm:$0x1]
    %v97 = vld [vmem:[%s7] sm:$0x1]
    %v98 = vld [vmem:[#allocation2] sm:$0xff]
    %v99 = vld [vmem:[#allocation3] sm:$0xff]
    %vm100 = vcmask 261120
    %v102 = vsel %vm100, %v98, 0
    %104 = vmatprep.subr.mxu0 0.0
    %105 = vmatpush1.msra.mxu0 0.0
    %106 = vmatprep.subr.mxu0 0.0
    %107 = vmatpush1.msra.mxu0 0.0
    %108 = vmatprep.subr.mxu0 0.0
    %109 = vmatpush1.msra.mxu0 0.0
    %110 = vmatprep.subr.mxu0 0.0
    %111 = vmatpush1.msra.mxu0 0.0
    %112 = vmatprep.subr.mxu0 0.0
    %113 = vmatpush1.msra.mxu0 0.0
    %114 = vmatprep.subr.mxu0 0.0
    %115 = vmatpush1.msra.mxu0 0.0
    %116 = vmatprep.subr.mxu0 0.0
    %117 = vmatpush1.msra.mxu0 0.0
    %118 = vmatprep.subr.mxu0 0.0
    %119 = vmatpush1.msra.mxu0 0.0
    %120 = vmatprep.subr.mxu0 0.0
    %121 = vmatpush1.msra.mxu0 0.0
    %122 = vmatprep.subr.mxu0 0.0
    %123 = vmatpush1.msra.mxu0 0.0
    %124 = vmatprep.subr.mxu0 0.0
    %125 = vmatpush1.msra.mxu0 0.0
    %126 = vmatprep.subr.mxu0 0.0
    %127 = vmatpush1.msra.mxu0 0.0
    %128 = vmatprep.subr.mxu0 0.0
    %v129 = vand.u32 %v87, 4294901760
    %130 = vmatpush1.msra.mxu0 %v129
    %131 = vmatprep.subr.mxu0 0.0
    %v132 = vand.u32 %v86, 4294901760
    %133 = vmatpush1.msra.mxu0 %v132
    %134 = vmatprep.subr.mxu0 0.0
    %v135 = vand.u32 %v85, 4294901760
    %136 = vmatpush1.msra.mxu0 %v135
    %137 = vmatprep.subr.mxu0 0.0
    %v138 = vand.u32 %v84, 4294901760
    %139 = vmatpush1.msra.mxu0 %v138
    %140 = vmatprep.subr.mxu0 0.0
    %141 = vmatpush2.msra.mxu0 0.0
    %142 = vmatprep.subr.mxu0 0.0
    %143 = vmatpush2.msra.mxu0 0.0
    %144 = vmatprep.subr.mxu0 0.0
    %145 = vmatpush2.msra.mxu0 0.0
    %146 = vmatprep.subr.mxu0 0.0
    %147 = vmatpush2.msra.mxu0 0.0
    %148 = vmatprep.subr.mxu0 0.0
    %149 = vmatpush2.msra.mxu0 0.0
    %150 = vmatprep.subr.mxu0 0.0
    %151 = vmatpush2.msra.mxu0 0.0
    %152 = vmatprep.subr.mxu0 0.0
    %153 = vmatpush2.msra.mxu0 0.0
    %154 = vmatprep.subr.mxu0 0.0
    %155 = vmatpush2.msra.mxu0 0.0
    %156 = vmatprep.subr.mxu0 0.0
    %157 = vmatpush2.msra.mxu0 0.0
    %158 = vmatprep.subr.mxu0 0.0
    %159 = vmatpush2.msra.mxu0 0.0
    %160 = vmatprep.subr.mxu0 0.0
    %161 = vmatpush2.msra.mxu0 0.0
    %162 = vmatprep.subr.mxu0 0.0
    %163 = vmatpush2.msra.mxu0 0.0
    %164 = vmatprep.subr.mxu0 0.0
    %165 = vmatpush2.msra.mxu0 0.0
    %166 = vmatprep.subr.mxu0 0.0
    %167 = vmatpush2.msra.mxu0 0.0
    %168 = vmatprep.subr.mxu0 0.0
    %169 = vmatpush2.msra.mxu0 0.0
    %170 = vmatprep.subr.mxu0 0.0
    %171 = vmatpush2.msra.mxu0 0.0
    %172 = vmatprep.mubr.f32.mxu0 0.0
    %v173 = vand.u32 %v102, 4294901760
    %v174 = vsub.f32 %v102, %v173
    %v175 = vand.u32 %v174, 4294901760
    %v176 = vsub.f32 %v174, %v175
    %v177 = vand.u32 %v176, 4294901760
    %178 = vmatmul.mubr.f32.gmra.mxu0 %v177
    %v179 = vpop.f32.mrf.mxu0
    %v180 = vadd.f32 %v99, %v179
    %v181 = vpop.f32.mrf.mxu0
    %182 = vdwg.mxu0
    %183 = vmatprep.subr.mxu0 0.0
    %184 = vmatpush1.msra.mxu0 0.0
    %185 = vmatprep.subr.mxu0 0.0
    %186 = vmatpush1.msra.mxu0 0.0
    %187 = vmatprep.subr.mxu0 0.0
    %188 = vmatpush1.msra.mxu0 0.0
    %189 = vmatprep.subr.mxu0 0.0
    %190 = vmatpush1.msra.mxu0 0.0
    %191 = vmatprep.subr.mxu0 0.0
    %192 = vmatpush1.msra.mxu0 0.0
    %193 = vmatprep.subr.mxu0 0.0
    %194 = vmatpush1.msra.mxu0 0.0
    %195 = vmatprep.subr.mxu0 0.0
    %196 = vmatpush1.msra.mxu0 0.0
    %197 = vmatprep.subr.mxu0 0.0
    %198 = vmatpush1.msra.mxu0 0.0
    %199 = vmatprep.subr.mxu0 0.0
    %200 = vmatpush1.msra.mxu0 0.0
    %201 = vmatprep.subr.mxu0 0.0
    %202 = vmatpush1.msra.mxu0 0.0
    %203 = vmatprep.subr.mxu0 0.0
    %204 = vmatpush1.msra.mxu0 0.0
    %205 = vmatprep.subr.mxu0 0.0
    %206 = vmatpush1.msra.mxu0 0.0
    %207 = vmatprep.subr.mxu0 0.0
    %v208 = vand.u32 %v87, 4294901760
    %v209 = vsub.f32 %v87, %v208
    %v210 = vand.u32 %v209, 4294901760
    %v211 = vsub.f32 %v209, %v210
    %v212 = vand.u32 %v211, 4294901760
    %213 = vmatpush1.msra.mxu0 %v212
    %214 = vmatprep.subr.mxu0 0.0
    %v215 = vand.u32 %v86, 4294901760
    %v216 = vsub.f32 %v86, %v215
    %v217 = vand.u32 %v216, 4294901760
    %v218 = vsub.f32 %v216, %v217
    %v219 = vand.u32 %v218, 4294901760
    %220 = vmatpush1.msra.mxu0 %v219
    %221 = vmatprep.subr.mxu0 0.0
    %v222 = vand.u32 %v85, 4294901760
    %v223 = vsub.f32 %v85, %v222
    %v224 = vand.u32 %v223, 4294901760
    %v225 = vsub.f32 %v223, %v224
    %v226 = vand.u32 %v225, 4294901760
    %227 = vmatpush1.msra.mxu0 %v226
    %228 = vmatprep.subr.mxu0 0.0
    %v229 = vand.u32 %v84, 4294901760
    %v230 = vsub.f32 %v84, %v229
    %v231 = vand.u32 %v230, 4294901760
    %v232 = vsub.f32 %v230, %v231
    %v233 = vand.u32 %v232, 4294901760
    %234 = vmatpush1.msra.mxu0 %v233
    %235 = vmatprep.subr.mxu0 0.0
    %236 = vmatpush2.msra.mxu0 0.0
    %237 = vmatprep.subr.mxu0 0.0
    %238 = vmatpush2.msra.mxu0 0.0
    %239 = vmatprep.subr.mxu0 0.0
    %240 = vmatpush2.msra.mxu0 0.0
    %241 = vmatprep.subr.mxu0 0.0
    %242 = vmatpush2.msra.mxu0 0.0
    %243 = vmatprep.subr.mxu0 0.0
    %244 = vmatpush2.msra.mxu0 0.0
    %245 = vmatprep.subr.mxu0 0.0
    %246 = vmatpush2.msra.mxu0 0.0
    %247 = vmatprep.subr.mxu0 0.0
    %248 = vmatpush2.msra.mxu0 0.0
    %249 = vmatprep.subr.mxu0 0.0
    %250 = vmatpush2.msra.mxu0 0.0
    %251 = vmatprep.subr.mxu0 0.0
    %252 = vmatpush2.msra.mxu0 0.0
    %253 = vmatprep.subr.mxu0 0.0
    %254 = vmatpush2.msra.mxu0 0.0
    %255 = vmatprep.subr.mxu0 0.0
    %256 = vmatpush2.msra.mxu0 0.0
    %257 = vmatprep.subr.mxu0 0.0
    %258 = vmatpush2.msra.mxu0 0.0
    %259 = vmatprep.subr.mxu0 0.0
    %260 = vmatpush2.msra.mxu0 0.0
    %261 = vmatprep.subr.mxu0 0.0
    %262 = vmatpush2.msra.mxu0 0.0
    %263 = vmatprep.subr.mxu0 0.0
    %264 = vmatpush2.msra.mxu0 0.0
    %265 = vmatprep.subr.mxu0 0.0
    %266 = vmatpush2.msra.mxu0 0.0
    %267 = vmatprep.mubr.f32.mxu0 0.0
    %v268 = vand.u32 %v102, 4294901760
    %269 = vmatmul.mubr.f32.gmra.mxu0 %v268
    %v270 = vpop.f32.mrf.mxu0
    %v271 = vadd.f32 %v180, %v270
    %v272 = vpop.f32.mrf.mxu0
    %273 = vdwg.mxu0
    %274 = vmatprep.subr.mxu0 0.0
    %275 = vmatpush1.msra.mxu0 0.0
    %276 = vmatprep.subr.mxu0 0.0
    %277 = vmatpush1.msra.mxu0 0.0
    %278 = vmatprep.subr.mxu0 0.0
    %279 = vmatpush1.msra.mxu0 0.0
    %280 = vmatprep.subr.mxu0 0.0
    %281 = vmatpush1.msra.mxu0 0.0
    %282 = vmatprep.subr.mxu0 0.0
    %283 = vmatpush1.msra.mxu0 0.0
    %284 = vmatprep.subr.mxu0 0.0
    %285 = vmatpush1.msra.mxu0 0.0
    %286 = vmatprep.subr.mxu0 0.0
    %287 = vmatpush1.msra.mxu0 0.0
    %288 = vmatprep.subr.mxu0 0.0
    %289 = vmatpush1.msra.mxu0 0.0
    %290 = vmatprep.subr.mxu0 0.0
    %291 = vmatpush1.msra.mxu0 0.0
    %292 = vmatprep.subr.mxu0 0.0
    %293 = vmatpush1.msra.mxu0 0.0
    %294 = vmatprep.subr.mxu0 0.0
    %295 = vmatpush1.msra.mxu0 0.0
    %296 = vmatprep.subr.mxu0 0.0
    %297 = vmatpush1.msra.mxu0 0.0
    %298 = vmatprep.subr.mxu0 0.0
    %v299 = vand.u32 %v87, 4294901760
    %v300 = vsub.f32 %v87, %v299
    %301 = vmatpush1.msra.mxu0 %v300
    %302 = vmatprep.subr.mxu0 0.0
    %v303 = vand.u32 %v86, 4294901760
    %v304 = vsub.f32 %v86, %v303
    %305 = vmatpush1.msra.mxu0 %v304
    %306 = vmatprep.subr.mxu0 0.0
    %v307 = vand.u32 %v85, 4294901760
    %v308 = vsub.f32 %v85, %v307
    %309 = vmatpush1.msra.mxu0 %v308
    %310 = vmatprep.subr.mxu0 0.0
    %v311 = vand.u32 %v84, 4294901760
    %v312 = vsub.f32 %v84, %v311
    %313 = vmatpush1.msra.mxu0 %v312
    %314 = vmatprep.subr.mxu0 0.0
    %315 = vmatpush2.msra.mxu0 0.0
    %316 = vmatprep.subr.mxu0 0.0
    %317 = vmatpush2.msra.mxu0 0.0
    %318 = vmatprep.subr.mxu0 0.0
    %319 = vmatpush2.msra.mxu0 0.0
    %320 = vmatprep.subr.mxu0 0.0
    %321 = vmatpush2.msra.mxu0 0.0
    %322 = vmatprep.subr.mxu0 0.0
    %323 = vmatpush2.msra.mxu0 0.0
    %324 = vmatprep.subr.mxu0 0.0
    %325 = vmatpush2.msra.mxu0 0.0
    %326 = vmatprep.subr.mxu0 0.0
    %327 = vmatpush2.msra.mxu0 0.0
    %328 = vmatprep.subr.mxu0 0.0
    %329 = vmatpush2.msra.mxu0 0.0
    %330 = vmatprep.subr.mxu0 0.0
    %331 = vmatpush2.msra.mxu0 0.0
    %332 = vmatprep.subr.mxu0 0.0
    %333 = vmatpush2.msra.mxu0 0.0
    %334 = vmatprep.subr.mxu0 0.0
    %335 = vmatpush2.msra.mxu0 0.0
    %336 = vmatprep.subr.mxu0 0.0
    %337 = vmatpush2.msra.mxu0 0.0
    %338 = vmatprep.subr.mxu0 0.0
    %339 = vmatpush2.msra.mxu0 0.0
    %340 = vmatprep.subr.mxu0 0.0
    %341 = vmatpush2.msra.mxu0 0.0
    %342 = vmatprep.subr.mxu0 0.0
    %343 = vmatpush2.msra.mxu0 0.0
    %344 = vmatprep.subr.mxu0 0.0
    %345 = vmatpush2.msra.mxu0 0.0
    %346 = vmatprep.mubr.f32.mxu0 0.0
    %v347 = vand.u32 %v102, 4294901760
    %v348 = vsub.f32 %v102, %v347
    %349 = vmatmul.mubr.f32.gmra.mxu0 %v348
    %v350 = vpop.f32.mrf.mxu0
    %v351 = vadd.f32 %v271, %v350
    %v352 = vpop.f32.mrf.mxu0
    %353 = vdwg.mxu0
    %354 = vmatprep.subr.mxu0 0.0
    %355 = vmatpush1.msra.mxu0 0.0
    %356 = vmatprep.subr.mxu0 0.0
    %357 = vmatpush1.msra.mxu0 0.0
    %358 = vmatprep.subr.mxu0 0.0
    %359 = vmatpush1.msra.mxu0 0.0
    %360 = vmatprep.subr.mxu0 0.0
    %361 = vmatpush1.msra.mxu0 0.0
    %362 = vmatprep.subr.mxu0 0.0
    %363 = vmatpush1.msra.mxu0 0.0
    %364 = vmatprep.subr.mxu0 0.0
    %365 = vmatpush1.msra.mxu0 0.0
    %366 = vmatprep.subr.mxu0 0.0
    %367 = vmatpush1.msra.mxu0 0.0
    %368 = vmatprep.subr.mxu0 0.0
    %369 = vmatpush1.msra.mxu0 0.0
    %370 = vmatprep.subr.mxu0 0.0
    %371 = vmatpush1.msra.mxu0 0.0
    %372 = vmatprep.subr.mxu0 0.0
    %373 = vmatpush1.msra.mxu0 0.0
    %374 = vmatprep.subr.mxu0 0.0
    %375 = vmatpush1.msra.mxu0 0.0
    %376 = vmatprep.subr.mxu0 0.0
    %377 = vmatpush1.msra.mxu0 0.0
    %378 = vmatprep.subr.mxu0 0.0
    %v379 = vand.u32 %v87, 4294901760
    %380 = vmatpush1.msra.mxu0 %v379
    %381 = vmatprep.subr.mxu0 0.0
    %v382 = vand.u32 %v86, 4294901760
    %383 = vmatpush1.msra.mxu0 %v382
    %384 = vmatprep.subr.mxu0 0.0
    %v385 = vand.u32 %v85, 4294901760
    %386 = vmatpush1.msra.mxu0 %v385
    %387 = vmatprep.subr.mxu0 0.0
    %v388 = vand.u32 %v84, 4294901760
    %389 = vmatpush1.msra.mxu0 %v388
    %390 = vmatprep.subr.mxu0 0.0
    %391 = vmatpush2.msra.mxu0 0.0
    %392 = vmatprep.subr.mxu0 0.0
    %393 = vmatpush2.msra.mxu0 0.0
    %394 = vmatprep.subr.mxu0 0.0
    %395 = vmatpush2.msra.mxu0 0.0
    %396 = vmatprep.subr.mxu0 0.0
    %397 = vmatpush2.msra.mxu0 0.0
    %398 = vmatprep.subr.mxu0 0.0
    %399 = vmatpush2.msra.mxu0 0.0
    %400 = vmatprep.subr.mxu0 0.0
    %401 = vmatpush2.msra.mxu0 0.0
    %402 = vmatprep.subr.mxu0 0.0
    %403 = vmatpush2.msra.mxu0 0.0
    %404 = vmatprep.subr.mxu0 0.0
    %405 = vmatpush2.msra.mxu0 0.0
    %406 = vmatprep.subr.mxu0 0.0
    %407 = vmatpush2.msra.mxu0 0.0
    %408 = vmatprep.subr.mxu0 0.0
    %409 = vmatpush2.msra.mxu0 0.0
    %410 = vmatprep.subr.mxu0 0.0
    %411 = vmatpush2.msra.mxu0 0.0
    %412 = vmatprep.subr.mxu0 0.0
    %413 = vmatpush2.msra.mxu0 0.0
    %414 = vmatprep.subr.mxu0 0.0
    %415 = vmatpush2.msra.mxu0 0.0
    %416 = vmatprep.subr.mxu0 0.0
    %417 = vmatpush2.msra.mxu0 0.0
    %418 = vmatprep.subr.mxu0 0.0
    %419 = vmatpush2.msra.mxu0 0.0
    %420 = vmatprep.subr.mxu0 0.0
    %421 = vmatpush2.msra.mxu0 0.0
    %422 = vmatprep.mubr.f32.mxu0 0.0
    %v423 = vand.u32 %v102, 4294901760
    %v424 = vsub.f32 %v102, %v423
    %v425 = vand.u32 %v424, 4294901760
    %426 = vmatmul.mubr.f32.gmra.mxu0 %v425
    %v427 = vpop.f32.mrf.mxu0
    %v428 = vadd.f32 %v351, %v427
    %v429 = vpop.f32.mrf.mxu0
    %430 = vdwg.mxu0
    %431 = vmatprep.subr.mxu0 0.0
    %432 = vmatpush1.msra.mxu0 0.0
    %433 = vmatprep.subr.mxu0 0.0
    %434 = vmatpush1.msra.mxu0 0.0
    %435 = vmatprep.subr.mxu0 0.0
    %436 = vmatpush1.msra.mxu0 0.0
    %437 = vmatprep.subr.mxu0 0.0
    %438 = vmatpush1.msra.mxu0 0.0
    %439 = vmatprep.subr.mxu0 0.0
    %440 = vmatpush1.msra.mxu0 0.0
    %441 = vmatprep.subr.mxu0 0.0
    %442 = vmatpush1.msra.mxu0 0.0
    %443 = vmatprep.subr.mxu0 0.0
    %444 = vmatpush1.msra.mxu0 0.0
    %445 = vmatprep.subr.mxu0 0.0
    %446 = vmatpush1.msra.mxu0 0.0
    %447 = vmatprep.subr.mxu0 0.0
    %448 = vmatpush1.msra.mxu0 0.0
    %449 = vmatprep.subr.mxu0 0.0
    %450 = vmatpush1.msra.mxu0 0.0
    %451 = vmatprep.subr.mxu0 0.0
    %452 = vmatpush1.msra.mxu0 0.0
    %453 = vmatprep.subr.mxu0 0.0
    %454 = vmatpush1.msra.mxu0 0.0
    %455 = vmatprep.subr.mxu0 0.0
    %v456 = vand.u32 %v87, 4294901760
    %v457 = vsub.f32 %v87, %v456
    %v458 = vand.u32 %v457, 4294901760
    %459 = vmatpush1.msra.mxu0 %v458
    %460 = vmatprep.subr.mxu0 0.0
    %v461 = vand.u32 %v86, 4294901760
    %v462 = vsub.f32 %v86, %v461
    %v463 = vand.u32 %v462, 4294901760
    %464 = vmatpush1.msra.mxu0 %v463
    %465 = vmatprep.subr.mxu0 0.0
    %v466 = vand.u32 %v85, 4294901760
    %v467 = vsub.f32 %v85, %v466
    %v468 = vand.u32 %v467, 4294901760
    %469 = vmatpush1.msra.mxu0 %v468
    %470 = vmatprep.subr.mxu0 0.0
    %v471 = vand.u32 %v84, 4294901760
    %v472 = vsub.f32 %v84, %v471
    %v473 = vand.u32 %v472, 4294901760
    %474 = vmatpush1.msra.mxu0 %v473
    %475 = vmatprep.subr.mxu0 0.0
    %476 = vmatpush2.msra.mxu0 0.0
    %477 = vmatprep.subr.mxu0 0.0
    %478 = vmatpush2.msra.mxu0 0.0
    %479 = vmatprep.subr.mxu0 0.0
    %480 = vmatpush2.msra.mxu0 0.0
    %481 = vmatprep.subr.mxu0 0.0
    %482 = vmatpush2.msra.mxu0 0.0
    %483 = vmatprep.subr.mxu0 0.0
    %484 = vmatpush2.msra.mxu0 0.0
    %485 = vmatprep.subr.mxu0 0.0
    %486 = vmatpush2.msra.mxu0 0.0
    %487 = vmatprep.subr.mxu0 0.0
    %488 = vmatpush2.msra.mxu0 0.0
    %489 = vmatprep.subr.mxu0 0.0
    %490 = vmatpush2.msra.mxu0 0.0
    %491 = vmatprep.subr.mxu0 0.0
    %492 = vmatpush2.msra.mxu0 0.0
    %493 = vmatprep.subr.mxu0 0.0
    %494 = vmatpush2.msra.mxu0 0.0
    %495 = vmatprep.subr.mxu0 0.0
    %496 = vmatpush2.msra.mxu0 0.0
    %497 = vmatprep.subr.mxu0 0.0
    %498 = vmatpush2.msra.mxu0 0.0
    %499 = vmatprep.subr.mxu0 0.0
    %500 = vmatpush2.msra.mxu0 0.0
    %501 = vmatprep.subr.mxu0 0.0
    %502 = vmatpush2.msra.mxu0 0.0
    %503 = vmatprep.subr.mxu0 0.0
    %504 = vmatpush2.msra.mxu0 0.0
    %505 = vmatprep.subr.mxu0 0.0
    %506 = vmatpush2.msra.mxu0 0.0
    %507 = vmatprep.mubr.f32.mxu0 0.0
    %v508 = vand.u32 %v102, 4294901760
    %509 = vmatmul.mubr.f32.gmra.mxu0 %v508
    %v510 = vpop.f32.mrf.mxu0
    %v511 = vadd.f32 %v428, %v510
    %v512 = vpop.f32.mrf.mxu0
    %513 = vdwg.mxu0
    %514 = vmatprep.subr.mxu0 0.0
    %515 = vmatpush1.msra.mxu0 0.0
    %516 = vmatprep.subr.mxu0 0.0
    %517 = vmatpush1.msra.mxu0 0.0
    %518 = vmatprep.subr.mxu0 0.0
    %519 = vmatpush1.msra.mxu0 0.0
    %520 = vmatprep.subr.mxu0 0.0
    %521 = vmatpush1.msra.mxu0 0.0
    %522 = vmatprep.subr.mxu0 0.0
    %523 = vmatpush1.msra.mxu0 0.0
    %524 = vmatprep.subr.mxu0 0.0
    %525 = vmatpush1.msra.mxu0 0.0
    %526 = vmatprep.subr.mxu0 0.0
    %527 = vmatpush1.msra.mxu0 0.0
    %528 = vmatprep.subr.mxu0 0.0
    %529 = vmatpush1.msra.mxu0 0.0
    %530 = vmatprep.subr.mxu0 0.0
    %531 = vmatpush1.msra.mxu0 0.0
    %532 = vmatprep.subr.mxu0 0.0
    %533 = vmatpush1.msra.mxu0 0.0
    %534 = vmatprep.subr.mxu0 0.0
    %535 = vmatpush1.msra.mxu0 0.0
    %536 = vmatprep.subr.mxu0 0.0
    %537 = vmatpush1.msra.mxu0 0.0
    %538 = vmatprep.subr.mxu0 0.0
    %v539 = vand.u32 %v87, 4294901760
    %540 = vmatpush1.msra.mxu0 %v539
    %541 = vmatprep.subr.mxu0 0.0
    %v542 = vand.u32 %v86, 4294901760
    %543 = vmatpush1.msra.mxu0 %v542
    %544 = vmatprep.subr.mxu0 0.0
    %v545 = vand.u32 %v85, 4294901760
    %546 = vmatpush1.msra.mxu0 %v545
    %547 = vmatprep.subr.mxu0 0.0
    %v548 = vand.u32 %v84, 4294901760
    %549 = vmatpush1.msra.mxu0 %v548
    %550 = vmatprep.subr.mxu0 0.0
    %551 = vmatpush2.msra.mxu0 0.0
    %552 = vmatprep.subr.mxu0 0.0
    %553 = vmatpush2.msra.mxu0 0.0
    %554 = vmatprep.subr.mxu0 0.0
    %555 = vmatpush2.msra.mxu0 0.0
    %556 = vmatprep.subr.mxu0 0.0
    %557 = vmatpush2.msra.mxu0 0.0
    %558 = vmatprep.subr.mxu0 0.0
    %559 = vmatpush2.msra.mxu0 0.0
    %560 = vmatprep.subr.mxu0 0.0
    %561 = vmatpush2.msra.mxu0 0.0
    %562 = vmatprep.subr.mxu0 0.0
    %563 = vmatpush2.msra.mxu0 0.0
    %564 = vmatprep.subr.mxu0 0.0
    %565 = vmatpush2.msra.mxu0 0.0
    %566 = vmatprep.subr.mxu0 0.0
    %567 = vmatpush2.msra.mxu0 0.0
    %568 = vmatprep.subr.mxu0 0.0
    %569 = vmatpush2.msra.mxu0 0.0
    %570 = vmatprep.subr.mxu0 0.0
    %571 = vmatpush2.msra.mxu0 0.0
    %572 = vmatprep.subr.mxu0 0.0
    %573 = vmatpush2.msra.mxu0 0.0
    %574 = vmatprep.subr.mxu0 0.0
    %575 = vmatpush2.msra.mxu0 0.0
    %576 = vmatprep.subr.mxu0 0.0
    %577 = vmatpush2.msra.mxu0 0.0
    %578 = vmatprep.subr.mxu0 0.0
    %579 = vmatpush2.msra.mxu0 0.0
    %580 = vmatprep.subr.mxu0 0.0
    %581 = vmatpush2.msra.mxu0 0.0
    %582 = vmatprep.mubr.f32.mxu0 0.0
    %v583 = vand.u32 %v102, 4294901760
    %584 = vmatmul.mubr.f32.gmra.mxu0 %v583
    %v585 = vpop.f32.mrf.mxu0
    %v586 = vadd.f32 %v511, %v585
    %v587 = vpop.f32.mrf.mxu0
    %588 = vdwg.mxu0
    %vm589 = vcmask 64512
    %v590 = vsel %vm589, %v586, -inf
    %591 = vmax.xlane.f32.xlu0 %v590
    %v592 = vpop.xlane.xlu0 %591
    %v593 = vsub.f32 %v586, %v592
    %v594 = vmul.f32 %v593, 1.442695
    %v595 = vpow.pop %v594
    %v596 = vsel %vm589, %v595, 0.0
    %597 = vadd.xlane.f32.xlu0 %v596
    %v598 = vpop.xlane.xlu0 %597
    %v599 = vrcp.pop %v598
    %v600 = vmul.f32 %v595, %v599
    %v602 = vcombine.high %v600, %v600
    %v604 = vunpack.c.l.s4 1966171168
    %v605 = vunpack.c.0.s8 %v604
    %v606 = vlaneseq
    %v607 = vshrl.u32 %v606, 7
    %v608 = vsub.s32 %v605, %v607
    %v609 = vrot.slane %v600, %v608
    %v611 = vunpack.c.l.s4 1966171168
    %v612 = vunpack.c.0.s8 %v611
    %v613 = vlaneseq
    %v614 = vshrl.u32 %v613, 7
    %v615 = vsub.s32 %v612, %v614
    %v616 = vrot.slane %v602, %v615
    %v617 = vcombine.high %v609, %v609
    %v618 = vcombine.high %v616, %v616
    %v620 = vunpack.c.l.s4 1966171168
    %v621 = vunpack.c.0.s8 %v620
    %v622 = vlaneseq
    %v623 = vshrl.u32 %v622, 7
    %v624 = vsub.s32 %v621, %v623
    %v625 = vrot.slane %v609, %v624
    %v627 = vunpack.c.l.s4 1966171168
    %v628 = vunpack.c.0.s8 %v627
    %v629 = vlaneseq
    %v630 = vshrl.u32 %v629, 7
    %v631 = vsub.s32 %v628, %v630
    %v632 = vrot.slane %v616, %v631
    %v634 = vunpack.c.l.s4 1966171168
    %v635 = vunpack.c.0.s8 %v634
    %v636 = vlaneseq
    %v637 = vshrl.u32 %v636, 7
    %v638 = vsub.s32 %v635, %v637
    %v639 = vrot.slane %v617, %v638
    %v641 = vunpack.c.l.s4 1966171168
    %v642 = vunpack.c.0.s8 %v641
    %v643 = vlaneseq
    %v644 = vshrl.u32 %v643, 7
    %v645 = vsub.s32 %v642, %v644
    %v646 = vrot.slane %v618, %v645
    %v647 = vcombine.high %v625, %v625
    %v648 = vcombine.high %v632, %v632
    %v649 = vcombine.high %v639, %v639
    %v650 = vcombine.high %v646, %v646
    %v651 = vsel %vm589, %v625, 0
    %653 = vmatprep.subr.mxu0 0.0
    %654 = vmatpush1.msra.mxu0 0.0
    %655 = vmatprep.subr.mxu0 0.0
    %656 = vmatpush1.msra.mxu0 0.0
    %657 = vmatprep.subr.mxu0 0.0
    %658 = vmatpush1.msra.mxu0 0.0
    %659 = vmatprep.subr.mxu0 0.0
    %660 = vmatpush1.msra.mxu0 0.0
    %661 = vmatprep.subr.mxu0 0.0
    %662 = vmatpush1.msra.mxu0 0.0
    %663 = vmatprep.subr.mxu0 0.0
    %664 = vmatpush1.msra.mxu0 0.0
    %665 = vmatprep.subr.mxu0 0.0
    %666 = vmatpush1.msra.mxu0 0.0
    %667 = vmatprep.subr.mxu0 0.0
    %668 = vmatpush1.msra.mxu0 0.0
    %669 = vmatprep.subr.mxu0 0.0
    %670 = vmatpush1.msra.mxu0 0.0
    %671 = vmatprep.subr.mxu0 0.0
    %672 = vmatpush1.msra.mxu0 0.0
    %673 = vmatprep.subr.mxu0 0.0
    %674 = vmatpush1.msra.mxu0 0.0
    %675 = vmatprep.subr.mxu0 0.0
    %676 = vmatpush1.msra.mxu0 0.0
    %677 = vmatprep.subr.mxu0 0.0
    %678 = vmatpush1.msra.mxu0 0.0
    %679 = vmatprep.subr.mxu0 0.0
    %680 = vmatpush1.msra.mxu0 0.0
    %681 = vmatprep.subr.mxu0 0.0
    %682 = vmatpush1.msra.mxu0 0.0
    %683 = vmatprep.subr.mxu0 0.0
    %v684 = vand.u32 %v76, 4294901760
    %685 = vmatpush1.msra.mxu0 %v684
    %686 = vmatprep.subr.mxu0 0.0
    %687 = vmatpush2.msra.mxu0 0.0
    %688 = vmatprep.subr.mxu0 0.0
    %689 = vmatpush2.msra.mxu0 0.0
    %690 = vmatprep.subr.mxu0 0.0
    %691 = vmatpush2.msra.mxu0 0.0
    %692 = vmatprep.subr.mxu0 0.0
    %693 = vmatpush2.msra.mxu0 0.0
    %694 = vmatprep.subr.mxu0 0.0
    %695 = vmatpush2.msra.mxu0 0.0
    %696 = vmatprep.subr.mxu0 0.0
    %697 = vmatpush2.msra.mxu0 0.0
    %698 = vmatprep.subr.mxu0 0.0
    %699 = vmatpush2.msra.mxu0 0.0
    %700 = vmatprep.subr.mxu0 0.0
    %701 = vmatpush2.msra.mxu0 0.0
    %702 = vmatprep.subr.mxu0 0.0
    %703 = vmatpush2.msra.mxu0 0.0
    %704 = vmatprep.subr.mxu0 0.0
    %705 = vmatpush2.msra.mxu0 0.0
    %706 = vmatprep.subr.mxu0 0.0
    %707 = vmatpush2.msra.mxu0 0.0
    %708 = vmatprep.subr.mxu0 0.0
    %709 = vmatpush2.msra.mxu0 0.0
    %710 = vmatprep.subr.mxu0 0.0
    %711 = vmatpush2.msra.mxu0 0.0
    %712 = vmatprep.subr.mxu0 0.0
    %713 = vmatpush2.msra.mxu0 0.0
    %714 = vmatprep.subr.mxu0 0.0
    %715 = vmatpush2.msra.mxu0 0.0
    %716 = vmatprep.subr.mxu0 0.0
    %717 = vmatpush2.msra.mxu0 0.0
    %718 = vmatprep.mubr.f32.mxu0 0.0
    %v719 = vand.u32 %v651, 4294901760
    %v720 = vsub.f32 %v651, %v719
    %v721 = vand.u32 %v720, 4294901760
    %v722 = vsub.f32 %v720, %v721
    %v723 = vand.u32 %v722, 4294901760
    %724 = vmatmul.mubr.f32.gmra.mxu0 %v723
    %v725 = vpop.f32.mrf.mxu0
    %v726 = vadd.f32 0.0, %v725
    %v727 = vpop.f32.mrf.mxu0
    %728 = vdwg.mxu0
    %729 = vmatprep.subr.mxu0 0.0
    %730 = vmatpush1.msra.mxu0 0.0
    %731 = vmatprep.subr.mxu0 0.0
    %732 = vmatpush1.msra.mxu0 0.0
    %733 = vmatprep.subr.mxu0 0.0
    %734 = vmatpush1.msra.mxu0 0.0
    %735 = vmatprep.subr.mxu0 0.0
    %736 = vmatpush1.msra.mxu0 0.0
    %737 = vmatprep.subr.mxu0 0.0
    %738 = vmatpush1.msra.mxu0 0.0
    %739 = vmatprep.subr.mxu0 0.0
    %740 = vmatpush1.msra.mxu0 0.0
    %741 = vmatprep.subr.mxu0 0.0
    %742 = vmatpush1.msra.mxu0 0.0
    %743 = vmatprep.subr.mxu0 0.0
    %744 = vmatpush1.msra.mxu0 0.0
    %745 = vmatprep.subr.mxu0 0.0
    %746 = vmatpush1.msra.mxu0 0.0
    %747 = vmatprep.subr.mxu0 0.0
    %748 = vmatpush1.msra.mxu0 0.0
    %749 = vmatprep.subr.mxu0 0.0
    %750 = vmatpush1.msra.mxu0 0.0
    %751 = vmatprep.subr.mxu0 0.0
    %752 = vmatpush1.msra.mxu0 0.0
    %753 = vmatprep.subr.mxu0 0.0
    %754 = vmatpush1.msra.mxu0 0.0
    %755 = vmatprep.subr.mxu0 0.0
    %756 = vmatpush1.msra.mxu0 0.0
    %757 = vmatprep.subr.mxu0 0.0
    %758 = vmatpush1.msra.mxu0 0.0
    %759 = vmatprep.subr.mxu0 0.0
    %v760 = vand.u32 %v76, 4294901760
    %v761 = vsub.f32 %v76, %v760
    %v762 = vand.u32 %v761, 4294901760
    %v763 = vsub.f32 %v761, %v762
    %v764 = vand.u32 %v763, 4294901760
    %765 = vmatpush1.msra.mxu0 %v764
    %766 = vmatprep.subr.mxu0 0.0
    %767 = vmatpush2.msra.mxu0 0.0
    %768 = vmatprep.subr.mxu0 0.0
    %769 = vmatpush2.msra.mxu0 0.0
    %770 = vmatprep.subr.mxu0 0.0
    %771 = vmatpush2.msra.mxu0 0.0
    %772 = vmatprep.subr.mxu0 0.0
    %773 = vmatpush2.msra.mxu0 0.0
    %774 = vmatprep.subr.mxu0 0.0
    %775 = vmatpush2.msra.mxu0 0.0
    %776 = vmatprep.subr.mxu0 0.0
    %777 = vmatpush2.msra.mxu0 0.0
    %778 = vmatprep.subr.mxu0 0.0
    %779 = vmatpush2.msra.mxu0 0.0
    %780 = vmatprep.subr.mxu0 0.0
    %781 = vmatpush2.msra.mxu0 0.0
    %782 = vmatprep.subr.mxu0 0.0
    %783 = vmatpush2.msra.mxu0 0.0
    %784 = vmatprep.subr.mxu0 0.0
    %785 = vmatpush2.msra.mxu0 0.0
    %786 = vmatprep.subr.mxu0 0.0
    %787 = vmatpush2.msra.mxu0 0.0
    %788 = vmatprep.subr.mxu0 0.0
    %789 = vmatpush2.msra.mxu0 0.0
    %790 = vmatprep.subr.mxu0 0.0
    %791 = vmatpush2.msra.mxu0 0.0
    %792 = vmatprep.subr.mxu0 0.0
    %793 = vmatpush2.msra.mxu0 0.0
    %794 = vmatprep.subr.mxu0 0.0
    %795 = vmatpush2.msra.mxu0 0.0
    %796 = vmatprep.subr.mxu0 0.0
    %797 = vmatpush2.msra.mxu0 0.0
    %798 = vmatprep.mubr.f32.mxu0 0.0
    %v799 = vand.u32 %v651, 4294901760
    %800 = vmatmul.mubr.f32.gmra.mxu0 %v799
    %v801 = vpop.f32.mrf.mxu0
    %v802 = vadd.f32 %v726, %v801
    %v803 = vpop.f32.mrf.mxu0
    %804 = vdwg.mxu0
    %805 = vmatprep.subr.mxu0 0.0
    %806 = vmatpush1.msra.mxu0 0.0
    %807 = vmatprep.subr.mxu0 0.0
    %808 = vmatpush1.msra.mxu0 0.0
    %809 = vmatprep.subr.mxu0 0.0
    %810 = vmatpush1.msra.mxu0 0.0
    %811 = vmatprep.subr.mxu0 0.0
    %812 = vmatpush1.msra.mxu0 0.0
    %813 = vmatprep.subr.mxu0 0.0
    %814 = vmatpush1.msra.mxu0 0.0
    %815 = vmatprep.subr.mxu0 0.0
    %816 = vmatpush1.msra.mxu0 0.0
    %817 = vmatprep.subr.mxu0 0.0
    %818 = vmatpush1.msra.mxu0 0.0
    %819 = vmatprep.subr.mxu0 0.0
    %820 = vmatpush1.msra.mxu0 0.0
    %821 = vmatprep.subr.mxu0 0.0
    %822 = vmatpush1.msra.mxu0 0.0
    %823 = vmatprep.subr.mxu0 0.0
    %824 = vmatpush1.msra.mxu0 0.0
    %825 = vmatprep.subr.mxu0 0.0
    %826 = vmatpush1.msra.mxu0 0.0
    %827 = vmatprep.subr.mxu0 0.0
    %828 = vmatpush1.msra.mxu0 0.0
    %829 = vmatprep.subr.mxu0 0.0
    %830 = vmatpush1.msra.mxu0 0.0
    %831 = vmatprep.subr.mxu0 0.0
    %832 = vmatpush1.msra.mxu0 0.0
    %833 = vmatprep.subr.mxu0 0.0
    %834 = vmatpush1.msra.mxu0 0.0
    %835 = vmatprep.subr.mxu0 0.0
    %v836 = vand.u32 %v76, 4294901760
    %v837 = vsub.f32 %v76, %v836
    %838 = vmatpush1.msra.mxu0 %v837
    %839 = vmatprep.subr.mxu0 0.0
    %840 = vmatpush2.msra.mxu0 0.0
    %841 = vmatprep.subr.mxu0 0.0
    %842 = vmatpush2.msra.mxu0 0.0
    %843 = vmatprep.subr.mxu0 0.0
    %844 = vmatpush2.msra.mxu0 0.0
    %845 = vmatprep.subr.mxu0 0.0
    %846 = vmatpush2.msra.mxu0 0.0
    %847 = vmatprep.subr.mxu0 0.0
    %848 = vmatpush2.msra.mxu0 0.0
    %849 = vmatprep.subr.mxu0 0.0
    %850 = vmatpush2.msra.mxu0 0.0
    %851 = vmatprep.subr.mxu0 0.0
    %852 = vmatpush2.msra.mxu0 0.0
    %853 = vmatprep.subr.mxu0 0.0
    %854 = vmatpush2.msra.mxu0 0.0
    %855 = vmatprep.subr.mxu0 0.0
    %856 = vmatpush2.msra.mxu0 0.0
    %857 = vmatprep.subr.mxu0 0.0
    %858 = vmatpush2.msra.mxu0 0.0
    %859 = vmatprep.subr.mxu0 0.0
    %860 = vmatpush2.msra.mxu0 0.0
    %861 = vmatprep.subr.mxu0 0.0
    %862 = vmatpush2.msra.mxu0 0.0
    %863 = vmatprep.subr.mxu0 0.0
    %864 = vmatpush2.msra.mxu0 0.0
    %865 = vmatprep.subr.mxu0 0.0
    %866 = vmatpush2.msra.mxu0 0.0
    %867 = vmatprep.subr.mxu0 0.0
    %868 = vmatpush2.msra.mxu0 0.0
    %869 = vmatprep.subr.mxu0 0.0
    %870 = vmatpush2.msra.mxu0 0.0
    %871 = vmatprep.mubr.f32.mxu0 0.0
    %v872 = vand.u32 %v651, 4294901760
    %v873 = vsub.f32 %v651, %v872
    %874 = vmatmul.mubr.f32.gmra.mxu0 %v873
    %v875 = vpop.f32.mrf.mxu0
    %v876 = vadd.f32 %v802, %v875
    %v877 = vpop.f32.mrf.mxu0
    %878 = vdwg.mxu0
    %879 = vmatprep.subr.mxu0 0.0
    %880 = vmatpush1.msra.mxu0 0.0
    %881 = vmatprep.subr.mxu0 0.0
    %882 = vmatpush1.msra.mxu0 0.0
    %883 = vmatprep.subr.mxu0 0.0
    %884 = vmatpush1.msra.mxu0 0.0
    %885 = vmatprep.subr.mxu0 0.0
    %886 = vmatpush1.msra.mxu0 0.0
    %887 = vmatprep.subr.mxu0 0.0
    %888 = vmatpush1.msra.mxu0 0.0
    %889 = vmatprep.subr.mxu0 0.0
    %890 = vmatpush1.msra.mxu0 0.0
    %891 = vmatprep.subr.mxu0 0.0
    %892 = vmatpush1.msra.mxu0 0.0
    %893 = vmatprep.subr.mxu0 0.0
    %894 = vmatpush1.msra.mxu0 0.0
    %895 = vmatprep.subr.mxu0 0.0
    %896 = vmatpush1.msra.mxu0 0.0
    %897 = vmatprep.subr.mxu0 0.0
    %898 = vmatpush1.msra.mxu0 0.0
    %899 = vmatprep.subr.mxu0 0.0
    %900 = vmatpush1.msra.mxu0 0.0
    %901 = vmatprep.subr.mxu0 0.0
    %902 = vmatpush1.msra.mxu0 0.0
    %903 = vmatprep.subr.mxu0 0.0
    %904 = vmatpush1.msra.mxu0 0.0
    %905 = vmatprep.subr.mxu0 0.0
    %906 = vmatpush1.msra.mxu0 0.0
    %907 = vmatprep.subr.mxu0 0.0
    %908 = vmatpush1.msra.mxu0 0.0
    %909 = vmatprep.subr.mxu0 0.0
    %v910 = vand.u32 %v76, 4294901760
    %911 = vmatpush1.msra.mxu0 %v910
    %912 = vmatprep.subr.mxu0 0.0
    %913 = vmatpush2.msra.mxu0 0.0
    %914 = vmatprep.subr.mxu0 0.0
    %915 = vmatpush2.msra.mxu0 0.0
    %916 = vmatprep.subr.mxu0 0.0
    %917 = vmatpush2.msra.mxu0 0.0
    %918 = vmatprep.subr.mxu0 0.0
    %919 = vmatpush2.msra.mxu0 0.0
    %920 = vmatprep.subr.mxu0 0.0
    %921 = vmatpush2.msra.mxu0 0.0
    %922 = vmatprep.subr.mxu0 0.0
    %923 = vmatpush2.msra.mxu0 0.0
    %924 = vmatprep.subr.mxu0 0.0
    %925 = vmatpush2.msra.mxu0 0.0
    %926 = vmatprep.subr.mxu0 0.0
    %927 = vmatpush2.msra.mxu0 0.0
    %928 = vmatprep.subr.mxu0 0.0
    %929 = vmatpush2.msra.mxu0 0.0
    %930 = vmatprep.subr.mxu0 0.0
    %931 = vmatpush2.msra.mxu0 0.0
    %932 = vmatprep.subr.mxu0 0.0
    %933 = vmatpush2.msra.mxu0 0.0
    %934 = vmatprep.subr.mxu0 0.0
    %935 = vmatpush2.msra.mxu0 0.0
    %936 = vmatprep.subr.mxu0 0.0
    %937 = vmatpush2.msra.mxu0 0.0
    %938 = vmatprep.subr.mxu0 0.0
    %939 = vmatpush2.msra.mxu0 0.0
    %940 = vmatprep.subr.mxu0 0.0
    %941 = vmatpush2.msra.mxu0 0.0
    %942 = vmatprep.subr.mxu0 0.0
    %943 = vmatpush2.msra.mxu0 0.0
    %944 = vmatprep.mubr.f32.mxu0 0.0
    %v945 = vand.u32 %v651, 4294901760
    %v946 = vsub.f32 %v651, %v945
    %v947 = vand.u32 %v946, 4294901760
    %948 = vmatmul.mubr.f32.gmra.mxu0 %v947
    %v949 = vpop.f32.mrf.mxu0
    %v950 = vadd.f32 %v876, %v949
    %v951 = vpop.f32.mrf.mxu0
    %952 = vdwg.mxu0
    %953 = vmatprep.subr.mxu0 0.0
    %954 = vmatpush1.msra.mxu0 0.0
    %955 = vmatprep.subr.mxu0 0.0
    %956 = vmatpush1.msra.mxu0 0.0
    %957 = vmatprep.subr.mxu0 0.0
    %958 = vmatpush1.msra.mxu0 0.0
    %959 = vmatprep.subr.mxu0 0.0
    %960 = vmatpush1.msra.mxu0 0.0
    %961 = vmatprep.subr.mxu0 0.0
    %962 = vmatpush1.msra.mxu0 0.0
    %963 = vmatprep.subr.mxu0 0.0
    %964 = vmatpush1.msra.mxu0 0.0
    %965 = vmatprep.subr.mxu0 0.0
    %966 = vmatpush1.msra.mxu0 0.0
    %967 = vmatprep.subr.mxu0 0.0
    %968 = vmatpush1.msra.mxu0 0.0
    %969 = vmatprep.subr.mxu0 0.0
    %970 = vmatpush1.msra.mxu0 0.0
    %971 = vmatprep.subr.mxu0 0.0
    %972 = vmatpush1.msra.mxu0 0.0
    %973 = vmatprep.subr.mxu0 0.0
    %974 = vmatpush1.msra.mxu0 0.0
    %975 = vmatprep.subr.mxu0 0.0
    %976 = vmatpush1.msra.mxu0 0.0
    %977 = vmatprep.subr.mxu0 0.0
    %978 = vmatpush1.msra.mxu0 0.0
    %979 = vmatprep.subr.mxu0 0.0
    %980 = vmatpush1.msra.mxu0 0.0
    %981 = vmatprep.subr.mxu0 0.0
    %982 = vmatpush1.msra.mxu0 0.0
    %983 = vmatprep.subr.mxu0 0.0
    %v984 = vand.u32 %v76, 4294901760
    %v985 = vsub.f32 %v76, %v984
    %v986 = vand.u32 %v985, 4294901760
    %987 = vmatpush1.msra.mxu0 %v986
    %988 = vmatprep.subr.mxu0 0.0
    %989 = vmatpush2.msra.mxu0 0.0
    %990 = vmatprep.subr.mxu0 0.0
    %991 = vmatpush2.msra.mxu0 0.0
    %992 = vmatprep.subr.mxu0 0.0
    %993 = vmatpush2.msra.mxu0 0.0
    %994 = vmatprep.subr.mxu0 0.0
    %995 = vmatpush2.msra.mxu0 0.0
    %996 = vmatprep.subr.mxu0 0.0
    %997 = vmatpush2.msra.mxu0 0.0
    %998 = vmatprep.subr.mxu0 0.0
    %999 = vmatpush2.msra.mxu0 0.0
    %1000 = vmatprep.subr.mxu0 0.0
    %1001 = vmatpush2.msra.mxu0 0.0
    %1002 = vmatprep.subr.mxu0 0.0
    %1003 = vmatpush2.msra.mxu0 0.0
    %1004 = vmatprep.subr.mxu0 0.0
    %1005 = vmatpush2.msra.mxu0 0.0
    %1006 = vmatprep.subr.mxu0 0.0
    %1007 = vmatpush2.msra.mxu0 0.0
    %1008 = vmatprep.subr.mxu0 0.0
    %1009 = vmatpush2.msra.mxu0 0.0
    %1010 = vmatprep.subr.mxu0 0.0
    %1011 = vmatpush2.msra.mxu0 0.0
    %1012 = vmatprep.subr.mxu0 0.0
    %1013 = vmatpush2.msra.mxu0 0.0
    %1014 = vmatprep.subr.mxu0 0.0
    %1015 = vmatpush2.msra.mxu0 0.0
    %1016 = vmatprep.subr.mxu0 0.0
    %1017 = vmatpush2.msra.mxu0 0.0
    %1018 = vmatprep.subr.mxu0 0.0
    %1019 = vmatpush2.msra.mxu0 0.0
    %1020 = vmatprep.mubr.f32.mxu0 0.0
    %v1021 = vand.u32 %v651, 4294901760
    %1022 = vmatmul.mubr.f32.gmra.mxu0 %v1021
    %v1023 = vpop.f32.mrf.mxu0
    %v1024 = vadd.f32 %v950, %v1023
    %v1025 = vpop.f32.mrf.mxu0
    %1026 = vdwg.mxu0
    %1027 = vmatprep.subr.mxu0 0.0
    %1028 = vmatpush1.msra.mxu0 0.0
    %1029 = vmatprep.subr.mxu0 0.0
    %1030 = vmatpush1.msra.mxu0 0.0
    %1031 = vmatprep.subr.mxu0 0.0
    %1032 = vmatpush1.msra.mxu0 0.0
    %1033 = vmatprep.subr.mxu0 0.0
    %1034 = vmatpush1.msra.mxu0 0.0
    %1035 = vmatprep.subr.mxu0 0.0
    %1036 = vmatpush1.msra.mxu0 0.0
    %1037 = vmatprep.subr.mxu0 0.0
    %1038 = vmatpush1.msra.mxu0 0.0
    %1039 = vmatprep.subr.mxu0 0.0
    %1040 = vmatpush1.msra.mxu0 0.0
    %1041 = vmatprep.subr.mxu0 0.0
    %1042 = vmatpush1.msra.mxu0 0.0
    %1043 = vmatprep.subr.mxu0 0.0
    %1044 = vmatpush1.msra.mxu0 0.0
    %1045 = vmatprep.subr.mxu0 0.0
    %1046 = vmatpush1.msra.mxu0 0.0
    %1047 = vmatprep.subr.mxu0 0.0
    %1048 = vmatpush1.msra.mxu0 0.0
    %1049 = vmatprep.subr.mxu0 0.0
    %1050 = vmatpush1.msra.mxu0 0.0
    %1051 = vmatprep.subr.mxu0 0.0
    %1052 = vmatpush1.msra.mxu0 0.0
    %1053 = vmatprep.subr.mxu0 0.0
    %1054 = vmatpush1.msra.mxu0 0.0
    %1055 = vmatprep.subr.mxu0 0.0
    %1056 = vmatpush1.msra.mxu0 0.0
    %1057 = vmatprep.subr.mxu0 0.0
    %v1058 = vand.u32 %v76, 4294901760
    %1059 = vmatpush1.msra.mxu0 %v1058
    %1060 = vmatprep.subr.mxu0 0.0
    %1061 = vmatpush2.msra.mxu0 0.0
    %1062 = vmatprep.subr.mxu0 0.0
    %1063 = vmatpush2.msra.mxu0 0.0
    %1064 = vmatprep.subr.mxu0 0.0
    %1065 = vmatpush2.msra.mxu0 0.0
    %1066 = vmatprep.subr.mxu0 0.0
    %1067 = vmatpush2.msra.mxu0 0.0
    %1068 = vmatprep.subr.mxu0 0.0
    %1069 = vmatpush2.msra.mxu0 0.0
    %1070 = vmatprep.subr.mxu0 0.0
    %1071 = vmatpush2.msra.mxu0 0.0
    %1072 = vmatprep.subr.mxu0 0.0
    %1073 = vmatpush2.msra.mxu0 0.0
    %1074 = vmatprep.subr.mxu0 0.0
    %1075 = vmatpush2.msra.mxu0 0.0
    %1076 = vmatprep.subr.mxu0 0.0
    %1077 = vmatpush2.msra.mxu0 0.0
    %1078 = vmatprep.subr.mxu0 0.0
    %1079 = vmatpush2.msra.mxu0 0.0
    %1080 = vmatprep.subr.mxu0 0.0
    %1081 = vmatpush2.msra.mxu0 0.0
    %1082 = vmatprep.subr.mxu0 0.0
    %1083 = vmatpush2.msra.mxu0 0.0
    %1084 = vmatprep.subr.mxu0 0.0
    %1085 = vmatpush2.msra.mxu0 0.0
    %1086 = vmatprep.subr.mxu0 0.0
    %1087 = vmatpush2.msra.mxu0 0.0
    %1088 = vmatprep.subr.mxu0 0.0
    %1089 = vmatpush2.msra.mxu0 0.0
    %1090 = vmatprep.subr.mxu0 0.0
    %1091 = vmatpush2.msra.mxu0 0.0
    %1092 = vmatprep.mubr.f32.mxu0 0.0
    %v1093 = vand.u32 %v651, 4294901760
    %1094 = vmatmul.mubr.f32.gmra.mxu0 %v1093
    %v1095 = vpop.f32.mrf.mxu0
    %v1096 = vadd.f32 %v1024, %v1095
    %v1097 = vpop.f32.mrf.mxu0
    %1098 = vdwg.mxu0
    %v1099 = vsel %vm589, %v639, 0
    %1101 = vmatprep.subr.mxu0 0.0
    %1102 = vmatpush1.msra.mxu0 0.0
    %1103 = vmatprep.subr.mxu0 0.0
    %1104 = vmatpush1.msra.mxu0 0.0
    %1105 = vmatprep.subr.mxu0 0.0
    %1106 = vmatpush1.msra.mxu0 0.0
    %1107 = vmatprep.subr.mxu0 0.0
    %1108 = vmatpush1.msra.mxu0 0.0
    %1109 = vmatprep.subr.mxu0 0.0
    %1110 = vmatpush1.msra.mxu0 0.0
    %1111 = vmatprep.subr.mxu0 0.0
    %1112 = vmatpush1.msra.mxu0 0.0
    %1113 = vmatprep.subr.mxu0 0.0
    %1114 = vmatpush1.msra.mxu0 0.0
    %1115 = vmatprep.subr.mxu0 0.0
    %1116 = vmatpush1.msra.mxu0 0.0
    %1117 = vmatprep.subr.mxu0 0.0
    %1118 = vmatpush1.msra.mxu0 0.0
    %1119 = vmatprep.subr.mxu0 0.0
    %1120 = vmatpush1.msra.mxu0 0.0
    %1121 = vmatprep.subr.mxu0 0.0
    %1122 = vmatpush1.msra.mxu0 0.0
    %1123 = vmatprep.subr.mxu0 0.0
    %1124 = vmatpush1.msra.mxu0 0.0
    %1125 = vmatprep.subr.mxu0 0.0
    %1126 = vmatpush1.msra.mxu0 0.0
    %1127 = vmatprep.subr.mxu0 0.0
    %1128 = vmatpush1.msra.mxu0 0.0
    %1129 = vmatprep.subr.mxu0 0.0
    %1130 = vmatpush1.msra.mxu0 0.0
    %1131 = vmatprep.subr.mxu0 0.0
    %v1132 = vand.u32 %v77, 4294901760
    %1133 = vmatpush1.msra.mxu0 %v1132
    %1134 = vmatprep.subr.mxu0 0.0
    %1135 = vmatpush2.msra.mxu0 0.0
    %1136 = vmatprep.subr.mxu0 0.0
    %1137 = vmatpush2.msra.mxu0 0.0
    %1138 = vmatprep.subr.mxu0 0.0
    %1139 = vmatpush2.msra.mxu0 0.0
    %1140 = vmatprep.subr.mxu0 0.0
    %1141 = vmatpush2.msra.mxu0 0.0
    %1142 = vmatprep.subr.mxu0 0.0
    %1143 = vmatpush2.msra.mxu0 0.0
    %1144 = vmatprep.subr.mxu0 0.0
    %1145 = vmatpush2.msra.mxu0 0.0
    %1146 = vmatprep.subr.mxu0 0.0
    %1147 = vmatpush2.msra.mxu0 0.0
    %1148 = vmatprep.subr.mxu0 0.0
    %1149 = vmatpush2.msra.mxu0 0.0
    %1150 = vmatprep.subr.mxu0 0.0
    %1151 = vmatpush2.msra.mxu0 0.0
    %1152 = vmatprep.subr.mxu0 0.0
    %1153 = vmatpush2.msra.mxu0 0.0
    %1154 = vmatprep.subr.mxu0 0.0
    %1155 = vmatpush2.msra.mxu0 0.0
    %1156 = vmatprep.subr.mxu0 0.0
    %1157 = vmatpush2.msra.mxu0 0.0
    %1158 = vmatprep.subr.mxu0 0.0
    %1159 = vmatpush2.msra.mxu0 0.0
    %1160 = vmatprep.subr.mxu0 0.0
    %1161 = vmatpush2.msra.mxu0 0.0
    %1162 = vmatprep.subr.mxu0 0.0
    %1163 = vmatpush2.msra.mxu0 0.0
    %1164 = vmatprep.subr.mxu0 0.0
    %1165 = vmatpush2.msra.mxu0 0.0
    %1166 = vmatprep.mubr.f32.mxu0 0.0
    %v1167 = vand.u32 %v1099, 4294901760
    %v1168 = vsub.f32 %v1099, %v1167
    %v1169 = vand.u32 %v1168, 4294901760
    %v1170 = vsub.f32 %v1168, %v1169
    %v1171 = vand.u32 %v1170, 4294901760
    %1172 = vmatmul.mubr.f32.gmra.mxu0 %v1171
    %v1173 = vpop.f32.mrf.mxu0
    %v1174 = vadd.f32 0.0, %v1173
    %v1175 = vpop.f32.mrf.mxu0
    %1176 = vdwg.mxu0
    %1177 = vmatprep.subr.mxu0 0.0
    %1178 = vmatpush1.msra.mxu0 0.0
    %1179 = vmatprep.subr.mxu0 0.0
    %1180 = vmatpush1.msra.mxu0 0.0
    %1181 = vmatprep.subr.mxu0 0.0
    %1182 = vmatpush1.msra.mxu0 0.0
    %1183 = vmatprep.subr.mxu0 0.0
    %1184 = vmatpush1.msra.mxu0 0.0
    %1185 = vmatprep.subr.mxu0 0.0
    %1186 = vmatpush1.msra.mxu0 0.0
    %1187 = vmatprep.subr.mxu0 0.0
    %1188 = vmatpush1.msra.mxu0 0.0
    %1189 = vmatprep.subr.mxu0 0.0
    %1190 = vmatpush1.msra.mxu0 0.0
    %1191 = vmatprep.subr.mxu0 0.0
    %1192 = vmatpush1.msra.mxu0 0.0
    %1193 = vmatprep.subr.mxu0 0.0
    %1194 = vmatpush1.msra.mxu0 0.0
    %1195 = vmatprep.subr.mxu0 0.0
    %1196 = vmatpush1.msra.mxu0 0.0
    %1197 = vmatprep.subr.mxu0 0.0
    %1198 = vmatpush1.msra.mxu0 0.0
    %1199 = vmatprep.subr.mxu0 0.0
    %1200 = vmatpush1.msra.mxu0 0.0
    %1201 = vmatprep.subr.mxu0 0.0
    %1202 = vmatpush1.msra.mxu0 0.0
    %1203 = vmatprep.subr.mxu0 0.0
    %1204 = vmatpush1.msra.mxu0 0.0
    %1205 = vmatprep.subr.mxu0 0.0
    %1206 = vmatpush1.msra.mxu0 0.0
    %1207 = vmatprep.subr.mxu0 0.0
    %v1208 = vand.u32 %v77, 4294901760
    %v1209 = vsub.f32 %v77, %v1208
    %v1210 = vand.u32 %v1209, 4294901760
    %v1211 = vsub.f32 %v1209, %v1210
    %v1212 = vand.u32 %v1211, 4294901760
    %1213 = vmatpush1.msra.mxu0 %v1212
    %1214 = vmatprep.subr.mxu0 0.0
    %1215 = vmatpush2.msra.mxu0 0.0
    %1216 = vmatprep.subr.mxu0 0.0
    %1217 = vmatpush2.msra.mxu0 0.0
    %1218 = vmatprep.subr.mxu0 0.0
    %1219 = vmatpush2.msra.mxu0 0.0
    %1220 = vmatprep.subr.mxu0 0.0
    %1221 = vmatpush2.msra.mxu0 0.0
    %1222 = vmatprep.subr.mxu0 0.0
    %1223 = vmatpush2.msra.mxu0 0.0
    %1224 = vmatprep.subr.mxu0 0.0
    %1225 = vmatpush2.msra.mxu0 0.0
    %1226 = vmatprep.subr.mxu0 0.0
    %1227 = vmatpush2.msra.mxu0 0.0
    %1228 = vmatprep.subr.mxu0 0.0
    %1229 = vmatpush2.msra.mxu0 0.0
    %1230 = vmatprep.subr.mxu0 0.0
    %1231 = vmatpush2.msra.mxu0 0.0
    %1232 = vmatprep.subr.mxu0 0.0
    %1233 = vmatpush2.msra.mxu0 0.0
    %1234 = vmatprep.subr.mxu0 0.0
    %1235 = vmatpush2.msra.mxu0 0.0
    %1236 = vmatprep.subr.mxu0 0.0
    %1237 = vmatpush2.msra.mxu0 0.0
    %1238 = vmatprep.subr.mxu0 0.0
    %1239 = vmatpush2.msra.mxu0 0.0
    %1240 = vmatprep.subr.mxu0 0.0
    %1241 = vmatpush2.msra.mxu0 0.0
    %1242 = vmatprep.subr.mxu0 0.0
    %1243 = vmatpush2.msra.mxu0 0.0
    %1244 = vmatprep.subr.mxu0 0.0
    %1245 = vmatpush2.msra.mxu0 0.0
    %1246 = vmatprep.mubr.f32.mxu0 0.0
    %v1247 = vand.u32 %v1099, 4294901760
    %1248 = vmatmul.mubr.f32.gmra.mxu0 %v1247
    %v1249 = vpop.f32.mrf.mxu0
    %v1250 = vadd.f32 %v1174, %v1249
    %v1251 = vpop.f32.mrf.mxu0
    %1252 = vdwg.mxu0
    %1253 = vmatprep.subr.mxu0 0.0
    %1254 = vmatpush1.msra.mxu0 0.0
    %1255 = vmatprep.subr.mxu0 0.0
    %1256 = vmatpush1.msra.mxu0 0.0
    %1257 = vmatprep.subr.mxu0 0.0
    %1258 = vmatpush1.msra.mxu0 0.0
    %1259 = vmatprep.subr.mxu0 0.0
    %1260 = vmatpush1.msra.mxu0 0.0
    %1261 = vmatprep.subr.mxu0 0.0
    %1262 = vmatpush1.msra.mxu0 0.0
    %1263 = vmatprep.subr.mxu0 0.0
    %1264 = vmatpush1.msra.mxu0 0.0
    %1265 = vmatprep.subr.mxu0 0.0
    %1266 = vmatpush1.msra.mxu0 0.0
    %1267 = vmatprep.subr.mxu0 0.0
    %1268 = vmatpush1.msra.mxu0 0.0
    %1269 = vmatprep.subr.mxu0 0.0
    %1270 = vmatpush1.msra.mxu0 0.0
    %1271 = vmatprep.subr.mxu0 0.0
    %1272 = vmatpush1.msra.mxu0 0.0
    %1273 = vmatprep.subr.mxu0 0.0
    %1274 = vmatpush1.msra.mxu0 0.0
    %1275 = vmatprep.subr.mxu0 0.0
    %1276 = vmatpush1.msra.mxu0 0.0
    %1277 = vmatprep.subr.mxu0 0.0
    %1278 = vmatpush1.msra.mxu0 0.0
    %1279 = vmatprep.subr.mxu0 0.0
    %1280 = vmatpush1.msra.mxu0 0.0
    %1281 = vmatprep.subr.mxu0 0.0
    %1282 = vmatpush1.msra.mxu0 0.0
    %1283 = vmatprep.subr.mxu0 0.0
    %v1284 = vand.u32 %v77, 4294901760
    %v1285 = vsub.f32 %v77, %v1284
    %1286 = vmatpush1.msra.mxu0 %v1285
    %1287 = vmatprep.subr.mxu0 0.0
    %1288 = vmatpush2.msra.mxu0 0.0
    %1289 = vmatprep.subr.mxu0 0.0
    %1290 = vmatpush2.msra.mxu0 0.0
    %1291 = vmatprep.subr.mxu0 0.0
    %1292 = vmatpush2.msra.mxu0 0.0
    %1293 = vmatprep.subr.mxu0 0.0
    %1294 = vmatpush2.msra.mxu0 0.0
    %1295 = vmatprep.subr.mxu0 0.0
    %1296 = vmatpush2.msra.mxu0 0.0
    %1297 = vmatprep.subr.mxu0 0.0
    %1298 = vmatpush2.msra.mxu0 0.0
    %1299 = vmatprep.subr.mxu0 0.0
    %1300 = vmatpush2.msra.mxu0 0.0
    %1301 = vmatprep.subr.mxu0 0.0
    %1302 = vmatpush2.msra.mxu0 0.0
    %1303 = vmatprep.subr.mxu0 0.0
    %1304 = vmatpush2.msra.mxu0 0.0
    %1305 = vmatprep.subr.mxu0 0.0
    %1306 = vmatpush2.msra.mxu0 0.0
    %1307 = vmatprep.subr.mxu0 0.0
    %1308 = vmatpush2.msra.mxu0 0.0
    %1309 = vmatprep.subr.mxu0 0.0
    %1310 = vmatpush2.msra.mxu0 0.0
    %1311 = vmatprep.subr.mxu0 0.0
    %1312 = vmatpush2.msra.mxu0 0.0
    %1313 = vmatprep.subr.mxu0 0.0
    %1314 = vmatpush2.msra.mxu0 0.0
    %1315 = vmatprep.subr.mxu0 0.0
    %1316 = vmatpush2.msra.mxu0 0.0
    %1317 = vmatprep.subr.mxu0 0.0
    %1318 = vmatpush2.msra.mxu0 0.0
    %1319 = vmatprep.mubr.f32.mxu0 0.0
    %v1320 = vand.u32 %v1099, 4294901760
    %v1321 = vsub.f32 %v1099, %v1320
    %1322 = vmatmul.mubr.f32.gmra.mxu0 %v1321
    %v1323 = vpop.f32.mrf.mxu0
    %v1324 = vadd.f32 %v1250, %v1323
    %v1325 = vpop.f32.mrf.mxu0
    %1326 = vdwg.mxu0
    %1327 = vmatprep.subr.mxu0 0.0
    %1328 = vmatpush1.msra.mxu0 0.0
    %1329 = vmatprep.subr.mxu0 0.0
    %1330 = vmatpush1.msra.mxu0 0.0
    %1331 = vmatprep.subr.mxu0 0.0
    %1332 = vmatpush1.msra.mxu0 0.0
    %1333 = vmatprep.subr.mxu0 0.0
    %1334 = vmatpush1.msra.mxu0 0.0
    %1335 = vmatprep.subr.mxu0 0.0
    %1336 = vmatpush1.msra.mxu0 0.0
    %1337 = vmatprep.subr.mxu0 0.0
    %1338 = vmatpush1.msra.mxu0 0.0
    %1339 = vmatprep.subr.mxu0 0.0
    %1340 = vmatpush1.msra.mxu0 0.0
    %1341 = vmatprep.subr.mxu0 0.0
    %1342 = vmatpush1.msra.mxu0 0.0
    %1343 = vmatprep.subr.mxu0 0.0
    %1344 = vmatpush1.msra.mxu0 0.0
    %1345 = vmatprep.subr.mxu0 0.0
    %1346 = vmatpush1.msra.mxu0 0.0
    %1347 = vmatprep.subr.mxu0 0.0
    %1348 = vmatpush1.msra.mxu0 0.0
    %1349 = vmatprep.subr.mxu0 0.0
    %1350 = vmatpush1.msra.mxu0 0.0
    %1351 = vmatprep.subr.mxu0 0.0
    %1352 = vmatpush1.msra.mxu0 0.0
    %1353 = vmatprep.subr.mxu0 0.0
    %1354 = vmatpush1.msra.mxu0 0.0
    %1355 = vmatprep.subr.mxu0 0.0
    %1356 = vmatpush1.msra.mxu0 0.0
    %1357 = vmatprep.subr.mxu0 0.0
    %v1358 = vand.u32 %v77, 4294901760
    %1359 = vmatpush1.msra.mxu0 %v1358
    %1360 = vmatprep.subr.mxu0 0.0
    %1361 = vmatpush2.msra.mxu0 0.0
    %1362 = vmatprep.subr.mxu0 0.0
    %1363 = vmatpush2.msra.mxu0 0.0
    %1364 = vmatprep.subr.mxu0 0.0
    %1365 = vmatpush2.msra.mxu0 0.0
    %1366 = vmatprep.subr.mxu0 0.0
    %1367 = vmatpush2.msra.mxu0 0.0
    %1368 = vmatprep.subr.mxu0 0.0
    %1369 = vmatpush2.msra.mxu0 0.0
    %1370 = vmatprep.subr.mxu0 0.0
    %1371 = vmatpush2.msra.mxu0 0.0
    %1372 = vmatprep.subr.mxu0 0.0
    %1373 = vmatpush2.msra.mxu0 0.0
    %1374 = vmatprep.subr.mxu0 0.0
    %1375 = vmatpush2.msra.mxu0 0.0
    %1376 = vmatprep.subr.mxu0 0.0
    %1377 = vmatpush2.msra.mxu0 0.0
    %1378 = vmatprep.subr.mxu0 0.0
    %1379 = vmatpush2.msra.mxu0 0.0
    %1380 = vmatprep.subr.mxu0 0.0
    %1381 = vmatpush2.msra.mxu0 0.0
    %1382 = vmatprep.subr.mxu0 0.0
    %1383 = vmatpush2.msra.mxu0 0.0
    %1384 = vmatprep.subr.mxu0 0.0
    %1385 = vmatpush2.msra.mxu0 0.0
    %1386 = vmatprep.subr.mxu0 0.0
    %1387 = vmatpush2.msra.mxu0 0.0
    %1388 = vmatprep.subr.mxu0 0.0
    %1389 = vmatpush2.msra.mxu0 0.0
    %1390 = vmatprep.subr.mxu0 0.0
    %1391 = vmatpush2.msra.mxu0 0.0
    %1392 = vmatprep.mubr.f32.mxu0 0.0
    %v1393 = vand.u32 %v1099, 4294901760
    %v1394 = vsub.f32 %v1099, %v1393
    %v1395 = vand.u32 %v1394, 4294901760
    %1396 = vmatmul.mubr.f32.gmra.mxu0 %v1395
    %v1397 = vpop.f32.mrf.mxu0
    %v1398 = vadd.f32 %v1324, %v1397
    %v1399 = vpop.f32.mrf.mxu0
    %1400 = vdwg.mxu0
    %1401 = vmatprep.subr.mxu0 0.0
    %1402 = vmatpush1.msra.mxu0 0.0
    %1403 = vmatprep.subr.mxu0 0.0
    %1404 = vmatpush1.msra.mxu0 0.0
    %1405 = vmatprep.subr.mxu0 0.0
    %1406 = vmatpush1.msra.mxu0 0.0
    %1407 = vmatprep.subr.mxu0 0.0
    %1408 = vmatpush1.msra.mxu0 0.0
    %1409 = vmatprep.subr.mxu0 0.0
    %1410 = vmatpush1.msra.mxu0 0.0
    %1411 = vmatprep.subr.mxu0 0.0
    %1412 = vmatpush1.msra.mxu0 0.0
    %1413 = vmatprep.subr.mxu0 0.0
    %1414 = vmatpush1.msra.mxu0 0.0
    %1415 = vmatprep.subr.mxu0 0.0
    %1416 = vmatpush1.msra.mxu0 0.0
    %1417 = vmatprep.subr.mxu0 0.0
    %1418 = vmatpush1.msra.mxu0 0.0
    %1419 = vmatprep.subr.mxu0 0.0
    %1420 = vmatpush1.msra.mxu0 0.0
    %1421 = vmatprep.subr.mxu0 0.0
    %1422 = vmatpush1.msra.mxu0 0.0
    %1423 = vmatprep.subr.mxu0 0.0
    %1424 = vmatpush1.msra.mxu0 0.0
    %1425 = vmatprep.subr.mxu0 0.0
    %1426 = vmatpush1.msra.mxu0 0.0
    %1427 = vmatprep.subr.mxu0 0.0
    %1428 = vmatpush1.msra.mxu0 0.0
    %1429 = vmatprep.subr.mxu0 0.0
    %1430 = vmatpush1.msra.mxu0 0.0
    %1431 = vmatprep.subr.mxu0 0.0
    %v1432 = vand.u32 %v77, 4294901760
    %v1433 = vsub.f32 %v77, %v1432
    %v1434 = vand.u32 %v1433, 4294901760
    %1435 = vmatpush1.msra.mxu0 %v1434
    %1436 = vmatprep.subr.mxu0 0.0
    %1437 = vmatpush2.msra.mxu0 0.0
    %1438 = vmatprep.subr.mxu0 0.0
    %1439 = vmatpush2.msra.mxu0 0.0
    %1440 = vmatprep.subr.mxu0 0.0
    %1441 = vmatpush2.msra.mxu0 0.0
    %1442 = vmatprep.subr.mxu0 0.0
    %1443 = vmatpush2.msra.mxu0 0.0
    %1444 = vmatprep.subr.mxu0 0.0
    %1445 = vmatpush2.msra.mxu0 0.0
    %1446 = vmatprep.subr.mxu0 0.0
    %1447 = vmatpush2.msra.mxu0 0.0
    %1448 = vmatprep.subr.mxu0 0.0
    %1449 = vmatpush2.msra.mxu0 0.0
    %1450 = vmatprep.subr.mxu0 0.0
    %1451 = vmatpush2.msra.mxu0 0.0
    %1452 = vmatprep.subr.mxu0 0.0
    %1453 = vmatpush2.msra.mxu0 0.0
    %1454 = vmatprep.subr.mxu0 0.0
    %1455 = vmatpush2.msra.mxu0 0.0
    %1456 = vmatprep.subr.mxu0 0.0
    %1457 = vmatpush2.msra.mxu0 0.0
    %1458 = vmatprep.subr.mxu0 0.0
    %1459 = vmatpush2.msra.mxu0 0.0
    %1460 = vmatprep.subr.mxu0 0.0
    %1461 = vmatpush2.msra.mxu0 0.0
    %1462 = vmatprep.subr.mxu0 0.0
    %1463 = vmatpush2.msra.mxu0 0.0
    %1464 = vmatprep.subr.mxu0 0.0
    %1465 = vmatpush2.msra.mxu0 0.0
    %1466 = vmatprep.subr.mxu0 0.0
    %1467 = vmatpush2.msra.mxu0 0.0
    %1468 = vmatprep.mubr.f32.mxu0 0.0
    %v1469 = vand.u32 %v1099, 4294901760
    %1470 = vmatmul.mubr.f32.gmra.mxu0 %v1469
    %v1471 = vpop.f32.mrf.mxu0
    %v1472 = vadd.f32 %v1398, %v1471
    %v1473 = vpop.f32.mrf.mxu0
    %1474 = vdwg.mxu0
    %1475 = vmatprep.subr.mxu0 0.0
    %1476 = vmatpush1.msra.mxu0 0.0
    %1477 = vmatprep.subr.mxu0 0.0
    %1478 = vmatpush1.msra.mxu0 0.0
    %1479 = vmatprep.subr.mxu0 0.0
    %1480 = vmatpush1.msra.mxu0 0.0
    %1481 = vmatprep.subr.mxu0 0.0
    %1482 = vmatpush1.msra.mxu0 0.0
    %1483 = vmatprep.subr.mxu0 0.0
    %1484 = vmatpush1.msra.mxu0 0.0
    %1485 = vmatprep.subr.mxu0 0.0
    %1486 = vmatpush1.msra.mxu0 0.0
    %1487 = vmatprep.subr.mxu0 0.0
    %1488 = vmatpush1.msra.mxu0 0.0
    %1489 = vmatprep.subr.mxu0 0.0
    %1490 = vmatpush1.msra.mxu0 0.0
    %1491 = vmatprep.subr.mxu0 0.0
    %1492 = vmatpush1.msra.mxu0 0.0
    %1493 = vmatprep.subr.mxu0 0.0
    %1494 = vmatpush1.msra.mxu0 0.0
    %1495 = vmatprep.subr.mxu0 0.0
    %1496 = vmatpush1.msra.mxu0 0.0
    %1497 = vmatprep.subr.mxu0 0.0
    %1498 = vmatpush1.msra.mxu0 0.0
    %1499 = vmatprep.subr.mxu0 0.0
    %1500 = vmatpush1.msra.mxu0 0.0
    %1501 = vmatprep.subr.mxu0 0.0
    %1502 = vmatpush1.msra.mxu0 0.0
    %1503 = vmatprep.subr.mxu0 0.0
    %1504 = vmatpush1.msra.mxu0 0.0
    %1505 = vmatprep.subr.mxu0 0.0
    %v1506 = vand.u32 %v77, 4294901760
    %1507 = vmatpush1.msra.mxu0 %v1506
    %1508 = vmatprep.subr.mxu0 0.0
    %1509 = vmatpush2.msra.mxu0 0.0
    %1510 = vmatprep.subr.mxu0 0.0
    %1511 = vmatpush2.msra.mxu0 0.0
    %1512 = vmatprep.subr.mxu0 0.0
    %1513 = vmatpush2.msra.mxu0 0.0
    %1514 = vmatprep.subr.mxu0 0.0
    %1515 = vmatpush2.msra.mxu0 0.0
    %1516 = vmatprep.subr.mxu0 0.0
    %1517 = vmatpush2.msra.mxu0 0.0
    %1518 = vmatprep.subr.mxu0 0.0
    %1519 = vmatpush2.msra.mxu0 0.0
    %1520 = vmatprep.subr.mxu0 0.0
    %1521 = vmatpush2.msra.mxu0 0.0
    %1522 = vmatprep.subr.mxu0 0.0
    %1523 = vmatpush2.msra.mxu0 0.0
    %1524 = vmatprep.subr.mxu0 0.0
    %1525 = vmatpush2.msra.mxu0 0.0
    %1526 = vmatprep.subr.mxu0 0.0
    %1527 = vmatpush2.msra.mxu0 0.0
    %1528 = vmatprep.subr.mxu0 0.0
    %1529 = vmatpush2.msra.mxu0 0.0
    %1530 = vmatprep.subr.mxu0 0.0
    %1531 = vmatpush2.msra.mxu0 0.0
    %1532 = vmatprep.subr.mxu0 0.0
    %1533 = vmatpush2.msra.mxu0 0.0
    %1534 = vmatprep.subr.mxu0 0.0
    %1535 = vmatpush2.msra.mxu0 0.0
    %1536 = vmatprep.subr.mxu0 0.0
    %1537 = vmatpush2.msra.mxu0 0.0
    %1538 = vmatprep.subr.mxu0 0.0
    %1539 = vmatpush2.msra.mxu0 0.0
    %1540 = vmatprep.mubr.f32.mxu0 0.0
    %v1541 = vand.u32 %v1099, 4294901760
    %1542 = vmatmul.mubr.f32.gmra.mxu0 %v1541
    %v1543 = vpop.f32.mrf.mxu0
    %v1544 = vadd.f32 %v1472, %v1543
    %v1545 = vpop.f32.mrf.mxu0
    %1546 = vdwg.mxu0
    %v1547 = vsel %vm589, %v647, 0
    %1549 = vmatprep.subr.mxu0 0.0
    %1550 = vmatpush1.msra.mxu0 0.0
    %1551 = vmatprep.subr.mxu0 0.0
    %1552 = vmatpush1.msra.mxu0 0.0
    %1553 = vmatprep.subr.mxu0 0.0
    %1554 = vmatpush1.msra.mxu0 0.0
    %1555 = vmatprep.subr.mxu0 0.0
    %1556 = vmatpush1.msra.mxu0 0.0
    %1557 = vmatprep.subr.mxu0 0.0
    %1558 = vmatpush1.msra.mxu0 0.0
    %1559 = vmatprep.subr.mxu0 0.0
    %1560 = vmatpush1.msra.mxu0 0.0
    %1561 = vmatprep.subr.mxu0 0.0
    %1562 = vmatpush1.msra.mxu0 0.0
    %1563 = vmatprep.subr.mxu0 0.0
    %1564 = vmatpush1.msra.mxu0 0.0
    %1565 = vmatprep.subr.mxu0 0.0
    %1566 = vmatpush1.msra.mxu0 0.0
    %1567 = vmatprep.subr.mxu0 0.0
    %1568 = vmatpush1.msra.mxu0 0.0
    %1569 = vmatprep.subr.mxu0 0.0
    %1570 = vmatpush1.msra.mxu0 0.0
    %1571 = vmatprep.subr.mxu0 0.0
    %1572 = vmatpush1.msra.mxu0 0.0
    %1573 = vmatprep.subr.mxu0 0.0
    %1574 = vmatpush1.msra.mxu0 0.0
    %1575 = vmatprep.subr.mxu0 0.0
    %1576 = vmatpush1.msra.mxu0 0.0
    %1577 = vmatprep.subr.mxu0 0.0
    %1578 = vmatpush1.msra.mxu0 0.0
    %1579 = vmatprep.subr.mxu0 0.0
    %v1580 = vand.u32 %v78, 4294901760
    %1581 = vmatpush1.msra.mxu0 %v1580
    %1582 = vmatprep.subr.mxu0 0.0
    %1583 = vmatpush2.msra.mxu0 0.0
    %1584 = vmatprep.subr.mxu0 0.0
    %1585 = vmatpush2.msra.mxu0 0.0
    %1586 = vmatprep.subr.mxu0 0.0
    %1587 = vmatpush2.msra.mxu0 0.0
    %1588 = vmatprep.subr.mxu0 0.0
    %1589 = vmatpush2.msra.mxu0 0.0
    %1590 = vmatprep.subr.mxu0 0.0
    %1591 = vmatpush2.msra.mxu0 0.0
    %1592 = vmatprep.subr.mxu0 0.0
    %1593 = vmatpush2.msra.mxu0 0.0
    %1594 = vmatprep.subr.mxu0 0.0
    %1595 = vmatpush2.msra.mxu0 0.0
    %1596 = vmatprep.subr.mxu0 0.0
    %1597 = vmatpush2.msra.mxu0 0.0
    %1598 = vmatprep.subr.mxu0 0.0
    %1599 = vmatpush2.msra.mxu0 0.0
    %1600 = vmatprep.subr.mxu0 0.0
    %1601 = vmatpush2.msra.mxu0 0.0
    %1602 = vmatprep.subr.mxu0 0.0
    %1603 = vmatpush2.msra.mxu0 0.0
    %1604 = vmatprep.subr.mxu0 0.0
    %1605 = vmatpush2.msra.mxu0 0.0
    %1606 = vmatprep.subr.mxu0 0.0
    %1607 = vmatpush2.msra.mxu0 0.0
    %1608 = vmatprep.subr.mxu0 0.0
    %1609 = vmatpush2.msra.mxu0 0.0
    %1610 = vmatprep.subr.mxu0 0.0
    %1611 = vmatpush2.msra.mxu0 0.0
    %1612 = vmatprep.subr.mxu0 0.0
    %1613 = vmatpush2.msra.mxu0 0.0
    %1614 = vmatprep.mubr.f32.mxu0 0.0
    %v1615 = vand.u32 %v1547, 4294901760
    %v1616 = vsub.f32 %v1547, %v1615
    %v1617 = vand.u32 %v1616, 4294901760
    %v1618 = vsub.f32 %v1616, %v1617
    %v1619 = vand.u32 %v1618, 4294901760
    %1620 = vmatmul.mubr.f32.gmra.mxu0 %v1619
    %v1621 = vpop.f32.mrf.mxu0
    %v1622 = vadd.f32 0.0, %v1621
    %v1623 = vpop.f32.mrf.mxu0
    %1624 = vdwg.mxu0
    %1625 = vmatprep.subr.mxu0 0.0
    %1626 = vmatpush1.msra.mxu0 0.0
    %1627 = vmatprep.subr.mxu0 0.0
    %1628 = vmatpush1.msra.mxu0 0.0
    %1629 = vmatprep.subr.mxu0 0.0
    %1630 = vmatpush1.msra.mxu0 0.0
    %1631 = vmatprep.subr.mxu0 0.0
    %1632 = vmatpush1.msra.mxu0 0.0
    %1633 = vmatprep.subr.mxu0 0.0
    %1634 = vmatpush1.msra.mxu0 0.0
    %1635 = vmatprep.subr.mxu0 0.0
    %1636 = vmatpush1.msra.mxu0 0.0
    %1637 = vmatprep.subr.mxu0 0.0
    %1638 = vmatpush1.msra.mxu0 0.0
    %1639 = vmatprep.subr.mxu0 0.0
    %1640 = vmatpush1.msra.mxu0 0.0
    %1641 = vmatprep.subr.mxu0 0.0
    %1642 = vmatpush1.msra.mxu0 0.0
    %1643 = vmatprep.subr.mxu0 0.0
    %1644 = vmatpush1.msra.mxu0 0.0
    %1645 = vmatprep.subr.mxu0 0.0
    %1646 = vmatpush1.msra.mxu0 0.0
    %1647 = vmatprep.subr.mxu0 0.0
    %1648 = vmatpush1.msra.mxu0 0.0
    %1649 = vmatprep.subr.mxu0 0.0
    %1650 = vmatpush1.msra.mxu0 0.0
    %1651 = vmatprep.subr.mxu0 0.0
    %1652 = vmatpush1.msra.mxu0 0.0
    %1653 = vmatprep.subr.mxu0 0.0
    %1654 = vmatpush1.msra.mxu0 0.0
    %1655 = vmatprep.subr.mxu0 0.0
    %v1656 = vand.u32 %v78, 4294901760
    %v1657 = vsub.f32 %v78, %v1656
    %v1658 = vand.u32 %v1657, 4294901760
    %v1659 = vsub.f32 %v1657, %v1658
    %v1660 = vand.u32 %v1659, 4294901760
    %1661 = vmatpush1.msra.mxu0 %v1660
    %1662 = vmatprep.subr.mxu0 0.0
    %1663 = vmatpush2.msra.mxu0 0.0
    %1664 = vmatprep.subr.mxu0 0.0
    %1665 = vmatpush2.msra.mxu0 0.0
    %1666 = vmatprep.subr.mxu0 0.0
    %1667 = vmatpush2.msra.mxu0 0.0
    %1668 = vmatprep.subr.mxu0 0.0
    %1669 = vmatpush2.msra.mxu0 0.0
    %1670 = vmatprep.subr.mxu0 0.0
    %1671 = vmatpush2.msra.mxu0 0.0
    %1672 = vmatprep.subr.mxu0 0.0
    %1673 = vmatpush2.msra.mxu0 0.0
    %1674 = vmatprep.subr.mxu0 0.0
    %1675 = vmatpush2.msra.mxu0 0.0
    %1676 = vmatprep.subr.mxu0 0.0
    %1677 = vmatpush2.msra.mxu0 0.0
    %1678 = vmatprep.subr.mxu0 0.0
    %1679 = vmatpush2.msra.mxu0 0.0
    %1680 = vmatprep.subr.mxu0 0.0
    %1681 = vmatpush2.msra.mxu0 0.0
    %1682 = vmatprep.subr.mxu0 0.0
    %1683 = vmatpush2.msra.mxu0 0.0
    %1684 = vmatprep.subr.mxu0 0.0
    %1685 = vmatpush2.msra.mxu0 0.0
    %1686 = vmatprep.subr.mxu0 0.0
    %1687 = vmatpush2.msra.mxu0 0.0
    %1688 = vmatprep.subr.mxu0 0.0
    %1689 = vmatpush2.msra.mxu0 0.0
    %1690 = vmatprep.subr.mxu0 0.0
    %1691 = vmatpush2.msra.mxu0 0.0
    %1692 = vmatprep.subr.mxu0 0.0
    %1693 = vmatpush2.msra.mxu0 0.0
    %1694 = vmatprep.mubr.f32.mxu0 0.0
    %v1695 = vand.u32 %v1547, 4294901760
    %1696 = vmatmul.mubr.f32.gmra.mxu0 %v1695
    %v1697 = vpop.f32.mrf.mxu0
    %v1698 = vadd.f32 %v1622, %v1697
    %v1699 = vpop.f32.mrf.mxu0
    %1700 = vdwg.mxu0
    %1701 = vmatprep.subr.mxu0 0.0
    %1702 = vmatpush1.msra.mxu0 0.0
    %1703 = vmatprep.subr.mxu0 0.0
    %1704 = vmatpush1.msra.mxu0 0.0
    %1705 = vmatprep.subr.mxu0 0.0
    %1706 = vmatpush1.msra.mxu0 0.0
    %1707 = vmatprep.subr.mxu0 0.0
    %1708 = vmatpush1.msra.mxu0 0.0
    %1709 = vmatprep.subr.mxu0 0.0
    %1710 = vmatpush1.msra.mxu0 0.0
    %1711 = vmatprep.subr.mxu0 0.0
    %1712 = vmatpush1.msra.mxu0 0.0
    %1713 = vmatprep.subr.mxu0 0.0
    %1714 = vmatpush1.msra.mxu0 0.0
    %1715 = vmatprep.subr.mxu0 0.0
    %1716 = vmatpush1.msra.mxu0 0.0
    %1717 = vmatprep.subr.mxu0 0.0
    %1718 = vmatpush1.msra.mxu0 0.0
    %1719 = vmatprep.subr.mxu0 0.0
    %1720 = vmatpush1.msra.mxu0 0.0
    %1721 = vmatprep.subr.mxu0 0.0
    %1722 = vmatpush1.msra.mxu0 0.0
    %1723 = vmatprep.subr.mxu0 0.0
    %1724 = vmatpush1.msra.mxu0 0.0
    %1725 = vmatprep.subr.mxu0 0.0
    %1726 = vmatpush1.msra.mxu0 0.0
    %1727 = vmatprep.subr.mxu0 0.0
    %1728 = vmatpush1.msra.mxu0 0.0
    %1729 = vmatprep.subr.mxu0 0.0
    %1730 = vmatpush1.msra.mxu0 0.0
    %1731 = vmatprep.subr.mxu0 0.0
    %v1732 = vand.u32 %v78, 4294901760
    %v1733 = vsub.f32 %v78, %v1732
    %1734 = vmatpush1.msra.mxu0 %v1733
    %1735 = vmatprep.subr.mxu0 0.0
    %1736 = vmatpush2.msra.mxu0 0.0
    %1737 = vmatprep.subr.mxu0 0.0
    %1738 = vmatpush2.msra.mxu0 0.0
    %1739 = vmatprep.subr.mxu0 0.0
    %1740 = vmatpush2.msra.mxu0 0.0
    %1741 = vmatprep.subr.mxu0 0.0
    %1742 = vmatpush2.msra.mxu0 0.0
    %1743 = vmatprep.subr.mxu0 0.0
    %1744 = vmatpush2.msra.mxu0 0.0
    %1745 = vmatprep.subr.mxu0 0.0
    %1746 = vmatpush2.msra.mxu0 0.0
    %1747 = vmatprep.subr.mxu0 0.0
    %1748 = vmatpush2.msra.mxu0 0.0
    %1749 = vmatprep.subr.mxu0 0.0
    %1750 = vmatpush2.msra.mxu0 0.0
    %1751 = vmatprep.subr.mxu0 0.0
    %1752 = vmatpush2.msra.mxu0 0.0
    %1753 = vmatprep.subr.mxu0 0.0
    %1754 = vmatpush2.msra.mxu0 0.0
    %1755 = vmatprep.subr.mxu0 0.0
    %1756 = vmatpush2.msra.mxu0 0.0
    %1757 = vmatprep.subr.mxu0 0.0
    %1758 = vmatpush2.msra.mxu0 0.0
    %1759 = vmatprep.subr.mxu0 0.0
    %1760 = vmatpush2.msra.mxu0 0.0
    %1761 = vmatprep.subr.mxu0 0.0
    %1762 = vmatpush2.msra.mxu0 0.0
    %1763 = vmatprep.subr.mxu0 0.0
    %1764 = vmatpush2.msra.mxu0 0.0
    %1765 = vmatprep.subr.mxu0 0.0
    %1766 = vmatpush2.msra.mxu0 0.0
    %1767 = vmatprep.mubr.f32.mxu0 0.0
    %v1768 = vand.u32 %v1547, 4294901760
    %v1769 = vsub.f32 %v1547, %v1768
    %1770 = vmatmul.mubr.f32.gmra.mxu0 %v1769
    %v1771 = vpop.f32.mrf.mxu0
    %v1772 = vadd.f32 %v1698, %v1771
    %v1773 = vpop.f32.mrf.mxu0
    %1774 = vdwg.mxu0
    %1775 = vmatprep.subr.mxu0 0.0
    %1776 = vmatpush1.msra.mxu0 0.0
    %1777 = vmatprep.subr.mxu0 0.0
    %1778 = vmatpush1.msra.mxu0 0.0
    %1779 = vmatprep.subr.mxu0 0.0
    %1780 = vmatpush1.msra.mxu0 0.0
    %1781 = vmatprep.subr.mxu0 0.0
    %1782 = vmatpush1.msra.mxu0 0.0
    %1783 = vmatprep.subr.mxu0 0.0
    %1784 = vmatpush1.msra.mxu0 0.0
    %1785 = vmatprep.subr.mxu0 0.0
    %1786 = vmatpush1.msra.mxu0 0.0
    %1787 = vmatprep.subr.mxu0 0.0
    %1788 = vmatpush1.msra.mxu0 0.0
    %1789 = vmatprep.subr.mxu0 0.0
    %1790 = vmatpush1.msra.mxu0 0.0
    %1791 = vmatprep.subr.mxu0 0.0
    %1792 = vmatpush1.msra.mxu0 0.0
    %1793 = vmatprep.subr.mxu0 0.0
    %1794 = vmatpush1.msra.mxu0 0.0
    %1795 = vmatprep.subr.mxu0 0.0
    %1796 = vmatpush1.msra.mxu0 0.0
    %1797 = vmatprep.subr.mxu0 0.0
    %1798 = vmatpush1.msra.mxu0 0.0
    %1799 = vmatprep.subr.mxu0 0.0
    %1800 = vmatpush1.msra.mxu0 0.0
    %1801 = vmatprep.subr.mxu0 0.0
    %1802 = vmatpush1.msra.mxu0 0.0
    %1803 = vmatprep.subr.mxu0 0.0
    %1804 = vmatpush1.msra.mxu0 0.0
    %1805 = vmatprep.subr.mxu0 0.0
    %v1806 = vand.u32 %v78, 4294901760
    %1807 = vmatpush1.msra.mxu0 %v1806
    %1808 = vmatprep.subr.mxu0 0.0
    %1809 = vmatpush2.msra.mxu0 0.0
    %1810 = vmatprep.subr.mxu0 0.0
    %1811 = vmatpush2.msra.mxu0 0.0
    %1812 = vmatprep.subr.mxu0 0.0
    %1813 = vmatpush2.msra.mxu0 0.0
    %1814 = vmatprep.subr.mxu0 0.0
    %1815 = vmatpush2.msra.mxu0 0.0
    %1816 = vmatprep.subr.mxu0 0.0
    %1817 = vmatpush2.msra.mxu0 0.0
    %1818 = vmatprep.subr.mxu0 0.0
    %1819 = vmatpush2.msra.mxu0 0.0
    %1820 = vmatprep.subr.mxu0 0.0
    %1821 = vmatpush2.msra.mxu0 0.0
    %1822 = vmatprep.subr.mxu0 0.0
    %1823 = vmatpush2.msra.mxu0 0.0
    %1824 = vmatprep.subr.mxu0 0.0
    %1825 = vmatpush2.msra.mxu0 0.0
    %1826 = vmatprep.subr.mxu0 0.0
    %1827 = vmatpush2.msra.mxu0 0.0
    %1828 = vmatprep.subr.mxu0 0.0
    %1829 = vmatpush2.msra.mxu0 0.0
    %1830 = vmatprep.subr.mxu0 0.0
    %1831 = vmatpush2.msra.mxu0 0.0
    %1832 = vmatprep.subr.mxu0 0.0
    %1833 = vmatpush2.msra.mxu0 0.0
    %1834 = vmatprep.subr.mxu0 0.0
    %1835 = vmatpush2.msra.mxu0 0.0
    %1836 = vmatprep.subr.mxu0 0.0
    %1837 = vmatpush2.msra.mxu0 0.0
    %1838 = vmatprep.subr.mxu0 0.0
    %1839 = vmatpush2.msra.mxu0 0.0
    %1840 = vmatprep.mubr.f32.mxu0 0.0
    %v1841 = vand.u32 %v1547, 4294901760
    %v1842 = vsub.f32 %v1547, %v1841
    %v1843 = vand.u32 %v1842, 4294901760
    %1844 = vmatmul.mubr.f32.gmra.mxu0 %v1843
    %v1845 = vpop.f32.mrf.mxu0
    %v1846 = vadd.f32 %v1772, %v1845
    %v1847 = vpop.f32.mrf.mxu0
    %1848 = vdwg.mxu0
    %1849 = vmatprep.subr.mxu0 0.0
    %1850 = vmatpush1.msra.mxu0 0.0
    %1851 = vmatprep.subr.mxu0 0.0
    %1852 = vmatpush1.msra.mxu0 0.0
    %1853 = vmatprep.subr.mxu0 0.0
    %1854 = vmatpush1.msra.mxu0 0.0
    %1855 = vmatprep.subr.mxu0 0.0
    %1856 = vmatpush1.msra.mxu0 0.0
    %1857 = vmatprep.subr.mxu0 0.0
    %1858 = vmatpush1.msra.mxu0 0.0
    %1859 = vmatprep.subr.mxu0 0.0
    %1860 = vmatpush1.msra.mxu0 0.0
    %1861 = vmatprep.subr.mxu0 0.0
    %1862 = vmatpush1.msra.mxu0 0.0
    %1863 = vmatprep.subr.mxu0 0.0
    %1864 = vmatpush1.msra.mxu0 0.0
    %1865 = vmatprep.subr.mxu0 0.0
    %1866 = vmatpush1.msra.mxu0 0.0
    %1867 = vmatprep.subr.mxu0 0.0
    %1868 = vmatpush1.msra.mxu0 0.0
    %1869 = vmatprep.subr.mxu0 0.0
    %1870 = vmatpush1.msra.mxu0 0.0
    %1871 = vmatprep.subr.mxu0 0.0
    %1872 = vmatpush1.msra.mxu0 0.0
    %1873 = vmatprep.subr.mxu0 0.0
    %1874 = vmatpush1.msra.mxu0 0.0
    %1875 = vmatprep.subr.mxu0 0.0
    %1876 = vmatpush1.msra.mxu0 0.0
    %1877 = vmatprep.subr.mxu0 0.0
    %1878 = vmatpush1.msra.mxu0 0.0
    %1879 = vmatprep.subr.mxu0 0.0
    %v1880 = vand.u32 %v78, 4294901760
    %v1881 = vsub.f32 %v78, %v1880
    %v1882 = vand.u32 %v1881, 4294901760
    %1883 = vmatpush1.msra.mxu0 %v1882
    %1884 = vmatprep.subr.mxu0 0.0
    %1885 = vmatpush2.msra.mxu0 0.0
    %1886 = vmatprep.subr.mxu0 0.0
    %1887 = vmatpush2.msra.mxu0 0.0
    %1888 = vmatprep.subr.mxu0 0.0
    %1889 = vmatpush2.msra.mxu0 0.0
    %1890 = vmatprep.subr.mxu0 0.0
    %1891 = vmatpush2.msra.mxu0 0.0
    %1892 = vmatprep.subr.mxu0 0.0
    %1893 = vmatpush2.msra.mxu0 0.0
    %1894 = vmatprep.subr.mxu0 0.0
    %1895 = vmatpush2.msra.mxu0 0.0
    %1896 = vmatprep.subr.mxu0 0.0
    %1897 = vmatpush2.msra.mxu0 0.0
    %1898 = vmatprep.subr.mxu0 0.0
    %1899 = vmatpush2.msra.mxu0 0.0
    %1900 = vmatprep.subr.mxu0 0.0
    %1901 = vmatpush2.msra.mxu0 0.0
    %1902 = vmatprep.subr.mxu0 0.0
    %1903 = vmatpush2.msra.mxu0 0.0
    %1904 = vmatprep.subr.mxu0 0.0
    %1905 = vmatpush2.msra.mxu0 0.0
    %1906 = vmatprep.subr.mxu0 0.0
    %1907 = vmatpush2.msra.mxu0 0.0
    %1908 = vmatprep.subr.mxu0 0.0
    %1909 = vmatpush2.msra.mxu0 0.0
    %1910 = vmatprep.subr.mxu0 0.0
    %1911 = vmatpush2.msra.mxu0 0.0
    %1912 = vmatprep.subr.mxu0 0.0
    %1913 = vmatpush2.msra.mxu0 0.0
    %1914 = vmatprep.subr.mxu0 0.0
    %1915 = vmatpush2.msra.mxu0 0.0
    %1916 = vmatprep.mubr.f32.mxu0 0.0
    %v1917 = vand.u32 %v1547, 4294901760
    %1918 = vmatmul.mubr.f32.gmra.mxu0 %v1917
    %v1919 = vpop.f32.mrf.mxu0
    %v1920 = vadd.f32 %v1846, %v1919
    %v1921 = vpop.f32.mrf.mxu0
    %1922 = vdwg.mxu0
    %1923 = vmatprep.subr.mxu0 0.0
    %1924 = vmatpush1.msra.mxu0 0.0
    %1925 = vmatprep.subr.mxu0 0.0
    %1926 = vmatpush1.msra.mxu0 0.0
    %1927 = vmatprep.subr.mxu0 0.0
    %1928 = vmatpush1.msra.mxu0 0.0
    %1929 = vmatprep.subr.mxu0 0.0
    %1930 = vmatpush1.msra.mxu0 0.0
    %1931 = vmatprep.subr.mxu0 0.0
    %1932 = vmatpush1.msra.mxu0 0.0
    %1933 = vmatprep.subr.mxu0 0.0
    %1934 = vmatpush1.msra.mxu0 0.0
    %1935 = vmatprep.subr.mxu0 0.0
    %1936 = vmatpush1.msra.mxu0 0.0
    %1937 = vmatprep.subr.mxu0 0.0
    %1938 = vmatpush1.msra.mxu0 0.0
    %1939 = vmatprep.subr.mxu0 0.0
    %1940 = vmatpush1.msra.mxu0 0.0
    %1941 = vmatprep.subr.mxu0 0.0
    %1942 = vmatpush1.msra.mxu0 0.0
    %1943 = vmatprep.subr.mxu0 0.0
    %1944 = vmatpush1.msra.mxu0 0.0
    %1945 = vmatprep.subr.mxu0 0.0
    %1946 = vmatpush1.msra.mxu0 0.0
    %1947 = vmatprep.subr.mxu0 0.0
    %1948 = vmatpush1.msra.mxu0 0.0
    %1949 = vmatprep.subr.mxu0 0.0
    %1950 = vmatpush1.msra.mxu0 0.0
    %1951 = vmatprep.subr.mxu0 0.0
    %1952 = vmatpush1.msra.mxu0 0.0
    %1953 = vmatprep.subr.mxu0 0.0
    %v1954 = vand.u32 %v78, 4294901760
    %1955 = vmatpush1.msra.mxu0 %v1954
    %1956 = vmatprep.subr.mxu0 0.0
    %1957 = vmatpush2.msra.mxu0 0.0
    %1958 = vmatprep.subr.mxu0 0.0
    %1959 = vmatpush2.msra.mxu0 0.0
    %1960 = vmatprep.subr.mxu0 0.0
    %1961 = vmatpush2.msra.mxu0 0.0
    %1962 = vmatprep.subr.mxu0 0.0
    %1963 = vmatpush2.msra.mxu0 0.0
    %1964 = vmatprep.subr.mxu0 0.0
    %1965 = vmatpush2.msra.mxu0 0.0
    %1966 = vmatprep.subr.mxu0 0.0
    %1967 = vmatpush2.msra.mxu0 0.0
    %1968 = vmatprep.subr.mxu0 0.0
    %1969 = vmatpush2.msra.mxu0 0.0
    %1970 = vmatprep.subr.mxu0 0.0
    %1971 = vmatpush2.msra.mxu0 0.0
    %1972 = vmatprep.subr.mxu0 0.0
    %1973 = vmatpush2.msra.mxu0 0.0
    %1974 = vmatprep.subr.mxu0 0.0
    %1975 = vmatpush2.msra.mxu0 0.0
    %1976 = vmatprep.subr.mxu0 0.0
    %1977 = vmatpush2.msra.mxu0 0.0
    %1978 = vmatprep.subr.mxu0 0.0
    %1979 = vmatpush2.msra.mxu0 0.0
    %1980 = vmatprep.subr.mxu0 0.0
    %1981 = vmatpush2.msra.mxu0 0.0
    %1982 = vmatprep.subr.mxu0 0.0
    %1983 = vmatpush2.msra.mxu0 0.0
    %1984 = vmatprep.subr.mxu0 0.0
    %1985 = vmatpush2.msra.mxu0 0.0
    %1986 = vmatprep.subr.mxu0 0.0
    %1987 = vmatpush2.msra.mxu0 0.0
    %1988 = vmatprep.mubr.f32.mxu0 0.0
    %v1989 = vand.u32 %v1547, 4294901760
    %1990 = vmatmul.mubr.f32.gmra.mxu0 %v1989
    %v1991 = vpop.f32.mrf.mxu0
    %v1992 = vadd.f32 %v1920, %v1991
    %v1993 = vpop.f32.mrf.mxu0
    %1994 = vdwg.mxu0
    %v1995 = vsel %vm589, %v649, 0
    %1997 = vmatprep.subr.mxu0 0.0
    %1998 = vmatpush1.msra.mxu0 0.0
    %1999 = vmatprep.subr.mxu0 0.0
    %2000 = vmatpush1.msra.mxu0 0.0
    %2001 = vmatprep.subr.mxu0 0.0
    %2002 = vmatpush1.msra.mxu0 0.0
    %2003 = vmatprep.subr.mxu0 0.0
    %2004 = vmatpush1.msra.mxu0 0.0
    %2005 = vmatprep.subr.mxu0 0.0
    %2006 = vmatpush1.msra.mxu0 0.0
    %2007 = vmatprep.subr.mxu0 0.0
    %2008 = vmatpush1.msra.mxu0 0.0
    %2009 = vmatprep.subr.mxu0 0.0
    %2010 = vmatpush1.msra.mxu0 0.0
    %2011 = vmatprep.subr.mxu0 0.0
    %2012 = vmatpush1.msra.mxu0 0.0
    %2013 = vmatprep.subr.mxu0 0.0
    %2014 = vmatpush1.msra.mxu0 0.0
    %2015 = vmatprep.subr.mxu0 0.0
    %2016 = vmatpush1.msra.mxu0 0.0
    %2017 = vmatprep.subr.mxu0 0.0
    %2018 = vmatpush1.msra.mxu0 0.0
    %2019 = vmatprep.subr.mxu0 0.0
    %2020 = vmatpush1.msra.mxu0 0.0
    %2021 = vmatprep.subr.mxu0 0.0
    %2022 = vmatpush1.msra.mxu0 0.0
    %2023 = vmatprep.subr.mxu0 0.0
    %2024 = vmatpush1.msra.mxu0 0.0
    %2025 = vmatprep.subr.mxu0 0.0
    %2026 = vmatpush1.msra.mxu0 0.0
    %2027 = vmatprep.subr.mxu0 0.0
    %v2028 = vand.u32 %v79, 4294901760
    %2029 = vmatpush1.msra.mxu0 %v2028
    %2030 = vmatprep.subr.mxu0 0.0
    %2031 = vmatpush2.msra.mxu0 0.0
    %2032 = vmatprep.subr.mxu0 0.0
    %2033 = vmatpush2.msra.mxu0 0.0
    %2034 = vmatprep.subr.mxu0 0.0
    %2035 = vmatpush2.msra.mxu0 0.0
    %2036 = vmatprep.subr.mxu0 0.0
    %2037 = vmatpush2.msra.mxu0 0.0
    %2038 = vmatprep.subr.mxu0 0.0
    %2039 = vmatpush2.msra.mxu0 0.0
    %2040 = vmatprep.subr.mxu0 0.0
    %2041 = vmatpush2.msra.mxu0 0.0
    %2042 = vmatprep.subr.mxu0 0.0
    %2043 = vmatpush2.msra.mxu0 0.0
    %2044 = vmatprep.subr.mxu0 0.0
    %2045 = vmatpush2.msra.mxu0 0.0
    %2046 = vmatprep.subr.mxu0 0.0
    %2047 = vmatpush2.msra.mxu0 0.0
    %2048 = vmatprep.subr.mxu0 0.0
    %2049 = vmatpush2.msra.mxu0 0.0
    %2050 = vmatprep.subr.mxu0 0.0
    %2051 = vmatpush2.msra.mxu0 0.0
    %2052 = vmatprep.subr.mxu0 0.0
    %2053 = vmatpush2.msra.mxu0 0.0
    %2054 = vmatprep.subr.mxu0 0.0
    %2055 = vmatpush2.msra.mxu0 0.0
    %2056 = vmatprep.subr.mxu0 0.0
    %2057 = vmatpush2.msra.mxu0 0.0
    %2058 = vmatprep.subr.mxu0 0.0
    %2059 = vmatpush2.msra.mxu0 0.0
    %2060 = vmatprep.subr.mxu0 0.0
    %2061 = vmatpush2.msra.mxu0 0.0
    %2062 = vmatprep.mubr.f32.mxu0 0.0
    %v2063 = vand.u32 %v1995, 4294901760
    %v2064 = vsub.f32 %v1995, %v2063
    %v2065 = vand.u32 %v2064, 4294901760
    %v2066 = vsub.f32 %v2064, %v2065
    %v2067 = vand.u32 %v2066, 4294901760
    %2068 = vmatmul.mubr.f32.gmra.mxu0 %v2067
    %v2069 = vpop.f32.mrf.mxu0
    %v2070 = vadd.f32 0.0, %v2069
    %v2071 = vpop.f32.mrf.mxu0
    %2072 = vdwg.mxu0
    %2073 = vmatprep.subr.mxu0 0.0
    %2074 = vmatpush1.msra.mxu0 0.0
    %2075 = vmatprep.subr.mxu0 0.0
    %2076 = vmatpush1.msra.mxu0 0.0
    %2077 = vmatprep.subr.mxu0 0.0
    %2078 = vmatpush1.msra.mxu0 0.0
    %2079 = vmatprep.subr.mxu0 0.0
    %2080 = vmatpush1.msra.mxu0 0.0
    %2081 = vmatprep.subr.mxu0 0.0
    %2082 = vmatpush1.msra.mxu0 0.0
    %2083 = vmatprep.subr.mxu0 0.0
    %2084 = vmatpush1.msra.mxu0 0.0
    %2085 = vmatprep.subr.mxu0 0.0
    %2086 = vmatpush1.msra.mxu0 0.0
    %2087 = vmatprep.subr.mxu0 0.0
    %2088 = vmatpush1.msra.mxu0 0.0
    %2089 = vmatprep.subr.mxu0 0.0
    %2090 = vmatpush1.msra.mxu0 0.0
    %2091 = vmatprep.subr.mxu0 0.0
    %2092 = vmatpush1.msra.mxu0 0.0
    %2093 = vmatprep.subr.mxu0 0.0
    %2094 = vmatpush1.msra.mxu0 0.0
    %2095 = vmatprep.subr.mxu0 0.0
    %2096 = vmatpush1.msra.mxu0 0.0
    %2097 = vmatprep.subr.mxu0 0.0
    %2098 = vmatpush1.msra.mxu0 0.0
    %2099 = vmatprep.subr.mxu0 0.0
    %2100 = vmatpush1.msra.mxu0 0.0
    %2101 = vmatprep.subr.mxu0 0.0
    %2102 = vmatpush1.msra.mxu0 0.0
    %2103 = vmatprep.subr.mxu0 0.0
    %v2104 = vand.u32 %v79, 4294901760
    %v2105 = vsub.f32 %v79, %v2104
    %v2106 = vand.u32 %v2105, 4294901760
    %v2107 = vsub.f32 %v2105, %v2106
    %v2108 = vand.u32 %v2107, 4294901760
    %2109 = vmatpush1.msra.mxu0 %v2108
    %2110 = vmatprep.subr.mxu0 0.0
    %2111 = vmatpush2.msra.mxu0 0.0
    %2112 = vmatprep.subr.mxu0 0.0
    %2113 = vmatpush2.msra.mxu0 0.0
    %2114 = vmatprep.subr.mxu0 0.0
    %2115 = vmatpush2.msra.mxu0 0.0
    %2116 = vmatprep.subr.mxu0 0.0
    %2117 = vmatpush2.msra.mxu0 0.0
    %2118 = vmatprep.subr.mxu0 0.0
    %2119 = vmatpush2.msra.mxu0 0.0
    %2120 = vmatprep.subr.mxu0 0.0
    %2121 = vmatpush2.msra.mxu0 0.0
    %2122 = vmatprep.subr.mxu0 0.0
    %2123 = vmatpush2.msra.mxu0 0.0
    %2124 = vmatprep.subr.mxu0 0.0
    %2125 = vmatpush2.msra.mxu0 0.0
    %2126 = vmatprep.subr.mxu0 0.0
    %2127 = vmatpush2.msra.mxu0 0.0
    %2128 = vmatprep.subr.mxu0 0.0
    %2129 = vmatpush2.msra.mxu0 0.0
    %2130 = vmatprep.subr.mxu0 0.0
    %2131 = vmatpush2.msra.mxu0 0.0
    %2132 = vmatprep.subr.mxu0 0.0
    %2133 = vmatpush2.msra.mxu0 0.0
    %2134 = vmatprep.subr.mxu0 0.0
    %2135 = vmatpush2.msra.mxu0 0.0
    %2136 = vmatprep.subr.mxu0 0.0
    %2137 = vmatpush2.msra.mxu0 0.0
    %2138 = vmatprep.subr.mxu0 0.0
    %2139 = vmatpush2.msra.mxu0 0.0
    %2140 = vmatprep.subr.mxu0 0.0
    %2141 = vmatpush2.msra.mxu0 0.0
    %2142 = vmatprep.mubr.f32.mxu0 0.0
    %v2143 = vand.u32 %v1995, 4294901760
    %2144 = vmatmul.mubr.f32.gmra.mxu0 %v2143
    %v2145 = vpop.f32.mrf.mxu0
    %v2146 = vadd.f32 %v2070, %v2145
    %v2147 = vpop.f32.mrf.mxu0
    %2148 = vdwg.mxu0
    %2149 = vmatprep.subr.mxu0 0.0
    %2150 = vmatpush1.msra.mxu0 0.0
    %2151 = vmatprep.subr.mxu0 0.0
    %2152 = vmatpush1.msra.mxu0 0.0
    %2153 = vmatprep.subr.mxu0 0.0
    %2154 = vmatpush1.msra.mxu0 0.0
    %2155 = vmatprep.subr.mxu0 0.0
    %2156 = vmatpush1.msra.mxu0 0.0
    %2157 = vmatprep.subr.mxu0 0.0
    %2158 = vmatpush1.msra.mxu0 0.0
    %2159 = vmatprep.subr.mxu0 0.0
    %2160 = vmatpush1.msra.mxu0 0.0
    %2161 = vmatprep.subr.mxu0 0.0
    %2162 = vmatpush1.msra.mxu0 0.0
    %2163 = vmatprep.subr.mxu0 0.0
    %2164 = vmatpush1.msra.mxu0 0.0
    %2165 = vmatprep.subr.mxu0 0.0
    %2166 = vmatpush1.msra.mxu0 0.0
    %2167 = vmatprep.subr.mxu0 0.0
    %2168 = vmatpush1.msra.mxu0 0.0
    %2169 = vmatprep.subr.mxu0 0.0
    %2170 = vmatpush1.msra.mxu0 0.0
    %2171 = vmatprep.subr.mxu0 0.0
    %2172 = vmatpush1.msra.mxu0 0.0
    %2173 = vmatprep.subr.mxu0 0.0
    %2174 = vmatpush1.msra.mxu0 0.0
    %2175 = vmatprep.subr.mxu0 0.0
    %2176 = vmatpush1.msra.mxu0 0.0
    %2177 = vmatprep.subr.mxu0 0.0
    %2178 = vmatpush1.msra.mxu0 0.0
    %2179 = vmatprep.subr.mxu0 0.0
    %v2180 = vand.u32 %v79, 4294901760
    %v2181 = vsub.f32 %v79, %v2180
    %2182 = vmatpush1.msra.mxu0 %v2181
    %2183 = vmatprep.subr.mxu0 0.0
    %2184 = vmatpush2.msra.mxu0 0.0
    %2185 = vmatprep.subr.mxu0 0.0
    %2186 = vmatpush2.msra.mxu0 0.0
    %2187 = vmatprep.subr.mxu0 0.0
    %2188 = vmatpush2.msra.mxu0 0.0
    %2189 = vmatprep.subr.mxu0 0.0
    %2190 = vmatpush2.msra.mxu0 0.0
    %2191 = vmatprep.subr.mxu0 0.0
    %2192 = vmatpush2.msra.mxu0 0.0
    %2193 = vmatprep.subr.mxu0 0.0
    %2194 = vmatpush2.msra.mxu0 0.0
    %2195 = vmatprep.subr.mxu0 0.0
    %2196 = vmatpush2.msra.mxu0 0.0
    %2197 = vmatprep.subr.mxu0 0.0
    %2198 = vmatpush2.msra.mxu0 0.0
    %2199 = vmatprep.subr.mxu0 0.0
    %2200 = vmatpush2.msra.mxu0 0.0
    %2201 = vmatprep.subr.mxu0 0.0
    %2202 = vmatpush2.msra.mxu0 0.0
    %2203 = vmatprep.subr.mxu0 0.0
    %2204 = vmatpush2.msra.mxu0 0.0
    %2205 = vmatprep.subr.mxu0 0.0
    %2206 = vmatpush2.msra.mxu0 0.0
    %2207 = vmatprep.subr.mxu0 0.0
    %2208 = vmatpush2.msra.mxu0 0.0
    %2209 = vmatprep.subr.mxu0 0.0
    %2210 = vmatpush2.msra.mxu0 0.0
    %2211 = vmatprep.subr.mxu0 0.0
    %2212 = vmatpush2.msra.mxu0 0.0
    %2213 = vmatprep.subr.mxu0 0.0
    %2214 = vmatpush2.msra.mxu0 0.0
    %2215 = vmatprep.mubr.f32.mxu0 0.0
    %v2216 = vand.u32 %v1995, 4294901760
    %v2217 = vsub.f32 %v1995, %v2216
    %2218 = vmatmul.mubr.f32.gmra.mxu0 %v2217
    %v2219 = vpop.f32.mrf.mxu0
    %v2220 = vadd.f32 %v2146, %v2219
    %v2221 = vpop.f32.mrf.mxu0
    %2222 = vdwg.mxu0
    %2223 = vmatprep.subr.mxu0 0.0
    %2224 = vmatpush1.msra.mxu0 0.0
    %2225 = vmatprep.subr.mxu0 0.0
    %2226 = vmatpush1.msra.mxu0 0.0
    %2227 = vmatprep.subr.mxu0 0.0
    %2228 = vmatpush1.msra.mxu0 0.0
    %2229 = vmatprep.subr.mxu0 0.0
    %2230 = vmatpush1.msra.mxu0 0.0
    %2231 = vmatprep.subr.mxu0 0.0
    %2232 = vmatpush1.msra.mxu0 0.0
    %2233 = vmatprep.subr.mxu0 0.0
    %2234 = vmatpush1.msra.mxu0 0.0
    %2235 = vmatprep.subr.mxu0 0.0
    %2236 = vmatpush1.msra.mxu0 0.0
    %2237 = vmatprep.subr.mxu0 0.0
    %2238 = vmatpush1.msra.mxu0 0.0
    %2239 = vmatprep.subr.mxu0 0.0
    %2240 = vmatpush1.msra.mxu0 0.0
    %2241 = vmatprep.subr.mxu0 0.0
    %2242 = vmatpush1.msra.mxu0 0.0
    %2243 = vmatprep.subr.mxu0 0.0
    %2244 = vmatpush1.msra.mxu0 0.0
    %2245 = vmatprep.subr.mxu0 0.0
    %2246 = vmatpush1.msra.mxu0 0.0
    %2247 = vmatprep.subr.mxu0 0.0
    %2248 = vmatpush1.msra.mxu0 0.0
    %2249 = vmatprep.subr.mxu0 0.0
    %2250 = vmatpush1.msra.mxu0 0.0
    %2251 = vmatprep.subr.mxu0 0.0
    %2252 = vmatpush1.msra.mxu0 0.0
    %2253 = vmatprep.subr.mxu0 0.0
    %v2254 = vand.u32 %v79, 4294901760
    %2255 = vmatpush1.msra.mxu0 %v2254
    %2256 = vmatprep.subr.mxu0 0.0
    %2257 = vmatpush2.msra.mxu0 0.0
    %2258 = vmatprep.subr.mxu0 0.0
    %2259 = vmatpush2.msra.mxu0 0.0
    %2260 = vmatprep.subr.mxu0 0.0
    %2261 = vmatpush2.msra.mxu0 0.0
    %2262 = vmatprep.subr.mxu0 0.0
    %2263 = vmatpush2.msra.mxu0 0.0
    %2264 = vmatprep.subr.mxu0 0.0
    %2265 = vmatpush2.msra.mxu0 0.0
    %2266 = vmatprep.subr.mxu0 0.0
    %2267 = vmatpush2.msra.mxu0 0.0
    %2268 = vmatprep.subr.mxu0 0.0
    %2269 = vmatpush2.msra.mxu0 0.0
    %2270 = vmatprep.subr.mxu0 0.0
    %2271 = vmatpush2.msra.mxu0 0.0
    %2272 = vmatprep.subr.mxu0 0.0
    %2273 = vmatpush2.msra.mxu0 0.0
    %2274 = vmatprep.subr.mxu0 0.0
    %2275 = vmatpush2.msra.mxu0 0.0
    %2276 = vmatprep.subr.mxu0 0.0
    %2277 = vmatpush2.msra.mxu0 0.0
    %2278 = vmatprep.subr.mxu0 0.0
    %2279 = vmatpush2.msra.mxu0 0.0
    %2280 = vmatprep.subr.mxu0 0.0
    %2281 = vmatpush2.msra.mxu0 0.0
    %2282 = vmatprep.subr.mxu0 0.0
    %2283 = vmatpush2.msra.mxu0 0.0
    %2284 = vmatprep.subr.mxu0 0.0
    %2285 = vmatpush2.msra.mxu0 0.0
    %2286 = vmatprep.subr.mxu0 0.0
    %2287 = vmatpush2.msra.mxu0 0.0
    %2288 = vmatprep.mubr.f32.mxu0 0.0
    %v2289 = vand.u32 %v1995, 4294901760
    %v2290 = vsub.f32 %v1995, %v2289
    %v2291 = vand.u32 %v2290, 4294901760
    %2292 = vmatmul.mubr.f32.gmra.mxu0 %v2291
    %v2293 = vpop.f32.mrf.mxu0
    %v2294 = vadd.f32 %v2220, %v2293
    %v2295 = vpop.f32.mrf.mxu0
    %2296 = vdwg.mxu0
    %2297 = vmatprep.subr.mxu0 0.0
    %2298 = vmatpush1.msra.mxu0 0.0
    %2299 = vmatprep.subr.mxu0 0.0
    %2300 = vmatpush1.msra.mxu0 0.0
    %2301 = vmatprep.subr.mxu0 0.0
    %2302 = vmatpush1.msra.mxu0 0.0
    %2303 = vmatprep.subr.mxu0 0.0
    %2304 = vmatpush1.msra.mxu0 0.0
    %2305 = vmatprep.subr.mxu0 0.0
    %2306 = vmatpush1.msra.mxu0 0.0
    %2307 = vmatprep.subr.mxu0 0.0
    %2308 = vmatpush1.msra.mxu0 0.0
    %2309 = vmatprep.subr.mxu0 0.0
    %2310 = vmatpush1.msra.mxu0 0.0
    %2311 = vmatprep.subr.mxu0 0.0
    %2312 = vmatpush1.msra.mxu0 0.0
    %2313 = vmatprep.subr.mxu0 0.0
    %2314 = vmatpush1.msra.mxu0 0.0
    %2315 = vmatprep.subr.mxu0 0.0
    %2316 = vmatpush1.msra.mxu0 0.0
    %2317 = vmatprep.subr.mxu0 0.0
    %2318 = vmatpush1.msra.mxu0 0.0
    %2319 = vmatprep.subr.mxu0 0.0
    %2320 = vmatpush1.msra.mxu0 0.0
    %2321 = vmatprep.subr.mxu0 0.0
    %2322 = vmatpush1.msra.mxu0 0.0
    %2323 = vmatprep.subr.mxu0 0.0
    %2324 = vmatpush1.msra.mxu0 0.0
    %2325 = vmatprep.subr.mxu0 0.0
    %2326 = vmatpush1.msra.mxu0 0.0
    %2327 = vmatprep.subr.mxu0 0.0
    %v2328 = vand.u32 %v79, 4294901760
    %v2329 = vsub.f32 %v79, %v2328
    %v2330 = vand.u32 %v2329, 4294901760
    %2331 = vmatpush1.msra.mxu0 %v2330
    %2332 = vmatprep.subr.mxu0 0.0
    %2333 = vmatpush2.msra.mxu0 0.0
    %2334 = vmatprep.subr.mxu0 0.0
    %2335 = vmatpush2.msra.mxu0 0.0
    %2336 = vmatprep.subr.mxu0 0.0
    %2337 = vmatpush2.msra.mxu0 0.0
    %2338 = vmatprep.subr.mxu0 0.0
    %2339 = vmatpush2.msra.mxu0 0.0
    %2340 = vmatprep.subr.mxu0 0.0
    %2341 = vmatpush2.msra.mxu0 0.0
    %2342 = vmatprep.subr.mxu0 0.0
    %2343 = vmatpush2.msra.mxu0 0.0
    %2344 = vmatprep.subr.mxu0 0.0
    %2345 = vmatpush2.msra.mxu0 0.0
    %2346 = vmatprep.subr.mxu0 0.0
    %2347 = vmatpush2.msra.mxu0 0.0
    %2348 = vmatprep.subr.mxu0 0.0
    %2349 = vmatpush2.msra.mxu0 0.0
    %2350 = vmatprep.subr.mxu0 0.0
    %2351 = vmatpush2.msra.mxu0 0.0
    %2352 = vmatprep.subr.mxu0 0.0
    %2353 = vmatpush2.msra.mxu0 0.0
    %2354 = vmatprep.subr.mxu0 0.0
    %2355 = vmatpush2.msra.mxu0 0.0
    %2356 = vmatprep.subr.mxu0 0.0
    %2357 = vmatpush2.msra.mxu0 0.0
    %2358 = vmatprep.subr.mxu0 0.0
    %2359 = vmatpush2.msra.mxu0 0.0
    %2360 = vmatprep.subr.mxu0 0.0
    %2361 = vmatpush2.msra.mxu0 0.0
    %2362 = vmatprep.subr.mxu0 0.0
    %2363 = vmatpush2.msra.mxu0 0.0
    %2364 = vmatprep.mubr.f32.mxu0 0.0
    %v2365 = vand.u32 %v1995, 4294901760
    %2366 = vmatmul.mubr.f32.gmra.mxu0 %v2365
    %v2367 = vpop.f32.mrf.mxu0
    %v2368 = vadd.f32 %v2294, %v2367
    %v2369 = vpop.f32.mrf.mxu0
    %2370 = vdwg.mxu0
    %2371 = vmatprep.subr.mxu0 0.0
    %2372 = vmatpush1.msra.mxu0 0.0
    %2373 = vmatprep.subr.mxu0 0.0
    %2374 = vmatpush1.msra.mxu0 0.0
    %2375 = vmatprep.subr.mxu0 0.0
    %2376 = vmatpush1.msra.mxu0 0.0
    %2377 = vmatprep.subr.mxu0 0.0
    %2378 = vmatpush1.msra.mxu0 0.0
    %2379 = vmatprep.subr.mxu0 0.0
    %2380 = vmatpush1.msra.mxu0 0.0
    %2381 = vmatprep.subr.mxu0 0.0
    %2382 = vmatpush1.msra.mxu0 0.0
    %2383 = vmatprep.subr.mxu0 0.0
    %2384 = vmatpush1.msra.mxu0 0.0
    %2385 = vmatprep.subr.mxu0 0.0
    %2386 = vmatpush1.msra.mxu0 0.0
    %2387 = vmatprep.subr.mxu0 0.0
    %2388 = vmatpush1.msra.mxu0 0.0
    %2389 = vmatprep.subr.mxu0 0.0
    %2390 = vmatpush1.msra.mxu0 0.0
    %2391 = vmatprep.subr.mxu0 0.0
    %2392 = vmatpush1.msra.mxu0 0.0
    %2393 = vmatprep.subr.mxu0 0.0
    %2394 = vmatpush1.msra.mxu0 0.0
    %2395 = vmatprep.subr.mxu0 0.0
    %2396 = vmatpush1.msra.mxu0 0.0
    %2397 = vmatprep.subr.mxu0 0.0
    %2398 = vmatpush1.msra.mxu0 0.0
    %2399 = vmatprep.subr.mxu0 0.0
    %2400 = vmatpush1.msra.mxu0 0.0
    %2401 = vmatprep.subr.mxu0 0.0
    %v2402 = vand.u32 %v79, 4294901760
    %2403 = vmatpush1.msra.mxu0 %v2402
    %2404 = vmatprep.subr.mxu0 0.0
    %2405 = vmatpush2.msra.mxu0 0.0
    %2406 = vmatprep.subr.mxu0 0.0
    %2407 = vmatpush2.msra.mxu0 0.0
    %2408 = vmatprep.subr.mxu0 0.0
    %2409 = vmatpush2.msra.mxu0 0.0
    %2410 = vmatprep.subr.mxu0 0.0
    %2411 = vmatpush2.msra.mxu0 0.0
    %2412 = vmatprep.subr.mxu0 0.0
    %2413 = vmatpush2.msra.mxu0 0.0
    %2414 = vmatprep.subr.mxu0 0.0
    %2415 = vmatpush2.msra.mxu0 0.0
    %2416 = vmatprep.subr.mxu0 0.0
    %2417 = vmatpush2.msra.mxu0 0.0
    %2418 = vmatprep.subr.mxu0 0.0
    %2419 = vmatpush2.msra.mxu0 0.0
    %2420 = vmatprep.subr.mxu0 0.0
    %2421 = vmatpush2.msra.mxu0 0.0
    %2422 = vmatprep.subr.mxu0 0.0
    %2423 = vmatpush2.msra.mxu0 0.0
    %2424 = vmatprep.subr.mxu0 0.0
    %2425 = vmatpush2.msra.mxu0 0.0
    %2426 = vmatprep.subr.mxu0 0.0
    %2427 = vmatpush2.msra.mxu0 0.0
    %2428 = vmatprep.subr.mxu0 0.0
    %2429 = vmatpush2.msra.mxu0 0.0
    %2430 = vmatprep.subr.mxu0 0.0
    %2431 = vmatpush2.msra.mxu0 0.0
    %2432 = vmatprep.subr.mxu0 0.0
    %2433 = vmatpush2.msra.mxu0 0.0
    %2434 = vmatprep.subr.mxu0 0.0
    %2435 = vmatpush2.msra.mxu0 0.0
    %2436 = vmatprep.mubr.f32.mxu0 0.0
    %v2437 = vand.u32 %v1995, 4294901760
    %2438 = vmatmul.mubr.f32.gmra.mxu0 %v2437
    %v2439 = vpop.f32.mrf.mxu0
    %v2440 = vadd.f32 %v2368, %v2439
    %v2441 = vpop.f32.mrf.mxu0
    %2442 = vdwg.mxu0
    %v2443 = vsel %vm589, %v632, 0
    %2445 = vmatprep.subr.mxu0 0.0
    %2446 = vmatpush1.msra.mxu0 0.0
    %2447 = vmatprep.subr.mxu0 0.0
    %2448 = vmatpush1.msra.mxu0 0.0
    %2449 = vmatprep.subr.mxu0 0.0
    %2450 = vmatpush1.msra.mxu0 0.0
    %2451 = vmatprep.subr.mxu0 0.0
    %2452 = vmatpush1.msra.mxu0 0.0
    %2453 = vmatprep.subr.mxu0 0.0
    %2454 = vmatpush1.msra.mxu0 0.0
    %2455 = vmatprep.subr.mxu0 0.0
    %2456 = vmatpush1.msra.mxu0 0.0
    %2457 = vmatprep.subr.mxu0 0.0
    %2458 = vmatpush1.msra.mxu0 0.0
    %2459 = vmatprep.subr.mxu0 0.0
    %2460 = vmatpush1.msra.mxu0 0.0
    %2461 = vmatprep.subr.mxu0 0.0
    %2462 = vmatpush1.msra.mxu0 0.0
    %2463 = vmatprep.subr.mxu0 0.0
    %2464 = vmatpush1.msra.mxu0 0.0
    %2465 = vmatprep.subr.mxu0 0.0
    %2466 = vmatpush1.msra.mxu0 0.0
    %2467 = vmatprep.subr.mxu0 0.0
    %2468 = vmatpush1.msra.mxu0 0.0
    %2469 = vmatprep.subr.mxu0 0.0
    %2470 = vmatpush1.msra.mxu0 0.0
    %2471 = vmatprep.subr.mxu0 0.0
    %2472 = vmatpush1.msra.mxu0 0.0
    %2473 = vmatprep.subr.mxu0 0.0
    %2474 = vmatpush1.msra.mxu0 0.0
    %2475 = vmatprep.subr.mxu0 0.0
    %v2476 = vand.u32 %v80, 4294901760
    %2477 = vmatpush1.msra.mxu0 %v2476
    %2478 = vmatprep.subr.mxu0 0.0
    %2479 = vmatpush2.msra.mxu0 0.0
    %2480 = vmatprep.subr.mxu0 0.0
    %2481 = vmatpush2.msra.mxu0 0.0
    %2482 = vmatprep.subr.mxu0 0.0
    %2483 = vmatpush2.msra.mxu0 0.0
    %2484 = vmatprep.subr.mxu0 0.0
    %2485 = vmatpush2.msra.mxu0 0.0
    %2486 = vmatprep.subr.mxu0 0.0
    %2487 = vmatpush2.msra.mxu0 0.0
    %2488 = vmatprep.subr.mxu0 0.0
    %2489 = vmatpush2.msra.mxu0 0.0
    %2490 = vmatprep.subr.mxu0 0.0
    %2491 = vmatpush2.msra.mxu0 0.0
    %2492 = vmatprep.subr.mxu0 0.0
    %2493 = vmatpush2.msra.mxu0 0.0
    %2494 = vmatprep.subr.mxu0 0.0
    %2495 = vmatpush2.msra.mxu0 0.0
    %2496 = vmatprep.subr.mxu0 0.0
    %2497 = vmatpush2.msra.mxu0 0.0
    %2498 = vmatprep.subr.mxu0 0.0
    %2499 = vmatpush2.msra.mxu0 0.0
    %2500 = vmatprep.subr.mxu0 0.0
    %2501 = vmatpush2.msra.mxu0 0.0
    %2502 = vmatprep.subr.mxu0 0.0
    %2503 = vmatpush2.msra.mxu0 0.0
    %2504 = vmatprep.subr.mxu0 0.0
    %2505 = vmatpush2.msra.mxu0 0.0
    %2506 = vmatprep.subr.mxu0 0.0
    %2507 = vmatpush2.msra.mxu0 0.0
    %2508 = vmatprep.subr.mxu0 0.0
    %2509 = vmatpush2.msra.mxu0 0.0
    %2510 = vmatprep.mubr.f32.mxu0 0.0
    %v2511 = vand.u32 %v2443, 4294901760
    %v2512 = vsub.f32 %v2443, %v2511
    %v2513 = vand.u32 %v2512, 4294901760
    %v2514 = vsub.f32 %v2512, %v2513
    %v2515 = vand.u32 %v2514, 4294901760
    %2516 = vmatmul.mubr.f32.gmra.mxu0 %v2515
    %v2517 = vpop.f32.mrf.mxu0
    %v2518 = vadd.f32 0.0, %v2517
    %v2519 = vpop.f32.mrf.mxu0
    %2520 = vdwg.mxu0
    %2521 = vmatprep.subr.mxu0 0.0
    %2522 = vmatpush1.msra.mxu0 0.0
    %2523 = vmatprep.subr.mxu0 0.0
    %2524 = vmatpush1.msra.mxu0 0.0
    %2525 = vmatprep.subr.mxu0 0.0
    %2526 = vmatpush1.msra.mxu0 0.0
    %2527 = vmatprep.subr.mxu0 0.0
    %2528 = vmatpush1.msra.mxu0 0.0
    %2529 = vmatprep.subr.mxu0 0.0
    %2530 = vmatpush1.msra.mxu0 0.0
    %2531 = vmatprep.subr.mxu0 0.0
    %2532 = vmatpush1.msra.mxu0 0.0
    %2533 = vmatprep.subr.mxu0 0.0
    %2534 = vmatpush1.msra.mxu0 0.0
    %2535 = vmatprep.subr.mxu0 0.0
    %2536 = vmatpush1.msra.mxu0 0.0
    %2537 = vmatprep.subr.mxu0 0.0
    %2538 = vmatpush1.msra.mxu0 0.0
    %2539 = vmatprep.subr.mxu0 0.0
    %2540 = vmatpush1.msra.mxu0 0.0
    %2541 = vmatprep.subr.mxu0 0.0
    %2542 = vmatpush1.msra.mxu0 0.0
    %2543 = vmatprep.subr.mxu0 0.0
    %2544 = vmatpush1.msra.mxu0 0.0
    %2545 = vmatprep.subr.mxu0 0.0
    %2546 = vmatpush1.msra.mxu0 0.0
    %2547 = vmatprep.subr.mxu0 0.0
    %2548 = vmatpush1.msra.mxu0 0.0
    %2549 = vmatprep.subr.mxu0 0.0
    %2550 = vmatpush1.msra.mxu0 0.0
    %2551 = vmatprep.subr.mxu0 0.0
    %v2552 = vand.u32 %v80, 4294901760
    %v2553 = vsub.f32 %v80, %v2552
    %v2554 = vand.u32 %v2553, 4294901760
    %v2555 = vsub.f32 %v2553, %v2554
    %v2556 = vand.u32 %v2555, 4294901760
    %2557 = vmatpush1.msra.mxu0 %v2556
    %2558 = vmatprep.subr.mxu0 0.0
    %2559 = vmatpush2.msra.mxu0 0.0
    %2560 = vmatprep.subr.mxu0 0.0
    %2561 = vmatpush2.msra.mxu0 0.0
    %2562 = vmatprep.subr.mxu0 0.0
    %2563 = vmatpush2.msra.mxu0 0.0
    %2564 = vmatprep.subr.mxu0 0.0
    %2565 = vmatpush2.msra.mxu0 0.0
    %2566 = vmatprep.subr.mxu0 0.0
    %2567 = vmatpush2.msra.mxu0 0.0
    %2568 = vmatprep.subr.mxu0 0.0
    %2569 = vmatpush2.msra.mxu0 0.0
    %2570 = vmatprep.subr.mxu0 0.0
    %2571 = vmatpush2.msra.mxu0 0.0
    %2572 = vmatprep.subr.mxu0 0.0
    %2573 = vmatpush2.msra.mxu0 0.0
    %2574 = vmatprep.subr.mxu0 0.0
    %2575 = vmatpush2.msra.mxu0 0.0
    %2576 = vmatprep.subr.mxu0 0.0
    %2577 = vmatpush2.msra.mxu0 0.0
    %2578 = vmatprep.subr.mxu0 0.0
    %2579 = vmatpush2.msra.mxu0 0.0
    %2580 = vmatprep.subr.mxu0 0.0
    %2581 = vmatpush2.msra.mxu0 0.0
    %2582 = vmatprep.subr.mxu0 0.0
    %2583 = vmatpush2.msra.mxu0 0.0
    %2584 = vmatprep.subr.mxu0 0.0
    %2585 = vmatpush2.msra.mxu0 0.0
    %2586 = vmatprep.subr.mxu0 0.0
    %2587 = vmatpush2.msra.mxu0 0.0
    %2588 = vmatprep.subr.mxu0 0.0
    %2589 = vmatpush2.msra.mxu0 0.0
    %2590 = vmatprep.mubr.f32.mxu0 0.0
    %v2591 = vand.u32 %v2443, 4294901760
    %2592 = vmatmul.mubr.f32.gmra.mxu0 %v2591
    %v2593 = vpop.f32.mrf.mxu0
    %v2594 = vadd.f32 %v2518, %v2593
    %v2595 = vpop.f32.mrf.mxu0
    %2596 = vdwg.mxu0
    %2597 = vmatprep.subr.mxu0 0.0
    %2598 = vmatpush1.msra.mxu0 0.0
    %2599 = vmatprep.subr.mxu0 0.0
    %2600 = vmatpush1.msra.mxu0 0.0
    %2601 = vmatprep.subr.mxu0 0.0
    %2602 = vmatpush1.msra.mxu0 0.0
    %2603 = vmatprep.subr.mxu0 0.0
    %2604 = vmatpush1.msra.mxu0 0.0
    %2605 = vmatprep.subr.mxu0 0.0
    %2606 = vmatpush1.msra.mxu0 0.0
    %2607 = vmatprep.subr.mxu0 0.0
    %2608 = vmatpush1.msra.mxu0 0.0
    %2609 = vmatprep.subr.mxu0 0.0
    %2610 = vmatpush1.msra.mxu0 0.0
    %2611 = vmatprep.subr.mxu0 0.0
    %2612 = vmatpush1.msra.mxu0 0.0
    %2613 = vmatprep.subr.mxu0 0.0
    %2614 = vmatpush1.msra.mxu0 0.0
    %2615 = vmatprep.subr.mxu0 0.0
    %2616 = vmatpush1.msra.mxu0 0.0
    %2617 = vmatprep.subr.mxu0 0.0
    %2618 = vmatpush1.msra.mxu0 0.0
    %2619 = vmatprep.subr.mxu0 0.0
    %2620 = vmatpush1.msra.mxu0 0.0
    %2621 = vmatprep.subr.mxu0 0.0
    %2622 = vmatpush1.msra.mxu0 0.0
    %2623 = vmatprep.subr.mxu0 0.0
    %2624 = vmatpush1.msra.mxu0 0.0
    %2625 = vmatprep.subr.mxu0 0.0
    %2626 = vmatpush1.msra.mxu0 0.0
    %2627 = vmatprep.subr.mxu0 0.0
    %v2628 = vand.u32 %v80, 4294901760
    %v2629 = vsub.f32 %v80, %v2628
    %2630 = vmatpush1.msra.mxu0 %v2629
    %2631 = vmatprep.subr.mxu0 0.0
    %2632 = vmatpush2.msra.mxu0 0.0
    %2633 = vmatprep.subr.mxu0 0.0
    %2634 = vmatpush2.msra.mxu0 0.0
    %2635 = vmatprep.subr.mxu0 0.0
    %2636 = vmatpush2.msra.mxu0 0.0
    %2637 = vmatprep.subr.mxu0 0.0
    %2638 = vmatpush2.msra.mxu0 0.0
    %2639 = vmatprep.subr.mxu0 0.0
    %2640 = vmatpush2.msra.mxu0 0.0
    %2641 = vmatprep.subr.mxu0 0.0
    %2642 = vmatpush2.msra.mxu0 0.0
    %2643 = vmatprep.subr.mxu0 0.0
    %2644 = vmatpush2.msra.mxu0 0.0
    %2645 = vmatprep.subr.mxu0 0.0
    %2646 = vmatpush2.msra.mxu0 0.0
    %2647 = vmatprep.subr.mxu0 0.0
    %2648 = vmatpush2.msra.mxu0 0.0
    %2649 = vmatprep.subr.mxu0 0.0
    %2650 = vmatpush2.msra.mxu0 0.0
    %2651 = vmatprep.subr.mxu0 0.0
    %2652 = vmatpush2.msra.mxu0 0.0
    %2653 = vmatprep.subr.mxu0 0.0
    %2654 = vmatpush2.msra.mxu0 0.0
    %2655 = vmatprep.subr.mxu0 0.0
    %2656 = vmatpush2.msra.mxu0 0.0
    %2657 = vmatprep.subr.mxu0 0.0
    %2658 = vmatpush2.msra.mxu0 0.0
    %2659 = vmatprep.subr.mxu0 0.0
    %2660 = vmatpush2.msra.mxu0 0.0
    %2661 = vmatprep.subr.mxu0 0.0
    %2662 = vmatpush2.msra.mxu0 0.0
    %2663 = vmatprep.mubr.f32.mxu0 0.0
    %v2664 = vand.u32 %v2443, 4294901760
    %v2665 = vsub.f32 %v2443, %v2664
    %2666 = vmatmul.mubr.f32.gmra.mxu0 %v2665
    %v2667 = vpop.f32.mrf.mxu0
    %v2668 = vadd.f32 %v2594, %v2667
    %v2669 = vpop.f32.mrf.mxu0
    %2670 = vdwg.mxu0
    %2671 = vmatprep.subr.mxu0 0.0
    %2672 = vmatpush1.msra.mxu0 0.0
    %2673 = vmatprep.subr.mxu0 0.0
    %2674 = vmatpush1.msra.mxu0 0.0
    %2675 = vmatprep.subr.mxu0 0.0
    %2676 = vmatpush1.msra.mxu0 0.0
    %2677 = vmatprep.subr.mxu0 0.0
    %2678 = vmatpush1.msra.mxu0 0.0
    %2679 = vmatprep.subr.mxu0 0.0
    %2680 = vmatpush1.msra.mxu0 0.0
    %2681 = vmatprep.subr.mxu0 0.0
    %2682 = vmatpush1.msra.mxu0 0.0
    %2683 = vmatprep.subr.mxu0 0.0
    %2684 = vmatpush1.msra.mxu0 0.0
    %2685 = vmatprep.subr.mxu0 0.0
    %2686 = vmatpush1.msra.mxu0 0.0
    %2687 = vmatprep.subr.mxu0 0.0
    %2688 = vmatpush1.msra.mxu0 0.0
    %2689 = vmatprep.subr.mxu0 0.0
    %2690 = vmatpush1.msra.mxu0 0.0
    %2691 = vmatprep.subr.mxu0 0.0
    %2692 = vmatpush1.msra.mxu0 0.0
    %2693 = vmatprep.subr.mxu0 0.0
    %2694 = vmatpush1.msra.mxu0 0.0
    %2695 = vmatprep.subr.mxu0 0.0
    %2696 = vmatpush1.msra.mxu0 0.0
    %2697 = vmatprep.subr.mxu0 0.0
    %2698 = vmatpush1.msra.mxu0 0.0
    %2699 = vmatprep.subr.mxu0 0.0
    %2700 = vmatpush1.msra.mxu0 0.0
    %2701 = vmatprep.subr.mxu0 0.0
    %v2702 = vand.u32 %v80, 4294901760
    %2703 = vmatpush1.msra.mxu0 %v2702
    %2704 = vmatprep.subr.mxu0 0.0
    %2705 = vmatpush2.msra.mxu0 0.0
    %2706 = vmatprep.subr.mxu0 0.0
    %2707 = vmatpush2.msra.mxu0 0.0
    %2708 = vmatprep.subr.mxu0 0.0
    %2709 = vmatpush2.msra.mxu0 0.0
    %2710 = vmatprep.subr.mxu0 0.0
    %2711 = vmatpush2.msra.mxu0 0.0
    %2712 = vmatprep.subr.mxu0 0.0
    %2713 = vmatpush2.msra.mxu0 0.0
    %2714 = vmatprep.subr.mxu0 0.0
    %2715 = vmatpush2.msra.mxu0 0.0
    %2716 = vmatprep.subr.mxu0 0.0
    %2717 = vmatpush2.msra.mxu0 0.0
    %2718 = vmatprep.subr.mxu0 0.0
    %2719 = vmatpush2.msra.mxu0 0.0
    %2720 = vmatprep.subr.mxu0 0.0
    %2721 = vmatpush2.msra.mxu0 0.0
    %2722 = vmatprep.subr.mxu0 0.0
    %2723 = vmatpush2.msra.mxu0 0.0
    %2724 = vmatprep.subr.mxu0 0.0
    %2725 = vmatpush2.msra.mxu0 0.0
    %2726 = vmatprep.subr.mxu0 0.0
    %2727 = vmatpush2.msra.mxu0 0.0
    %2728 = vmatprep.subr.mxu0 0.0
    %2729 = vmatpush2.msra.mxu0 0.0
    %2730 = vmatprep.subr.mxu0 0.0
    %2731 = vmatpush2.msra.mxu0 0.0
    %2732 = vmatprep.subr.mxu0 0.0
    %2733 = vmatpush2.msra.mxu0 0.0
    %2734 = vmatprep.subr.mxu0 0.0
    %2735 = vmatpush2.msra.mxu0 0.0
    %2736 = vmatprep.mubr.f32.mxu0 0.0
    %v2737 = vand.u32 %v2443, 4294901760
    %v2738 = vsub.f32 %v2443, %v2737
    %v2739 = vand.u32 %v2738, 4294901760
    %2740 = vmatmul.mubr.f32.gmra.mxu0 %v2739
    %v2741 = vpop.f32.mrf.mxu0
    %v2742 = vadd.f32 %v2668, %v2741
    %v2743 = vpop.f32.mrf.mxu0
    %2744 = vdwg.mxu0
    %2745 = vmatprep.subr.mxu0 0.0
    %2746 = vmatpush1.msra.mxu0 0.0
    %2747 = vmatprep.subr.mxu0 0.0
    %2748 = vmatpush1.msra.mxu0 0.0
    %2749 = vmatprep.subr.mxu0 0.0
    %2750 = vmatpush1.msra.mxu0 0.0
    %2751 = vmatprep.subr.mxu0 0.0
    %2752 = vmatpush1.msra.mxu0 0.0
    %2753 = vmatprep.subr.mxu0 0.0
    %2754 = vmatpush1.msra.mxu0 0.0
    %2755 = vmatprep.subr.mxu0 0.0
    %2756 = vmatpush1.msra.mxu0 0.0
    %2757 = vmatprep.subr.mxu0 0.0
    %2758 = vmatpush1.msra.mxu0 0.0
    %2759 = vmatprep.subr.mxu0 0.0
    %2760 = vmatpush1.msra.mxu0 0.0
    %2761 = vmatprep.subr.mxu0 0.0
    %2762 = vmatpush1.msra.mxu0 0.0
    %2763 = vmatprep.subr.mxu0 0.0
    %2764 = vmatpush1.msra.mxu0 0.0
    %2765 = vmatprep.subr.mxu0 0.0
    %2766 = vmatpush1.msra.mxu0 0.0
    %2767 = vmatprep.subr.mxu0 0.0
    %2768 = vmatpush1.msra.mxu0 0.0
    %2769 = vmatprep.subr.mxu0 0.0
    %2770 = vmatpush1.msra.mxu0 0.0
    %2771 = vmatprep.subr.mxu0 0.0
    %2772 = vmatpush1.msra.mxu0 0.0
    %2773 = vmatprep.subr.mxu0 0.0
    %2774 = vmatpush1.msra.mxu0 0.0
    %2775 = vmatprep.subr.mxu0 0.0
    %v2776 = vand.u32 %v80, 4294901760
    %v2777 = vsub.f32 %v80, %v2776
    %v2778 = vand.u32 %v2777, 4294901760
    %2779 = vmatpush1.msra.mxu0 %v2778
    %2780 = vmatprep.subr.mxu0 0.0
    %2781 = vmatpush2.msra.mxu0 0.0
    %2782 = vmatprep.subr.mxu0 0.0
    %2783 = vmatpush2.msra.mxu0 0.0
    %2784 = vmatprep.subr.mxu0 0.0
    %2785 = vmatpush2.msra.mxu0 0.0
    %2786 = vmatprep.subr.mxu0 0.0
    %2787 = vmatpush2.msra.mxu0 0.0
    %2788 = vmatprep.subr.mxu0 0.0
    %2789 = vmatpush2.msra.mxu0 0.0
    %2790 = vmatprep.subr.mxu0 0.0
    %2791 = vmatpush2.msra.mxu0 0.0
    %2792 = vmatprep.subr.mxu0 0.0
    %2793 = vmatpush2.msra.mxu0 0.0
    %2794 = vmatprep.subr.mxu0 0.0
    %2795 = vmatpush2.msra.mxu0 0.0
    %2796 = vmatprep.subr.mxu0 0.0
    %2797 = vmatpush2.msra.mxu0 0.0
    %2798 = vmatprep.subr.mxu0 0.0
    %2799 = vmatpush2.msra.mxu0 0.0
    %2800 = vmatprep.subr.mxu0 0.0
    %2801 = vmatpush2.msra.mxu0 0.0
    %2802 = vmatprep.subr.mxu0 0.0
    %2803 = vmatpush2.msra.mxu0 0.0
    %2804 = vmatprep.subr.mxu0 0.0
    %2805 = vmatpush2.msra.mxu0 0.0
    %2806 = vmatprep.subr.mxu0 0.0
    %2807 = vmatpush2.msra.mxu0 0.0
    %2808 = vmatprep.subr.mxu0 0.0
    %2809 = vmatpush2.msra.mxu0 0.0
    %2810 = vmatprep.subr.mxu0 0.0
    %2811 = vmatpush2.msra.mxu0 0.0
    %2812 = vmatprep.mubr.f32.mxu0 0.0
    %v2813 = vand.u32 %v2443, 4294901760
    %2814 = vmatmul.mubr.f32.gmra.mxu0 %v2813
    %v2815 = vpop.f32.mrf.mxu0
    %v2816 = vadd.f32 %v2742, %v2815
    %v2817 = vpop.f32.mrf.mxu0
    %2818 = vdwg.mxu0
    %2819 = vmatprep.subr.mxu0 0.0
    %2820 = vmatpush1.msra.mxu0 0.0
    %2821 = vmatprep.subr.mxu0 0.0
    %2822 = vmatpush1.msra.mxu0 0.0
    %2823 = vmatprep.subr.mxu0 0.0
    %2824 = vmatpush1.msra.mxu0 0.0
    %2825 = vmatprep.subr.mxu0 0.0
    %2826 = vmatpush1.msra.mxu0 0.0
    %2827 = vmatprep.subr.mxu0 0.0
    %2828 = vmatpush1.msra.mxu0 0.0
    %2829 = vmatprep.subr.mxu0 0.0
    %2830 = vmatpush1.msra.mxu0 0.0
    %2831 = vmatprep.subr.mxu0 0.0
    %2832 = vmatpush1.msra.mxu0 0.0
    %2833 = vmatprep.subr.mxu0 0.0
    %2834 = vmatpush1.msra.mxu0 0.0
    %2835 = vmatprep.subr.mxu0 0.0
    %2836 = vmatpush1.msra.mxu0 0.0
    %2837 = vmatprep.subr.mxu0 0.0
    %2838 = vmatpush1.msra.mxu0 0.0
    %2839 = vmatprep.subr.mxu0 0.0
    %2840 = vmatpush1.msra.mxu0 0.0
    %2841 = vmatprep.subr.mxu0 0.0
    %2842 = vmatpush1.msra.mxu0 0.0
    %2843 = vmatprep.subr.mxu0 0.0
    %2844 = vmatpush1.msra.mxu0 0.0
    %2845 = vmatprep.subr.mxu0 0.0
    %2846 = vmatpush1.msra.mxu0 0.0
    %2847 = vmatprep.subr.mxu0 0.0
    %2848 = vmatpush1.msra.mxu0 0.0
    %2849 = vmatprep.subr.mxu0 0.0
    %v2850 = vand.u32 %v80, 4294901760
    %2851 = vmatpush1.msra.mxu0 %v2850
    %2852 = vmatprep.subr.mxu0 0.0
    %2853 = vmatpush2.msra.mxu0 0.0
    %2854 = vmatprep.subr.mxu0 0.0
    %2855 = vmatpush2.msra.mxu0 0.0
    %2856 = vmatprep.subr.mxu0 0.0
    %2857 = vmatpush2.msra.mxu0 0.0
    %2858 = vmatprep.subr.mxu0 0.0
    %2859 = vmatpush2.msra.mxu0 0.0
    %2860 = vmatprep.subr.mxu0 0.0
    %2861 = vmatpush2.msra.mxu0 0.0
    %2862 = vmatprep.subr.mxu0 0.0
    %2863 = vmatpush2.msra.mxu0 0.0
    %2864 = vmatprep.subr.mxu0 0.0
    %2865 = vmatpush2.msra.mxu0 0.0
    %2866 = vmatprep.subr.mxu0 0.0
    %2867 = vmatpush2.msra.mxu0 0.0
    %2868 = vmatprep.subr.mxu0 0.0
    %2869 = vmatpush2.msra.mxu0 0.0
    %2870 = vmatprep.subr.mxu0 0.0
    %2871 = vmatpush2.msra.mxu0 0.0
    %2872 = vmatprep.subr.mxu0 0.0
    %2873 = vmatpush2.msra.mxu0 0.0
    %2874 = vmatprep.subr.mxu0 0.0
    %2875 = vmatpush2.msra.mxu0 0.0
    %2876 = vmatprep.subr.mxu0 0.0
    %2877 = vmatpush2.msra.mxu0 0.0
    %2878 = vmatprep.subr.mxu0 0.0
    %2879 = vmatpush2.msra.mxu0 0.0
    %2880 = vmatprep.subr.mxu0 0.0
    %2881 = vmatpush2.msra.mxu0 0.0
    %2882 = vmatprep.subr.mxu0 0.0
    %2883 = vmatpush2.msra.mxu0 0.0
    %2884 = vmatprep.mubr.f32.mxu0 0.0
    %v2885 = vand.u32 %v2443, 4294901760
    %2886 = vmatmul.mubr.f32.gmra.mxu0 %v2885
    %v2887 = vpop.f32.mrf.mxu0
    %v2888 = vadd.f32 %v2816, %v2887
    %v2889 = vpop.f32.mrf.mxu0
    %2890 = vdwg.mxu0
    %v2891 = vsel %vm589, %v646, 0
    %2893 = vmatprep.subr.mxu0 0.0
    %2894 = vmatpush1.msra.mxu0 0.0
    %2895 = vmatprep.subr.mxu0 0.0
    %2896 = vmatpush1.msra.mxu0 0.0
    %2897 = vmatprep.subr.mxu0 0.0
    %2898 = vmatpush1.msra.mxu0 0.0
    %2899 = vmatprep.subr.mxu0 0.0
    %2900 = vmatpush1.msra.mxu0 0.0
    %2901 = vmatprep.subr.mxu0 0.0
    %2902 = vmatpush1.msra.mxu0 0.0
    %2903 = vmatprep.subr.mxu0 0.0
    %2904 = vmatpush1.msra.mxu0 0.0
    %2905 = vmatprep.subr.mxu0 0.0
    %2906 = vmatpush1.msra.mxu0 0.0
    %2907 = vmatprep.subr.mxu0 0.0
    %2908 = vmatpush1.msra.mxu0 0.0
    %2909 = vmatprep.subr.mxu0 0.0
    %2910 = vmatpush1.msra.mxu0 0.0
    %2911 = vmatprep.subr.mxu0 0.0
    %2912 = vmatpush1.msra.mxu0 0.0
    %2913 = vmatprep.subr.mxu0 0.0
    %2914 = vmatpush1.msra.mxu0 0.0
    %2915 = vmatprep.subr.mxu0 0.0
    %2916 = vmatpush1.msra.mxu0 0.0
    %2917 = vmatprep.subr.mxu0 0.0
    %2918 = vmatpush1.msra.mxu0 0.0
    %2919 = vmatprep.subr.mxu0 0.0
    %2920 = vmatpush1.msra.mxu0 0.0
    %2921 = vmatprep.subr.mxu0 0.0
    %2922 = vmatpush1.msra.mxu0 0.0
    %2923 = vmatprep.subr.mxu0 0.0
    %v2924 = vand.u32 %v81, 4294901760
    %2925 = vmatpush1.msra.mxu0 %v2924
    %2926 = vmatprep.subr.mxu0 0.0
    %2927 = vmatpush2.msra.mxu0 0.0
    %2928 = vmatprep.subr.mxu0 0.0
    %2929 = vmatpush2.msra.mxu0 0.0
    %2930 = vmatprep.subr.mxu0 0.0
    %2931 = vmatpush2.msra.mxu0 0.0
    %2932 = vmatprep.subr.mxu0 0.0
    %2933 = vmatpush2.msra.mxu0 0.0
    %2934 = vmatprep.subr.mxu0 0.0
    %2935 = vmatpush2.msra.mxu0 0.0
    %2936 = vmatprep.subr.mxu0 0.0
    %2937 = vmatpush2.msra.mxu0 0.0
    %2938 = vmatprep.subr.mxu0 0.0
    %2939 = vmatpush2.msra.mxu0 0.0
    %2940 = vmatprep.subr.mxu0 0.0
    %2941 = vmatpush2.msra.mxu0 0.0
    %2942 = vmatprep.subr.mxu0 0.0
    %2943 = vmatpush2.msra.mxu0 0.0
    %2944 = vmatprep.subr.mxu0 0.0
    %2945 = vmatpush2.msra.mxu0 0.0
    %2946 = vmatprep.subr.mxu0 0.0
    %2947 = vmatpush2.msra.mxu0 0.0
    %2948 = vmatprep.subr.mxu0 0.0
    %2949 = vmatpush2.msra.mxu0 0.0
    %2950 = vmatprep.subr.mxu0 0.0
    %2951 = vmatpush2.msra.mxu0 0.0
    %2952 = vmatprep.subr.mxu0 0.0
    %2953 = vmatpush2.msra.mxu0 0.0
    %2954 = vmatprep.subr.mxu0 0.0
    %2955 = vmatpush2.msra.mxu0 0.0
    %2956 = vmatprep.subr.mxu0 0.0
    %2957 = vmatpush2.msra.mxu0 0.0
    %2958 = vmatprep.mubr.f32.mxu0 0.0
    %v2959 = vand.u32 %v2891, 4294901760
    %v2960 = vsub.f32 %v2891, %v2959
    %v2961 = vand.u32 %v2960, 4294901760
    %v2962 = vsub.f32 %v2960, %v2961
    %v2963 = vand.u32 %v2962, 4294901760
    %2964 = vmatmul.mubr.f32.gmra.mxu0 %v2963
    %v2965 = vpop.f32.mrf.mxu0
    %v2966 = vadd.f32 0.0, %v2965
    %v2967 = vpop.f32.mrf.mxu0
    %2968 = vdwg.mxu0
    %2969 = vmatprep.subr.mxu0 0.0
    %2970 = vmatpush1.msra.mxu0 0.0
    %2971 = vmatprep.subr.mxu0 0.0
    %2972 = vmatpush1.msra.mxu0 0.0
    %2973 = vmatprep.subr.mxu0 0.0
    %2974 = vmatpush1.msra.mxu0 0.0
    %2975 = vmatprep.subr.mxu0 0.0
    %2976 = vmatpush1.msra.mxu0 0.0
    %2977 = vmatprep.subr.mxu0 0.0
    %2978 = vmatpush1.msra.mxu0 0.0
    %2979 = vmatprep.subr.mxu0 0.0
    %2980 = vmatpush1.msra.mxu0 0.0
    %2981 = vmatprep.subr.mxu0 0.0
    %2982 = vmatpush1.msra.mxu0 0.0
    %2983 = vmatprep.subr.mxu0 0.0
    %2984 = vmatpush1.msra.mxu0 0.0
    %2985 = vmatprep.subr.mxu0 0.0
    %2986 = vmatpush1.msra.mxu0 0.0
    %2987 = vmatprep.subr.mxu0 0.0
    %2988 = vmatpush1.msra.mxu0 0.0
    %2989 = vmatprep.subr.mxu0 0.0
    %2990 = vmatpush1.msra.mxu0 0.0
    %2991 = vmatprep.subr.mxu0 0.0
    %2992 = vmatpush1.msra.mxu0 0.0
    %2993 = vmatprep.subr.mxu0 0.0
    %2994 = vmatpush1.msra.mxu0 0.0
    %2995 = vmatprep.subr.mxu0 0.0
    %2996 = vmatpush1.msra.mxu0 0.0
    %2997 = vmatprep.subr.mxu0 0.0
    %2998 = vmatpush1.msra.mxu0 0.0
    %2999 = vmatprep.subr.mxu0 0.0
    %v3000 = vand.u32 %v81, 4294901760
    %v3001 = vsub.f32 %v81, %v3000
    %v3002 = vand.u32 %v3001, 4294901760
    %v3003 = vsub.f32 %v3001, %v3002
    %v3004 = vand.u32 %v3003, 4294901760
    %3005 = vmatpush1.msra.mxu0 %v3004
    %3006 = vmatprep.subr.mxu0 0.0
    %3007 = vmatpush2.msra.mxu0 0.0
    %3008 = vmatprep.subr.mxu0 0.0
    %3009 = vmatpush2.msra.mxu0 0.0
    %3010 = vmatprep.subr.mxu0 0.0
    %3011 = vmatpush2.msra.mxu0 0.0
    %3012 = vmatprep.subr.mxu0 0.0
    %3013 = vmatpush2.msra.mxu0 0.0
    %3014 = vmatprep.subr.mxu0 0.0
    %3015 = vmatpush2.msra.mxu0 0.0
    %3016 = vmatprep.subr.mxu0 0.0
    %3017 = vmatpush2.msra.mxu0 0.0
    %3018 = vmatprep.subr.mxu0 0.0
    %3019 = vmatpush2.msra.mxu0 0.0
    %3020 = vmatprep.subr.mxu0 0.0
    %3021 = vmatpush2.msra.mxu0 0.0
    %3022 = vmatprep.subr.mxu0 0.0
    %3023 = vmatpush2.msra.mxu0 0.0
    %3024 = vmatprep.subr.mxu0 0.0
    %3025 = vmatpush2.msra.mxu0 0.0
    %3026 = vmatprep.subr.mxu0 0.0
    %3027 = vmatpush2.msra.mxu0 0.0
    %3028 = vmatprep.subr.mxu0 0.0
    %3029 = vmatpush2.msra.mxu0 0.0
    %3030 = vmatprep.subr.mxu0 0.0
    %3031 = vmatpush2.msra.mxu0 0.0
    %3032 = vmatprep.subr.mxu0 0.0
    %3033 = vmatpush2.msra.mxu0 0.0
    %3034 = vmatprep.subr.mxu0 0.0
    %3035 = vmatpush2.msra.mxu0 0.0
    %3036 = vmatprep.subr.mxu0 0.0
    %3037 = vmatpush2.msra.mxu0 0.0
    %3038 = vmatprep.mubr.f32.mxu0 0.0
    %v3039 = vand.u32 %v2891, 4294901760
    %3040 = vmatmul.mubr.f32.gmra.mxu0 %v3039
    %v3041 = vpop.f32.mrf.mxu0
    %v3042 = vadd.f32 %v2966, %v3041
    %v3043 = vpop.f32.mrf.mxu0
    %3044 = vdwg.mxu0
    %3045 = vmatprep.subr.mxu0 0.0
    %3046 = vmatpush1.msra.mxu0 0.0
    %3047 = vmatprep.subr.mxu0 0.0
    %3048 = vmatpush1.msra.mxu0 0.0
    %3049 = vmatprep.subr.mxu0 0.0
    %3050 = vmatpush1.msra.mxu0 0.0
    %3051 = vmatprep.subr.mxu0 0.0
    %3052 = vmatpush1.msra.mxu0 0.0
    %3053 = vmatprep.subr.mxu0 0.0
    %3054 = vmatpush1.msra.mxu0 0.0
    %3055 = vmatprep.subr.mxu0 0.0
    %3056 = vmatpush1.msra.mxu0 0.0
    %3057 = vmatprep.subr.mxu0 0.0
    %3058 = vmatpush1.msra.mxu0 0.0
    %3059 = vmatprep.subr.mxu0 0.0
    %3060 = vmatpush1.msra.mxu0 0.0
    %3061 = vmatprep.subr.mxu0 0.0
    %3062 = vmatpush1.msra.mxu0 0.0
    %3063 = vmatprep.subr.mxu0 0.0
    %3064 = vmatpush1.msra.mxu0 0.0
    %3065 = vmatprep.subr.mxu0 0.0
    %3066 = vmatpush1.msra.mxu0 0.0
    %3067 = vmatprep.subr.mxu0 0.0
    %3068 = vmatpush1.msra.mxu0 0.0
    %3069 = vmatprep.subr.mxu0 0.0
    %3070 = vmatpush1.msra.mxu0 0.0
    %3071 = vmatprep.subr.mxu0 0.0
    %3072 = vmatpush1.msra.mxu0 0.0
    %3073 = vmatprep.subr.mxu0 0.0
    %3074 = vmatpush1.msra.mxu0 0.0
    %3075 = vmatprep.subr.mxu0 0.0
    %v3076 = vand.u32 %v81, 4294901760
    %v3077 = vsub.f32 %v81, %v3076
    %3078 = vmatpush1.msra.mxu0 %v3077
    %3079 = vmatprep.subr.mxu0 0.0
    %3080 = vmatpush2.msra.mxu0 0.0
    %3081 = vmatprep.subr.mxu0 0.0
    %3082 = vmatpush2.msra.mxu0 0.0
    %3083 = vmatprep.subr.mxu0 0.0
    %3084 = vmatpush2.msra.mxu0 0.0
    %3085 = vmatprep.subr.mxu0 0.0
    %3086 = vmatpush2.msra.mxu0 0.0
    %3087 = vmatprep.subr.mxu0 0.0
    %3088 = vmatpush2.msra.mxu0 0.0
    %3089 = vmatprep.subr.mxu0 0.0
    %3090 = vmatpush2.msra.mxu0 0.0
    %3091 = vmatprep.subr.mxu0 0.0
    %3092 = vmatpush2.msra.mxu0 0.0
    %3093 = vmatprep.subr.mxu0 0.0
    %3094 = vmatpush2.msra.mxu0 0.0
    %3095 = vmatprep.subr.mxu0 0.0
    %3096 = vmatpush2.msra.mxu0 0.0
    %3097 = vmatprep.subr.mxu0 0.0
    %3098 = vmatpush2.msra.mxu0 0.0
    %3099 = vmatprep.subr.mxu0 0.0
    %3100 = vmatpush2.msra.mxu0 0.0
    %3101 = vmatprep.subr.mxu0 0.0
    %3102 = vmatpush2.msra.mxu0 0.0
    %3103 = vmatprep.subr.mxu0 0.0
    %3104 = vmatpush2.msra.mxu0 0.0
    %3105 = vmatprep.subr.mxu0 0.0
    %3106 = vmatpush2.msra.mxu0 0.0
    %3107 = vmatprep.subr.mxu0 0.0
    %3108 = vmatpush2.msra.mxu0 0.0
    %3109 = vmatprep.subr.mxu0 0.0
    %3110 = vmatpush2.msra.mxu0 0.0
    %3111 = vmatprep.mubr.f32.mxu0 0.0
    %v3112 = vand.u32 %v2891, 4294901760
    %v3113 = vsub.f32 %v2891, %v3112
    %3114 = vmatmul.mubr.f32.gmra.mxu0 %v3113
    %v3115 = vpop.f32.mrf.mxu0
    %v3116 = vadd.f32 %v3042, %v3115
    %v3117 = vpop.f32.mrf.mxu0
    %3118 = vdwg.mxu0
    %3119 = vmatprep.subr.mxu0 0.0
    %3120 = vmatpush1.msra.mxu0 0.0
    %3121 = vmatprep.subr.mxu0 0.0
    %3122 = vmatpush1.msra.mxu0 0.0
    %3123 = vmatprep.subr.mxu0 0.0
    %3124 = vmatpush1.msra.mxu0 0.0
    %3125 = vmatprep.subr.mxu0 0.0
    %3126 = vmatpush1.msra.mxu0 0.0
    %3127 = vmatprep.subr.mxu0 0.0
    %3128 = vmatpush1.msra.mxu0 0.0
    %3129 = vmatprep.subr.mxu0 0.0
    %3130 = vmatpush1.msra.mxu0 0.0
    %3131 = vmatprep.subr.mxu0 0.0
    %3132 = vmatpush1.msra.mxu0 0.0
    %3133 = vmatprep.subr.mxu0 0.0
    %3134 = vmatpush1.msra.mxu0 0.0
    %3135 = vmatprep.subr.mxu0 0.0
    %3136 = vmatpush1.msra.mxu0 0.0
    %3137 = vmatprep.subr.mxu0 0.0
    %3138 = vmatpush1.msra.mxu0 0.0
    %3139 = vmatprep.subr.mxu0 0.0
    %3140 = vmatpush1.msra.mxu0 0.0
    %3141 = vmatprep.subr.mxu0 0.0
    %3142 = vmatpush1.msra.mxu0 0.0
    %3143 = vmatprep.subr.mxu0 0.0
    %3144 = vmatpush1.msra.mxu0 0.0
    %3145 = vmatprep.subr.mxu0 0.0
    %3146 = vmatpush1.msra.mxu0 0.0
    %3147 = vmatprep.subr.mxu0 0.0
    %3148 = vmatpush1.msra.mxu0 0.0
    %3149 = vmatprep.subr.mxu0 0.0
    %v3150 = vand.u32 %v81, 4294901760
    %3151 = vmatpush1.msra.mxu0 %v3150
    %3152 = vmatprep.subr.mxu0 0.0
    %3153 = vmatpush2.msra.mxu0 0.0
    %3154 = vmatprep.subr.mxu0 0.0
    %3155 = vmatpush2.msra.mxu0 0.0
    %3156 = vmatprep.subr.mxu0 0.0
    %3157 = vmatpush2.msra.mxu0 0.0
    %3158 = vmatprep.subr.mxu0 0.0
    %3159 = vmatpush2.msra.mxu0 0.0
    %3160 = vmatprep.subr.mxu0 0.0
    %3161 = vmatpush2.msra.mxu0 0.0
    %3162 = vmatprep.subr.mxu0 0.0
    %3163 = vmatpush2.msra.mxu0 0.0
    %3164 = vmatprep.subr.mxu0 0.0
    %3165 = vmatpush2.msra.mxu0 0.0
    %3166 = vmatprep.subr.mxu0 0.0
    %3167 = vmatpush2.msra.mxu0 0.0
    %3168 = vmatprep.subr.mxu0 0.0
    %3169 = vmatpush2.msra.mxu0 0.0
    %3170 = vmatprep.subr.mxu0 0.0
    %3171 = vmatpush2.msra.mxu0 0.0
    %3172 = vmatprep.subr.mxu0 0.0
    %3173 = vmatpush2.msra.mxu0 0.0
    %3174 = vmatprep.subr.mxu0 0.0
    %3175 = vmatpush2.msra.mxu0 0.0
    %3176 = vmatprep.subr.mxu0 0.0
    %3177 = vmatpush2.msra.mxu0 0.0
    %3178 = vmatprep.subr.mxu0 0.0
    %3179 = vmatpush2.msra.mxu0 0.0
    %3180 = vmatprep.subr.mxu0 0.0
    %3181 = vmatpush2.msra.mxu0 0.0
    %3182 = vmatprep.subr.mxu0 0.0
    %3183 = vmatpush2.msra.mxu0 0.0
    %3184 = vmatprep.mubr.f32.mxu0 0.0
    %v3185 = vand.u32 %v2891, 4294901760
    %v3186 = vsub.f32 %v2891, %v3185
    %v3187 = vand.u32 %v3186, 4294901760
    %3188 = vmatmul.mubr.f32.gmra.mxu0 %v3187
    %v3189 = vpop.f32.mrf.mxu0
    %v3190 = vadd.f32 %v3116, %v3189
    %v3191 = vpop.f32.mrf.mxu0
    %3192 = vdwg.mxu0
    %3193 = vmatprep.subr.mxu0 0.0
    %3194 = vmatpush1.msra.mxu0 0.0
    %3195 = vmatprep.subr.mxu0 0.0
    %3196 = vmatpush1.msra.mxu0 0.0
    %3197 = vmatprep.subr.mxu0 0.0
    %3198 = vmatpush1.msra.mxu0 0.0
    %3199 = vmatprep.subr.mxu0 0.0
    %3200 = vmatpush1.msra.mxu0 0.0
    %3201 = vmatprep.subr.mxu0 0.0
    %3202 = vmatpush1.msra.mxu0 0.0
    %3203 = vmatprep.subr.mxu0 0.0
    %3204 = vmatpush1.msra.mxu0 0.0
    %3205 = vmatprep.subr.mxu0 0.0
    %3206 = vmatpush1.msra.mxu0 0.0
    %3207 = vmatprep.subr.mxu0 0.0
    %3208 = vmatpush1.msra.mxu0 0.0
    %3209 = vmatprep.subr.mxu0 0.0
    %3210 = vmatpush1.msra.mxu0 0.0
    %3211 = vmatprep.subr.mxu0 0.0
    %3212 = vmatpush1.msra.mxu0 0.0
    %3213 = vmatprep.subr.mxu0 0.0
    %3214 = vmatpush1.msra.mxu0 0.0
    %3215 = vmatprep.subr.mxu0 0.0
    %3216 = vmatpush1.msra.mxu0 0.0
    %3217 = vmatprep.subr.mxu0 0.0
    %3218 = vmatpush1.msra.mxu0 0.0
    %3219 = vmatprep.subr.mxu0 0.0
    %3220 = vmatpush1.msra.mxu0 0.0
    %3221 = vmatprep.subr.mxu0 0.0
    %3222 = vmatpush1.msra.mxu0 0.0
    %3223 = vmatprep.subr.mxu0 0.0
    %v3224 = vand.u32 %v81, 4294901760
    %v3225 = vsub.f32 %v81, %v3224
    %v3226 = vand.u32 %v3225, 4294901760
    %3227 = vmatpush1.msra.mxu0 %v3226
    %3228 = vmatprep.subr.mxu0 0.0
    %3229 = vmatpush2.msra.mxu0 0.0
    %3230 = vmatprep.subr.mxu0 0.0
    %3231 = vmatpush2.msra.mxu0 0.0
    %3232 = vmatprep.subr.mxu0 0.0
    %3233 = vmatpush2.msra.mxu0 0.0
    %3234 = vmatprep.subr.mxu0 0.0
    %3235 = vmatpush2.msra.mxu0 0.0
    %3236 = vmatprep.subr.mxu0 0.0
    %3237 = vmatpush2.msra.mxu0 0.0
    %3238 = vmatprep.subr.mxu0 0.0
    %3239 = vmatpush2.msra.mxu0 0.0
    %3240 = vmatprep.subr.mxu0 0.0
    %3241 = vmatpush2.msra.mxu0 0.0
    %3242 = vmatprep.subr.mxu0 0.0
    %3243 = vmatpush2.msra.mxu0 0.0
    %3244 = vmatprep.subr.mxu0 0.0
    %3245 = vmatpush2.msra.mxu0 0.0
    %3246 = vmatprep.subr.mxu0 0.0
    %3247 = vmatpush2.msra.mxu0 0.0
    %3248 = vmatprep.subr.mxu0 0.0
    %3249 = vmatpush2.msra.mxu0 0.0
    %3250 = vmatprep.subr.mxu0 0.0
    %3251 = vmatpush2.msra.mxu0 0.0
    %3252 = vmatprep.subr.mxu0 0.0
    %3253 = vmatpush2.msra.mxu0 0.0
    %3254 = vmatprep.subr.mxu0 0.0
    %3255 = vmatpush2.msra.mxu0 0.0
    %3256 = vmatprep.subr.mxu0 0.0
    %3257 = vmatpush2.msra.mxu0 0.0
    %3258 = vmatprep.subr.mxu0 0.0
    %3259 = vmatpush2.msra.mxu0 0.0
    %3260 = vmatprep.mubr.f32.mxu0 0.0
    %v3261 = vand.u32 %v2891, 4294901760
    %3262 = vmatmul.mubr.f32.gmra.mxu0 %v3261
    %v3263 = vpop.f32.mrf.mxu0
    %v3264 = vadd.f32 %v3190, %v3263
    %v3265 = vpop.f32.mrf.mxu0
    %3266 = vdwg.mxu0
    %3267 = vmatprep.subr.mxu0 0.0
    %3268 = vmatpush1.msra.mxu0 0.0
    %3269 = vmatprep.subr.mxu0 0.0
    %3270 = vmatpush1.msra.mxu0 0.0
    %3271 = vmatprep.subr.mxu0 0.0
    %3272 = vmatpush1.msra.mxu0 0.0
    %3273 = vmatprep.subr.mxu0 0.0
    %3274 = vmatpush1.msra.mxu0 0.0
    %3275 = vmatprep.subr.mxu0 0.0
    %3276 = vmatpush1.msra.mxu0 0.0
    %3277 = vmatprep.subr.mxu0 0.0
    %3278 = vmatpush1.msra.mxu0 0.0
    %3279 = vmatprep.subr.mxu0 0.0
    %3280 = vmatpush1.msra.mxu0 0.0
    %3281 = vmatprep.subr.mxu0 0.0
    %3282 = vmatpush1.msra.mxu0 0.0
    %3283 = vmatprep.subr.mxu0 0.0
    %3284 = vmatpush1.msra.mxu0 0.0
    %3285 = vmatprep.subr.mxu0 0.0
    %3286 = vmatpush1.msra.mxu0 0.0
    %3287 = vmatprep.subr.mxu0 0.0
    %3288 = vmatpush1.msra.mxu0 0.0
    %3289 = vmatprep.subr.mxu0 0.0
    %3290 = vmatpush1.msra.mxu0 0.0
    %3291 = vmatprep.subr.mxu0 0.0
    %3292 = vmatpush1.msra.mxu0 0.0
    %3293 = vmatprep.subr.mxu0 0.0
    %3294 = vmatpush1.msra.mxu0 0.0
    %3295 = vmatprep.subr.mxu0 0.0
    %3296 = vmatpush1.msra.mxu0 0.0
    %3297 = vmatprep.subr.mxu0 0.0
    %v3298 = vand.u32 %v81, 4294901760
    %3299 = vmatpush1.msra.mxu0 %v3298
    %3300 = vmatprep.subr.mxu0 0.0
    %3301 = vmatpush2.msra.mxu0 0.0
    %3302 = vmatprep.subr.mxu0 0.0
    %3303 = vmatpush2.msra.mxu0 0.0
    %3304 = vmatprep.subr.mxu0 0.0
    %3305 = vmatpush2.msra.mxu0 0.0
    %3306 = vmatprep.subr.mxu0 0.0
    %3307 = vmatpush2.msra.mxu0 0.0
    %3308 = vmatprep.subr.mxu0 0.0
    %3309 = vmatpush2.msra.mxu0 0.0
    %3310 = vmatprep.subr.mxu0 0.0
    %3311 = vmatpush2.msra.mxu0 0.0
    %3312 = vmatprep.subr.mxu0 0.0
    %3313 = vmatpush2.msra.mxu0 0.0
    %3314 = vmatprep.subr.mxu0 0.0
    %3315 = vmatpush2.msra.mxu0 0.0
    %3316 = vmatprep.subr.mxu0 0.0
    %3317 = vmatpush2.msra.mxu0 0.0
    %3318 = vmatprep.subr.mxu0 0.0
    %3319 = vmatpush2.msra.mxu0 0.0
    %3320 = vmatprep.subr.mxu0 0.0
    %3321 = vmatpush2.msra.mxu0 0.0
    %3322 = vmatprep.subr.mxu0 0.0
    %3323 = vmatpush2.msra.mxu0 0.0
    %3324 = vmatprep.subr.mxu0 0.0
    %3325 = vmatpush2.msra.mxu0 0.0
    %3326 = vmatprep.subr.mxu0 0.0
    %3327 = vmatpush2.msra.mxu0 0.0
    %3328 = vmatprep.subr.mxu0 0.0
    %3329 = vmatpush2.msra.mxu0 0.0
    %3330 = vmatprep.subr.mxu0 0.0
    %3331 = vmatpush2.msra.mxu0 0.0
    %3332 = vmatprep.mubr.f32.mxu0 0.0
    %v3333 = vand.u32 %v2891, 4294901760
    %3334 = vmatmul.mubr.f32.gmra.mxu0 %v3333
    %v3335 = vpop.f32.mrf.mxu0
    %v3336 = vadd.f32 %v3264, %v3335
    %v3337 = vpop.f32.mrf.mxu0
    %3338 = vdwg.mxu0
    %v3339 = vsel %vm589, %v648, 0
    %3341 = vmatprep.subr.mxu0 0.0
    %3342 = vmatpush1.msra.mxu0 0.0
    %3343 = vmatprep.subr.mxu0 0.0
    %3344 = vmatpush1.msra.mxu0 0.0
    %3345 = vmatprep.subr.mxu0 0.0
    %3346 = vmatpush1.msra.mxu0 0.0
    %3347 = vmatprep.subr.mxu0 0.0
    %3348 = vmatpush1.msra.mxu0 0.0
    %3349 = vmatprep.subr.mxu0 0.0
    %3350 = vmatpush1.msra.mxu0 0.0
    %3351 = vmatprep.subr.mxu0 0.0
    %3352 = vmatpush1.msra.mxu0 0.0
    %3353 = vmatprep.subr.mxu0 0.0
    %3354 = vmatpush1.msra.mxu0 0.0
    %3355 = vmatprep.subr.mxu0 0.0
    %3356 = vmatpush1.msra.mxu0 0.0
    %3357 = vmatprep.subr.mxu0 0.0
    %3358 = vmatpush1.msra.mxu0 0.0
    %3359 = vmatprep.subr.mxu0 0.0
    %3360 = vmatpush1.msra.mxu0 0.0
    %3361 = vmatprep.subr.mxu0 0.0
    %3362 = vmatpush1.msra.mxu0 0.0
    %3363 = vmatprep.subr.mxu0 0.0
    %3364 = vmatpush1.msra.mxu0 0.0
    %3365 = vmatprep.subr.mxu0 0.0
    %3366 = vmatpush1.msra.mxu0 0.0
    %3367 = vmatprep.subr.mxu0 0.0
    %3368 = vmatpush1.msra.mxu0 0.0
    %3369 = vmatprep.subr.mxu0 0.0
    %3370 = vmatpush1.msra.mxu0 0.0
    %3371 = vmatprep.subr.mxu0 0.0
    %v3372 = vand.u32 %v82, 4294901760
    %3373 = vmatpush1.msra.mxu0 %v3372
    %3374 = vmatprep.subr.mxu0 0.0
    %3375 = vmatpush2.msra.mxu0 0.0
    %3376 = vmatprep.subr.mxu0 0.0
    %3377 = vmatpush2.msra.mxu0 0.0
    %3378 = vmatprep.subr.mxu0 0.0
    %3379 = vmatpush2.msra.mxu0 0.0
    %3380 = vmatprep.subr.mxu0 0.0
    %3381 = vmatpush2.msra.mxu0 0.0
    %3382 = vmatprep.subr.mxu0 0.0
    %3383 = vmatpush2.msra.mxu0 0.0
    %3384 = vmatprep.subr.mxu0 0.0
    %3385 = vmatpush2.msra.mxu0 0.0
    %3386 = vmatprep.subr.mxu0 0.0
    %3387 = vmatpush2.msra.mxu0 0.0
    %3388 = vmatprep.subr.mxu0 0.0
    %3389 = vmatpush2.msra.mxu0 0.0
    %3390 = vmatprep.subr.mxu0 0.0
    %3391 = vmatpush2.msra.mxu0 0.0
    %3392 = vmatprep.subr.mxu0 0.0
    %3393 = vmatpush2.msra.mxu0 0.0
    %3394 = vmatprep.subr.mxu0 0.0
    %3395 = vmatpush2.msra.mxu0 0.0
    %3396 = vmatprep.subr.mxu0 0.0
    %3397 = vmatpush2.msra.mxu0 0.0
    %3398 = vmatprep.subr.mxu0 0.0
    %3399 = vmatpush2.msra.mxu0 0.0
    %3400 = vmatprep.subr.mxu0 0.0
    %3401 = vmatpush2.msra.mxu0 0.0
    %3402 = vmatprep.subr.mxu0 0.0
    %3403 = vmatpush2.msra.mxu0 0.0
    %3404 = vmatprep.subr.mxu0 0.0
    %3405 = vmatpush2.msra.mxu0 0.0
    %3406 = vmatprep.mubr.f32.mxu0 0.0
    %v3407 = vand.u32 %v3339, 4294901760
    %v3408 = vsub.f32 %v3339, %v3407
    %v3409 = vand.u32 %v3408, 4294901760
    %v3410 = vsub.f32 %v3408, %v3409
    %v3411 = vand.u32 %v3410, 4294901760
    %3412 = vmatmul.mubr.f32.gmra.mxu0 %v3411
    %v3413 = vpop.f32.mrf.mxu0
    %v3414 = vadd.f32 0.0, %v3413
    %v3415 = vpop.f32.mrf.mxu0
    %3416 = vdwg.mxu0
    %3417 = vmatprep.subr.mxu0 0.0
    %3418 = vmatpush1.msra.mxu0 0.0
    %3419 = vmatprep.subr.mxu0 0.0
    %3420 = vmatpush1.msra.mxu0 0.0
    %3421 = vmatprep.subr.mxu0 0.0
    %3422 = vmatpush1.msra.mxu0 0.0
    %3423 = vmatprep.subr.mxu0 0.0
    %3424 = vmatpush1.msra.mxu0 0.0
    %3425 = vmatprep.subr.mxu0 0.0
    %3426 = vmatpush1.msra.mxu0 0.0
    %3427 = vmatprep.subr.mxu0 0.0
    %3428 = vmatpush1.msra.mxu0 0.0
    %3429 = vmatprep.subr.mxu0 0.0
    %3430 = vmatpush1.msra.mxu0 0.0
    %3431 = vmatprep.subr.mxu0 0.0
    %3432 = vmatpush1.msra.mxu0 0.0
    %3433 = vmatprep.subr.mxu0 0.0
    %3434 = vmatpush1.msra.mxu0 0.0
    %3435 = vmatprep.subr.mxu0 0.0
    %3436 = vmatpush1.msra.mxu0 0.0
    %3437 = vmatprep.subr.mxu0 0.0
    %3438 = vmatpush1.msra.mxu0 0.0
    %3439 = vmatprep.subr.mxu0 0.0
    %3440 = vmatpush1.msra.mxu0 0.0
    %3441 = vmatprep.subr.mxu0 0.0
    %3442 = vmatpush1.msra.mxu0 0.0
    %3443 = vmatprep.subr.mxu0 0.0
    %3444 = vmatpush1.msra.mxu0 0.0
    %3445 = vmatprep.subr.mxu0 0.0
    %3446 = vmatpush1.msra.mxu0 0.0
    %3447 = vmatprep.subr.mxu0 0.0
    %v3448 = vand.u32 %v82, 4294901760
    %v3449 = vsub.f32 %v82, %v3448
    %v3450 = vand.u32 %v3449, 4294901760
    %v3451 = vsub.f32 %v3449, %v3450
    %v3452 = vand.u32 %v3451, 4294901760
    %3453 = vmatpush1.msra.mxu0 %v3452
    %3454 = vmatprep.subr.mxu0 0.0
    %3455 = vmatpush2.msra.mxu0 0.0
    %3456 = vmatprep.subr.mxu0 0.0
    %3457 = vmatpush2.msra.mxu0 0.0
    %3458 = vmatprep.subr.mxu0 0.0
    %3459 = vmatpush2.msra.mxu0 0.0
    %3460 = vmatprep.subr.mxu0 0.0
    %3461 = vmatpush2.msra.mxu0 0.0
    %3462 = vmatprep.subr.mxu0 0.0
    %3463 = vmatpush2.msra.mxu0 0.0
    %3464 = vmatprep.subr.mxu0 0.0
    %3465 = vmatpush2.msra.mxu0 0.0
    %3466 = vmatprep.subr.mxu0 0.0
    %3467 = vmatpush2.msra.mxu0 0.0
    %3468 = vmatprep.subr.mxu0 0.0
    %3469 = vmatpush2.msra.mxu0 0.0
    %3470 = vmatprep.subr.mxu0 0.0
    %3471 = vmatpush2.msra.mxu0 0.0
    %3472 = vmatprep.subr.mxu0 0.0
    %3473 = vmatpush2.msra.mxu0 0.0
    %3474 = vmatprep.subr.mxu0 0.0
    %3475 = vmatpush2.msra.mxu0 0.0
    %3476 = vmatprep.subr.mxu0 0.0
    %3477 = vmatpush2.msra.mxu0 0.0
    %3478 = vmatprep.subr.mxu0 0.0
    %3479 = vmatpush2.msra.mxu0 0.0
    %3480 = vmatprep.subr.mxu0 0.0
    %3481 = vmatpush2.msra.mxu0 0.0
    %3482 = vmatprep.subr.mxu0 0.0
    %3483 = vmatpush2.msra.mxu0 0.0
    %3484 = vmatprep.subr.mxu0 0.0
    %3485 = vmatpush2.msra.mxu0 0.0
    %3486 = vmatprep.mubr.f32.mxu0 0.0
    %v3487 = vand.u32 %v3339, 4294901760
    %3488 = vmatmul.mubr.f32.gmra.mxu0 %v3487
    %v3489 = vpop.f32.mrf.mxu0
    %v3490 = vadd.f32 %v3414, %v3489
    %v3491 = vpop.f32.mrf.mxu0
    %3492 = vdwg.mxu0
    %3493 = vmatprep.subr.mxu0 0.0
    %3494 = vmatpush1.msra.mxu0 0.0
    %3495 = vmatprep.subr.mxu0 0.0
    %3496 = vmatpush1.msra.mxu0 0.0
    %3497 = vmatprep.subr.mxu0 0.0
    %3498 = vmatpush1.msra.mxu0 0.0
    %3499 = vmatprep.subr.mxu0 0.0
    %3500 = vmatpush1.msra.mxu0 0.0
    %3501 = vmatprep.subr.mxu0 0.0
    %3502 = vmatpush1.msra.mxu0 0.0
    %3503 = vmatprep.subr.mxu0 0.0
    %3504 = vmatpush1.msra.mxu0 0.0
    %3505 = vmatprep.subr.mxu0 0.0
    %3506 = vmatpush1.msra.mxu0 0.0
    %3507 = vmatprep.subr.mxu0 0.0
    %3508 = vmatpush1.msra.mxu0 0.0
    %3509 = vmatprep.subr.mxu0 0.0
    %3510 = vmatpush1.msra.mxu0 0.0
    %3511 = vmatprep.subr.mxu0 0.0
    %3512 = vmatpush1.msra.mxu0 0.0
    %3513 = vmatprep.subr.mxu0 0.0
    %3514 = vmatpush1.msra.mxu0 0.0
    %3515 = vmatprep.subr.mxu0 0.0
    %3516 = vmatpush1.msra.mxu0 0.0
    %3517 = vmatprep.subr.mxu0 0.0
    %3518 = vmatpush1.msra.mxu0 0.0
    %3519 = vmatprep.subr.mxu0 0.0
    %3520 = vmatpush1.msra.mxu0 0.0
    %3521 = vmatprep.subr.mxu0 0.0
    %3522 = vmatpush1.msra.mxu0 0.0
    %3523 = vmatprep.subr.mxu0 0.0
    %v3524 = vand.u32 %v82, 4294901760
    %v3525 = vsub.f32 %v82, %v3524
    %3526 = vmatpush1.msra.mxu0 %v3525
    %3527 = vmatprep.subr.mxu0 0.0
    %3528 = vmatpush2.msra.mxu0 0.0
    %3529 = vmatprep.subr.mxu0 0.0
    %3530 = vmatpush2.msra.mxu0 0.0
    %3531 = vmatprep.subr.mxu0 0.0
    %3532 = vmatpush2.msra.mxu0 0.0
    %3533 = vmatprep.subr.mxu0 0.0
    %3534 = vmatpush2.msra.mxu0 0.0
    %3535 = vmatprep.subr.mxu0 0.0
    %3536 = vmatpush2.msra.mxu0 0.0
    %3537 = vmatprep.subr.mxu0 0.0
    %3538 = vmatpush2.msra.mxu0 0.0
    %3539 = vmatprep.subr.mxu0 0.0
    %3540 = vmatpush2.msra.mxu0 0.0
    %3541 = vmatprep.subr.mxu0 0.0
    %3542 = vmatpush2.msra.mxu0 0.0
    %3543 = vmatprep.subr.mxu0 0.0
    %3544 = vmatpush2.msra.mxu0 0.0
    %3545 = vmatprep.subr.mxu0 0.0
    %3546 = vmatpush2.msra.mxu0 0.0
    %3547 = vmatprep.subr.mxu0 0.0
    %3548 = vmatpush2.msra.mxu0 0.0
    %3549 = vmatprep.subr.mxu0 0.0
    %3550 = vmatpush2.msra.mxu0 0.0
    %3551 = vmatprep.subr.mxu0 0.0
    %3552 = vmatpush2.msra.mxu0 0.0
    %3553 = vmatprep.subr.mxu0 0.0
    %3554 = vmatpush2.msra.mxu0 0.0
    %3555 = vmatprep.subr.mxu0 0.0
    %3556 = vmatpush2.msra.mxu0 0.0
    %3557 = vmatprep.subr.mxu0 0.0
    %3558 = vmatpush2.msra.mxu0 0.0
    %3559 = vmatprep.mubr.f32.mxu0 0.0
    %v3560 = vand.u32 %v3339, 4294901760
    %v3561 = vsub.f32 %v3339, %v3560
    %3562 = vmatmul.mubr.f32.gmra.mxu0 %v3561
    %v3563 = vpop.f32.mrf.mxu0
    %v3564 = vadd.f32 %v3490, %v3563
    %v3565 = vpop.f32.mrf.mxu0
    %3566 = vdwg.mxu0
    %3567 = vmatprep.subr.mxu0 0.0
    %3568 = vmatpush1.msra.mxu0 0.0
    %3569 = vmatprep.subr.mxu0 0.0
    %3570 = vmatpush1.msra.mxu0 0.0
    %3571 = vmatprep.subr.mxu0 0.0
    %3572 = vmatpush1.msra.mxu0 0.0
    %3573 = vmatprep.subr.mxu0 0.0
    %3574 = vmatpush1.msra.mxu0 0.0
    %3575 = vmatprep.subr.mxu0 0.0
    %3576 = vmatpush1.msra.mxu0 0.0
    %3577 = vmatprep.subr.mxu0 0.0
    %3578 = vmatpush1.msra.mxu0 0.0
    %3579 = vmatprep.subr.mxu0 0.0
    %3580 = vmatpush1.msra.mxu0 0.0
    %3581 = vmatprep.subr.mxu0 0.0
    %3582 = vmatpush1.msra.mxu0 0.0
    %3583 = vmatprep.subr.mxu0 0.0
    %3584 = vmatpush1.msra.mxu0 0.0
    %3585 = vmatprep.subr.mxu0 0.0
    %3586 = vmatpush1.msra.mxu0 0.0
    %3587 = vmatprep.subr.mxu0 0.0
    %3588 = vmatpush1.msra.mxu0 0.0
    %3589 = vmatprep.subr.mxu0 0.0
    %3590 = vmatpush1.msra.mxu0 0.0
    %3591 = vmatprep.subr.mxu0 0.0
    %3592 = vmatpush1.msra.mxu0 0.0
    %3593 = vmatprep.subr.mxu0 0.0
    %3594 = vmatpush1.msra.mxu0 0.0
    %3595 = vmatprep.subr.mxu0 0.0
    %3596 = vmatpush1.msra.mxu0 0.0
    %3597 = vmatprep.subr.mxu0 0.0
    %v3598 = vand.u32 %v82, 4294901760
    %3599 = vmatpush1.msra.mxu0 %v3598
    %3600 = vmatprep.subr.mxu0 0.0
    %3601 = vmatpush2.msra.mxu0 0.0
    %3602 = vmatprep.subr.mxu0 0.0
    %3603 = vmatpush2.msra.mxu0 0.0
    %3604 = vmatprep.subr.mxu0 0.0
    %3605 = vmatpush2.msra.mxu0 0.0
    %3606 = vmatprep.subr.mxu0 0.0
    %3607 = vmatpush2.msra.mxu0 0.0
    %3608 = vmatprep.subr.mxu0 0.0
    %3609 = vmatpush2.msra.mxu0 0.0
    %3610 = vmatprep.subr.mxu0 0.0
    %3611 = vmatpush2.msra.mxu0 0.0
    %3612 = vmatprep.subr.mxu0 0.0
    %3613 = vmatpush2.msra.mxu0 0.0
    %3614 = vmatprep.subr.mxu0 0.0
    %3615 = vmatpush2.msra.mxu0 0.0
    %3616 = vmatprep.subr.mxu0 0.0
    %3617 = vmatpush2.msra.mxu0 0.0
    %3618 = vmatprep.subr.mxu0 0.0
    %3619 = vmatpush2.msra.mxu0 0.0
    %3620 = vmatprep.subr.mxu0 0.0
    %3621 = vmatpush2.msra.mxu0 0.0
    %3622 = vmatprep.subr.mxu0 0.0
    %3623 = vmatpush2.msra.mxu0 0.0
    %3624 = vmatprep.subr.mxu0 0.0
    %3625 = vmatpush2.msra.mxu0 0.0
    %3626 = vmatprep.subr.mxu0 0.0
    %3627 = vmatpush2.msra.mxu0 0.0
    %3628 = vmatprep.subr.mxu0 0.0
    %3629 = vmatpush2.msra.mxu0 0.0
    %3630 = vmatprep.subr.mxu0 0.0
    %3631 = vmatpush2.msra.mxu0 0.0
    %3632 = vmatprep.mubr.f32.mxu0 0.0
    %v3633 = vand.u32 %v3339, 4294901760
    %v3634 = vsub.f32 %v3339, %v3633
    %v3635 = vand.u32 %v3634, 4294901760
    %3636 = vmatmul.mubr.f32.gmra.mxu0 %v3635
    %v3637 = vpop.f32.mrf.mxu0
    %v3638 = vadd.f32 %v3564, %v3637
    %v3639 = vpop.f32.mrf.mxu0
    %3640 = vdwg.mxu0
    %3641 = vmatprep.subr.mxu0 0.0
    %3642 = vmatpush1.msra.mxu0 0.0
    %3643 = vmatprep.subr.mxu0 0.0
    %3644 = vmatpush1.msra.mxu0 0.0
    %3645 = vmatprep.subr.mxu0 0.0
    %3646 = vmatpush1.msra.mxu0 0.0
    %3647 = vmatprep.subr.mxu0 0.0
    %3648 = vmatpush1.msra.mxu0 0.0
    %3649 = vmatprep.subr.mxu0 0.0
    %3650 = vmatpush1.msra.mxu0 0.0
    %3651 = vmatprep.subr.mxu0 0.0
    %3652 = vmatpush1.msra.mxu0 0.0
    %3653 = vmatprep.subr.mxu0 0.0
    %3654 = vmatpush1.msra.mxu0 0.0
    %3655 = vmatprep.subr.mxu0 0.0
    %3656 = vmatpush1.msra.mxu0 0.0
    %3657 = vmatprep.subr.mxu0 0.0
    %3658 = vmatpush1.msra.mxu0 0.0
    %3659 = vmatprep.subr.mxu0 0.0
    %3660 = vmatpush1.msra.mxu0 0.0
    %3661 = vmatprep.subr.mxu0 0.0
    %3662 = vmatpush1.msra.mxu0 0.0
    %3663 = vmatprep.subr.mxu0 0.0
    %3664 = vmatpush1.msra.mxu0 0.0
    %3665 = vmatprep.subr.mxu0 0.0
    %3666 = vmatpush1.msra.mxu0 0.0
    %3667 = vmatprep.subr.mxu0 0.0
    %3668 = vmatpush1.msra.mxu0 0.0
    %3669 = vmatprep.subr.mxu0 0.0
    %3670 = vmatpush1.msra.mxu0 0.0
    %3671 = vmatprep.subr.mxu0 0.0
    %v3672 = vand.u32 %v82, 4294901760
    %v3673 = vsub.f32 %v82, %v3672
    %v3674 = vand.u32 %v3673, 4294901760
    %3675 = vmatpush1.msra.mxu0 %v3674
    %3676 = vmatprep.subr.mxu0 0.0
    %3677 = vmatpush2.msra.mxu0 0.0
    %3678 = vmatprep.subr.mxu0 0.0
    %3679 = vmatpush2.msra.mxu0 0.0
    %3680 = vmatprep.subr.mxu0 0.0
    %3681 = vmatpush2.msra.mxu0 0.0
    %3682 = vmatprep.subr.mxu0 0.0
    %3683 = vmatpush2.msra.mxu0 0.0
    %3684 = vmatprep.subr.mxu0 0.0
    %3685 = vmatpush2.msra.mxu0 0.0
    %3686 = vmatprep.subr.mxu0 0.0
    %3687 = vmatpush2.msra.mxu0 0.0
    %3688 = vmatprep.subr.mxu0 0.0
    %3689 = vmatpush2.msra.mxu0 0.0
    %3690 = vmatprep.subr.mxu0 0.0
    %3691 = vmatpush2.msra.mxu0 0.0
    %3692 = vmatprep.subr.mxu0 0.0
    %3693 = vmatpush2.msra.mxu0 0.0
    %3694 = vmatprep.subr.mxu0 0.0
    %3695 = vmatpush2.msra.mxu0 0.0
    %3696 = vmatprep.subr.mxu0 0.0
    %3697 = vmatpush2.msra.mxu0 0.0
    %3698 = vmatprep.subr.mxu0 0.0
    %3699 = vmatpush2.msra.mxu0 0.0
    %3700 = vmatprep.subr.mxu0 0.0
    %3701 = vmatpush2.msra.mxu0 0.0
    %3702 = vmatprep.subr.mxu0 0.0
    %3703 = vmatpush2.msra.mxu0 0.0
    %3704 = vmatprep.subr.mxu0 0.0
    %3705 = vmatpush2.msra.mxu0 0.0
    %3706 = vmatprep.subr.mxu0 0.0
    %3707 = vmatpush2.msra.mxu0 0.0
    %3708 = vmatprep.mubr.f32.mxu0 0.0
    %v3709 = vand.u32 %v3339, 4294901760
    %3710 = vmatmul.mubr.f32.gmra.mxu0 %v3709
    %v3711 = vpop.f32.mrf.mxu0
    %v3712 = vadd.f32 %v3638, %v3711
    %v3713 = vpop.f32.mrf.mxu0
    %3714 = vdwg.mxu0
    %3715 = vmatprep.subr.mxu0 0.0
    %3716 = vmatpush1.msra.mxu0 0.0
    %3717 = vmatprep.subr.mxu0 0.0
    %3718 = vmatpush1.msra.mxu0 0.0
    %3719 = vmatprep.subr.mxu0 0.0
    %3720 = vmatpush1.msra.mxu0 0.0
    %3721 = vmatprep.subr.mxu0 0.0
    %3722 = vmatpush1.msra.mxu0 0.0
    %3723 = vmatprep.subr.mxu0 0.0
    %3724 = vmatpush1.msra.mxu0 0.0
    %3725 = vmatprep.subr.mxu0 0.0
    %3726 = vmatpush1.msra.mxu0 0.0
    %3727 = vmatprep.subr.mxu0 0.0
    %3728 = vmatpush1.msra.mxu0 0.0
    %3729 = vmatprep.subr.mxu0 0.0
    %3730 = vmatpush1.msra.mxu0 0.0
    %3731 = vmatprep.subr.mxu0 0.0
    %3732 = vmatpush1.msra.mxu0 0.0
    %3733 = vmatprep.subr.mxu0 0.0
    %3734 = vmatpush1.msra.mxu0 0.0
    %3735 = vmatprep.subr.mxu0 0.0
    %3736 = vmatpush1.msra.mxu0 0.0
    %3737 = vmatprep.subr.mxu0 0.0
    %3738 = vmatpush1.msra.mxu0 0.0
    %3739 = vmatprep.subr.mxu0 0.0
    %3740 = vmatpush1.msra.mxu0 0.0
    %3741 = vmatprep.subr.mxu0 0.0
    %3742 = vmatpush1.msra.mxu0 0.0
    %3743 = vmatprep.subr.mxu0 0.0
    %3744 = vmatpush1.msra.mxu0 0.0
    %3745 = vmatprep.subr.mxu0 0.0
    %v3746 = vand.u32 %v82, 4294901760
    %3747 = vmatpush1.msra.mxu0 %v3746
    %3748 = vmatprep.subr.mxu0 0.0
    %3749 = vmatpush2.msra.mxu0 0.0
    %3750 = vmatprep.subr.mxu0 0.0
    %3751 = vmatpush2.msra.mxu0 0.0
    %3752 = vmatprep.subr.mxu0 0.0
    %3753 = vmatpush2.msra.mxu0 0.0
    %3754 = vmatprep.subr.mxu0 0.0
    %3755 = vmatpush2.msra.mxu0 0.0
    %3756 = vmatprep.subr.mxu0 0.0
    %3757 = vmatpush2.msra.mxu0 0.0
    %3758 = vmatprep.subr.mxu0 0.0
    %3759 = vmatpush2.msra.mxu0 0.0
    %3760 = vmatprep.subr.mxu0 0.0
    %3761 = vmatpush2.msra.mxu0 0.0
    %3762 = vmatprep.subr.mxu0 0.0
    %3763 = vmatpush2.msra.mxu0 0.0
    %3764 = vmatprep.subr.mxu0 0.0
    %3765 = vmatpush2.msra.mxu0 0.0
    %3766 = vmatprep.subr.mxu0 0.0
    %3767 = vmatpush2.msra.mxu0 0.0
    %3768 = vmatprep.subr.mxu0 0.0
    %3769 = vmatpush2.msra.mxu0 0.0
    %3770 = vmatprep.subr.mxu0 0.0
    %3771 = vmatpush2.msra.mxu0 0.0
    %3772 = vmatprep.subr.mxu0 0.0
    %3773 = vmatpush2.msra.mxu0 0.0
    %3774 = vmatprep.subr.mxu0 0.0
    %3775 = vmatpush2.msra.mxu0 0.0
    %3776 = vmatprep.subr.mxu0 0.0
    %3777 = vmatpush2.msra.mxu0 0.0
    %3778 = vmatprep.subr.mxu0 0.0
    %3779 = vmatpush2.msra.mxu0 0.0
    %3780 = vmatprep.mubr.f32.mxu0 0.0
    %v3781 = vand.u32 %v3339, 4294901760
    %3782 = vmatmul.mubr.f32.gmra.mxu0 %v3781
    %v3783 = vpop.f32.mrf.mxu0
    %v3784 = vadd.f32 %v3712, %v3783
    %v3785 = vpop.f32.mrf.mxu0
    %3786 = vdwg.mxu0
    %v3787 = vsel %vm589, %v650, 0
    %3789 = vmatprep.subr.mxu0 0.0
    %3790 = vmatpush1.msra.mxu0 0.0
    %3791 = vmatprep.subr.mxu0 0.0
    %3792 = vmatpush1.msra.mxu0 0.0
    %3793 = vmatprep.subr.mxu0 0.0
    %3794 = vmatpush1.msra.mxu0 0.0
    %3795 = vmatprep.subr.mxu0 0.0
    %3796 = vmatpush1.msra.mxu0 0.0
    %3797 = vmatprep.subr.mxu0 0.0
    %3798 = vmatpush1.msra.mxu0 0.0
    %3799 = vmatprep.subr.mxu0 0.0
    %3800 = vmatpush1.msra.mxu0 0.0
    %3801 = vmatprep.subr.mxu0 0.0
    %3802 = vmatpush1.msra.mxu0 0.0
    %3803 = vmatprep.subr.mxu0 0.0
    %3804 = vmatpush1.msra.mxu0 0.0
    %3805 = vmatprep.subr.mxu0 0.0
    %3806 = vmatpush1.msra.mxu0 0.0
    %3807 = vmatprep.subr.mxu0 0.0
    %3808 = vmatpush1.msra.mxu0 0.0
    %3809 = vmatprep.subr.mxu0 0.0
    %3810 = vmatpush1.msra.mxu0 0.0
    %3811 = vmatprep.subr.mxu0 0.0
    %3812 = vmatpush1.msra.mxu0 0.0
    %3813 = vmatprep.subr.mxu0 0.0
    %3814 = vmatpush1.msra.mxu0 0.0
    %3815 = vmatprep.subr.mxu0 0.0
    %3816 = vmatpush1.msra.mxu0 0.0
    %3817 = vmatprep.subr.mxu0 0.0
    %3818 = vmatpush1.msra.mxu0 0.0
    %3819 = vmatprep.subr.mxu0 0.0
    %v3820 = vand.u32 %v83, 4294901760
    %3821 = vmatpush1.msra.mxu0 %v3820
    %3822 = vmatprep.subr.mxu0 0.0
    %3823 = vmatpush2.msra.mxu0 0.0
    %3824 = vmatprep.subr.mxu0 0.0
    %3825 = vmatpush2.msra.mxu0 0.0
    %3826 = vmatprep.subr.mxu0 0.0
    %3827 = vmatpush2.msra.mxu0 0.0
    %3828 = vmatprep.subr.mxu0 0.0
    %3829 = vmatpush2.msra.mxu0 0.0
    %3830 = vmatprep.subr.mxu0 0.0
    %3831 = vmatpush2.msra.mxu0 0.0
    %3832 = vmatprep.subr.mxu0 0.0
    %3833 = vmatpush2.msra.mxu0 0.0
    %3834 = vmatprep.subr.mxu0 0.0
    %3835 = vmatpush2.msra.mxu0 0.0
    %3836 = vmatprep.subr.mxu0 0.0
    %3837 = vmatpush2.msra.mxu0 0.0
    %3838 = vmatprep.subr.mxu0 0.0
    %3839 = vmatpush2.msra.mxu0 0.0
    %3840 = vmatprep.subr.mxu0 0.0
    %3841 = vmatpush2.msra.mxu0 0.0
    %3842 = vmatprep.subr.mxu0 0.0
    %3843 = vmatpush2.msra.mxu0 0.0
    %3844 = vmatprep.subr.mxu0 0.0
    %3845 = vmatpush2.msra.mxu0 0.0
    %3846 = vmatprep.subr.mxu0 0.0
    %3847 = vmatpush2.msra.mxu0 0.0
    %3848 = vmatprep.subr.mxu0 0.0
    %3849 = vmatpush2.msra.mxu0 0.0
    %3850 = vmatprep.subr.mxu0 0.0
    %3851 = vmatpush2.msra.mxu0 0.0
    %3852 = vmatprep.subr.mxu0 0.0
    %3853 = vmatpush2.msra.mxu0 0.0
    %3854 = vmatprep.mubr.f32.mxu0 0.0
    %v3855 = vand.u32 %v3787, 4294901760
    %v3856 = vsub.f32 %v3787, %v3855
    %v3857 = vand.u32 %v3856, 4294901760
    %v3858 = vsub.f32 %v3856, %v3857
    %v3859 = vand.u32 %v3858, 4294901760
    %3860 = vmatmul.mubr.f32.gmra.mxu0 %v3859
    %v3861 = vpop.f32.mrf.mxu0
    %v3862 = vadd.f32 0.0, %v3861
    %v3863 = vpop.f32.mrf.mxu0
    %3864 = vdwg.mxu0
    %3865 = vmatprep.subr.mxu0 0.0
    %3866 = vmatpush1.msra.mxu0 0.0
    %3867 = vmatprep.subr.mxu0 0.0
    %3868 = vmatpush1.msra.mxu0 0.0
    %3869 = vmatprep.subr.mxu0 0.0
    %3870 = vmatpush1.msra.mxu0 0.0
    %3871 = vmatprep.subr.mxu0 0.0
    %3872 = vmatpush1.msra.mxu0 0.0
    %3873 = vmatprep.subr.mxu0 0.0
    %3874 = vmatpush1.msra.mxu0 0.0
    %3875 = vmatprep.subr.mxu0 0.0
    %3876 = vmatpush1.msra.mxu0 0.0
    %3877 = vmatprep.subr.mxu0 0.0
    %3878 = vmatpush1.msra.mxu0 0.0
    %3879 = vmatprep.subr.mxu0 0.0
    %3880 = vmatpush1.msra.mxu0 0.0
    %3881 = vmatprep.subr.mxu0 0.0
    %3882 = vmatpush1.msra.mxu0 0.0
    %3883 = vmatprep.subr.mxu0 0.0
    %3884 = vmatpush1.msra.mxu0 0.0
    %3885 = vmatprep.subr.mxu0 0.0
    %3886 = vmatpush1.msra.mxu0 0.0
    %3887 = vmatprep.subr.mxu0 0.0
    %3888 = vmatpush1.msra.mxu0 0.0
    %3889 = vmatprep.subr.mxu0 0.0
    %3890 = vmatpush1.msra.mxu0 0.0
    %3891 = vmatprep.subr.mxu0 0.0
    %3892 = vmatpush1.msra.mxu0 0.0
    %3893 = vmatprep.subr.mxu0 0.0
    %3894 = vmatpush1.msra.mxu0 0.0
    %3895 = vmatprep.subr.mxu0 0.0
    %v3896 = vand.u32 %v83, 4294901760
    %v3897 = vsub.f32 %v83, %v3896
    %v3898 = vand.u32 %v3897, 4294901760
    %v3899 = vsub.f32 %v3897, %v3898
    %v3900 = vand.u32 %v3899, 4294901760
    %3901 = vmatpush1.msra.mxu0 %v3900
    %3902 = vmatprep.subr.mxu0 0.0
    %3903 = vmatpush2.msra.mxu0 0.0
    %3904 = vmatprep.subr.mxu0 0.0
    %3905 = vmatpush2.msra.mxu0 0.0
    %3906 = vmatprep.subr.mxu0 0.0
    %3907 = vmatpush2.msra.mxu0 0.0
    %3908 = vmatprep.subr.mxu0 0.0
    %3909 = vmatpush2.msra.mxu0 0.0
    %3910 = vmatprep.subr.mxu0 0.0
    %3911 = vmatpush2.msra.mxu0 0.0
    %3912 = vmatprep.subr.mxu0 0.0
    %3913 = vmatpush2.msra.mxu0 0.0
    %3914 = vmatprep.subr.mxu0 0.0
    %3915 = vmatpush2.msra.mxu0 0.0
    %3916 = vmatprep.subr.mxu0 0.0
    %3917 = vmatpush2.msra.mxu0 0.0
    %3918 = vmatprep.subr.mxu0 0.0
    %3919 = vmatpush2.msra.mxu0 0.0
    %3920 = vmatprep.subr.mxu0 0.0
    %3921 = vmatpush2.msra.mxu0 0.0
    %3922 = vmatprep.subr.mxu0 0.0
    %3923 = vmatpush2.msra.mxu0 0.0
    %3924 = vmatprep.subr.mxu0 0.0
    %3925 = vmatpush2.msra.mxu0 0.0
    %3926 = vmatprep.subr.mxu0 0.0
    %3927 = vmatpush2.msra.mxu0 0.0
    %3928 = vmatprep.subr.mxu0 0.0
    %3929 = vmatpush2.msra.mxu0 0.0
    %3930 = vmatprep.subr.mxu0 0.0
    %3931 = vmatpush2.msra.mxu0 0.0
    %3932 = vmatprep.subr.mxu0 0.0
    %3933 = vmatpush2.msra.mxu0 0.0
    %3934 = vmatprep.mubr.f32.mxu0 0.0
    %v3935 = vand.u32 %v3787, 4294901760
    %3936 = vmatmul.mubr.f32.gmra.mxu0 %v3935
    %v3937 = vpop.f32.mrf.mxu0
    %v3938 = vadd.f32 %v3862, %v3937
    %v3939 = vpop.f32.mrf.mxu0
    %3940 = vdwg.mxu0
    %3941 = vmatprep.subr.mxu0 0.0
    %3942 = vmatpush1.msra.mxu0 0.0
    %3943 = vmatprep.subr.mxu0 0.0
    %3944 = vmatpush1.msra.mxu0 0.0
    %3945 = vmatprep.subr.mxu0 0.0
    %3946 = vmatpush1.msra.mxu0 0.0
    %3947 = vmatprep.subr.mxu0 0.0
    %3948 = vmatpush1.msra.mxu0 0.0
    %3949 = vmatprep.subr.mxu0 0.0
    %3950 = vmatpush1.msra.mxu0 0.0
    %3951 = vmatprep.subr.mxu0 0.0
    %3952 = vmatpush1.msra.mxu0 0.0
    %3953 = vmatprep.subr.mxu0 0.0
    %3954 = vmatpush1.msra.mxu0 0.0
    %3955 = vmatprep.subr.mxu0 0.0
    %3956 = vmatpush1.msra.mxu0 0.0
    %3957 = vmatprep.subr.mxu0 0.0
    %3958 = vmatpush1.msra.mxu0 0.0
    %3959 = vmatprep.subr.mxu0 0.0
    %3960 = vmatpush1.msra.mxu0 0.0
    %3961 = vmatprep.subr.mxu0 0.0
    %3962 = vmatpush1.msra.mxu0 0.0
    %3963 = vmatprep.subr.mxu0 0.0
    %3964 = vmatpush1.msra.mxu0 0.0
    %3965 = vmatprep.subr.mxu0 0.0
    %3966 = vmatpush1.msra.mxu0 0.0
    %3967 = vmatprep.subr.mxu0 0.0
    %3968 = vmatpush1.msra.mxu0 0.0
    %3969 = vmatprep.subr.mxu0 0.0
    %3970 = vmatpush1.msra.mxu0 0.0
    %3971 = vmatprep.subr.mxu0 0.0
    %v3972 = vand.u32 %v83, 4294901760
    %v3973 = vsub.f32 %v83, %v3972
    %3974 = vmatpush1.msra.mxu0 %v3973
    %3975 = vmatprep.subr.mxu0 0.0
    %3976 = vmatpush2.msra.mxu0 0.0
    %3977 = vmatprep.subr.mxu0 0.0
    %3978 = vmatpush2.msra.mxu0 0.0
    %3979 = vmatprep.subr.mxu0 0.0
    %3980 = vmatpush2.msra.mxu0 0.0
    %3981 = vmatprep.subr.mxu0 0.0
    %3982 = vmatpush2.msra.mxu0 0.0
    %3983 = vmatprep.subr.mxu0 0.0
    %3984 = vmatpush2.msra.mxu0 0.0
    %3985 = vmatprep.subr.mxu0 0.0
    %3986 = vmatpush2.msra.mxu0 0.0
    %3987 = vmatprep.subr.mxu0 0.0
    %3988 = vmatpush2.msra.mxu0 0.0
    %3989 = vmatprep.subr.mxu0 0.0
    %3990 = vmatpush2.msra.mxu0 0.0
    %3991 = vmatprep.subr.mxu0 0.0
    %3992 = vmatpush2.msra.mxu0 0.0
    %3993 = vmatprep.subr.mxu0 0.0
    %3994 = vmatpush2.msra.mxu0 0.0
    %3995 = vmatprep.subr.mxu0 0.0
    %3996 = vmatpush2.msra.mxu0 0.0
    %3997 = vmatprep.subr.mxu0 0.0
    %3998 = vmatpush2.msra.mxu0 0.0
    %3999 = vmatprep.subr.mxu0 0.0
    %4000 = vmatpush2.msra.mxu0 0.0
    %4001 = vmatprep.subr.mxu0 0.0
    %4002 = vmatpush2.msra.mxu0 0.0
    %4003 = vmatprep.subr.mxu0 0.0
    %4004 = vmatpush2.msra.mxu0 0.0
    %4005 = vmatprep.subr.mxu0 0.0
    %4006 = vmatpush2.msra.mxu0 0.0
    %4007 = vmatprep.mubr.f32.mxu0 0.0
    %v4008 = vand.u32 %v3787, 4294901760
    %v4009 = vsub.f32 %v3787, %v4008
    %4010 = vmatmul.mubr.f32.gmra.mxu0 %v4009
    %v4011 = vpop.f32.mrf.mxu0
    %v4012 = vadd.f32 %v3938, %v4011
    %v4013 = vpop.f32.mrf.mxu0
    %4014 = vdwg.mxu0
    %4015 = vmatprep.subr.mxu0 0.0
    %4016 = vmatpush1.msra.mxu0 0.0
    %4017 = vmatprep.subr.mxu0 0.0
    %4018 = vmatpush1.msra.mxu0 0.0
    %4019 = vmatprep.subr.mxu0 0.0
    %4020 = vmatpush1.msra.mxu0 0.0
    %4021 = vmatprep.subr.mxu0 0.0
    %4022 = vmatpush1.msra.mxu0 0.0
    %4023 = vmatprep.subr.mxu0 0.0
    %4024 = vmatpush1.msra.mxu0 0.0
    %4025 = vmatprep.subr.mxu0 0.0
    %4026 = vmatpush1.msra.mxu0 0.0
    %4027 = vmatprep.subr.mxu0 0.0
    %4028 = vmatpush1.msra.mxu0 0.0
    %4029 = vmatprep.subr.mxu0 0.0
    %4030 = vmatpush1.msra.mxu0 0.0
    %4031 = vmatprep.subr.mxu0 0.0
    %4032 = vmatpush1.msra.mxu0 0.0
    %4033 = vmatprep.subr.mxu0 0.0
    %4034 = vmatpush1.msra.mxu0 0.0
    %4035 = vmatprep.subr.mxu0 0.0
    %4036 = vmatpush1.msra.mxu0 0.0
    %4037 = vmatprep.subr.mxu0 0.0
    %4038 = vmatpush1.msra.mxu0 0.0
    %4039 = vmatprep.subr.mxu0 0.0
    %4040 = vmatpush1.msra.mxu0 0.0
    %4041 = vmatprep.subr.mxu0 0.0
    %4042 = vmatpush1.msra.mxu0 0.0
    %4043 = vmatprep.subr.mxu0 0.0
    %4044 = vmatpush1.msra.mxu0 0.0
    %4045 = vmatprep.subr.mxu0 0.0
    %v4046 = vand.u32 %v83, 4294901760
    %4047 = vmatpush1.msra.mxu0 %v4046
    %4048 = vmatprep.subr.mxu0 0.0
    %4049 = vmatpush2.msra.mxu0 0.0
    %4050 = vmatprep.subr.mxu0 0.0
    %4051 = vmatpush2.msra.mxu0 0.0
    %4052 = vmatprep.subr.mxu0 0.0
    %4053 = vmatpush2.msra.mxu0 0.0
    %4054 = vmatprep.subr.mxu0 0.0
    %4055 = vmatpush2.msra.mxu0 0.0
    %4056 = vmatprep.subr.mxu0 0.0
    %4057 = vmatpush2.msra.mxu0 0.0
    %4058 = vmatprep.subr.mxu0 0.0
    %4059 = vmatpush2.msra.mxu0 0.0
    %4060 = vmatprep.subr.mxu0 0.0
    %4061 = vmatpush2.msra.mxu0 0.0
    %4062 = vmatprep.subr.mxu0 0.0
    %4063 = vmatpush2.msra.mxu0 0.0
    %4064 = vmatprep.subr.mxu0 0.0
    %4065 = vmatpush2.msra.mxu0 0.0
    %4066 = vmatprep.subr.mxu0 0.0
    %4067 = vmatpush2.msra.mxu0 0.0
    %4068 = vmatprep.subr.mxu0 0.0
    %4069 = vmatpush2.msra.mxu0 0.0
    %4070 = vmatprep.subr.mxu0 0.0
    %4071 = vmatpush2.msra.mxu0 0.0
    %4072 = vmatprep.subr.mxu0 0.0
    %4073 = vmatpush2.msra.mxu0 0.0
    %4074 = vmatprep.subr.mxu0 0.0
    %4075 = vmatpush2.msra.mxu0 0.0
    %4076 = vmatprep.subr.mxu0 0.0
    %4077 = vmatpush2.msra.mxu0 0.0
    %4078 = vmatprep.subr.mxu0 0.0
    %4079 = vmatpush2.msra.mxu0 0.0
    %4080 = vmatprep.mubr.f32.mxu0 0.0
    %v4081 = vand.u32 %v3787, 4294901760
    %v4082 = vsub.f32 %v3787, %v4081
    %v4083 = vand.u32 %v4082, 4294901760
    %4084 = vmatmul.mubr.f32.gmra.mxu0 %v4083
    %v4085 = vpop.f32.mrf.mxu0
    %v4086 = vadd.f32 %v4012, %v4085
    %v4087 = vpop.f32.mrf.mxu0
    %4088 = vdwg.mxu0
    %4089 = vmatprep.subr.mxu0 0.0
    %4090 = vmatpush1.msra.mxu0 0.0
    %4091 = vmatprep.subr.mxu0 0.0
    %4092 = vmatpush1.msra.mxu0 0.0
    %4093 = vmatprep.subr.mxu0 0.0
    %4094 = vmatpush1.msra.mxu0 0.0
    %4095 = vmatprep.subr.mxu0 0.0
    %4096 = vmatpush1.msra.mxu0 0.0
    %4097 = vmatprep.subr.mxu0 0.0
    %4098 = vmatpush1.msra.mxu0 0.0
    %4099 = vmatprep.subr.mxu0 0.0
    %4100 = vmatpush1.msra.mxu0 0.0
    %4101 = vmatprep.subr.mxu0 0.0
    %4102 = vmatpush1.msra.mxu0 0.0
    %4103 = vmatprep.subr.mxu0 0.0
    %4104 = vmatpush1.msra.mxu0 0.0
    %4105 = vmatprep.subr.mxu0 0.0
    %4106 = vmatpush1.msra.mxu0 0.0
    %4107 = vmatprep.subr.mxu0 0.0
    %4108 = vmatpush1.msra.mxu0 0.0
    %4109 = vmatprep.subr.mxu0 0.0
    %4110 = vmatpush1.msra.mxu0 0.0
    %4111 = vmatprep.subr.mxu0 0.0
    %4112 = vmatpush1.msra.mxu0 0.0
    %4113 = vmatprep.subr.mxu0 0.0
    %4114 = vmatpush1.msra.mxu0 0.0
    %4115 = vmatprep.subr.mxu0 0.0
    %4116 = vmatpush1.msra.mxu0 0.0
    %4117 = vmatprep.subr.mxu0 0.0
    %4118 = vmatpush1.msra.mxu0 0.0
    %4119 = vmatprep.subr.mxu0 0.0
    %v4120 = vand.u32 %v83, 4294901760
    %v4121 = vsub.f32 %v83, %v4120
    %v4122 = vand.u32 %v4121, 4294901760
    %4123 = vmatpush1.msra.mxu0 %v4122
    %4124 = vmatprep.subr.mxu0 0.0
    %4125 = vmatpush2.msra.mxu0 0.0
    %4126 = vmatprep.subr.mxu0 0.0
    %4127 = vmatpush2.msra.mxu0 0.0
    %4128 = vmatprep.subr.mxu0 0.0
    %4129 = vmatpush2.msra.mxu0 0.0
    %4130 = vmatprep.subr.mxu0 0.0
    %4131 = vmatpush2.msra.mxu0 0.0
    %4132 = vmatprep.subr.mxu0 0.0
    %4133 = vmatpush2.msra.mxu0 0.0
    %4134 = vmatprep.subr.mxu0 0.0
    %4135 = vmatpush2.msra.mxu0 0.0
    %4136 = vmatprep.subr.mxu0 0.0
    %4137 = vmatpush2.msra.mxu0 0.0
    %4138 = vmatprep.subr.mxu0 0.0
    %4139 = vmatpush2.msra.mxu0 0.0
    %4140 = vmatprep.subr.mxu0 0.0
    %4141 = vmatpush2.msra.mxu0 0.0
    %4142 = vmatprep.subr.mxu0 0.0
    %4143 = vmatpush2.msra.mxu0 0.0
    %4144 = vmatprep.subr.mxu0 0.0
    %4145 = vmatpush2.msra.mxu0 0.0
    %4146 = vmatprep.subr.mxu0 0.0
    %4147 = vmatpush2.msra.mxu0 0.0
    %4148 = vmatprep.subr.mxu0 0.0
    %4149 = vmatpush2.msra.mxu0 0.0
    %4150 = vmatprep.subr.mxu0 0.0
    %4151 = vmatpush2.msra.mxu0 0.0
    %4152 = vmatprep.subr.mxu0 0.0
    %4153 = vmatpush2.msra.mxu0 0.0
    %4154 = vmatprep.subr.mxu0 0.0
    %4155 = vmatpush2.msra.mxu0 0.0
    %4156 = vmatprep.mubr.f32.mxu0 0.0
    %v4157 = vand.u32 %v3787, 4294901760
    %4158 = vmatmul.mubr.f32.gmra.mxu0 %v4157
    %v4159 = vpop.f32.mrf.mxu0
    %v4160 = vadd.f32 %v4086, %v4159
    %v4161 = vpop.f32.mrf.mxu0
    %4162 = vdwg.mxu0
    %4163 = vmatprep.subr.mxu0 0.0
    %4164 = vmatpush1.msra.mxu0 0.0
    %4165 = vmatprep.subr.mxu0 0.0
    %4166 = vmatpush1.msra.mxu0 0.0
    %4167 = vmatprep.subr.mxu0 0.0
    %4168 = vmatpush1.msra.mxu0 0.0
    %4169 = vmatprep.subr.mxu0 0.0
    %4170 = vmatpush1.msra.mxu0 0.0
    %4171 = vmatprep.subr.mxu0 0.0
    %4172 = vmatpush1.msra.mxu0 0.0
    %4173 = vmatprep.subr.mxu0 0.0
    %4174 = vmatpush1.msra.mxu0 0.0
    %4175 = vmatprep.subr.mxu0 0.0
    %4176 = vmatpush1.msra.mxu0 0.0
    %4177 = vmatprep.subr.mxu0 0.0
    %4178 = vmatpush1.msra.mxu0 0.0
    %4179 = vmatprep.subr.mxu0 0.0
    %4180 = vmatpush1.msra.mxu0 0.0
    %4181 = vmatprep.subr.mxu0 0.0
    %4182 = vmatpush1.msra.mxu0 0.0
    %4183 = vmatprep.subr.mxu0 0.0
    %4184 = vmatpush1.msra.mxu0 0.0
    %4185 = vmatprep.subr.mxu0 0.0
    %4186 = vmatpush1.msra.mxu0 0.0
    %4187 = vmatprep.subr.mxu0 0.0
    %4188 = vmatpush1.msra.mxu0 0.0
    %4189 = vmatprep.subr.mxu0 0.0
    %4190 = vmatpush1.msra.mxu0 0.0
    %4191 = vmatprep.subr.mxu0 0.0
    %4192 = vmatpush1.msra.mxu0 0.0
    %4193 = vmatprep.subr.mxu0 0.0
    %v4194 = vand.u32 %v83, 4294901760
    %4195 = vmatpush1.msra.mxu0 %v4194
    %4196 = vmatprep.subr.mxu0 0.0
    %4197 = vmatpush2.msra.mxu0 0.0
    %4198 = vmatprep.subr.mxu0 0.0
    %4199 = vmatpush2.msra.mxu0 0.0
    %4200 = vmatprep.subr.mxu0 0.0
    %4201 = vmatpush2.msra.mxu0 0.0
    %4202 = vmatprep.subr.mxu0 0.0
    %4203 = vmatpush2.msra.mxu0 0.0
    %4204 = vmatprep.subr.mxu0 0.0
    %4205 = vmatpush2.msra.mxu0 0.0
    %4206 = vmatprep.subr.mxu0 0.0
    %4207 = vmatpush2.msra.mxu0 0.0
    %4208 = vmatprep.subr.mxu0 0.0
    %4209 = vmatpush2.msra.mxu0 0.0
    %4210 = vmatprep.subr.mxu0 0.0
    %4211 = vmatpush2.msra.mxu0 0.0
    %4212 = vmatprep.subr.mxu0 0.0
    %4213 = vmatpush2.msra.mxu0 0.0
    %4214 = vmatprep.subr.mxu0 0.0
    %4215 = vmatpush2.msra.mxu0 0.0
    %4216 = vmatprep.subr.mxu0 0.0
    %4217 = vmatpush2.msra.mxu0 0.0
    %4218 = vmatprep.subr.mxu0 0.0
    %4219 = vmatpush2.msra.mxu0 0.0
    %4220 = vmatprep.subr.mxu0 0.0
    %4221 = vmatpush2.msra.mxu0 0.0
    %4222 = vmatprep.subr.mxu0 0.0
    %4223 = vmatpush2.msra.mxu0 0.0
    %4224 = vmatprep.subr.mxu0 0.0
    %4225 = vmatpush2.msra.mxu0 0.0
    %4226 = vmatprep.subr.mxu0 0.0
    %4227 = vmatpush2.msra.mxu0 0.0
    %4228 = vmatprep.mubr.f32.mxu0 0.0
    %v4229 = vand.u32 %v3787, 4294901760
    %4230 = vmatmul.mubr.f32.gmra.mxu0 %v4229
    %v4231 = vpop.f32.mrf.mxu0
    %v4232 = vadd.f32 %v4160, %v4231
    %v4233 = vpop.f32.mrf.mxu0
    %4234 = vdwg.mxu0
    %v4236 = vlaneseq
    %v4237 = vshrl.u32 %v4236, 7
    %v4238 = vsub.s32 0, %v4237
    %v4239 = vrot.slane %v96, %v4238
    %v4249 = vrot.slane %v1544, 7
    %vm4250 = vcmask 1041409
    %v4251 = vsel %vm4250, %v4249, %v1096
    %v4252 = vrot.slane %v1992, 6
    %vm4253 = vcmask 1042434
    %v4254 = vsel %vm4253, %v4252, %v4251
    %v4255 = vrot.slane %v2440, 5
    %vm4256 = vcmask 1043459
    %v4257 = vsel %vm4256, %v4255, %v4254
    %v4258 = vrot.slane %v2888, 4
    %vm4259 = vcmask 1044484
    %v4260 = vsel %vm4259, %v4258, %v4257
    %v4261 = vrot.slane %v3336, 3
    %vm4262 = vcmask 1045509
    %v4263 = vsel %vm4262, %v4261, %v4260
    %v4264 = vrot.slane %v3784, 2
    %vm4265 = vcmask 1046534
    %v4266 = vsel %vm4265, %v4264, %v4263
    %v4267 = vrot.slane %v4232, 1
    %vm4268 = vcmask 1047559
    %v4269 = vsel %vm4268, %v4267, %v4266
    %v4270 = vsel %vm100, %v4269, 0
    %4272 = vmatprep.subr.mxu0 0.0
    %4273 = vmatpush1.msra.mxu0 0.0
    %4274 = vmatprep.subr.mxu0 0.0
    %4275 = vmatpush1.msra.mxu0 0.0
    %4276 = vmatprep.subr.mxu0 0.0
    %4277 = vmatpush1.msra.mxu0 0.0
    %4278 = vmatprep.subr.mxu0 0.0
    %4279 = vmatpush1.msra.mxu0 0.0
    %4280 = vmatprep.subr.mxu0 0.0
    %4281 = vmatpush1.msra.mxu0 0.0
    %4282 = vmatprep.subr.mxu0 0.0
    %4283 = vmatpush1.msra.mxu0 0.0
    %4284 = vmatprep.subr.mxu0 0.0
    %4285 = vmatpush1.msra.mxu0 0.0
    %4286 = vmatprep.subr.mxu0 0.0
    %4287 = vmatpush1.msra.mxu0 0.0
    %4288 = vmatprep.subr.mxu0 0.0
    %4289 = vmatpush1.msra.mxu0 0.0
    %4290 = vmatprep.subr.mxu0 0.0
    %4291 = vmatpush1.msra.mxu0 0.0
    %4292 = vmatprep.subr.mxu0 0.0
    %4293 = vmatpush1.msra.mxu0 0.0
    %4294 = vmatprep.subr.mxu0 0.0
    %4295 = vmatpush1.msra.mxu0 0.0
    %4296 = vmatprep.subr.mxu0 0.0
    %v4297 = vand.u32 %v91, 4294901760
    %4298 = vmatpush1.msra.mxu0 %v4297
    %4299 = vmatprep.subr.mxu0 0.0
    %v4300 = vand.u32 %v90, 4294901760
    %4301 = vmatpush1.msra.mxu0 %v4300
    %4302 = vmatprep.subr.mxu0 0.0
    %v4303 = vand.u32 %v89, 4294901760
    %4304 = vmatpush1.msra.mxu0 %v4303
    %4305 = vmatprep.subr.mxu0 0.0
    %v4306 = vand.u32 %v88, 4294901760
    %4307 = vmatpush1.msra.mxu0 %v4306
    %4308 = vmatprep.subr.mxu0 0.0
    %4309 = vmatpush2.msra.mxu0 0.0
    %4310 = vmatprep.subr.mxu0 0.0
    %4311 = vmatpush2.msra.mxu0 0.0
    %4312 = vmatprep.subr.mxu0 0.0
    %4313 = vmatpush2.msra.mxu0 0.0
    %4314 = vmatprep.subr.mxu0 0.0
    %4315 = vmatpush2.msra.mxu0 0.0
    %4316 = vmatprep.subr.mxu0 0.0
    %4317 = vmatpush2.msra.mxu0 0.0
    %4318 = vmatprep.subr.mxu0 0.0
    %4319 = vmatpush2.msra.mxu0 0.0
    %4320 = vmatprep.subr.mxu0 0.0
    %4321 = vmatpush2.msra.mxu0 0.0
    %4322 = vmatprep.subr.mxu0 0.0
    %4323 = vmatpush2.msra.mxu0 0.0
    %4324 = vmatprep.subr.mxu0 0.0
    %4325 = vmatpush2.msra.mxu0 0.0
    %4326 = vmatprep.subr.mxu0 0.0
    %4327 = vmatpush2.msra.mxu0 0.0
    %4328 = vmatprep.subr.mxu0 0.0
    %4329 = vmatpush2.msra.mxu0 0.0
    %4330 = vmatprep.subr.mxu0 0.0
    %4331 = vmatpush2.msra.mxu0 0.0
    %4332 = vmatprep.subr.mxu0 0.0
    %4333 = vmatpush2.msra.mxu0 0.0
    %4334 = vmatprep.subr.mxu0 0.0
    %4335 = vmatpush2.msra.mxu0 0.0
    %4336 = vmatprep.subr.mxu0 0.0
    %4337 = vmatpush2.msra.mxu0 0.0
    %4338 = vmatprep.subr.mxu0 0.0
    %4339 = vmatpush2.msra.mxu0 0.0
    %4340 = vmatprep.mubr.f32.mxu0 0.0
    %v4341 = vand.u32 %v4270, 4294901760
    %v4342 = vsub.f32 %v4270, %v4341
    %v4343 = vand.u32 %v4342, 4294901760
    %v4344 = vsub.f32 %v4342, %v4343
    %v4345 = vand.u32 %v4344, 4294901760
    %4346 = vmatmul.mubr.f32.gmra.mxu0 %v4345
    %v4347 = vpop.f32.mrf.mxu0
    %v4348 = vadd.f32 %v4239, %v4347
    %v4349 = vpop.f32.mrf.mxu0
    %4350 = vdwg.mxu0
    %4351 = vmatprep.subr.mxu0 0.0
    %4352 = vmatpush1.msra.mxu0 0.0
    %4353 = vmatprep.subr.mxu0 0.0
    %4354 = vmatpush1.msra.mxu0 0.0
    %4355 = vmatprep.subr.mxu0 0.0
    %4356 = vmatpush1.msra.mxu0 0.0
    %4357 = vmatprep.subr.mxu0 0.0
    %4358 = vmatpush1.msra.mxu0 0.0
    %4359 = vmatprep.subr.mxu0 0.0
    %4360 = vmatpush1.msra.mxu0 0.0
    %4361 = vmatprep.subr.mxu0 0.0
    %4362 = vmatpush1.msra.mxu0 0.0
    %4363 = vmatprep.subr.mxu0 0.0
    %4364 = vmatpush1.msra.mxu0 0.0
    %4365 = vmatprep.subr.mxu0 0.0
    %4366 = vmatpush1.msra.mxu0 0.0
    %4367 = vmatprep.subr.mxu0 0.0
    %4368 = vmatpush1.msra.mxu0 0.0
    %4369 = vmatprep.subr.mxu0 0.0
    %4370 = vmatpush1.msra.mxu0 0.0
    %4371 = vmatprep.subr.mxu0 0.0
    %4372 = vmatpush1.msra.mxu0 0.0
    %4373 = vmatprep.subr.mxu0 0.0
    %4374 = vmatpush1.msra.mxu0 0.0
    %4375 = vmatprep.subr.mxu0 0.0
    %v4376 = vand.u32 %v91, 4294901760
    %v4377 = vsub.f32 %v91, %v4376
    %v4378 = vand.u32 %v4377, 4294901760
    %v4379 = vsub.f32 %v4377, %v4378
    %v4380 = vand.u32 %v4379, 4294901760
    %4381 = vmatpush1.msra.mxu0 %v4380
    %4382 = vmatprep.subr.mxu0 0.0
    %v4383 = vand.u32 %v90, 4294901760
    %v4384 = vsub.f32 %v90, %v4383
    %v4385 = vand.u32 %v4384, 4294901760
    %v4386 = vsub.f32 %v4384, %v4385
    %v4387 = vand.u32 %v4386, 4294901760
    %4388 = vmatpush1.msra.mxu0 %v4387
    %4389 = vmatprep.subr.mxu0 0.0
    %v4390 = vand.u32 %v89, 4294901760
    %v4391 = vsub.f32 %v89, %v4390
    %v4392 = vand.u32 %v4391, 4294901760
    %v4393 = vsub.f32 %v4391, %v4392
    %v4394 = vand.u32 %v4393, 4294901760
    %4395 = vmatpush1.msra.mxu0 %v4394
    %4396 = vmatprep.subr.mxu0 0.0
    %v4397 = vand.u32 %v88, 4294901760
    %v4398 = vsub.f32 %v88, %v4397
    %v4399 = vand.u32 %v4398, 4294901760
    %v4400 = vsub.f32 %v4398, %v4399
    %v4401 = vand.u32 %v4400, 4294901760
    %4402 = vmatpush1.msra.mxu0 %v4401
    %4403 = vmatprep.subr.mxu0 0.0
    %4404 = vmatpush2.msra.mxu0 0.0
    %4405 = vmatprep.subr.mxu0 0.0
    %4406 = vmatpush2.msra.mxu0 0.0
    %4407 = vmatprep.subr.mxu0 0.0
    %4408 = vmatpush2.msra.mxu0 0.0
    %4409 = vmatprep.subr.mxu0 0.0
    %4410 = vmatpush2.msra.mxu0 0.0
    %4411 = vmatprep.subr.mxu0 0.0
    %4412 = vmatpush2.msra.mxu0 0.0
    %4413 = vmatprep.subr.mxu0 0.0
    %4414 = vmatpush2.msra.mxu0 0.0
    %4415 = vmatprep.subr.mxu0 0.0
    %4416 = vmatpush2.msra.mxu0 0.0
    %4417 = vmatprep.subr.mxu0 0.0
    %4418 = vmatpush2.msra.mxu0 0.0
    %4419 = vmatprep.subr.mxu0 0.0
    %4420 = vmatpush2.msra.mxu0 0.0
    %4421 = vmatprep.subr.mxu0 0.0
    %4422 = vmatpush2.msra.mxu0 0.0
    %4423 = vmatprep.subr.mxu0 0.0
    %4424 = vmatpush2.msra.mxu0 0.0
    %4425 = vmatprep.subr.mxu0 0.0
    %4426 = vmatpush2.msra.mxu0 0.0
    %4427 = vmatprep.subr.mxu0 0.0
    %4428 = vmatpush2.msra.mxu0 0.0
    %4429 = vmatprep.subr.mxu0 0.0
    %4430 = vmatpush2.msra.mxu0 0.0
    %4431 = vmatprep.subr.mxu0 0.0
    %4432 = vmatpush2.msra.mxu0 0.0
    %4433 = vmatprep.subr.mxu0 0.0
    %4434 = vmatpush2.msra.mxu0 0.0
    %4435 = vmatprep.mubr.f32.mxu0 0.0
    %v4436 = vand.u32 %v4270, 4294901760
    %4437 = vmatmul.mubr.f32.gmra.mxu0 %v4436
    %v4438 = vpop.f32.mrf.mxu0
    %v4439 = vadd.f32 %v4348, %v4438
    %v4440 = vpop.f32.mrf.mxu0
    %4441 = vdwg.mxu0
    %4442 = vmatprep.subr.mxu0 0.0
    %4443 = vmatpush1.msra.mxu0 0.0
    %4444 = vmatprep.subr.mxu0 0.0
    %4445 = vmatpush1.msra.mxu0 0.0
    %4446 = vmatprep.subr.mxu0 0.0
    %4447 = vmatpush1.msra.mxu0 0.0
    %4448 = vmatprep.subr.mxu0 0.0
    %4449 = vmatpush1.msra.mxu0 0.0
    %4450 = vmatprep.subr.mxu0 0.0
    %4451 = vmatpush1.msra.mxu0 0.0
    %4452 = vmatprep.subr.mxu0 0.0
    %4453 = vmatpush1.msra.mxu0 0.0
    %4454 = vmatprep.subr.mxu0 0.0
    %4455 = vmatpush1.msra.mxu0 0.0
    %4456 = vmatprep.subr.mxu0 0.0
    %4457 = vmatpush1.msra.mxu0 0.0
    %4458 = vmatprep.subr.mxu0 0.0
    %4459 = vmatpush1.msra.mxu0 0.0
    %4460 = vmatprep.subr.mxu0 0.0
    %4461 = vmatpush1.msra.mxu0 0.0
    %4462 = vmatprep.subr.mxu0 0.0
    %4463 = vmatpush1.msra.mxu0 0.0
    %4464 = vmatprep.subr.mxu0 0.0
    %4465 = vmatpush1.msra.mxu0 0.0
    %4466 = vmatprep.subr.mxu0 0.0
    %v4467 = vand.u32 %v91, 4294901760
    %v4468 = vsub.f32 %v91, %v4467
    %4469 = vmatpush1.msra.mxu0 %v4468
    %4470 = vmatprep.subr.mxu0 0.0
    %v4471 = vand.u32 %v90, 4294901760
    %v4472 = vsub.f32 %v90, %v4471
    %4473 = vmatpush1.msra.mxu0 %v4472
    %4474 = vmatprep.subr.mxu0 0.0
    %v4475 = vand.u32 %v89, 4294901760
    %v4476 = vsub.f32 %v89, %v4475
    %4477 = vmatpush1.msra.mxu0 %v4476
    %4478 = vmatprep.subr.mxu0 0.0
    %v4479 = vand.u32 %v88, 4294901760
    %v4480 = vsub.f32 %v88, %v4479
    %4481 = vmatpush1.msra.mxu0 %v4480
    %4482 = vmatprep.subr.mxu0 0.0
    %4483 = vmatpush2.msra.mxu0 0.0
    %4484 = vmatprep.subr.mxu0 0.0
    %4485 = vmatpush2.msra.mxu0 0.0
    %4486 = vmatprep.subr.mxu0 0.0
    %4487 = vmatpush2.msra.mxu0 0.0
    %4488 = vmatprep.subr.mxu0 0.0
    %4489 = vmatpush2.msra.mxu0 0.0
    %4490 = vmatprep.subr.mxu0 0.0
    %4491 = vmatpush2.msra.mxu0 0.0
    %4492 = vmatprep.subr.mxu0 0.0
    %4493 = vmatpush2.msra.mxu0 0.0
    %4494 = vmatprep.subr.mxu0 0.0
    %4495 = vmatpush2.msra.mxu0 0.0
    %4496 = vmatprep.subr.mxu0 0.0
    %4497 = vmatpush2.msra.mxu0 0.0
    %4498 = vmatprep.subr.mxu0 0.0
    %4499 = vmatpush2.msra.mxu0 0.0
    %4500 = vmatprep.subr.mxu0 0.0
    %4501 = vmatpush2.msra.mxu0 0.0
    %4502 = vmatprep.subr.mxu0 0.0
    %4503 = vmatpush2.msra.mxu0 0.0
    %4504 = vmatprep.subr.mxu0 0.0
    %4505 = vmatpush2.msra.mxu0 0.0
    %4506 = vmatprep.subr.mxu0 0.0
    %4507 = vmatpush2.msra.mxu0 0.0
    %4508 = vmatprep.subr.mxu0 0.0
    %4509 = vmatpush2.msra.mxu0 0.0
    %4510 = vmatprep.subr.mxu0 0.0
    %4511 = vmatpush2.msra.mxu0 0.0
    %4512 = vmatprep.subr.mxu0 0.0
    %4513 = vmatpush2.msra.mxu0 0.0
    %4514 = vmatprep.mubr.f32.mxu0 0.0
    %v4515 = vand.u32 %v4270, 4294901760
    %v4516 = vsub.f32 %v4270, %v4515
    %4517 = vmatmul.mubr.f32.gmra.mxu0 %v4516
    %v4518 = vpop.f32.mrf.mxu0
    %v4519 = vadd.f32 %v4439, %v4518
    %v4520 = vpop.f32.mrf.mxu0
    %4521 = vdwg.mxu0
    %4522 = vmatprep.subr.mxu0 0.0
    %4523 = vmatpush1.msra.mxu0 0.0
    %4524 = vmatprep.subr.mxu0 0.0
    %4525 = vmatpush1.msra.mxu0 0.0
    %4526 = vmatprep.subr.mxu0 0.0
    %4527 = vmatpush1.msra.mxu0 0.0
    %4528 = vmatprep.subr.mxu0 0.0
    %4529 = vmatpush1.msra.mxu0 0.0
    %4530 = vmatprep.subr.mxu0 0.0
    %4531 = vmatpush1.msra.mxu0 0.0
    %4532 = vmatprep.subr.mxu0 0.0
    %4533 = vmatpush1.msra.mxu0 0.0
    %4534 = vmatprep.subr.mxu0 0.0
    %4535 = vmatpush1.msra.mxu0 0.0
    %4536 = vmatprep.subr.mxu0 0.0
    %4537 = vmatpush1.msra.mxu0 0.0
    %4538 = vmatprep.subr.mxu0 0.0
    %4539 = vmatpush1.msra.mxu0 0.0
    %4540 = vmatprep.subr.mxu0 0.0
    %4541 = vmatpush1.msra.mxu0 0.0
    %4542 = vmatprep.subr.mxu0 0.0
    %4543 = vmatpush1.msra.mxu0 0.0
    %4544 = vmatprep.subr.mxu0 0.0
    %4545 = vmatpush1.msra.mxu0 0.0
    %4546 = vmatprep.subr.mxu0 0.0
    %v4547 = vand.u32 %v91, 4294901760
    %4548 = vmatpush1.msra.mxu0 %v4547
    %4549 = vmatprep.subr.mxu0 0.0
    %v4550 = vand.u32 %v90, 4294901760
    %4551 = vmatpush1.msra.mxu0 %v4550
    %4552 = vmatprep.subr.mxu0 0.0
    %v4553 = vand.u32 %v89, 4294901760
    %4554 = vmatpush1.msra.mxu0 %v4553
    %4555 = vmatprep.subr.mxu0 0.0
    %v4556 = vand.u32 %v88, 4294901760
    %4557 = vmatpush1.msra.mxu0 %v4556
    %4558 = vmatprep.subr.mxu0 0.0
    %4559 = vmatpush2.msra.mxu0 0.0
    %4560 = vmatprep.subr.mxu0 0.0
    %4561 = vmatpush2.msra.mxu0 0.0
    %4562 = vmatprep.subr.mxu0 0.0
    %4563 = vmatpush2.msra.mxu0 0.0
    %4564 = vmatprep.subr.mxu0 0.0
    %4565 = vmatpush2.msra.mxu0 0.0
    %4566 = vmatprep.subr.mxu0 0.0
    %4567 = vmatpush2.msra.mxu0 0.0
    %4568 = vmatprep.subr.mxu0 0.0
    %4569 = vmatpush2.msra.mxu0 0.0
    %4570 = vmatprep.subr.mxu0 0.0
    %4571 = vmatpush2.msra.mxu0 0.0
    %4572 = vmatprep.subr.mxu0 0.0
    %4573 = vmatpush2.msra.mxu0 0.0
    %4574 = vmatprep.subr.mxu0 0.0
    %4575 = vmatpush2.msra.mxu0 0.0
    %4576 = vmatprep.subr.mxu0 0.0
    %4577 = vmatpush2.msra.mxu0 0.0
    %4578 = vmatprep.subr.mxu0 0.0
    %4579 = vmatpush2.msra.mxu0 0.0
    %4580 = vmatprep.subr.mxu0 0.0
    %4581 = vmatpush2.msra.mxu0 0.0
    %4582 = vmatprep.subr.mxu0 0.0
    %4583 = vmatpush2.msra.mxu0 0.0
    %4584 = vmatprep.subr.mxu0 0.0
    %4585 = vmatpush2.msra.mxu0 0.0
    %4586 = vmatprep.subr.mxu0 0.0
    %4587 = vmatpush2.msra.mxu0 0.0
    %4588 = vmatprep.subr.mxu0 0.0
    %4589 = vmatpush2.msra.mxu0 0.0
    %4590 = vmatprep.mubr.f32.mxu0 0.0
    %v4591 = vand.u32 %v4270, 4294901760
    %v4592 = vsub.f32 %v4270, %v4591
    %v4593 = vand.u32 %v4592, 4294901760
    %4594 = vmatmul.mubr.f32.gmra.mxu0 %v4593
    %v4595 = vpop.f32.mrf.mxu0
    %v4596 = vadd.f32 %v4519, %v4595
    %v4597 = vpop.f32.mrf.mxu0
    %4598 = vdwg.mxu0
    %4599 = vmatprep.subr.mxu0 0.0
    %4600 = vmatpush1.msra.mxu0 0.0
    %4601 = vmatprep.subr.mxu0 0.0
    %4602 = vmatpush1.msra.mxu0 0.0
    %4603 = vmatprep.subr.mxu0 0.0
    %4604 = vmatpush1.msra.mxu0 0.0
    %4605 = vmatprep.subr.mxu0 0.0
    %4606 = vmatpush1.msra.mxu0 0.0
    %4607 = vmatprep.subr.mxu0 0.0
    %4608 = vmatpush1.msra.mxu0 0.0
    %4609 = vmatprep.subr.mxu0 0.0
    %4610 = vmatpush1.msra.mxu0 0.0
    %4611 = vmatprep.subr.mxu0 0.0
    %4612 = vmatpush1.msra.mxu0 0.0
    %4613 = vmatprep.subr.mxu0 0.0
    %4614 = vmatpush1.msra.mxu0 0.0
    %4615 = vmatprep.subr.mxu0 0.0
    %4616 = vmatpush1.msra.mxu0 0.0
    %4617 = vmatprep.subr.mxu0 0.0
    %4618 = vmatpush1.msra.mxu0 0.0
    %4619 = vmatprep.subr.mxu0 0.0
    %4620 = vmatpush1.msra.mxu0 0.0
    %4621 = vmatprep.subr.mxu0 0.0
    %4622 = vmatpush1.msra.mxu0 0.0
    %4623 = vmatprep.subr.mxu0 0.0
    %v4624 = vand.u32 %v91, 4294901760
    %v4625 = vsub.f32 %v91, %v4624
    %v4626 = vand.u32 %v4625, 4294901760
    %4627 = vmatpush1.msra.mxu0 %v4626
    %4628 = vmatprep.subr.mxu0 0.0
    %v4629 = vand.u32 %v90, 4294901760
    %v4630 = vsub.f32 %v90, %v4629
    %v4631 = vand.u32 %v4630, 4294901760
    %4632 = vmatpush1.msra.mxu0 %v4631
    %4633 = vmatprep.subr.mxu0 0.0
    %v4634 = vand.u32 %v89, 4294901760
    %v4635 = vsub.f32 %v89, %v4634
    %v4636 = vand.u32 %v4635, 4294901760
    %4637 = vmatpush1.msra.mxu0 %v4636
    %4638 = vmatprep.subr.mxu0 0.0
    %v4639 = vand.u32 %v88, 4294901760
    %v4640 = vsub.f32 %v88, %v4639
    %v4641 = vand.u32 %v4640, 4294901760
    %4642 = vmatpush1.msra.mxu0 %v4641
    %4643 = vmatprep.subr.mxu0 0.0
    %4644 = vmatpush2.msra.mxu0 0.0
    %4645 = vmatprep.subr.mxu0 0.0
    %4646 = vmatpush2.msra.mxu0 0.0
    %4647 = vmatprep.subr.mxu0 0.0
    %4648 = vmatpush2.msra.mxu0 0.0
    %4649 = vmatprep.subr.mxu0 0.0
    %4650 = vmatpush2.msra.mxu0 0.0
    %4651 = vmatprep.subr.mxu0 0.0
    %4652 = vmatpush2.msra.mxu0 0.0
    %4653 = vmatprep.subr.mxu0 0.0
    %4654 = vmatpush2.msra.mxu0 0.0
    %4655 = vmatprep.subr.mxu0 0.0
    %4656 = vmatpush2.msra.mxu0 0.0
    %4657 = vmatprep.subr.mxu0 0.0
    %4658 = vmatpush2.msra.mxu0 0.0
    %4659 = vmatprep.subr.mxu0 0.0
    %4660 = vmatpush2.msra.mxu0 0.0
    %4661 = vmatprep.subr.mxu0 0.0
    %4662 = vmatpush2.msra.mxu0 0.0
    %4663 = vmatprep.subr.mxu0 0.0
    %4664 = vmatpush2.msra.mxu0 0.0
    %4665 = vmatprep.subr.mxu0 0.0
    %4666 = vmatpush2.msra.mxu0 0.0
    %4667 = vmatprep.subr.mxu0 0.0
    %4668 = vmatpush2.msra.mxu0 0.0
    %4669 = vmatprep.subr.mxu0 0.0
    %4670 = vmatpush2.msra.mxu0 0.0
    %4671 = vmatprep.subr.mxu0 0.0
    %4672 = vmatpush2.msra.mxu0 0.0
    %4673 = vmatprep.subr.mxu0 0.0
    %4674 = vmatpush2.msra.mxu0 0.0
    %4675 = vmatprep.mubr.f32.mxu0 0.0
    %v4676 = vand.u32 %v4270, 4294901760
    %4677 = vmatmul.mubr.f32.gmra.mxu0 %v4676
    %v4678 = vpop.f32.mrf.mxu0
    %v4679 = vadd.f32 %v4596, %v4678
    %v4680 = vpop.f32.mrf.mxu0
    %4681 = vdwg.mxu0
    %4682 = vmatprep.subr.mxu0 0.0
    %4683 = vmatpush1.msra.mxu0 0.0
    %4684 = vmatprep.subr.mxu0 0.0
    %4685 = vmatpush1.msra.mxu0 0.0
    %4686 = vmatprep.subr.mxu0 0.0
    %4687 = vmatpush1.msra.mxu0 0.0
    %4688 = vmatprep.subr.mxu0 0.0
    %4689 = vmatpush1.msra.mxu0 0.0
    %4690 = vmatprep.subr.mxu0 0.0
    %4691 = vmatpush1.msra.mxu0 0.0
    %4692 = vmatprep.subr.mxu0 0.0
    %4693 = vmatpush1.msra.mxu0 0.0
    %4694 = vmatprep.subr.mxu0 0.0
    %4695 = vmatpush1.msra.mxu0 0.0
    %4696 = vmatprep.subr.mxu0 0.0
    %4697 = vmatpush1.msra.mxu0 0.0
    %4698 = vmatprep.subr.mxu0 0.0
    %4699 = vmatpush1.msra.mxu0 0.0
    %4700 = vmatprep.subr.mxu0 0.0
    %4701 = vmatpush1.msra.mxu0 0.0
    %4702 = vmatprep.subr.mxu0 0.0
    %4703 = vmatpush1.msra.mxu0 0.0
    %4704 = vmatprep.subr.mxu0 0.0
    %4705 = vmatpush1.msra.mxu0 0.0
    %4706 = vmatprep.subr.mxu0 0.0
    %v4707 = vand.u32 %v91, 4294901760
    %4708 = vmatpush1.msra.mxu0 %v4707
    %4709 = vmatprep.subr.mxu0 0.0
    %v4710 = vand.u32 %v90, 4294901760
    %4711 = vmatpush1.msra.mxu0 %v4710
    %4712 = vmatprep.subr.mxu0 0.0
    %v4713 = vand.u32 %v89, 4294901760
    %4714 = vmatpush1.msra.mxu0 %v4713
    %4715 = vmatprep.subr.mxu0 0.0
    %v4716 = vand.u32 %v88, 4294901760
    %4717 = vmatpush1.msra.mxu0 %v4716
    %4718 = vmatprep.subr.mxu0 0.0
    %4719 = vmatpush2.msra.mxu0 0.0
    %4720 = vmatprep.subr.mxu0 0.0
    %4721 = vmatpush2.msra.mxu0 0.0
    %4722 = vmatprep.subr.mxu0 0.0
    %4723 = vmatpush2.msra.mxu0 0.0
    %4724 = vmatprep.subr.mxu0 0.0
    %4725 = vmatpush2.msra.mxu0 0.0
    %4726 = vmatprep.subr.mxu0 0.0
    %4727 = vmatpush2.msra.mxu0 0.0
    %4728 = vmatprep.subr.mxu0 0.0
    %4729 = vmatpush2.msra.mxu0 0.0
    %4730 = vmatprep.subr.mxu0 0.0
    %4731 = vmatpush2.msra.mxu0 0.0
    %4732 = vmatprep.subr.mxu0 0.0
    %4733 = vmatpush2.msra.mxu0 0.0
    %4734 = vmatprep.subr.mxu0 0.0
    %4735 = vmatpush2.msra.mxu0 0.0
    %4736 = vmatprep.subr.mxu0 0.0
    %4737 = vmatpush2.msra.mxu0 0.0
    %4738 = vmatprep.subr.mxu0 0.0
    %4739 = vmatpush2.msra.mxu0 0.0
    %4740 = vmatprep.subr.mxu0 0.0
    %4741 = vmatpush2.msra.mxu0 0.0
    %4742 = vmatprep.subr.mxu0 0.0
    %4743 = vmatpush2.msra.mxu0 0.0
    %4744 = vmatprep.subr.mxu0 0.0
    %4745 = vmatpush2.msra.mxu0 0.0
    %4746 = vmatprep.subr.mxu0 0.0
    %4747 = vmatpush2.msra.mxu0 0.0
    %4748 = vmatprep.subr.mxu0 0.0
    %4749 = vmatpush2.msra.mxu0 0.0
    %4750 = vmatprep.mubr.f32.mxu0 0.0
    %v4751 = vand.u32 %v4270, 4294901760
    %4752 = vmatmul.mubr.f32.gmra.mxu0 %v4751
    %v4753 = vpop.f32.mrf.mxu0
    %v4754 = vadd.f32 %v4679, %v4753
    %v4755 = vpop.f32.mrf.mxu0
    %4756 = vdwg.mxu0
    %4757 = vmatprep.subr.mxu0 0.0
    %4758 = vmatpush1.msra.mxu0 0.0
    %4759 = vmatprep.subr.mxu0 0.0
    %4760 = vmatpush1.msra.mxu0 0.0
    %4761 = vmatprep.subr.mxu0 0.0
    %4762 = vmatpush1.msra.mxu0 0.0
    %4763 = vmatprep.subr.mxu0 0.0
    %4764 = vmatpush1.msra.mxu0 0.0
    %4765 = vmatprep.subr.mxu0 0.0
    %4766 = vmatpush1.msra.mxu0 0.0
    %4767 = vmatprep.subr.mxu0 0.0
    %4768 = vmatpush1.msra.mxu0 0.0
    %4769 = vmatprep.subr.mxu0 0.0
    %4770 = vmatpush1.msra.mxu0 0.0
    %4771 = vmatprep.subr.mxu0 0.0
    %4772 = vmatpush1.msra.mxu0 0.0
    %4773 = vmatprep.subr.mxu0 0.0
    %4774 = vmatpush1.msra.mxu0 0.0
    %4775 = vmatprep.subr.mxu0 0.0
    %4776 = vmatpush1.msra.mxu0 0.0
    %4777 = vmatprep.subr.mxu0 0.0
    %4778 = vmatpush1.msra.mxu0 0.0
    %4779 = vmatprep.subr.mxu0 0.0
    %4780 = vmatpush1.msra.mxu0 0.0
    %4781 = vmatprep.subr.mxu0 0.0
    %v4782 = vand.u32 %v95, 4294901760
    %4783 = vmatpush1.msra.mxu0 %v4782
    %4784 = vmatprep.subr.mxu0 0.0
    %v4785 = vand.u32 %v94, 4294901760
    %4786 = vmatpush1.msra.mxu0 %v4785
    %4787 = vmatprep.subr.mxu0 0.0
    %v4788 = vand.u32 %v93, 4294901760
    %4789 = vmatpush1.msra.mxu0 %v4788
    %4790 = vmatprep.subr.mxu0 0.0
    %v4791 = vand.u32 %v92, 4294901760
    %4792 = vmatpush1.msra.mxu0 %v4791
    %4793 = vmatprep.subr.mxu0 0.0
    %4794 = vmatpush2.msra.mxu0 0.0
    %4795 = vmatprep.subr.mxu0 0.0
    %4796 = vmatpush2.msra.mxu0 0.0
    %4797 = vmatprep.subr.mxu0 0.0
    %4798 = vmatpush2.msra.mxu0 0.0
    %4799 = vmatprep.subr.mxu0 0.0
    %4800 = vmatpush2.msra.mxu0 0.0
    %4801 = vmatprep.subr.mxu0 0.0
    %4802 = vmatpush2.msra.mxu0 0.0
    %4803 = vmatprep.subr.mxu0 0.0
    %4804 = vmatpush2.msra.mxu0 0.0
    %4805 = vmatprep.subr.mxu0 0.0
    %4806 = vmatpush2.msra.mxu0 0.0
    %4807 = vmatprep.subr.mxu0 0.0
    %4808 = vmatpush2.msra.mxu0 0.0
    %4809 = vmatprep.subr.mxu0 0.0
    %4810 = vmatpush2.msra.mxu0 0.0
    %4811 = vmatprep.subr.mxu0 0.0
    %4812 = vmatpush2.msra.mxu0 0.0
    %4813 = vmatprep.subr.mxu0 0.0
    %4814 = vmatpush2.msra.mxu0 0.0
    %4815 = vmatprep.subr.mxu0 0.0
    %4816 = vmatpush2.msra.mxu0 0.0
    %4817 = vmatprep.subr.mxu0 0.0
    %4818 = vmatpush2.msra.mxu0 0.0
    %4819 = vmatprep.subr.mxu0 0.0
    %4820 = vmatpush2.msra.mxu0 0.0
    %4821 = vmatprep.subr.mxu0 0.0
    %4822 = vmatpush2.msra.mxu0 0.0
    %4823 = vmatprep.subr.mxu0 0.0
    %4824 = vmatpush2.msra.mxu0 0.0
    %4825 = vmatprep.mubr.f32.mxu0 0.0
    %v4826 = vand.u32 %v102, 4294901760
    %v4827 = vsub.f32 %v102, %v4826
    %v4828 = vand.u32 %v4827, 4294901760
    %v4829 = vsub.f32 %v4827, %v4828
    %v4830 = vand.u32 %v4829, 4294901760
    %4831 = vmatmul.mubr.f32.gmra.mxu0 %v4830
    %v4832 = vpop.f32.mrf.mxu0
    %v4833 = vadd.f32 0.0, %v4832
    %v4834 = vpop.f32.mrf.mxu0
    %4835 = vdwg.mxu0
    %4836 = vmatprep.subr.mxu0 0.0
    %4837 = vmatpush1.msra.mxu0 0.0
    %4838 = vmatprep.subr.mxu0 0.0
    %4839 = vmatpush1.msra.mxu0 0.0
    %4840 = vmatprep.subr.mxu0 0.0
    %4841 = vmatpush1.msra.mxu0 0.0
    %4842 = vmatprep.subr.mxu0 0.0
    %4843 = vmatpush1.msra.mxu0 0.0
    %4844 = vmatprep.subr.mxu0 0.0
    %4845 = vmatpush1.msra.mxu0 0.0
    %4846 = vmatprep.subr.mxu0 0.0
    %4847 = vmatpush1.msra.mxu0 0.0
    %4848 = vmatprep.subr.mxu0 0.0
    %4849 = vmatpush1.msra.mxu0 0.0
    %4850 = vmatprep.subr.mxu0 0.0
    %4851 = vmatpush1.msra.mxu0 0.0
    %4852 = vmatprep.subr.mxu0 0.0
    %4853 = vmatpush1.msra.mxu0 0.0
    %4854 = vmatprep.subr.mxu0 0.0
    %4855 = vmatpush1.msra.mxu0 0.0
    %4856 = vmatprep.subr.mxu0 0.0
    %4857 = vmatpush1.msra.mxu0 0.0
    %4858 = vmatprep.subr.mxu0 0.0
    %4859 = vmatpush1.msra.mxu0 0.0
    %4860 = vmatprep.subr.mxu0 0.0
    %v4861 = vand.u32 %v95, 4294901760
    %v4862 = vsub.f32 %v95, %v4861
    %v4863 = vand.u32 %v4862, 4294901760
    %v4864 = vsub.f32 %v4862, %v4863
    %v4865 = vand.u32 %v4864, 4294901760
    %4866 = vmatpush1.msra.mxu0 %v4865
    %4867 = vmatprep.subr.mxu0 0.0
    %v4868 = vand.u32 %v94, 4294901760
    %v4869 = vsub.f32 %v94, %v4868
    %v4870 = vand.u32 %v4869, 4294901760
    %v4871 = vsub.f32 %v4869, %v4870
    %v4872 = vand.u32 %v4871, 4294901760
    %4873 = vmatpush1.msra.mxu0 %v4872
    %4874 = vmatprep.subr.mxu0 0.0
    %v4875 = vand.u32 %v93, 4294901760
    %v4876 = vsub.f32 %v93, %v4875
    %v4877 = vand.u32 %v4876, 4294901760
    %v4878 = vsub.f32 %v4876, %v4877
    %v4879 = vand.u32 %v4878, 4294901760
    %4880 = vmatpush1.msra.mxu0 %v4879
    %4881 = vmatprep.subr.mxu0 0.0
    %v4882 = vand.u32 %v92, 4294901760
    %v4883 = vsub.f32 %v92, %v4882
    %v4884 = vand.u32 %v4883, 4294901760
    %v4885 = vsub.f32 %v4883, %v4884
    %v4886 = vand.u32 %v4885, 4294901760
    %4887 = vmatpush1.msra.mxu0 %v4886
    %4888 = vmatprep.subr.mxu0 0.0
    %4889 = vmatpush2.msra.mxu0 0.0
    %4890 = vmatprep.subr.mxu0 0.0
    %4891 = vmatpush2.msra.mxu0 0.0
    %4892 = vmatprep.subr.mxu0 0.0
    %4893 = vmatpush2.msra.mxu0 0.0
    %4894 = vmatprep.subr.mxu0 0.0
    %4895 = vmatpush2.msra.mxu0 0.0
    %4896 = vmatprep.subr.mxu0 0.0
    %4897 = vmatpush2.msra.mxu0 0.0
    %4898 = vmatprep.subr.mxu0 0.0
    %4899 = vmatpush2.msra.mxu0 0.0
    %4900 = vmatprep.subr.mxu0 0.0
    %4901 = vmatpush2.msra.mxu0 0.0
    %4902 = vmatprep.subr.mxu0 0.0
    %4903 = vmatpush2.msra.mxu0 0.0
    %4904 = vmatprep.subr.mxu0 0.0
    %4905 = vmatpush2.msra.mxu0 0.0
    %4906 = vmatprep.subr.mxu0 0.0
    %4907 = vmatpush2.msra.mxu0 0.0
    %4908 = vmatprep.subr.mxu0 0.0
    %4909 = vmatpush2.msra.mxu0 0.0
    %4910 = vmatprep.subr.mxu0 0.0
    %4911 = vmatpush2.msra.mxu0 0.0
    %4912 = vmatprep.subr.mxu0 0.0
    %4913 = vmatpush2.msra.mxu0 0.0
    %4914 = vmatprep.subr.mxu0 0.0
    %4915 = vmatpush2.msra.mxu0 0.0
    %4916 = vmatprep.subr.mxu0 0.0
    %4917 = vmatpush2.msra.mxu0 0.0
    %4918 = vmatprep.subr.mxu0 0.0
    %4919 = vmatpush2.msra.mxu0 0.0
    %4920 = vmatprep.mubr.f32.mxu0 0.0
    %v4921 = vand.u32 %v102, 4294901760
    %4922 = vmatmul.mubr.f32.gmra.mxu0 %v4921
    %v4923 = vpop.f32.mrf.mxu0
    %v4924 = vadd.f32 %v4833, %v4923
    %v4925 = vpop.f32.mrf.mxu0
    %4926 = vdwg.mxu0
    %4927 = vmatprep.subr.mxu0 0.0
    %4928 = vmatpush1.msra.mxu0 0.0
    %4929 = vmatprep.subr.mxu0 0.0
    %4930 = vmatpush1.msra.mxu0 0.0
    %4931 = vmatprep.subr.mxu0 0.0
    %4932 = vmatpush1.msra.mxu0 0.0
    %4933 = vmatprep.subr.mxu0 0.0
    %4934 = vmatpush1.msra.mxu0 0.0
    %4935 = vmatprep.subr.mxu0 0.0
    %4936 = vmatpush1.msra.mxu0 0.0
    %4937 = vmatprep.subr.mxu0 0.0
    %4938 = vmatpush1.msra.mxu0 0.0
    %4939 = vmatprep.subr.mxu0 0.0
    %4940 = vmatpush1.msra.mxu0 0.0
    %4941 = vmatprep.subr.mxu0 0.0
    %4942 = vmatpush1.msra.mxu0 0.0
    %4943 = vmatprep.subr.mxu0 0.0
    %4944 = vmatpush1.msra.mxu0 0.0
    %4945 = vmatprep.subr.mxu0 0.0
    %4946 = vmatpush1.msra.mxu0 0.0
    %4947 = vmatprep.subr.mxu0 0.0
    %4948 = vmatpush1.msra.mxu0 0.0
    %4949 = vmatprep.subr.mxu0 0.0
    %4950 = vmatpush1.msra.mxu0 0.0
    %4951 = vmatprep.subr.mxu0 0.0
    %v4952 = vand.u32 %v95, 4294901760
    %v4953 = vsub.f32 %v95, %v4952
    %4954 = vmatpush1.msra.mxu0 %v4953
    %4955 = vmatprep.subr.mxu0 0.0
    %v4956 = vand.u32 %v94, 4294901760
    %v4957 = vsub.f32 %v94, %v4956
    %4958 = vmatpush1.msra.mxu0 %v4957
    %4959 = vmatprep.subr.mxu0 0.0
    %v4960 = vand.u32 %v93, 4294901760
    %v4961 = vsub.f32 %v93, %v4960
    %4962 = vmatpush1.msra.mxu0 %v4961
    %4963 = vmatprep.subr.mxu0 0.0
    %v4964 = vand.u32 %v92, 4294901760
    %v4965 = vsub.f32 %v92, %v4964
    %4966 = vmatpush1.msra.mxu0 %v4965
    %4967 = vmatprep.subr.mxu0 0.0
    %4968 = vmatpush2.msra.mxu0 0.0
    %4969 = vmatprep.subr.mxu0 0.0
    %4970 = vmatpush2.msra.mxu0 0.0
    %4971 = vmatprep.subr.mxu0 0.0
    %4972 = vmatpush2.msra.mxu0 0.0
    %4973 = vmatprep.subr.mxu0 0.0
    %4974 = vmatpush2.msra.mxu0 0.0
    %4975 = vmatprep.subr.mxu0 0.0
    %4976 = vmatpush2.msra.mxu0 0.0
    %4977 = vmatprep.subr.mxu0 0.0
    %4978 = vmatpush2.msra.mxu0 0.0
    %4979 = vmatprep.subr.mxu0 0.0
    %4980 = vmatpush2.msra.mxu0 0.0
    %4981 = vmatprep.subr.mxu0 0.0
    %4982 = vmatpush2.msra.mxu0 0.0
    %4983 = vmatprep.subr.mxu0 0.0
    %4984 = vmatpush2.msra.mxu0 0.0
    %4985 = vmatprep.subr.mxu0 0.0
    %4986 = vmatpush2.msra.mxu0 0.0
    %4987 = vmatprep.subr.mxu0 0.0
    %4988 = vmatpush2.msra.mxu0 0.0
    %4989 = vmatprep.subr.mxu0 0.0
    %4990 = vmatpush2.msra.mxu0 0.0
    %4991 = vmatprep.subr.mxu0 0.0
    %4992 = vmatpush2.msra.mxu0 0.0
    %4993 = vmatprep.subr.mxu0 0.0
    %4994 = vmatpush2.msra.mxu0 0.0
    %4995 = vmatprep.subr.mxu0 0.0
    %4996 = vmatpush2.msra.mxu0 0.0
    %4997 = vmatprep.subr.mxu0 0.0
    %4998 = vmatpush2.msra.mxu0 0.0
    %4999 = vmatprep.mubr.f32.mxu0 0.0
    %v5000 = vand.u32 %v102, 4294901760
    %v5001 = vsub.f32 %v102, %v5000
    %5002 = vmatmul.mubr.f32.gmra.mxu0 %v5001
    %v5003 = vpop.f32.mrf.mxu0
    %v5004 = vadd.f32 %v4924, %v5003
    %v5005 = vpop.f32.mrf.mxu0
    %5006 = vdwg.mxu0
    %5007 = vmatprep.subr.mxu0 0.0
    %5008 = vmatpush1.msra.mxu0 0.0
    %5009 = vmatprep.subr.mxu0 0.0
    %5010 = vmatpush1.msra.mxu0 0.0
    %5011 = vmatprep.subr.mxu0 0.0
    %5012 = vmatpush1.msra.mxu0 0.0
    %5013 = vmatprep.subr.mxu0 0.0
    %5014 = vmatpush1.msra.mxu0 0.0
    %5015 = vmatprep.subr.mxu0 0.0
    %5016 = vmatpush1.msra.mxu0 0.0
    %5017 = vmatprep.subr.mxu0 0.0
    %5018 = vmatpush1.msra.mxu0 0.0
    %5019 = vmatprep.subr.mxu0 0.0
    %5020 = vmatpush1.msra.mxu0 0.0
    %5021 = vmatprep.subr.mxu0 0.0
    %5022 = vmatpush1.msra.mxu0 0.0
    %5023 = vmatprep.subr.mxu0 0.0
    %5024 = vmatpush1.msra.mxu0 0.0
    %5025 = vmatprep.subr.mxu0 0.0
    %5026 = vmatpush1.msra.mxu0 0.0
    %5027 = vmatprep.subr.mxu0 0.0
    %5028 = vmatpush1.msra.mxu0 0.0
    %5029 = vmatprep.subr.mxu0 0.0
    %5030 = vmatpush1.msra.mxu0 0.0
    %5031 = vmatprep.subr.mxu0 0.0
    %v5032 = vand.u32 %v95, 4294901760
    %5033 = vmatpush1.msra.mxu0 %v5032
    %5034 = vmatprep.subr.mxu0 0.0
    %v5035 = vand.u32 %v94, 4294901760
    %5036 = vmatpush1.msra.mxu0 %v5035
    %5037 = vmatprep.subr.mxu0 0.0
    %v5038 = vand.u32 %v93, 4294901760
    %5039 = vmatpush1.msra.mxu0 %v5038
    %5040 = vmatprep.subr.mxu0 0.0
    %v5041 = vand.u32 %v92, 4294901760
    %5042 = vmatpush1.msra.mxu0 %v5041
    %5043 = vmatprep.subr.mxu0 0.0
    %5044 = vmatpush2.msra.mxu0 0.0
    %5045 = vmatprep.subr.mxu0 0.0
    %5046 = vmatpush2.msra.mxu0 0.0
    %5047 = vmatprep.subr.mxu0 0.0
    %5048 = vmatpush2.msra.mxu0 0.0
    %5049 = vmatprep.subr.mxu0 0.0
    %5050 = vmatpush2.msra.mxu0 0.0
    %5051 = vmatprep.subr.mxu0 0.0
    %5052 = vmatpush2.msra.mxu0 0.0
    %5053 = vmatprep.subr.mxu0 0.0
    %5054 = vmatpush2.msra.mxu0 0.0
    %5055 = vmatprep.subr.mxu0 0.0
    %5056 = vmatpush2.msra.mxu0 0.0
    %5057 = vmatprep.subr.mxu0 0.0
    %5058 = vmatpush2.msra.mxu0 0.0
    %5059 = vmatprep.subr.mxu0 0.0
    %5060 = vmatpush2.msra.mxu0 0.0
    %5061 = vmatprep.subr.mxu0 0.0
    %5062 = vmatpush2.msra.mxu0 0.0
    %5063 = vmatprep.subr.mxu0 0.0
    %5064 = vmatpush2.msra.mxu0 0.0
    %5065 = vmatprep.subr.mxu0 0.0
    %5066 = vmatpush2.msra.mxu0 0.0
    %5067 = vmatprep.subr.mxu0 0.0
    %5068 = vmatpush2.msra.mxu0 0.0
    %5069 = vmatprep.subr.mxu0 0.0
    %5070 = vmatpush2.msra.mxu0 0.0
    %5071 = vmatprep.subr.mxu0 0.0
    %5072 = vmatpush2.msra.mxu0 0.0
    %5073 = vmatprep.subr.mxu0 0.0
    %5074 = vmatpush2.msra.mxu0 0.0
    %5075 = vmatprep.mubr.f32.mxu0 0.0
    %v5076 = vand.u32 %v102, 4294901760
    %v5077 = vsub.f32 %v102, %v5076
    %v5078 = vand.u32 %v5077, 4294901760
    %5079 = vmatmul.mubr.f32.gmra.mxu0 %v5078
    %v5080 = vpop.f32.mrf.mxu0
    %v5081 = vadd.f32 %v5004, %v5080
    %v5082 = vpop.f32.mrf.mxu0
    %5083 = vdwg.mxu0
    %5084 = vmatprep.subr.mxu0 0.0
    %5085 = vmatpush1.msra.mxu0 0.0
    %5086 = vmatprep.subr.mxu0 0.0
    %5087 = vmatpush1.msra.mxu0 0.0
    %5088 = vmatprep.subr.mxu0 0.0
    %5089 = vmatpush1.msra.mxu0 0.0
    %5090 = vmatprep.subr.mxu0 0.0
    %5091 = vmatpush1.msra.mxu0 0.0
    %5092 = vmatprep.subr.mxu0 0.0
    %5093 = vmatpush1.msra.mxu0 0.0
    %5094 = vmatprep.subr.mxu0 0.0
    %5095 = vmatpush1.msra.mxu0 0.0
    %5096 = vmatprep.subr.mxu0 0.0
    %5097 = vmatpush1.msra.mxu0 0.0
    %5098 = vmatprep.subr.mxu0 0.0
    %5099 = vmatpush1.msra.mxu0 0.0
    %5100 = vmatprep.subr.mxu0 0.0
    %5101 = vmatpush1.msra.mxu0 0.0
    %5102 = vmatprep.subr.mxu0 0.0
    %5103 = vmatpush1.msra.mxu0 0.0
    %5104 = vmatprep.subr.mxu0 0.0
    %5105 = vmatpush1.msra.mxu0 0.0
    %5106 = vmatprep.subr.mxu0 0.0
    %5107 = vmatpush1.msra.mxu0 0.0
    %5108 = vmatprep.subr.mxu0 0.0
    %v5109 = vand.u32 %v95, 4294901760
    %v5110 = vsub.f32 %v95, %v5109
    %v5111 = vand.u32 %v5110, 4294901760
    %5112 = vmatpush1.msra.mxu0 %v5111
    %5113 = vmatprep.subr.mxu0 0.0
    %v5114 = vand.u32 %v94, 4294901760
    %v5115 = vsub.f32 %v94, %v5114
    %v5116 = vand.u32 %v5115, 4294901760
    %5117 = vmatpush1.msra.mxu0 %v5116
    %5118 = vmatprep.subr.mxu0 0.0
    %v5119 = vand.u32 %v93, 4294901760
    %v5120 = vsub.f32 %v93, %v5119
    %v5121 = vand.u32 %v5120, 4294901760
    %5122 = vmatpush1.msra.mxu0 %v5121
    %5123 = vmatprep.subr.mxu0 0.0
    %v5124 = vand.u32 %v92, 4294901760
    %v5125 = vsub.f32 %v92, %v5124
    %v5126 = vand.u32 %v5125, 4294901760
    %5127 = vmatpush1.msra.mxu0 %v5126
    %5128 = vmatprep.subr.mxu0 0.0
    %5129 = vmatpush2.msra.mxu0 0.0
    %5130 = vmatprep.subr.mxu0 0.0
    %5131 = vmatpush2.msra.mxu0 0.0
    %5132 = vmatprep.subr.mxu0 0.0
    %5133 = vmatpush2.msra.mxu0 0.0
    %5134 = vmatprep.subr.mxu0 0.0
    %5135 = vmatpush2.msra.mxu0 0.0
    %5136 = vmatprep.subr.mxu0 0.0
    %5137 = vmatpush2.msra.mxu0 0.0
    %5138 = vmatprep.subr.mxu0 0.0
    %5139 = vmatpush2.msra.mxu0 0.0
    %5140 = vmatprep.subr.mxu0 0.0
    %5141 = vmatpush2.msra.mxu0 0.0
    %5142 = vmatprep.subr.mxu0 0.0
    %5143 = vmatpush2.msra.mxu0 0.0
    %5144 = vmatprep.subr.mxu0 0.0
    %5145 = vmatpush2.msra.mxu0 0.0
    %5146 = vmatprep.subr.mxu0 0.0
    %5147 = vmatpush2.msra.mxu0 0.0
    %5148 = vmatprep.subr.mxu0 0.0
    %5149 = vmatpush2.msra.mxu0 0.0
    %5150 = vmatprep.subr.mxu0 0.0
    %5151 = vmatpush2.msra.mxu0 0.0
    %5152 = vmatprep.subr.mxu0 0.0
    %5153 = vmatpush2.msra.mxu0 0.0
    %5154 = vmatprep.subr.mxu0 0.0
    %5155 = vmatpush2.msra.mxu0 0.0
    %5156 = vmatprep.subr.mxu0 0.0
    %5157 = vmatpush2.msra.mxu0 0.0
    %5158 = vmatprep.subr.mxu0 0.0
    %5159 = vmatpush2.msra.mxu0 0.0
    %5160 = vmatprep.mubr.f32.mxu0 0.0
    %v5161 = vand.u32 %v102, 4294901760
    %5162 = vmatmul.mubr.f32.gmra.mxu0 %v5161
    %v5163 = vpop.f32.mrf.mxu0
    %v5164 = vadd.f32 %v5081, %v5163
    %v5165 = vpop.f32.mrf.mxu0
    %5166 = vdwg.mxu0
    %5167 = vmatprep.subr.mxu0 0.0
    %5168 = vmatpush1.msra.mxu0 0.0
    %5169 = vmatprep.subr.mxu0 0.0
    %5170 = vmatpush1.msra.mxu0 0.0
    %5171 = vmatprep.subr.mxu0 0.0
    %5172 = vmatpush1.msra.mxu0 0.0
    %5173 = vmatprep.subr.mxu0 0.0
    %5174 = vmatpush1.msra.mxu0 0.0
    %5175 = vmatprep.subr.mxu0 0.0
    %5176 = vmatpush1.msra.mxu0 0.0
    %5177 = vmatprep.subr.mxu0 0.0
    %5178 = vmatpush1.msra.mxu0 0.0
    %5179 = vmatprep.subr.mxu0 0.0
    %5180 = vmatpush1.msra.mxu0 0.0
    %5181 = vmatprep.subr.mxu0 0.0
    %5182 = vmatpush1.msra.mxu0 0.0
    %5183 = vmatprep.subr.mxu0 0.0
    %5184 = vmatpush1.msra.mxu0 0.0
    %5185 = vmatprep.subr.mxu0 0.0
    %5186 = vmatpush1.msra.mxu0 0.0
    %5187 = vmatprep.subr.mxu0 0.0
    %5188 = vmatpush1.msra.mxu0 0.0
    %5189 = vmatprep.subr.mxu0 0.0
    %5190 = vmatpush1.msra.mxu0 0.0
    %5191 = vmatprep.subr.mxu0 0.0
    %v5192 = vand.u32 %v95, 4294901760
    %5193 = vmatpush1.msra.mxu0 %v5192
    %5194 = vmatprep.subr.mxu0 0.0
    %v5195 = vand.u32 %v94, 4294901760
    %5196 = vmatpush1.msra.mxu0 %v5195
    %5197 = vmatprep.subr.mxu0 0.0
    %v5198 = vand.u32 %v93, 4294901760
    %5199 = vmatpush1.msra.mxu0 %v5198
    %5200 = vmatprep.subr.mxu0 0.0
    %v5201 = vand.u32 %v92, 4294901760
    %5202 = vmatpush1.msra.mxu0 %v5201
    %5203 = vmatprep.subr.mxu0 0.0
    %5204 = vmatpush2.msra.mxu0 0.0
    %5205 = vmatprep.subr.mxu0 0.0
    %5206 = vmatpush2.msra.mxu0 0.0
    %5207 = vmatprep.subr.mxu0 0.0
    %5208 = vmatpush2.msra.mxu0 0.0
    %5209 = vmatprep.subr.mxu0 0.0
    %5210 = vmatpush2.msra.mxu0 0.0
    %5211 = vmatprep.subr.mxu0 0.0
    %5212 = vmatpush2.msra.mxu0 0.0
    %5213 = vmatprep.subr.mxu0 0.0
    %5214 = vmatpush2.msra.mxu0 0.0
    %5215 = vmatprep.subr.mxu0 0.0
    %5216 = vmatpush2.msra.mxu0 0.0
    %5217 = vmatprep.subr.mxu0 0.0
    %5218 = vmatpush2.msra.mxu0 0.0
    %5219 = vmatprep.subr.mxu0 0.0
    %5220 = vmatpush2.msra.mxu0 0.0
    %5221 = vmatprep.subr.mxu0 0.0
    %5222 = vmatpush2.msra.mxu0 0.0
    %5223 = vmatprep.subr.mxu0 0.0
    %5224 = vmatpush2.msra.mxu0 0.0
    %5225 = vmatprep.subr.mxu0 0.0
    %5226 = vmatpush2.msra.mxu0 0.0
    %5227 = vmatprep.subr.mxu0 0.0
    %5228 = vmatpush2.msra.mxu0 0.0
    %5229 = vmatprep.subr.mxu0 0.0
    %5230 = vmatpush2.msra.mxu0 0.0
    %5231 = vmatprep.subr.mxu0 0.0
    %5232 = vmatpush2.msra.mxu0 0.0
    %5233 = vmatprep.subr.mxu0 0.0
    %5234 = vmatpush2.msra.mxu0 0.0
    %5235 = vmatprep.mubr.f32.mxu0 0.0
    %v5236 = vand.u32 %v102, 4294901760
    %5237 = vmatmul.mubr.f32.gmra.mxu0 %v5236
    %v5238 = vpop.f32.mrf.mxu0
    %v5239 = vadd.f32 %v5164, %v5238
    %v5240 = vpop.f32.mrf.mxu0
    %5241 = vdwg.mxu0
    %v5242 = vadd.f32 %v4754, %v5239
    %v5243 = vxor.u32 %v5242, 2147483648
    %v5244 = vmul.f32 %v5243, 1.442695
    %v5245 = vpow.pop %v5244
    %v5246 = vadd.f32 %v5245, 1.0
    %v5247 = vrcp.pop %v5246
    %v5248 = vmul.f32 1.0, %v5247
    %v5250 = vlaneseq
    %v5251 = vshrl.u32 %v5250, 7
    %v5252 = vsub.s32 0, %v5251
    %v5253 = vrot.slane %v97, %v5252
    %5254 = vrot.lane.b32.xlu0 %v5253, 64
    %v5255 = vpop.permute.xlu0 %5254
    %v5257 = vadd.f32 %v5239, %v5255
    %5259 = vrot.lane.b32.xlu0 %v5257, 64
    %v5260 = vpop.permute.xlu0 %5259
    %v5262 = vmul.f32 %v5248, %v5260
    %5264 = vrot.lane.b32.xlu0 %v5262, 64
    %v5265 = vpop.permute.xlu0 %5264
    %v5267 = vadd.f32 %v4754, %v5265
    %v5268 = vtanh.pop %v5267
    %v5269 = vsub.f32 1.0, %v5248
    %5271 = vrot.lane.b32.xlu0 %v5268, 96
    %v5272 = vpop.permute.xlu0 %5271
    %v5274 = vmul.f32 %v5269, %v5272
    %5275 = vrot.lane.b32.xlu0 %v98, 32
    %v5276 = vpop.permute.xlu0 %5275
    %v5278 = vmul.f32 %v5248, %v5276
    %v5279 = vadd.f32 %v5274, %v5278
    %5281 = vrot.lane.b32.xlu0 %v5279, 96
    %v5282 = vpop.permute.xlu0 %5281
    %5284 = vst.msk [vmem:[#allocation9] sm:$0xff] %vm100, %v5282
    %5285 = vst.msk [vmem:[#allocation2] sm:$0xff] %vm100, %v5282
    // Predicated region
    $region50: #{tpu_custom_call.1} parent=1 // pred_check
      _
    $region51: #{tpu_custom_call.1} parent=1 // pred_check_branch
      %5287 = sbr.rel (0) target = $region53
    $region52: #{tpu_custom_call.1} parent=1 // pred_region
      %s5289 = ssub.s32 128, 128
      %5290 = vsyncadd [#allocation5], %s5289
      %s5292 = sshll.u32 [#allocation9], 4
      %s5293 = int_to_ptr.vmem [resolvable:$true] %s5292
      %5295 = dma.vmem_to_hbm [thread:$0]  %s5293, 128, %s8, [#allocation5]
    $region53: #{tpu_custom_call.1} parent=1 // pred_fallthru
      _
    // Predicated region
    $region54: #{tpu_custom_call.1} parent=1 // pred_check
      _
    $region55: #{tpu_custom_call.1} parent=1 // pred_check_branch
      %5297 = sbr.rel (0) target = $region57
    $region56: #{tpu_custom_call.1} parent=1 // pred_region
      %5298 = dma.done [#allocation5], 128
    $region57: #{tpu_custom_call.1} parent=1 // pred_fallthru
      _
    %5299 = vsyncpa [#allocation4], 1
    %5300 = vsyncpa [#allocation7], 1
    %5301 = vsyncpa [#allocation5], 1

</llo_original>
